<compile_context>
chip_gen: v5e
topology: v5e:2x2
jax: 0.10.0
libtpu: 0.0.40
codegen_flags: <defaults>
</compile_context>

<pallas_src>
import functools

import jax
import jax.numpy as jnp
from jax import lax
from jax.experimental import pallas as pl
from jax.experimental.pallas import tpu as pltpu

NEG_SLOPE = 0.2


def _round_up(n, m):
    return ((n + m - 1) // m) * m


def _layer_cfg(H, Cin, Cout, K, pad):
    """Static geometry for one stride-2 conv implemented as a stride-1 2x2
    conv on a space-to-depth input with flattened spatial dims."""
    OH = (H + 2 * pad - K) // 2 + 1            # torch output size (square)
    He = H + 2 * pad
    Ht = max(He + (He % 2), 2 * OH + 2)        # padded (even) spatial size
    Ht += Ht % 2
    Hs = Ht // 2                               # space-to-depth spatial size
    Wq = Hs                                    # flattened row width
    Mp = _round_up(OH * Wq, 8)                 # sublane-aligned matmul M
    Lin = _round_up(max(Hs * Hs, Wq + 1 + Mp), 8)
    return dict(H=H, pad=pad, OH=OH, Ht=Ht, Hs=Hs, Wq=Wq, Mp=Mp, Lin=Lin,
                Cin=Cin, Cout=Cout, C4=4 * Cin)


CFG1 = _layer_cfg(32, 3, 64, 4, 0)      # -> (B, 15, 15, 64)
CFG2 = _layer_cfg(15, 64, 128, 4, 1)    # -> (B, 7, 7, 128)
CFG3 = _layer_cfg(7, 128, 256, 3, 1)    # -> (B, 4, 4, 256)


# ------------------------- conv (stride-2) kernel -------------------------- #

def _make_conv_kernel(Wq, Mp):
    tap_starts = tuple(a * Wq + b for a in range(2) for b in range(2))

    def kernel(x_ref, w_ref, b_ref, o_ref):
        # x_ref: (Lin, 4*Cin) bf16 ; w_ref: (4, 4*Cin, Cout) bf16
        # b_ref: (1, Cout) f32     ; o_ref: (Mp, Cout) bf16
        acc = jnp.zeros(o_ref.shape, jnp.float32)
        for t, s in enumerate(tap_starts):
            patch = x_ref[pl.ds(s, Mp), :]            # contiguous row slice
            acc += jnp.dot(patch, w_ref[t],
                           preferred_element_type=jnp.float32)
        acc = acc + b_ref[...]
        acc = jnp.maximum(acc, NEG_SLOPE * acc)       # LeakyReLU(0.2)
        o_ref[...] = acc.astype(o_ref.dtype)

    return kernel


def _conv_layer(x_nhwc, w_packed, bias, cfg):
    """One Conv2d(stride=2) + LeakyReLU; NHWC in -> NHWC out."""
    B, H, W, C = x_nhwc.shape
    assert (H, C) == (cfg["H"], cfg["Cin"])
    Hs, Wq, Mp, Lin = cfg["Hs"], cfg["Wq"], cfg["Mp"], cfg["Lin"]
    OH, Cout, C4, p, Ht = cfg["OH"], cfg["Cout"], cfg["C4"], cfg["pad"], cfg["Ht"]

    # Host-side layout only: pad -> space-to-depth -> flatten spatial rows.
    xp = jnp.pad(x_nhwc, ((0, 0), (p, Ht - H - p), (p, Ht - W - p), (0, 0)))
    y = xp.reshape(B, Hs, 2, Hs, 2, C).transpose(0, 1, 3, 2, 4, 5)
    y = y.reshape(B, Hs * Hs, C4)
    y = jnp.pad(y, ((0, 0), (0, Lin - Hs * Hs), (0, 0))).astype(jnp.bfloat16)

    out = pl.pallas_call(
        _make_conv_kernel(Wq, Mp),
        grid=(B,),
        in_specs=[
            pl.BlockSpec((None, Lin, C4), lambda bi: (bi, 0, 0)),
            pl.BlockSpec(w_packed.shape, lambda bi: (0, 0, 0)),
            pl.BlockSpec((1, Cout), lambda bi: (0, 0)),
        ],
        out_specs=pl.BlockSpec((None, Mp, Cout), lambda bi: (bi, 0, 0)),
        out_shape=jax.ShapeDtypeStruct((B, Mp, Cout), jnp.bfloat16),
        compiler_params=pltpu.CompilerParams(
            dimension_semantics=("parallel",)),
    )(y, w_packed, bias)

    # Crop the flattened rows back to the valid (OH, OH) output plane.
    out = out[:, :OH * Wq, :].reshape(B, OH, Wq, Cout)[:, :, :OH, :]
    return out


# --------------------------- dense + tanh kernel --------------------------- #

def _dense_tanh_kernel(x_ref, w_ref, b_ref, o_ref):
    y = jnp.dot(x_ref[...], w_ref[...], preferred_element_type=jnp.float32)
    o_ref[...] = jnp.tanh(y + b_ref[...]).astype(o_ref.dtype)


def _dense_tanh(x, w_packed, bias):
    B = x.shape[0]
    ZP = w_packed.shape[1]
    return pl.pallas_call(
        _dense_tanh_kernel,
        out_shape=jax.ShapeDtypeStruct((B, ZP), jnp.float32),
        in_specs=[pl.BlockSpec(memory_space=pltpu.MemorySpace.VMEM)] * 3,
        out_specs=pl.BlockSpec(memory_space=pltpu.MemorySpace.VMEM),
    )(x.astype(jnp.bfloat16), w_packed, bias)


# ------------------------------- parameters -------------------------------- #

def init_params(key, z_dim):
    """Random parameters in the PyTorch layouts of the reference module."""
    ks = jax.random.split(key, 8)
    rnd = lambda k, shape: jax.random.normal(k, shape, jnp.float32) * 0.05
    return {
        "conv1_w": rnd(ks[0], (64, 3, 4, 4)),      # (Cout, Cin, kH, kW)
        "conv1_b": rnd(ks[1], (64,)),
        "conv2_w": rnd(ks[2], (128, 64, 4, 4)),
        "conv2_b": rnd(ks[3], (128,)),
        "conv3_w": rnd(ks[4], (256, 128, 3, 3)),
        "conv3_b": rnd(ks[5], (256,)),
        "dense_w": rnd(ks[6], (z_dim, 256 * 4 * 4)),  # torch Linear layout
        "dense_b": rnd(ks[7], (z_dim,)),
    }


def _pack_conv_weight(w_torch):
    """(Cout,Cin,K,K) torch conv weight -> (4, 4*Cin, Cout) bf16 taps for the
    stride-1 2x2 conv on the space-to-depth input (K padded to 4)."""
    Cout, Cin, K, _ = w_torch.shape
    w4 = jnp.zeros((Cout, Cin, 4, 4), w_torch.dtype).at[:, :, :K, :K].set(w_torch)
    taps = []
    for a in range(2):
        for b in range(2):
            sub = w4[:, :, 2 * a:2 * a + 2, 2 * b:2 * b + 2]   # (Cout,Cin,rh,rw)
            sub = jnp.transpose(sub, (2, 3, 1, 0))             # (rh,rw,Cin,Cout)
            taps.append(sub.reshape(4 * Cin, Cout))
    return jnp.stack(taps, 0).astype(jnp.bfloat16)


def pack_params(raw, z_dim):
    """One-time repack of torch-layout params into kernel-friendly layouts."""
    z_pad = _round_up(max(z_dim, 128), 128)
    dw = raw["dense_w"].reshape(z_dim, 256, 4, 4)              # CHW flatten
    dw = jnp.transpose(dw, (2, 3, 1, 0)).reshape(4 * 4 * 256, z_dim)  # HWC rows
    dw = jnp.pad(dw, ((0, 0), (0, z_pad - z_dim))).astype(jnp.bfloat16)
    db = jnp.pad(raw["dense_b"], (0, z_pad - z_dim)).reshape(1, z_pad)
    packed = {"dense_w": dw, "dense_b": db.astype(jnp.float32)}
    for i in (1, 2, 3):
        packed[f"conv{i}_w"] = _pack_conv_weight(raw[f"conv{i}_w"])
        packed[f"conv{i}_b"] = raw[f"conv{i}_b"].reshape(1, -1).astype(jnp.float32)
    return packed


# -------------------------------- forward ---------------------------------- #

@functools.partial(jax.jit, static_argnums=2)
def encoder_forward(params, x_nchw, z_dim):
    x = jnp.transpose(x_nchw, (0, 2, 3, 1))                     # NHWC
    # TODO(synk): the reference calls `self.normalization(64/128)` on an
    # nn.BatchNorm2d() built without num_features; that code cannot run in
    # PyTorch and has no defined semantics, so normalization is omitted.
    x = _conv_layer(x, params["conv1_w"], params["conv1_b"], CFG1)  # (B,15,15,64)
    x = _conv_layer(x, params["conv2_w"], params["conv2_b"], CFG2)  # (B,7,7,128)
    x = _conv_layer(x, params["conv3_w"], params["conv3_b"], CFG3)  # (B,4,4,256)
    B = x.shape[0]
    flat = x.reshape(B, 4 * 4 * 256)                                # HWC order
    z = _dense_tanh(flat, params["dense_w"], params["dense_b"])     # (B, 128)
    return z[:, :z_dim]


def _reference_forward(raw, x_nchw):
    """Pure-JAX f32 reference faithful to the PyTorch forward."""
    lrelu = lambda v: jnp.maximum(v, NEG_SLOPE * v)
    dn = ("NHWC", "OIHW", "NHWC")
    x = jnp.transpose(x_nchw, (0, 2, 3, 1))
    x = lrelu(lax.conv_general_dilated(x, raw["conv1_w"], (2, 2),
              [(0, 0), (0, 0)], dimension_numbers=dn) + raw["conv1_b"])
    x = lrelu(lax.conv_general_dilated(x, raw["conv2_w"], (2, 2),
              [(1, 1), (1, 1)], dimension_numbers=dn) + raw["conv2_b"])
    x = lrelu(lax.conv_general_dilated(x, raw["conv3_w"], (2, 2),
              [(1, 1), (1, 1)], dimension_numbers=dn) + raw["conv3_b"])
    flat = jnp.transpose(x, (0, 3, 1, 2)).reshape(x.shape[0], -1)   # CHW order
    return jnp.tanh(flat @ raw["dense_w"].T + raw["dense_b"])


if __name__ == "__main__":
    z_dim, B = 32, 2
    key = jax.random.PRNGKey(0)
    kp, kx = jax.random.split(key)
    raw = init_params(kp, z_dim)
    params = pack_params(raw, z_dim)
    x = jax.random.normal(kx, (B, 3, 32, 32), jnp.float32)

    out = encoder_forward(params, x, z_dim)
    out = jax.block_until_ready(out)

    assert out.shape == (B, z_dim), out.shape
    assert bool(jnp.all(jnp.isfinite(out)))
    assert bool(jnp.all(jnp.abs(out) <= 1.0))        # tanh range

    ref = _reference_forward(raw, x)
    err = float(jnp.max(jnp.abs(out - ref)))
    assert err < 0.1, f"mismatch vs f32 reference: {err}"
    print("KERNEL_OK")
</pallas_src>

<mosaic_0001>
module attributes {stable_mosaic.version = 11 : i64} {
  func.func @kernel(%arg0: i32, %arg1: memref<1x264x12xbf16, #tpu.memory_space<vmem>>, %arg2: memref<4x12x64xbf16, #tpu.memory_space<vmem>>, %arg3: memref<1x64xf32, #tpu.memory_space<vmem>>, %arg4: memref<1x240x64xbf16, #tpu.memory_space<vmem>>) attributes {dimension_semantics = [#tpu.dimension_semantics<parallel>], iteration_bounds = array<i64: 2>, scalar_prefetch = 0 : i64, scratch_operands = 0 : i64, tpu.core_type = #tpu.core_type<tc>, window_params = [{transform_indices = @transform_0, window_bounds = array<i64: 1, 264, 12>}, {pipeline_mode = #tpu.pipeline_mode<synchronous>, transform_indices = @transform_1, window_bounds = array<i64: 4, 12, 64>}, {pipeline_mode = #tpu.pipeline_mode<synchronous>, transform_indices = @transform_2, window_bounds = array<i64: 1, 64>}, {transform_indices = @transform_3, window_bounds = array<i64: 1, 240, 64>}]} {
    %cst = arith.constant 0.000000e+00 : f32
    %0 = vector.broadcast %cst : f32 to vector<240x64xf32>
    %c0 = arith.constant 0 : index
    %c0_0 = arith.constant 0 : index
    %c0_1 = arith.constant 0 : index
    %1 = vector.load %arg1[%c0, %c0_0, %c0_1] : memref<1x264x12xbf16, #tpu.memory_space<vmem>>, vector<1x240x12xbf16>
    %2 = vector.shape_cast %1 : vector<1x240x12xbf16> to vector<240x12xbf16>
    %c0_2 = arith.constant 0 : index
    %c0_3 = arith.constant 0 : index
    %c0_4 = arith.constant 0 : index
    %3 = vector.load %arg2[%c0_2, %c0_3, %c0_4] : memref<4x12x64xbf16, #tpu.memory_space<vmem>>, vector<1x12x64xbf16>
    %4 = vector.shape_cast %3 : vector<1x12x64xbf16> to vector<12x64xbf16>
    %cst_5 = arith.constant dense<0.000000e+00> : vector<240x64xf32>
    %5 = tpu.matmul %2, %4, %cst_5 {dimension_numbers = #tpu.dot_dimension_numbers<[1], [0], [0], [1], [0, 0, 1, 1], [], []>} : vector<240x12xbf16>, vector<12x64xbf16>, vector<240x64xf32> -> vector<240x64xf32>
    %6 = arith.addf %0, %5 : vector<240x64xf32>
    %c0_6 = arith.constant 0 : index
    %c1 = arith.constant 1 : index
    %c0_7 = arith.constant 0 : index
    %7 = vector.load %arg1[%c0_6, %c1, %c0_7] : memref<1x264x12xbf16, #tpu.memory_space<vmem>>, vector<1x240x12xbf16>
    %8 = vector.shape_cast %7 : vector<1x240x12xbf16> to vector<240x12xbf16>
    %c1_8 = arith.constant 1 : index
    %c0_9 = arith.constant 0 : index
    %c0_10 = arith.constant 0 : index
    %9 = vector.load %arg2[%c1_8, %c0_9, %c0_10] : memref<4x12x64xbf16, #tpu.memory_space<vmem>>, vector<1x12x64xbf16>
    %10 = vector.shape_cast %9 : vector<1x12x64xbf16> to vector<12x64xbf16>
    %cst_11 = arith.constant dense<0.000000e+00> : vector<240x64xf32>
    %11 = tpu.matmul %8, %10, %cst_11 {dimension_numbers = #tpu.dot_dimension_numbers<[1], [0], [0], [1], [0, 0, 1, 1], [], []>} : vector<240x12xbf16>, vector<12x64xbf16>, vector<240x64xf32> -> vector<240x64xf32>
    %12 = arith.addf %6, %11 : vector<240x64xf32>
    %c0_12 = arith.constant 0 : index
    %c16 = arith.constant 16 : index
    %c0_13 = arith.constant 0 : index
    %13 = vector.load %arg1[%c0_12, %c16, %c0_13] : memref<1x264x12xbf16, #tpu.memory_space<vmem>>, vector<1x240x12xbf16>
    %14 = vector.shape_cast %13 : vector<1x240x12xbf16> to vector<240x12xbf16>
    %c2 = arith.constant 2 : index
    %c0_14 = arith.constant 0 : index
    %c0_15 = arith.constant 0 : index
    %15 = vector.load %arg2[%c2, %c0_14, %c0_15] : memref<4x12x64xbf16, #tpu.memory_space<vmem>>, vector<1x12x64xbf16>
    %16 = vector.shape_cast %15 : vector<1x12x64xbf16> to vector<12x64xbf16>
    %cst_16 = arith.constant dense<0.000000e+00> : vector<240x64xf32>
    %17 = tpu.matmul %14, %16, %cst_16 {dimension_numbers = #tpu.dot_dimension_numbers<[1], [0], [0], [1], [0, 0, 1, 1], [], []>} : vector<240x12xbf16>, vector<12x64xbf16>, vector<240x64xf32> -> vector<240x64xf32>
    %18 = arith.addf %12, %17 : vector<240x64xf32>
    %c0_17 = arith.constant 0 : index
    %c17 = arith.constant 17 : index
    %c0_18 = arith.constant 0 : index
    %19 = vector.load %arg1[%c0_17, %c17, %c0_18] : memref<1x264x12xbf16, #tpu.memory_space<vmem>>, vector<1x240x12xbf16>
    %20 = vector.shape_cast %19 : vector<1x240x12xbf16> to vector<240x12xbf16>
    %c3 = arith.constant 3 : index
    %c0_19 = arith.constant 0 : index
    %c0_20 = arith.constant 0 : index
    %21 = vector.load %arg2[%c3, %c0_19, %c0_20] : memref<4x12x64xbf16, #tpu.memory_space<vmem>>, vector<1x12x64xbf16>
    %22 = vector.shape_cast %21 : vector<1x12x64xbf16> to vector<12x64xbf16>
    %cst_21 = arith.constant dense<0.000000e+00> : vector<240x64xf32>
    %23 = tpu.matmul %20, %22, %cst_21 {dimension_numbers = #tpu.dot_dimension_numbers<[1], [0], [0], [1], [0, 0, 1, 1], [], []>} : vector<240x12xbf16>, vector<12x64xbf16>, vector<240x64xf32> -> vector<240x64xf32>
    %24 = arith.addf %18, %23 : vector<240x64xf32>
    %c0_22 = arith.constant 0 : index
    %c0_23 = arith.constant 0 : index
    %25 = vector.load %arg3[%c0_22, %c0_23] : memref<1x64xf32, #tpu.memory_space<vmem>>, vector<1x64xf32>
    %26 = vector.broadcast %25 : vector<1x64xf32> to vector<240x64xf32>
    %27 = arith.addf %24, %26 : vector<240x64xf32>
    %cst_24 = arith.constant 2.000000e-01 : f32
    %28 = vector.broadcast %cst_24 : f32 to vector<240x64xf32>
    %29 = arith.mulf %28, %27 : vector<240x64xf32>
    %30 = arith.maximumf %27, %29 : vector<240x64xf32>
    %31 = arith.truncf %30 : vector<240x64xf32> to vector<240x64xbf16>
    %c0_25 = arith.constant 0 : index
    %c0_26 = arith.constant 0 : index
    %c0_27 = arith.constant 0 : index
    %32 = vector.load %arg4[%c0_25, %c0_26, %c0_27] : memref<1x240x64xbf16, #tpu.memory_space<vmem>>, vector<1x240x64xbf16>
    %33 = vector.shape_cast %32 : vector<1x240x64xbf16> to vector<240x64xbf16>
    %34 = vector.shape_cast %31 : vector<240x64xbf16> to vector<1x240x64xbf16>
    tpu.vector_store %arg4[%c0_25, %c0_26, %c0_27], %34 {strides = array<i32>} : memref<1x240x64xbf16, #tpu.memory_space<vmem>>, vector<1x240x64xbf16>,
    return
  }
  func.func @transform_0(%arg0: i32) -> (i32, i32, i32) {
    %c0_i32 = arith.constant 0 : i32
    %c0_i32_0 = arith.constant 0 : i32
    %c0_i32_1 = arith.constant 0 : i32
    return %arg0, %c0_i32, %c0_i32_0 : i32, i32, i32
  }
  func.func @transform_1(%arg0: i32) -> (i32, i32, i32) {
    %c0_i32 = arith.constant 0 : i32
    %c0_i32_0 = arith.constant 0 : i32
    %c0_i32_1 = arith.constant 0 : i32
    %c0_i32_2 = arith.constant 0 : i32
    return %c0_i32, %c0_i32_0, %c0_i32_1 : i32, i32, i32
  }
  func.func @transform_2(%arg0: i32) -> (i32, i32) {
    %c0_i32 = arith.constant 0 : i32
    %c0_i32_0 = arith.constant 0 : i32
    %c0_i32_1 = arith.constant 0 : i32
    return %c0_i32, %c0_i32_0 : i32, i32
  }
  func.func @transform_3(%arg0: i32) -> (i32, i32, i32) {
    %c0_i32 = arith.constant 0 : i32
    %c0_i32_0 = arith.constant 0 : i32
    %c0_i32_1 = arith.constant 0 : i32
    return %arg0, %c0_i32, %c0_i32_0 : i32, i32, i32
  }
}

module attributes {stable_mosaic.version = 11 : i64} {
  func.func @kernel(%arg0: i32, %arg1: memref<1x88x256xbf16, #tpu.memory_space<vmem>>, %arg2: memref<4x256x128xbf16, #tpu.memory_space<vmem>>, %arg3: memref<1x128xf32, #tpu.memory_space<vmem>>, %arg4: memref<1x64x128xbf16, #tpu.memory_space<vmem>>) attributes {dimension_semantics = [#tpu.dimension_semantics<parallel>], iteration_bounds = array<i64: 2>, scalar_prefetch = 0 : i64, scratch_operands = 0 : i64, tpu.core_type = #tpu.core_type<tc>, window_params = [{transform_indices = @transform_0, window_bounds = array<i64: 1, 88, 256>}, {pipeline_mode = #tpu.pipeline_mode<synchronous>, transform_indices = @transform_1, window_bounds = array<i64: 4, 256, 128>}, {pipeline_mode = #tpu.pipeline_mode<synchronous>, transform_indices = @transform_2, window_bounds = array<i64: 1, 128>}, {transform_indices = @transform_3, window_bounds = array<i64: 1, 64, 128>}]} {
    %cst = arith.constant 0.000000e+00 : f32
    %0 = vector.broadcast %cst : f32 to vector<64x128xf32>
    %c0 = arith.constant 0 : index
    %c0_0 = arith.constant 0 : index
    %c0_1 = arith.constant 0 : index
    %1 = vector.load %arg1[%c0, %c0_0, %c0_1] : memref<1x88x256xbf16, #tpu.memory_space<vmem>>, vector<1x64x256xbf16>
    %2 = vector.shape_cast %1 : vector<1x64x256xbf16> to vector<64x256xbf16>
    %c0_2 = arith.constant 0 : index
    %c0_3 = arith.constant 0 : index
    %c0_4 = arith.constant 0 : index
    %3 = vector.load %arg2[%c0_2, %c0_3, %c0_4] : memref<4x256x128xbf16, #tpu.memory_space<vmem>>, vector<1x256x128xbf16>
    %4 = vector.shape_cast %3 : vector<1x256x128xbf16> to vector<256x128xbf16>
    %cst_5 = arith.constant dense<0.000000e+00> : vector<64x128xf32>
    %5 = tpu.matmul %2, %4, %cst_5 {dimension_numbers = #tpu.dot_dimension_numbers<[1], [0], [0], [1], [0, 0, 1, 1], [], []>} : vector<64x256xbf16>, vector<256x128xbf16>, vector<64x128xf32> -> vector<64x128xf32>
    %6 = arith.addf %0, %5 : vector<64x128xf32>
    %c0_6 = arith.constant 0 : index
    %c1 = arith.constant 1 : index
    %c0_7 = arith.constant 0 : index
    %7 = vector.load %arg1[%c0_6, %c1, %c0_7] : memref<1x88x256xbf16, #tpu.memory_space<vmem>>, vector<1x64x256xbf16>
    %8 = vector.shape_cast %7 : vector<1x64x256xbf16> to vector<64x256xbf16>
    %c1_8 = arith.constant 1 : index
    %c0_9 = arith.constant 0 : index
    %c0_10 = arith.constant 0 : index
    %9 = vector.load %arg2[%c1_8, %c0_9, %c0_10] : memref<4x256x128xbf16, #tpu.memory_space<vmem>>, vector<1x256x128xbf16>
    %10 = vector.shape_cast %9 : vector<1x256x128xbf16> to vector<256x128xbf16>
    %cst_11 = arith.constant dense<0.000000e+00> : vector<64x128xf32>
    %11 = tpu.matmul %8, %10, %cst_11 {dimension_numbers = #tpu.dot_dimension_numbers<[1], [0], [0], [1], [0, 0, 1, 1], [], []>} : vector<64x256xbf16>, vector<256x128xbf16>, vector<64x128xf32> -> vector<64x128xf32>
    %12 = arith.addf %6, %11 : vector<64x128xf32>
    %c0_12 = arith.constant 0 : index
    %c9 = arith.constant 9 : index
    %c0_13 = arith.constant 0 : index
    %13 = vector.load %arg1[%c0_12, %c9, %c0_13] : memref<1x88x256xbf16, #tpu.memory_space<vmem>>, vector<1x64x256xbf16>
    %14 = vector.shape_cast %13 : vector<1x64x256xbf16> to vector<64x256xbf16>
    %c2 = arith.constant 2 : index
    %c0_14 = arith.constant 0 : index
    %c0_15 = arith.constant 0 : index
    %15 = vector.load %arg2[%c2, %c0_14, %c0_15] : memref<4x256x128xbf16, #tpu.memory_space<vmem>>, vector<1x256x128xbf16>
    %16 = vector.shape_cast %15 : vector<1x256x128xbf16> to vector<256x128xbf16>
    %cst_16 = arith.constant dense<0.000000e+00> : vector<64x128xf32>
    %17 = tpu.matmul %14, %16, %cst_16 {dimension_numbers = #tpu.dot_dimension_numbers<[1], [0], [0], [1], [0, 0, 1, 1], [], []>} : vector<64x256xbf16>, vector<256x128xbf16>, vector<64x128xf32> -> vector<64x128xf32>
    %18 = arith.addf %12, %17 : vector<64x128xf32>
    %c0_17 = arith.constant 0 : index
    %c10 = arith.constant 10 : index
    %c0_18 = arith.constant 0 : index
    %19 = vector.load %arg1[%c0_17, %c10, %c0_18] : memref<1x88x256xbf16, #tpu.memory_space<vmem>>, vector<1x64x256xbf16>
    %20 = vector.shape_cast %19 : vector<1x64x256xbf16> to vector<64x256xbf16>
    %c3 = arith.constant 3 : index
    %c0_19 = arith.constant 0 : index
    %c0_20 = arith.constant 0 : index
    %21 = vector.load %arg2[%c3, %c0_19, %c0_20] : memref<4x256x128xbf16, #tpu.memory_space<vmem>>, vector<1x256x128xbf16>
    %22 = vector.shape_cast %21 : vector<1x256x128xbf16> to vector<256x128xbf16>
    %cst_21 = arith.constant dense<0.000000e+00> : vector<64x128xf32>
    %23 = tpu.matmul %20, %22, %cst_21 {dimension_numbers = #tpu.dot_dimension_numbers<[1], [0], [0], [1], [0, 0, 1, 1], [], []>} : vector<64x256xbf16>, vector<256x128xbf16>, vector<64x128xf32> -> vector<64x128xf32>
    %24 = arith.addf %18, %23 : vector<64x128xf32>
    %c0_22 = arith.constant 0 : index
    %c0_23 = arith.constant 0 : index
    %25 = vector.load %arg3[%c0_22, %c0_23] : memref<1x128xf32, #tpu.memory_space<vmem>>, vector<1x128xf32>
    %26 = vector.broadcast %25 : vector<1x128xf32> to vector<64x128xf32>
    %27 = arith.addf %24, %26 : vector<64x128xf32>
    %cst_24 = arith.constant 2.000000e-01 : f32
    %28 = vector.broadcast %cst_24 : f32 to vector<64x128xf32>
    %29 = arith.mulf %28, %27 : vector<64x128xf32>
    %30 = arith.maximumf %27, %29 : vector<64x128xf32>
    %31 = arith.truncf %30 : vector<64x128xf32> to vector<64x128xbf16>
    %c0_25 = arith.constant 0 : index
    %c0_26 = arith.constant 0 : index
    %c0_27 = arith.constant 0 : index
    %32 = vector.load %arg4[%c0_25, %c0_26, %c0_27] : memref<1x64x128xbf16, #tpu.memory_space<vmem>>, vector<1x64x128xbf16>
    %33 = vector.shape_cast %32 : vector<1x64x128xbf16> to vector<64x128xbf16>
    %34 = vector.shape_cast %31 : vector<64x128xbf16> to vector<1x64x128xbf16>
    tpu.vector_store %arg4[%c0_25, %c0_26, %c0_27], %34 {strides = array<i32>} : memref<1x64x128xbf16, #tpu.memory_space<vmem>>, vector<1x64x128xbf16>,
    return
  }
  func.func @transform_0(%arg0: i32) -> (i32, i32, i32) {
    %c0_i32 = arith.constant 0 : i32
    %c0_i32_0 = arith.constant 0 : i32
    %c0_i32_1 = arith.constant 0 : i32
    return %arg0, %c0_i32, %c0_i32_0 : i32, i32, i32
  }
  func.func @transform_1(%arg0: i32) -> (i32, i32, i32) {
    %c0_i32 = arith.constant 0 : i32
    %c0_i32_0 = arith.constant 0 : i32
    %c0_i32_1 = arith.constant 0 : i32
    %c0_i32_2 = arith.constant 0 : i32
    return %c0_i32, %c0_i32_0, %c0_i32_1 : i32, i32, i32
  }
  func.func @transform_2(%arg0: i32) -> (i32, i32) {
    %c0_i32 = arith.constant 0 : i32
    %c0_i32_0 = arith.constant 0 : i32
    %c0_i32_1 = arith.constant 0 : i32
    return %c0_i32, %c0_i32_0 : i32, i32
  }
  func.func @transform_3(%arg0: i32) -> (i32, i32, i32) {
    %c0_i32 = arith.constant 0 : i32
    %c0_i32_0 = arith.constant 0 : i32
    %c0_i32_1 = arith.constant 0 : i32
    return %arg0, %c0_i32, %c0_i32_0 : i32, i32, i32
  }
}

module attributes {stable_mosaic.version = 11 : i64} {
  func.func @kernel(%arg0: i32, %arg1: memref<1x32x512xbf16, #tpu.memory_space<vmem>>, %arg2: memref<4x512x256xbf16, #tpu.memory_space<vmem>>, %arg3: memref<1x256xf32, #tpu.memory_space<vmem>>, %arg4: memref<1x24x256xbf16, #tpu.memory_space<vmem>>) attributes {dimension_semantics = [#tpu.dimension_semantics<parallel>], iteration_bounds = array<i64: 2>, scalar_prefetch = 0 : i64, scratch_operands = 0 : i64, tpu.core_type = #tpu.core_type<tc>, window_params = [{transform_indices = @transform_0, window_bounds = array<i64: 1, 32, 512>}, {pipeline_mode = #tpu.pipeline_mode<synchronous>, transform_indices = @transform_1, window_bounds = array<i64: 4, 512, 256>}, {pipeline_mode = #tpu.pipeline_mode<synchronous>, transform_indices = @transform_2, window_bounds = array<i64: 1, 256>}, {transform_indices = @transform_3, window_bounds = array<i64: 1, 24, 256>}]} {
    %cst = arith.constant 0.000000e+00 : f32
    %0 = vector.broadcast %cst : f32 to vector<24x256xf32>
    %c0 = arith.constant 0 : index
    %c0_0 = arith.constant 0 : index
    %c0_1 = arith.constant 0 : index
    %1 = vector.load %arg1[%c0, %c0_0, %c0_1] : memref<1x32x512xbf16, #tpu.memory_space<vmem>>, vector<1x24x512xbf16>
    %2 = vector.shape_cast %1 : vector<1x24x512xbf16> to vector<24x512xbf16>
    %c0_2 = arith.constant 0 : index
    %c0_3 = arith.constant 0 : index
    %c0_4 = arith.constant 0 : index
    %3 = vector.load %arg2[%c0_2, %c0_3, %c0_4] : memref<4x512x256xbf16, #tpu.memory_space<vmem>>, vector<1x512x256xbf16>
    %4 = vector.shape_cast %3 : vector<1x512x256xbf16> to vector<512x256xbf16>
    %cst_5 = arith.constant dense<0.000000e+00> : vector<24x256xf32>
    %5 = tpu.matmul %2, %4, %cst_5 {dimension_numbers = #tpu.dot_dimension_numbers<[1], [0], [0], [1], [0, 0, 1, 1], [], []>} : vector<24x512xbf16>, vector<512x256xbf16>, vector<24x256xf32> -> vector<24x256xf32>
    %6 = arith.addf %0, %5 : vector<24x256xf32>
    %c0_6 = arith.constant 0 : index
    %c1 = arith.constant 1 : index
    %c0_7 = arith.constant 0 : index
    %7 = vector.load %arg1[%c0_6, %c1, %c0_7] : memref<1x32x512xbf16, #tpu.memory_space<vmem>>, vector<1x24x512xbf16>
    %8 = vector.shape_cast %7 : vector<1x24x512xbf16> to vector<24x512xbf16>
    %c1_8 = arith.constant 1 : index
    %c0_9 = arith.constant 0 : index
    %c0_10 = arith.constant 0 : index
    %9 = vector.load %arg2[%c1_8, %c0_9, %c0_10] : memref<4x512x256xbf16, #tpu.memory_space<vmem>>, vector<1x512x256xbf16>
    %10 = vector.shape_cast %9 : vector<1x512x256xbf16> to vector<512x256xbf16>
    %cst_11 = arith.constant dense<0.000000e+00> : vector<24x256xf32>
    %11 = tpu.matmul %8, %10, %cst_11 {dimension_numbers = #tpu.dot_dimension_numbers<[1], [0], [0], [1], [0, 0, 1, 1], [], []>} : vector<24x512xbf16>, vector<512x256xbf16>, vector<24x256xf32> -> vector<24x256xf32>
    %12 = arith.addf %6, %11 : vector<24x256xf32>
    %c0_12 = arith.constant 0 : index
    %c5 = arith.constant 5 : index
    %c0_13 = arith.constant 0 : index
    %13 = vector.load %arg1[%c0_12, %c5, %c0_13] : memref<1x32x512xbf16, #tpu.memory_space<vmem>>, vector<1x24x512xbf16>
    %14 = vector.shape_cast %13 : vector<1x24x512xbf16> to vector<24x512xbf16>
    %c2 = arith.constant 2 : index
    %c0_14 = arith.constant 0 : index
    %c0_15 = arith.constant 0 : index
    %15 = vector.load %arg2[%c2, %c0_14, %c0_15] : memref<4x512x256xbf16, #tpu.memory_space<vmem>>, vector<1x512x256xbf16>
    %16 = vector.shape_cast %15 : vector<1x512x256xbf16> to vector<512x256xbf16>
    %cst_16 = arith.constant dense<0.000000e+00> : vector<24x256xf32>
    %17 = tpu.matmul %14, %16, %cst_16 {dimension_numbers = #tpu.dot_dimension_numbers<[1], [0], [0], [1], [0, 0, 1, 1], [], []>} : vector<24x512xbf16>, vector<512x256xbf16>, vector<24x256xf32> -> vector<24x256xf32>
    %18 = arith.addf %12, %17 : vector<24x256xf32>
    %c0_17 = arith.constant 0 : index
    %c6 = arith.constant 6 : index
    %c0_18 = arith.constant 0 : index
    %19 = vector.load %arg1[%c0_17, %c6, %c0_18] : memref<1x32x512xbf16, #tpu.memory_space<vmem>>, vector<1x24x512xbf16>
    %20 = vector.shape_cast %19 : vector<1x24x512xbf16> to vector<24x512xbf16>
    %c3 = arith.constant 3 : index
    %c0_19 = arith.constant 0 : index
    %c0_20 = arith.constant 0 : index
    %21 = vector.load %arg2[%c3, %c0_19, %c0_20] : memref<4x512x256xbf16, #tpu.memory_space<vmem>>, vector<1x512x256xbf16>
    %22 = vector.shape_cast %21 : vector<1x512x256xbf16> to vector<512x256xbf16>
    %cst_21 = arith.constant dense<0.000000e+00> : vector<24x256xf32>
    %23 = tpu.matmul %20, %22, %cst_21 {dimension_numbers = #tpu.dot_dimension_numbers<[1], [0], [0], [1], [0, 0, 1, 1], [], []>} : vector<24x512xbf16>, vector<512x256xbf16>, vector<24x256xf32> -> vector<24x256xf32>
    %24 = arith.addf %18, %23 : vector<24x256xf32>
    %c0_22 = arith.constant 0 : index
    %c0_23 = arith.constant 0 : index
    %25 = vector.load %arg3[%c0_22, %c0_23] : memref<1x256xf32, #tpu.memory_space<vmem>>, vector<1x256xf32>
    %26 = vector.broadcast %25 : vector<1x256xf32> to vector<24x256xf32>
    %27 = arith.addf %24, %26 : vector<24x256xf32>
    %cst_24 = arith.constant 2.000000e-01 : f32
    %28 = vector.broadcast %cst_24 : f32 to vector<24x256xf32>
    %29 = arith.mulf %28, %27 : vector<24x256xf32>
    %30 = arith.maximumf %27, %29 : vector<24x256xf32>
    %31 = arith.truncf %30 : vector<24x256xf32> to vector<24x256xbf16>
    %c0_25 = arith.constant 0 : index
    %c0_26 = arith.constant 0 : index
    %c0_27 = arith.constant 0 : index
    %32 = vector.load %arg4[%c0_25, %c0_26, %c0_27] : memref<1x24x256xbf16, #tpu.memory_space<vmem>>, vector<1x24x256xbf16>
    %33 = vector.shape_cast %32 : vector<1x24x256xbf16> to vector<24x256xbf16>
    %34 = vector.shape_cast %31 : vector<24x256xbf16> to vector<1x24x256xbf16>
    tpu.vector_store %arg4[%c0_25, %c0_26, %c0_27], %34 {strides = array<i32>} : memref<1x24x256xbf16, #tpu.memory_space<vmem>>, vector<1x24x256xbf16>,
    return
  }
  func.func @transform_0(%arg0: i32) -> (i32, i32, i32) {
    %c0_i32 = arith.constant 0 : i32
    %c0_i32_0 = arith.constant 0 : i32
    %c0_i32_1 = arith.constant 0 : i32
    return %arg0, %c0_i32, %c0_i32_0 : i32, i32, i32
  }
  func.func @transform_1(%arg0: i32) -> (i32, i32, i32) {
    %c0_i32 = arith.constant 0 : i32
    %c0_i32_0 = arith.constant 0 : i32
    %c0_i32_1 = arith.constant 0 : i32
    %c0_i32_2 = arith.constant 0 : i32
    return %c0_i32, %c0_i32_0, %c0_i32_1 : i32, i32, i32
  }
  func.func @transform_2(%arg0: i32) -> (i32, i32) {
    %c0_i32 = arith.constant 0 : i32
    %c0_i32_0 = arith.constant 0 : i32
    %c0_i32_1 = arith.constant 0 : i32
    return %c0_i32, %c0_i32_0 : i32, i32
  }
  func.func @transform_3(%arg0: i32) -> (i32, i32, i32) {
    %c0_i32 = arith.constant 0 : i32
    %c0_i32_0 = arith.constant 0 : i32
    %c0_i32_1 = arith.constant 0 : i32
    return %arg0, %c0_i32, %c0_i32_0 : i32, i32, i32
  }
}

module attributes {stable_mosaic.version = 11 : i64} {
  func.func @_dense_tanh_kernel(%arg0: memref<2x4096xbf16, #tpu.memory_space<vmem>>, %arg1: memref<4096x128xbf16, #tpu.memory_space<vmem>>, %arg2: memref<1x128xf32, #tpu.memory_space<vmem>>, %arg3: memref<2x128xf32, #tpu.memory_space<vmem>>) attributes {dimension_semantics = [], scalar_prefetch = 0 : i64, scratch_operands = 0 : i64, tpu.core_type = #tpu.core_type<tc>} {
    %c0 = arith.constant 0 : index
    %c0_0 = arith.constant 0 : index
    %0 = vector.load %arg0[%c0, %c0_0] : memref<2x4096xbf16, #tpu.memory_space<vmem>>, vector<2x4096xbf16>
    %c0_1 = arith.constant 0 : index
    %c0_2 = arith.constant 0 : index
    %1 = vector.load %arg1[%c0_1, %c0_2] : memref<4096x128xbf16, #tpu.memory_space<vmem>>, vector<4096x128xbf16>
    %cst = arith.constant dense<0.000000e+00> : vector<2x128xf32>
    %2 = tpu.matmul %0, %1, %cst {dimension_numbers = #tpu.dot_dimension_numbers<[1], [0], [0], [1], [0, 0, 1, 1], [], []>} : vector<2x4096xbf16>, vector<4096x128xbf16>, vector<2x128xf32> -> vector<2x128xf32>
    %c0_3 = arith.constant 0 : index
    %c0_4 = arith.constant 0 : index
    %3 = vector.load %arg2[%c0_3, %c0_4] : memref<1x128xf32, #tpu.memory_space<vmem>>, vector<1x128xf32>
    %4 = vector.broadcast %3 : vector<1x128xf32> to vector<2x128xf32>
    %5 = arith.addf %2, %4 : vector<2x128xf32>
    %6 = math.tanh %5 : vector<2x128xf32>
    %c0_5 = arith.constant 0 : index
    %c0_6 = arith.constant 0 : index
    %7 = vector.load %arg3[%c0_5, %c0_6] : memref<2x128xf32, #tpu.memory_space<vmem>>, vector<2x128xf32>
    tpu.vector_store %arg3[%c0_5, %c0_6], %6 {strides = array<i32>} : memref<2x128xf32, #tpu.memory_space<vmem>>, vector<2x128xf32>,
    return
  }
}

</mosaic_0001>

<llo_original>
// kernel: encoder_forward.4
$region0: #{encoder_forward.4}
  #allocation0 [shape = 'u32[]', space=smem, size = 0x4, offset = 0x4, fixed_abs, tag = 'smem constant byte address 0x4 - core index']
  #allocation1 [shape = 'u32[72,128]{1,0:T(1,128)}', space=vmem, size = 0x9000, scoped, tag = 'internal scratch']
  %s0 = inlined_call_operand.vmem [shape: bf16[2,264,12], index: 0, kind: input, shape index: {}]
  %s1 = inlined_call_operand.vmem [shape: bf16[4,12,64], index: 1, kind: input, shape index: {}]
  %s2 = inlined_call_operand.vmem [shape: f32[1,64], index: 2, kind: input, shape index: {}]
  %s3 = inlined_call_operand.vmem [shape: bf16[2,240,64], index: 3, kind: output, shape index: {}]
  %s4 = sld [smem:[#allocation0]]
  $region45: #{encoder_forward.4} parent=0
    _
  %s6 = ssub.s32 1, %s4
  %s7 = scalar_select 0, %s6, %s4
  loop: start=0, step=1, limit=4
  $region2: #{encoder_forward.4} parent=0 // loop_pre_header
    _
  $region3: #{encoder_forward.4} parent=0 // loop_header
    %s9 = sphi 0, %s13
    %p10 = scmp.ge.s32.totalorder %s9, 4
    %s19 = sphi 0, %s21
    %s22 = sphi 0, %s19
    %s23 = sphi 0, %s22
    %s39 = sphi 0, %s23
    %s43 = sphi 0, %s43
    %s45 = sphi 0, %s43
    %s46 = sphi 0, %s45
    %s60 = sphi 0, %s46
    %s64 = sphi 0, %s64
    %s66 = sphi 0, %s64
    %s67 = sphi 0, %s66
    %s81 = sphi 0, %s67
    %s87 = sphi 0, %s89
    %s90 = sphi 0, %s87
    %s91 = sphi 0, %s90
    %s107 = sphi 0, %s91
  $region4: #{encoder_forward.4} parent=0 // loop_header_branch
    %12 = sbr.rel (%p10) target = $region8
  $region5: #{encoder_forward.4} parent=0 // loop_body
    %s14 = ssub.s32 %s9, 1
    %s15 = ssub.s32 %s9, 2
    %s16 = sadd.s32 %s9, 1
    %s17 = ssub.s32 %s9, %s16
    %p18 = scmp.eq.s32.totalorder %s17, 0
    %s20 = sadd.s32 %s19, 1
    %s21 = scalar_select %p18, %s19, %s20
    %p24 = pneg %p18
    %p25 = scmp.eq.s32.totalorder %s9, 1
    %p26 = por %p24, %p25
    %p27 = scmp.ne.s32.totalorder %s19, %s22
    %p28 = scmp.eq.s32.totalorder %s9, 0
    %p29 = por %p27, %p28
    %p30 = scmp.ne.s32.totalorder %s19, %s22
    %p31 = scmp.eq.s32.totalorder %s14, 1
    %p32 = por %p30, %p31
    %p33 = scmp.ne.s32.totalorder %s22, %s23
    %p34 = scmp.eq.s32.totalorder %s14, 0
    %p35 = por %p33, %p34
    %p36 = scmp.ne.s32.totalorder %s22, %s23
    %p37 = scmp.eq.s32.totalorder %s15, 1
    %p38 = por %p36, %p37
    %p40 = scmp.ne.s32.totalorder %s23, %s39
    %p41 = scmp.eq.s32.totalorder %s15, 0
    %p42 = por %p40, %p41
    %s44 = sadd.s32 %s43, 1
    %p47 = scmp.eq.s32.totalorder %s9, 1
    %p48 = scmp.ne.s32.totalorder %s43, %s45
    %p49 = scmp.eq.s32.totalorder %s9, 0
    %p50 = por %p48, %p49
    %p51 = scmp.ne.s32.totalorder %s43, %s45
    %p52 = scmp.eq.s32.totalorder %s14, 1
    %p53 = por %p51, %p52
    %p54 = scmp.ne.s32.totalorder %s45, %s46
    %p55 = scmp.eq.s32.totalorder %s14, 0
    %p56 = por %p54, %p55
    %p57 = scmp.ne.s32.totalorder %s45, %s46
    %p58 = scmp.eq.s32.totalorder %s15, 1
    %p59 = por %p57, %p58
    %p61 = scmp.ne.s32.totalorder %s46, %s60
    %p62 = scmp.eq.s32.totalorder %s15, 0
    %p63 = por %p61, %p62
    %s65 = sadd.s32 %s64, 1
    %p68 = scmp.eq.s32.totalorder %s9, 1
    %p69 = scmp.ne.s32.totalorder %s64, %s66
    %p70 = scmp.eq.s32.totalorder %s9, 0
    %p71 = por %p69, %p70
    %p72 = scmp.ne.s32.totalorder %s64, %s66
    %p73 = scmp.eq.s32.totalorder %s14, 1
    %p74 = por %p72, %p73
    %p75 = scmp.ne.s32.totalorder %s66, %s67
    %p76 = scmp.eq.s32.totalorder %s14, 0
    %p77 = por %p75, %p76
    %p78 = scmp.ne.s32.totalorder %s66, %s67
    %p79 = scmp.eq.s32.totalorder %s15, 1
    %p80 = por %p78, %p79
    %p82 = scmp.ne.s32.totalorder %s67, %s81
    %p83 = scmp.eq.s32.totalorder %s15, 0
    %p84 = por %p82, %p83
    %s85 = ssub.s32 %s9, %s16
    %p86 = scmp.eq.s32.totalorder %s85, 0
    %s88 = sadd.s32 %s87, 1
    %s89 = scalar_select %p86, %s87, %s88
    %p92 = pneg %p86
    %p93 = scmp.eq.s32.totalorder %s9, 1
    %p94 = por %p92, %p93
    %p95 = scmp.ne.s32.totalorder %s87, %s90
    %p96 = scmp.eq.s32.totalorder %s9, 0
    %p97 = por %p95, %p96
    %p98 = scmp.ne.s32.totalorder %s87, %s90
    %p99 = scmp.eq.s32.totalorder %s14, 1
    %p100 = por %p98, %p99
    %p101 = scmp.ne.s32.totalorder %s90, %s91
    %p102 = scmp.eq.s32.totalorder %s14, 0
    %p103 = por %p101, %p102
    %p104 = scmp.ne.s32.totalorder %s90, %s91
    %p105 = scmp.eq.s32.totalorder %s15, 1
    %p106 = por %p104, %p105
    %p108 = scmp.ne.s32.totalorder %s91, %s107
    %p109 = scmp.eq.s32.totalorder %s15, 0
    %p110 = por %p108, %p109
    %p111 = scmp.le.s32.totalorder 1, %s9
    %p112 = scmp.lt.s32.totalorder %s9, 3
    %p113 = pnand %p111, %p112
    %p114 = pneg %p113
    // Predicated region
    $region9: #{encoder_forward.4} parent=5 // pred_check
      _
    $region10: #{encoder_forward.4} parent=5 // pred_check_branch
      %116 = sbr.rel (%p113) target = $region12
    $region11: #{encoder_forward.4} parent=5 // pred_region
      %s117 = ssub.s32 %s9, 1
      // Predicated region
      $region13: #{encoder_forward.4} parent=11 // pred_check
        %p118 = pneg %p56
      $region14: #{encoder_forward.4} parent=11 // pred_check_branch
        %120 = sbr.rel (%p118) target = $region16
      $region15: #{encoder_forward.4} parent=11 // pred_region
        _
      $region16: #{encoder_forward.4} parent=11 // pred_fallthru
        _
      // Predicated region
      $region17: #{encoder_forward.4} parent=11 // pred_check
        %p121 = pneg %p77
      $region18: #{encoder_forward.4} parent=11 // pred_check_branch
        %123 = sbr.rel (%p121) target = $region20
      $region19: #{encoder_forward.4} parent=11 // pred_region
        _
      $region20: #{encoder_forward.4} parent=11 // pred_fallthru
        _
    $region12: #{encoder_forward.4} parent=5 // pred_fallthru
      _
    %p124 = scmp.lt.s32.totalorder %s9, 2
    // Predicated region
    $region21: #{encoder_forward.4} parent=5 // pred_check
      %p125 = pneg %p124
    $region22: #{encoder_forward.4} parent=5 // pred_check_branch
      %127 = sbr.rel (%p125) target = $region24
    $region23: #{encoder_forward.4} parent=5 // pred_region
      // Predicated region
      $region25: #{encoder_forward.4} parent=23 // pred_check
        %p128 = pneg %p29
      $region26: #{encoder_forward.4} parent=23 // pred_check_branch
        %130 = sbr.rel (%p128) target = $region28
      $region27: #{encoder_forward.4} parent=23 // pred_region
        %p131 = scmp.lt.s32.totalorder %s9, 1
        %s132 = scalar_select %p131, %s9, 1
        %s133 = smul.addr %s132, 33
        %s134 = smul.addr %s133, 4
        %s135 = scalar_lea.vmem %s0, %s134
      $region28: #{encoder_forward.4} parent=23 // pred_fallthru
        _
    $region24: #{encoder_forward.4} parent=5 // pred_fallthru
      _
    %p136 = scmp.le.s32.totalorder 1, %s9
    %p137 = scmp.lt.s32.totalorder %s9, 3
    %p138 = pnand %p136, %p137
    %p139 = pneg %p138
    // Predicated region
    $region29: #{encoder_forward.4} parent=5 // pred_check
      _
    $region30: #{encoder_forward.4} parent=5 // pred_check_branch
      %141 = sbr.rel (%p138) target = $region32
    $region31: #{encoder_forward.4} parent=5 // pred_region
      %s142 = ssub.s32 %s9, 1
      %p143 = scmp.lt.s32.totalorder %s14, 1
      %s144 = scalar_select %p143, %s14, 1
      %s145 = smul.addr %s144, 33
      %s146 = smul.addr %s145, 4
      %s147 = scalar_lea.vmem %s0, %s146
      %p148 = pneg %p35
      %p149 = pneg %p32
      %p150 = pneg %p56
      %p151 = pneg %p53
      %p152 = pneg %p77
      %p153 = pneg %p74
      %p154 = pneg %p103
      %p155 = pneg %p100
      %p156 = scmp.lt.s32.totalorder %s14, 1
      %s157 = scalar_select %p156, %s14, 1
      %s158 = smul.addr %s157, 30
      %s159 = smul.addr %s158, 4
      %s160 = scalar_lea.vmem %s3, %s159
      %p161 = scmp.lt.s32.totalorder %s14, 1
      %s162 = scalar_select %p161, %s14, 1
      %s163 = smul.addr %s162, 33
      %s164 = smul.addr %s163, 4
      %s165 = scalar_lea.vmem %s0, %s164
      %p166 = scmp.lt.s32.totalorder %s14, 1
      %s167 = scalar_select %p166, %s14, 1
      %s168 = smul.addr %s167, 30
      %s169 = smul.addr %s168, 4
      %s170 = scalar_lea.vmem %s3, %s169
      %v172 = vld [vmem:[%s165] sm:$0xf]
      %v173 = vld [vmem:[%s165 + $0x4] sm:$0xf]
      %v174 = vld [vmem:[%s165 + $0x8] sm:$0xf]
      %v175 = vld [vmem:[%s165 + $0xc] sm:$0xf]
      %v176 = vld [vmem:[%s165 + $0x10] sm:$0xf]
      %v177 = vld [vmem:[%s165 + $0x14] sm:$0xf]
      %v178 = vld [vmem:[%s165 + $0x18] sm:$0xf]
      %v179 = vld [vmem:[%s165 + $0x1c] sm:$0xf]
      %v180 = vld [vmem:[%s165 + $0x20] sm:$0xf]
      %v181 = vld [vmem:[%s165 + $0x24] sm:$0xf]
      %v182 = vld [vmem:[%s165 + $0x28] sm:$0xf]
      %v183 = vld [vmem:[%s165 + $0x2c] sm:$0xf]
      %v184 = vld [vmem:[%s165 + $0x30] sm:$0xf]
      %v185 = vld [vmem:[%s165 + $0x34] sm:$0xf]
      %v186 = vld [vmem:[%s165 + $0x38] sm:$0xf]
      %v187 = vld [vmem:[%s165 + $0x3c] sm:$0xf]
      %v188 = vld [vmem:[%s165 + $0x40] sm:$0xf]
      %v189 = vld [vmem:[%s165 + $0x44] sm:$0xf]
      %v190 = vld [vmem:[%s165 + $0x48] sm:$0xf]
      %v191 = vld [vmem:[%s165 + $0x4c] sm:$0xf]
      %v192 = vld [vmem:[%s165 + $0x50] sm:$0xf]
      %v193 = vld [vmem:[%s165 + $0x54] sm:$0xf]
      %v194 = vld [vmem:[%s165 + $0x58] sm:$0xf]
      %v195 = vld [vmem:[%s165 + $0x5c] sm:$0xf]
      %v196 = vld [vmem:[%s165 + $0x60] sm:$0xf]
      %v197 = vld [vmem:[%s165 + $0x64] sm:$0xf]
      %v198 = vld [vmem:[%s165 + $0x68] sm:$0xf]
      %v199 = vld [vmem:[%s165 + $0x6c] sm:$0xf]
      %v200 = vld [vmem:[%s165 + $0x70] sm:$0xf]
      %v201 = vld [vmem:[%s165 + $0x74] sm:$0xf]
      %v202 = vld [vmem:[%s1] sm:$0xf]
      %v203 = vld [vmem:[%s1 + $0x4] sm:$0x3]
      %v204 = vld [vmem:[%s165 + $0x78] sm:$0x1]
      %s205 = scalar_lea.vmem %s1, 8
      %v206 = vld [vmem:[%s205] sm:$0xf]
      %v207 = vld [vmem:[%s205 + $0x4] sm:$0x3]
      %v239 = vunpack.c.l.b16 %v172
      %v240 = vunpack.c.l.b16 %v173
      %v241 = vunpack.c.l.b16 %v174
      %v242 = vunpack.c.l.b16 %v175
      %v243 = vunpack.c.l.b16 %v176
      %v244 = vunpack.c.l.b16 %v177
      %v245 = vunpack.c.l.b16 %v178
      %v246 = vunpack.c.l.b16 %v179
      %v247 = vunpack.c.l.b16 %v180
      %v248 = vunpack.c.l.b16 %v181
      %v249 = vunpack.c.l.b16 %v182
      %v250 = vunpack.c.l.b16 %v183
      %v251 = vunpack.c.l.b16 %v184
      %v252 = vunpack.c.l.b16 %v185
      %v253 = vunpack.c.l.b16 %v186
      %v254 = vunpack.c.l.b16 %v187
      %v255 = vunpack.c.l.b16 %v188
      %v256 = vunpack.c.l.b16 %v189
      %v257 = vunpack.c.l.b16 %v190
      %v258 = vunpack.c.l.b16 %v191
      %v259 = vunpack.c.l.b16 %v192
      %v260 = vunpack.c.l.b16 %v193
      %v261 = vunpack.c.l.b16 %v194
      %v262 = vunpack.c.l.b16 %v195
      %v263 = vunpack.c.l.b16 %v196
      %v264 = vunpack.c.l.b16 %v197
      %v265 = vunpack.c.l.b16 %v198
      %v266 = vunpack.c.l.b16 %v199
      %v267 = vunpack.c.l.b16 %v200
      %v268 = vunpack.c.l.b16 %v201
      %v269 = vunpack.c.l.b16 %v204
      %v270 = vpack.c.b16 %v240, %v239
      %v271 = vpack.c.b16 %v242, %v241
      %v272 = vpack.c.b16 %v244, %v243
      %v273 = vpack.c.b16 %v246, %v245
      %v274 = vpack.c.b16 %v248, %v247
      %v275 = vpack.c.b16 %v250, %v249
      %v276 = vpack.c.b16 %v252, %v251
      %v277 = vpack.c.b16 %v254, %v253
      %v278 = vpack.c.b16 %v256, %v255
      %v279 = vpack.c.b16 %v258, %v257
      %v280 = vpack.c.b16 %v260, %v259
      %v281 = vpack.c.b16 %v262, %v261
      %v282 = vpack.c.b16 %v264, %v263
      %v283 = vpack.c.b16 %v266, %v265
      %v284 = vpack.c.b16 %v268, %v267
      %v285 = vpack.c.b16 %v269, %v269
      %vm286 = vsmask.f32 7424
      %v288 = vshrl.u32 %v270, 16
      %v290 = vshll.u32 %v270, 16
      %v292 = vrot.slane %v290, 1
      %v293 = vor.u32 %v288, %v292
      %v295 = vshll.u32 %v271, 16
      %v297 = vrot.slane %v295, 1
      %v298 = vsel %vm286, %v293, %v297
      %v299 = vshrl.u32 %v271, 16
      %v301 = vor.u32 %v299, %v297
      %v303 = vshll.u32 %v272, 16
      %v305 = vrot.slane %v303, 1
      %v306 = vsel %vm286, %v301, %v305
      %v307 = vshrl.u32 %v272, 16
      %v309 = vor.u32 %v307, %v305
      %v311 = vshll.u32 %v273, 16
      %v313 = vrot.slane %v311, 1
      %v314 = vsel %vm286, %v309, %v313
      %v315 = vshrl.u32 %v273, 16
      %v317 = vor.u32 %v315, %v313
      %v319 = vshll.u32 %v274, 16
      %v321 = vrot.slane %v319, 1
      %v322 = vsel %vm286, %v317, %v321
      %v323 = vshrl.u32 %v274, 16
      %v325 = vor.u32 %v323, %v321
      %v327 = vshll.u32 %v275, 16
      %v329 = vrot.slane %v327, 1
      %v330 = vsel %vm286, %v325, %v329
      %v331 = vshrl.u32 %v275, 16
      %v333 = vor.u32 %v331, %v329
      %v335 = vshll.u32 %v276, 16
      %v337 = vrot.slane %v335, 1
      %v338 = vsel %vm286, %v333, %v337
      %v339 = vshrl.u32 %v276, 16
      %v341 = vor.u32 %v339, %v337
      %v343 = vshll.u32 %v277, 16
      %v345 = vrot.slane %v343, 1
      %v346 = vsel %vm286, %v341, %v345
      %v347 = vshrl.u32 %v277, 16
      %v349 = vor.u32 %v347, %v345
      %v351 = vshll.u32 %v278, 16
      %v353 = vrot.slane %v351, 1
      %v354 = vsel %vm286, %v349, %v353
      %v355 = vshrl.u32 %v278, 16
      %v357 = vor.u32 %v355, %v353
      %v359 = vshll.u32 %v279, 16
      %v361 = vrot.slane %v359, 1
      %v362 = vsel %vm286, %v357, %v361
      %v363 = vshrl.u32 %v279, 16
      %v365 = vor.u32 %v363, %v361
      %v367 = vshll.u32 %v280, 16
      %v369 = vrot.slane %v367, 1
      %v370 = vsel %vm286, %v365, %v369
      %v371 = vshrl.u32 %v280, 16
      %v373 = vor.u32 %v371, %v369
      %v375 = vshll.u32 %v281, 16
      %v377 = vrot.slane %v375, 1
      %v378 = vsel %vm286, %v373, %v377
      %v379 = vshrl.u32 %v281, 16
      %v381 = vor.u32 %v379, %v377
      %v383 = vshll.u32 %v282, 16
      %v385 = vrot.slane %v383, 1
      %v386 = vsel %vm286, %v381, %v385
      %v387 = vshrl.u32 %v282, 16
      %v389 = vor.u32 %v387, %v385
      %v391 = vshll.u32 %v283, 16
      %v393 = vrot.slane %v391, 1
      %v394 = vsel %vm286, %v389, %v393
      %v395 = vshrl.u32 %v283, 16
      %v397 = vor.u32 %v395, %v393
      %v399 = vshll.u32 %v284, 16
      %v401 = vrot.slane %v399, 1
      %v402 = vsel %vm286, %v397, %v401
      %v403 = vshrl.u32 %v284, 16
      %v405 = vor.u32 %v403, %v401
      %v407 = vshll.u32 %v285, 16
      %v409 = vrot.slane %v407, 1
      %v410 = vsel %vm286, %v405, %v409
      %v413 = vunpack.c.l.b16 %v206
      %v414 = vunpack.c.l.b16 %v207
      %v415 = vpack.c.b16 %v414, %v413
      %vm416 = vcmask 97280
      %v418 = vsel %vm416, %v298, 0
      %v421 = vsel %vm416, %v306, 0
      %v424 = vsel %vm416, %v314, 0
      %v427 = vsel %vm416, %v322, 0
      %v430 = vsel %vm416, %v330, 0
      %v433 = vsel %vm416, %v338, 0
      %v436 = vsel %vm416, %v346, 0
      %v439 = vsel %vm416, %v354, 0
      %v442 = vsel %vm416, %v362, 0
      %v445 = vsel %vm416, %v370, 0
      %v448 = vsel %vm416, %v378, 0
      %v451 = vsel %vm416, %v386, 0
      %v454 = vsel %vm416, %v394, 0
      %v457 = vsel %vm416, %v402, 0
      %v460 = vsel %vm416, %v410, 0
      %vm462 = vcmask 1045504
      %v464 = vsel %vm462, %v415, 0
      %466 = vmatpush.bf16.msra.mxu0 0
      %467 = vmatpush.bf16.msra.mxu0 0
      %468 = vmatpush.bf16.msra.mxu0 0
      %469 = vmatpush.bf16.msra.mxu0 0
      %470 = vmatpush.bf16.msra.mxu0 0
      %471 = vmatpush.bf16.msra.mxu0 0
      %472 = vmatpush.bf16.msra.mxu0 0
      %473 = vmatpush.bf16.msra.mxu0 %v464
      %474 = vmatmul.bf16.gmra.mxu0 %v418
      %v475 = vpop.f32.mrf.mxu0
      %v476 = vadd.f32 0.0, %v475
      %v477 = vpop.f32.mrf.mxu0
      %v478 = vadd.f32 0.0, %v477
      %479 = vmatmul.bf16.gmra.mxu0 %v421
      %v480 = vpop.f32.mrf.mxu0
      %v481 = vadd.f32 0.0, %v480
      %v482 = vpop.f32.mrf.mxu0
      %v483 = vadd.f32 0.0, %v482
      %484 = vmatmul.bf16.gmra.mxu0 %v424
      %v485 = vpop.f32.mrf.mxu0
      %v486 = vadd.f32 0.0, %v485
      %v487 = vpop.f32.mrf.mxu0
      %v488 = vadd.f32 0.0, %v487
      %489 = vmatmul.bf16.gmra.mxu0 %v427
      %v490 = vpop.f32.mrf.mxu0
      %v491 = vadd.f32 0.0, %v490
      %v492 = vpop.f32.mrf.mxu0
      %v493 = vadd.f32 0.0, %v492
      %494 = vmatmul.bf16.gmra.mxu0 %v430
      %v495 = vpop.f32.mrf.mxu0
      %v496 = vadd.f32 0.0, %v495
      %v497 = vpop.f32.mrf.mxu0
      %v498 = vadd.f32 0.0, %v497
      %499 = vmatmul.bf16.gmra.mxu0 %v433
      %v500 = vpop.f32.mrf.mxu0
      %v501 = vadd.f32 0.0, %v500
      %v502 = vpop.f32.mrf.mxu0
      %v503 = vadd.f32 0.0, %v502
      %504 = vmatmul.bf16.gmra.mxu0 %v436
      %v505 = vpop.f32.mrf.mxu0
      %v506 = vadd.f32 0.0, %v505
      %v507 = vpop.f32.mrf.mxu0
      %v508 = vadd.f32 0.0, %v507
      %509 = vmatmul.bf16.gmra.mxu0 %v439
      %v510 = vpop.f32.mrf.mxu0
      %v511 = vadd.f32 0.0, %v510
      %v512 = vpop.f32.mrf.mxu0
      %v513 = vadd.f32 0.0, %v512
      %514 = vmatmul.bf16.gmra.mxu0 %v442
      %v515 = vpop.f32.mrf.mxu0
      %v516 = vadd.f32 0.0, %v515
      %v517 = vpop.f32.mrf.mxu0
      %v518 = vadd.f32 0.0, %v517
      %519 = vmatmul.bf16.gmra.mxu0 %v445
      %v520 = vpop.f32.mrf.mxu0
      %v521 = vadd.f32 0.0, %v520
      %v522 = vpop.f32.mrf.mxu0
      %v523 = vadd.f32 0.0, %v522
      %524 = vmatmul.bf16.gmra.mxu0 %v448
      %v525 = vpop.f32.mrf.mxu0
      %v526 = vadd.f32 0.0, %v525
      %v527 = vpop.f32.mrf.mxu0
      %v528 = vadd.f32 0.0, %v527
      %529 = vmatmul.bf16.gmra.mxu0 %v451
      %v530 = vpop.f32.mrf.mxu0
      %v531 = vadd.f32 0.0, %v530
      %v532 = vpop.f32.mrf.mxu0
      %v533 = vadd.f32 0.0, %v532
      %534 = vmatmul.bf16.gmra.mxu0 %v454
      %v535 = vpop.f32.mrf.mxu0
      %v536 = vadd.f32 0.0, %v535
      %v537 = vpop.f32.mrf.mxu0
      %v538 = vadd.f32 0.0, %v537
      %539 = vmatmul.bf16.gmra.mxu0 %v457
      %v540 = vpop.f32.mrf.mxu0
      %v541 = vadd.f32 0.0, %v540
      %v542 = vpop.f32.mrf.mxu0
      %v543 = vadd.f32 0.0, %v542
      %544 = vmatmul.bf16.gmra.mxu0 %v460
      %v545 = vpop.f32.mrf.mxu0
      %v546 = vadd.f32 0.0, %v545
      %v547 = vpop.f32.mrf.mxu0
      %v548 = vadd.f32 0.0, %v547
      %549 = vdwg.mxu0
      %v552 = vunpack.c.l.b16 %v202
      %v553 = vunpack.c.l.b16 %v203
      %v554 = vpack.c.b16 %v553, %v552
      %v555 = vsel %vm416, %v270, 0
      %v557 = vsel %vm416, %v271, 0
      %v559 = vsel %vm416, %v272, 0
      %v561 = vsel %vm416, %v273, 0
      %v563 = vsel %vm416, %v274, 0
      %v565 = vsel %vm416, %v275, 0
      %v567 = vsel %vm416, %v276, 0
      %v569 = vsel %vm416, %v277, 0
      %v571 = vsel %vm416, %v278, 0
      %v573 = vsel %vm416, %v279, 0
      %v575 = vsel %vm416, %v280, 0
      %v577 = vsel %vm416, %v281, 0
      %v579 = vsel %vm416, %v282, 0
      %v581 = vsel %vm416, %v283, 0
      %v583 = vsel %vm416, %v284, 0
      %v586 = vsel %vm462, %v554, 0
      %588 = vmatpush.bf16.msra.mxu0 0
      %589 = vmatpush.bf16.msra.mxu0 0
      %590 = vmatpush.bf16.msra.mxu0 0
      %591 = vmatpush.bf16.msra.mxu0 0
      %592 = vmatpush.bf16.msra.mxu0 0
      %593 = vmatpush.bf16.msra.mxu0 0
      %594 = vmatpush.bf16.msra.mxu0 0
      %595 = vmatpush.bf16.msra.mxu0 %v586
      %596 = vmatmul.bf16.gmra.mxu0 %v555
      %v597 = vpop.f32.mrf.mxu0
      %v598 = vadd.f32 %v476, %v597
      %v599 = vpop.f32.mrf.mxu0
      %v600 = vadd.f32 %v478, %v599
      %601 = vmatmul.bf16.gmra.mxu0 %v557
      %v602 = vpop.f32.mrf.mxu0
      %v603 = vadd.f32 %v481, %v602
      %v604 = vpop.f32.mrf.mxu0
      %v605 = vadd.f32 %v483, %v604
      %606 = vmatmul.bf16.gmra.mxu0 %v559
      %v607 = vpop.f32.mrf.mxu0
      %v608 = vadd.f32 %v486, %v607
      %v609 = vpop.f32.mrf.mxu0
      %v610 = vadd.f32 %v488, %v609
      %611 = vmatmul.bf16.gmra.mxu0 %v561
      %v612 = vpop.f32.mrf.mxu0
      %v613 = vadd.f32 %v491, %v612
      %v614 = vpop.f32.mrf.mxu0
      %v615 = vadd.f32 %v493, %v614
      %616 = vmatmul.bf16.gmra.mxu0 %v563
      %v617 = vpop.f32.mrf.mxu0
      %v618 = vadd.f32 %v496, %v617
      %v619 = vpop.f32.mrf.mxu0
      %v620 = vadd.f32 %v498, %v619
      %621 = vmatmul.bf16.gmra.mxu0 %v565
      %v622 = vpop.f32.mrf.mxu0
      %v623 = vadd.f32 %v501, %v622
      %v624 = vpop.f32.mrf.mxu0
      %v625 = vadd.f32 %v503, %v624
      %626 = vmatmul.bf16.gmra.mxu0 %v567
      %v627 = vpop.f32.mrf.mxu0
      %v628 = vadd.f32 %v506, %v627
      %v629 = vpop.f32.mrf.mxu0
      %v630 = vadd.f32 %v508, %v629
      %631 = vmatmul.bf16.gmra.mxu0 %v569
      %v632 = vpop.f32.mrf.mxu0
      %v633 = vadd.f32 %v511, %v632
      %v634 = vpop.f32.mrf.mxu0
      %v635 = vadd.f32 %v513, %v634
      %636 = vmatmul.bf16.gmra.mxu0 %v571
      %v637 = vpop.f32.mrf.mxu0
      %v638 = vadd.f32 %v516, %v637
      %v639 = vpop.f32.mrf.mxu0
      %v640 = vadd.f32 %v518, %v639
      %641 = vmatmul.bf16.gmra.mxu0 %v573
      %v642 = vpop.f32.mrf.mxu0
      %v643 = vadd.f32 %v521, %v642
      %v644 = vpop.f32.mrf.mxu0
      %v645 = vadd.f32 %v523, %v644
      %646 = vmatmul.bf16.gmra.mxu0 %v575
      %v647 = vpop.f32.mrf.mxu0
      %v648 = vadd.f32 %v526, %v647
      %v649 = vpop.f32.mrf.mxu0
      %v650 = vadd.f32 %v528, %v649
      %651 = vmatmul.bf16.gmra.mxu0 %v577
      %v652 = vpop.f32.mrf.mxu0
      %v653 = vadd.f32 %v531, %v652
      %v654 = vpop.f32.mrf.mxu0
      %v655 = vadd.f32 %v533, %v654
      %656 = vmatmul.bf16.gmra.mxu0 %v579
      %v657 = vpop.f32.mrf.mxu0
      %v658 = vadd.f32 %v536, %v657
      %v659 = vpop.f32.mrf.mxu0
      %v660 = vadd.f32 %v538, %v659
      %661 = vmatmul.bf16.gmra.mxu0 %v581
      %v662 = vpop.f32.mrf.mxu0
      %v663 = vadd.f32 %v541, %v662
      %v664 = vpop.f32.mrf.mxu0
      %v665 = vadd.f32 %v543, %v664
      %666 = vmatmul.bf16.gmra.mxu0 %v583
      %v667 = vpop.f32.mrf.mxu0
      %v668 = vadd.f32 %v546, %v667
      %v669 = vpop.f32.mrf.mxu0
      %v670 = vadd.f32 %v548, %v669
      %671 = vdwg.mxu0
      %v672 = vld [vmem:[%s165 + $0x8] sm:$0xf]
      %v673 = vld [vmem:[%s165 + $0xc] sm:$0xf]
      %v674 = vld [vmem:[%s165 + $0x10] sm:$0xf]
      %v675 = vld [vmem:[%s165 + $0x14] sm:$0xf]
      %v676 = vld [vmem:[%s165 + $0x18] sm:$0xf]
      %v677 = vld [vmem:[%s165 + $0x1c] sm:$0xf]
      %v678 = vld [vmem:[%s165 + $0x20] sm:$0xf]
      %v679 = vld [vmem:[%s165 + $0x24] sm:$0xf]
      %v680 = vld [vmem:[%s165 + $0x28] sm:$0xf]
      %v681 = vld [vmem:[%s165 + $0x2c] sm:$0xf]
      %v682 = vld [vmem:[%s165 + $0x30] sm:$0xf]
      %v683 = vld [vmem:[%s165 + $0x34] sm:$0xf]
      %v684 = vld [vmem:[%s165 + $0x38] sm:$0xf]
      %v685 = vld [vmem:[%s165 + $0x3c] sm:$0xf]
      %v686 = vld [vmem:[%s165 + $0x40] sm:$0xf]
      %v687 = vld [vmem:[%s165 + $0x44] sm:$0xf]
      %v688 = vld [vmem:[%s165 + $0x48] sm:$0xf]
      %v689 = vld [vmem:[%s165 + $0x4c] sm:$0xf]
      %v690 = vld [vmem:[%s165 + $0x50] sm:$0xf]
      %v691 = vld [vmem:[%s165 + $0x54] sm:$0xf]
      %v692 = vld [vmem:[%s165 + $0x58] sm:$0xf]
      %v693 = vld [vmem:[%s165 + $0x5c] sm:$0xf]
      %v694 = vld [vmem:[%s165 + $0x60] sm:$0xf]
      %v695 = vld [vmem:[%s165 + $0x64] sm:$0xf]
      %v696 = vld [vmem:[%s165 + $0x68] sm:$0xf]
      %v697 = vld [vmem:[%s165 + $0x6c] sm:$0xf]
      %v698 = vld [vmem:[%s165 + $0x70] sm:$0xf]
      %v699 = vld [vmem:[%s165 + $0x74] sm:$0xf]
      %v700 = vld [vmem:[%s165 + $0x78] sm:$0xf]
      %v701 = vld [vmem:[%s165 + $0x7c] sm:$0xf]
      %s702 = scalar_lea.vmem %s1, 16
      %v703 = vld [vmem:[%s702] sm:$0xf]
      %v704 = vld [vmem:[%s702 + $0x4] sm:$0x3]
      %v735 = vunpack.c.l.b16 %v672
      %v736 = vunpack.c.l.b16 %v673
      %v737 = vunpack.c.l.b16 %v674
      %v738 = vunpack.c.l.b16 %v675
      %v739 = vunpack.c.l.b16 %v676
      %v740 = vunpack.c.l.b16 %v677
      %v741 = vunpack.c.l.b16 %v678
      %v742 = vunpack.c.l.b16 %v679
      %v743 = vunpack.c.l.b16 %v680
      %v744 = vunpack.c.l.b16 %v681
      %v745 = vunpack.c.l.b16 %v682
      %v746 = vunpack.c.l.b16 %v683
      %v747 = vunpack.c.l.b16 %v684
      %v748 = vunpack.c.l.b16 %v685
      %v749 = vunpack.c.l.b16 %v686
      %v750 = vunpack.c.l.b16 %v687
      %v751 = vunpack.c.l.b16 %v688
      %v752 = vunpack.c.l.b16 %v689
      %v753 = vunpack.c.l.b16 %v690
      %v754 = vunpack.c.l.b16 %v691
      %v755 = vunpack.c.l.b16 %v692
      %v756 = vunpack.c.l.b16 %v693
      %v757 = vunpack.c.l.b16 %v694
      %v758 = vunpack.c.l.b16 %v695
      %v759 = vunpack.c.l.b16 %v696
      %v760 = vunpack.c.l.b16 %v697
      %v761 = vunpack.c.l.b16 %v698
      %v762 = vunpack.c.l.b16 %v699
      %v763 = vunpack.c.l.b16 %v700
      %v764 = vunpack.c.l.b16 %v701
      %v765 = vpack.c.b16 %v736, %v735
      %v766 = vpack.c.b16 %v738, %v737
      %v767 = vpack.c.b16 %v740, %v739
      %v768 = vpack.c.b16 %v742, %v741
      %v769 = vpack.c.b16 %v744, %v743
      %v770 = vpack.c.b16 %v746, %v745
      %v771 = vpack.c.b16 %v748, %v747
      %v772 = vpack.c.b16 %v750, %v749
      %v773 = vpack.c.b16 %v752, %v751
      %v774 = vpack.c.b16 %v754, %v753
      %v775 = vpack.c.b16 %v756, %v755
      %v776 = vpack.c.b16 %v758, %v757
      %v777 = vpack.c.b16 %v760, %v759
      %v778 = vpack.c.b16 %v762, %v761
      %v779 = vpack.c.b16 %v764, %v763
      %v782 = vunpack.c.l.b16 %v703
      %v783 = vunpack.c.l.b16 %v704
      %v784 = vpack.c.b16 %v783, %v782
      %v786 = vsel %vm416, %v765, 0
      %v789 = vsel %vm416, %v766, 0
      %v792 = vsel %vm416, %v767, 0
      %v795 = vsel %vm416, %v768, 0
      %v798 = vsel %vm416, %v769, 0
      %v801 = vsel %vm416, %v770, 0
      %v804 = vsel %vm416, %v771, 0
      %v807 = vsel %vm416, %v772, 0
      %v810 = vsel %vm416, %v773, 0
      %v813 = vsel %vm416, %v774, 0
      %v816 = vsel %vm416, %v775, 0
      %v819 = vsel %vm416, %v776, 0
      %v822 = vsel %vm416, %v777, 0
      %v825 = vsel %vm416, %v778, 0
      %v828 = vsel %vm416, %v779, 0
      %v831 = vsel %vm462, %v784, 0
      %833 = vmatpush.bf16.msra.mxu0 0
      %834 = vmatpush.bf16.msra.mxu0 0
      %835 = vmatpush.bf16.msra.mxu0 0
      %836 = vmatpush.bf16.msra.mxu0 0
      %837 = vmatpush.bf16.msra.mxu0 0
      %838 = vmatpush.bf16.msra.mxu0 0
      %839 = vmatpush.bf16.msra.mxu0 0
      %840 = vmatpush.bf16.msra.mxu0 %v831
      %841 = vmatmul.bf16.gmra.mxu0 %v786
      %v842 = vpop.f32.mrf.mxu0
      %v843 = vadd.f32 0.0, %v842
      %v844 = vpop.f32.mrf.mxu0
      %v845 = vadd.f32 0.0, %v844
      %846 = vmatmul.bf16.gmra.mxu0 %v789
      %v847 = vpop.f32.mrf.mxu0
      %v848 = vadd.f32 0.0, %v847
      %v849 = vpop.f32.mrf.mxu0
      %v850 = vadd.f32 0.0, %v849
      %851 = vmatmul.bf16.gmra.mxu0 %v792
      %v852 = vpop.f32.mrf.mxu0
      %v853 = vadd.f32 0.0, %v852
      %v854 = vpop.f32.mrf.mxu0
      %v855 = vadd.f32 0.0, %v854
      %856 = vmatmul.bf16.gmra.mxu0 %v795
      %v857 = vpop.f32.mrf.mxu0
      %v858 = vadd.f32 0.0, %v857
      %v859 = vpop.f32.mrf.mxu0
      %v860 = vadd.f32 0.0, %v859
      %861 = vmatmul.bf16.gmra.mxu0 %v798
      %v862 = vpop.f32.mrf.mxu0
      %v863 = vadd.f32 0.0, %v862
      %v864 = vpop.f32.mrf.mxu0
      %v865 = vadd.f32 0.0, %v864
      %866 = vmatmul.bf16.gmra.mxu0 %v801
      %v867 = vpop.f32.mrf.mxu0
      %v868 = vadd.f32 0.0, %v867
      %v869 = vpop.f32.mrf.mxu0
      %v870 = vadd.f32 0.0, %v869
      %871 = vmatmul.bf16.gmra.mxu0 %v804
      %v872 = vpop.f32.mrf.mxu0
      %v873 = vadd.f32 0.0, %v872
      %v874 = vpop.f32.mrf.mxu0
      %v875 = vadd.f32 0.0, %v874
      %876 = vmatmul.bf16.gmra.mxu0 %v807
      %v877 = vpop.f32.mrf.mxu0
      %v878 = vadd.f32 0.0, %v877
      %v879 = vpop.f32.mrf.mxu0
      %v880 = vadd.f32 0.0, %v879
      %881 = vmatmul.bf16.gmra.mxu0 %v810
      %v882 = vpop.f32.mrf.mxu0
      %v883 = vadd.f32 0.0, %v882
      %v884 = vpop.f32.mrf.mxu0
      %v885 = vadd.f32 0.0, %v884
      %886 = vmatmul.bf16.gmra.mxu0 %v813
      %v887 = vpop.f32.mrf.mxu0
      %v888 = vadd.f32 0.0, %v887
      %v889 = vpop.f32.mrf.mxu0
      %v890 = vadd.f32 0.0, %v889
      %891 = vmatmul.bf16.gmra.mxu0 %v816
      %v892 = vpop.f32.mrf.mxu0
      %v893 = vadd.f32 0.0, %v892
      %v894 = vpop.f32.mrf.mxu0
      %v895 = vadd.f32 0.0, %v894
      %896 = vmatmul.bf16.gmra.mxu0 %v819
      %v897 = vpop.f32.mrf.mxu0
      %v898 = vadd.f32 0.0, %v897
      %v899 = vpop.f32.mrf.mxu0
      %v900 = vadd.f32 0.0, %v899
      %901 = vmatmul.bf16.gmra.mxu0 %v822
      %v902 = vpop.f32.mrf.mxu0
      %v903 = vadd.f32 0.0, %v902
      %v904 = vpop.f32.mrf.mxu0
      %v905 = vadd.f32 0.0, %v904
      %906 = vmatmul.bf16.gmra.mxu0 %v825
      %v907 = vpop.f32.mrf.mxu0
      %v908 = vadd.f32 0.0, %v907
      %v909 = vpop.f32.mrf.mxu0
      %v910 = vadd.f32 0.0, %v909
      %911 = vmatmul.bf16.gmra.mxu0 %v828
      %v912 = vpop.f32.mrf.mxu0
      %v913 = vadd.f32 0.0, %v912
      %v914 = vpop.f32.mrf.mxu0
      %v915 = vadd.f32 0.0, %v914
      %916 = vdwg.mxu0
      %v917 = vadd.f32 %v598, %v843
      %v918 = vadd.f32 %v600, %v845
      %v919 = vadd.f32 %v603, %v848
      %v920 = vadd.f32 %v605, %v850
      %v921 = vadd.f32 %v608, %v853
      %v922 = vadd.f32 %v610, %v855
      %v923 = vadd.f32 %v613, %v858
      %v924 = vadd.f32 %v615, %v860
      %v925 = vadd.f32 %v618, %v863
      %v926 = vadd.f32 %v620, %v865
      %v927 = vadd.f32 %v623, %v868
      %v928 = vadd.f32 %v625, %v870
      %v929 = vadd.f32 %v628, %v873
      %v930 = vadd.f32 %v630, %v875
      %v931 = vadd.f32 %v633, %v878
      %v932 = vadd.f32 %v635, %v880
      %v933 = vadd.f32 %v638, %v883
      %v934 = vadd.f32 %v640, %v885
      %v935 = vadd.f32 %v643, %v888
      %v936 = vadd.f32 %v645, %v890
      %v937 = vadd.f32 %v648, %v893
      %v938 = vadd.f32 %v650, %v895
      %v939 = vadd.f32 %v653, %v898
      %v940 = vadd.f32 %v655, %v900
      %v941 = vadd.f32 %v658, %v903
      %v942 = vadd.f32 %v660, %v905
      %v943 = vadd.f32 %v663, %v908
      %v944 = vadd.f32 %v665, %v910
      %v945 = vadd.f32 %v668, %v913
      %v946 = vadd.f32 %v670, %v915
      %v947 = vld [vmem:[%s165 + $0x8] sm:$0xf]
      %v948 = vld [vmem:[%s165 + $0xc] sm:$0xf]
      %v949 = vld [vmem:[%s165 + $0x10] sm:$0xf]
      %v950 = vld [vmem:[%s165 + $0x14] sm:$0xf]
      %v951 = vld [vmem:[%s165 + $0x18] sm:$0xf]
      %v952 = vld [vmem:[%s165 + $0x1c] sm:$0xf]
      %v953 = vld [vmem:[%s165 + $0x20] sm:$0xf]
      %v954 = vld [vmem:[%s165 + $0x24] sm:$0xf]
      %v955 = vld [vmem:[%s165 + $0x28] sm:$0xf]
      %v956 = vld [vmem:[%s165 + $0x2c] sm:$0xf]
      %v957 = vld [vmem:[%s165 + $0x30] sm:$0xf]
      %v958 = vld [vmem:[%s165 + $0x34] sm:$0xf]
      %v959 = vld [vmem:[%s165 + $0x38] sm:$0xf]
      %v960 = vld [vmem:[%s165 + $0x3c] sm:$0xf]
      %v961 = vld [vmem:[%s165 + $0x40] sm:$0xf]
      %v962 = vld [vmem:[%s165 + $0x44] sm:$0xf]
      %v963 = vld [vmem:[%s165 + $0x48] sm:$0xf]
      %v964 = vld [vmem:[%s165 + $0x4c] sm:$0xf]
      %v965 = vld [vmem:[%s165 + $0x50] sm:$0xf]
      %v966 = vld [vmem:[%s165 + $0x54] sm:$0xf]
      %v967 = vld [vmem:[%s165 + $0x58] sm:$0xf]
      %v968 = vld [vmem:[%s165 + $0x5c] sm:$0xf]
      %v969 = vld [vmem:[%s165 + $0x60] sm:$0xf]
      %v970 = vld [vmem:[%s165 + $0x64] sm:$0xf]
      %v971 = vld [vmem:[%s165 + $0x68] sm:$0xf]
      %v972 = vld [vmem:[%s165 + $0x6c] sm:$0xf]
      %v973 = vld [vmem:[%s165 + $0x70] sm:$0xf]
      %v974 = vld [vmem:[%s165 + $0x74] sm:$0xf]
      %v975 = vld [vmem:[%s165 + $0x78] sm:$0xf]
      %v976 = vld [vmem:[%s165 + $0x7c] sm:$0xf]
      %v977 = vld [vmem:[%s165 + $0x80] sm:$0x1]
      %s978 = scalar_lea.vmem %s1, 24
      %v979 = vld [vmem:[%s978] sm:$0xf]
      %v980 = vld [vmem:[%s978 + $0x4] sm:$0x3]
      %v1012 = vunpack.c.l.b16 %v947
      %v1013 = vunpack.c.l.b16 %v948
      %v1014 = vunpack.c.l.b16 %v949
      %v1015 = vunpack.c.l.b16 %v950
      %v1016 = vunpack.c.l.b16 %v951
      %v1017 = vunpack.c.l.b16 %v952
      %v1018 = vunpack.c.l.b16 %v953
      %v1019 = vunpack.c.l.b16 %v954
      %v1020 = vunpack.c.l.b16 %v955
      %v1021 = vunpack.c.l.b16 %v956
      %v1022 = vunpack.c.l.b16 %v957
      %v1023 = vunpack.c.l.b16 %v958
      %v1024 = vunpack.c.l.b16 %v959
      %v1025 = vunpack.c.l.b16 %v960
      %v1026 = vunpack.c.l.b16 %v961
      %v1027 = vunpack.c.l.b16 %v962
      %v1028 = vunpack.c.l.b16 %v963
      %v1029 = vunpack.c.l.b16 %v964
      %v1030 = vunpack.c.l.b16 %v965
      %v1031 = vunpack.c.l.b16 %v966
      %v1032 = vunpack.c.l.b16 %v967
      %v1033 = vunpack.c.l.b16 %v968
      %v1034 = vunpack.c.l.b16 %v969
      %v1035 = vunpack.c.l.b16 %v970
      %v1036 = vunpack.c.l.b16 %v971
      %v1037 = vunpack.c.l.b16 %v972
      %v1038 = vunpack.c.l.b16 %v973
      %v1039 = vunpack.c.l.b16 %v974
      %v1040 = vunpack.c.l.b16 %v975
      %v1041 = vunpack.c.l.b16 %v976
      %v1042 = vunpack.c.l.b16 %v977
      %v1043 = vpack.c.b16 %v1013, %v1012
      %v1044 = vpack.c.b16 %v1015, %v1014
      %v1045 = vpack.c.b16 %v1017, %v1016
      %v1046 = vpack.c.b16 %v1019, %v1018
      %v1047 = vpack.c.b16 %v1021, %v1020
      %v1048 = vpack.c.b16 %v1023, %v1022
      %v1049 = vpack.c.b16 %v1025, %v1024
      %v1050 = vpack.c.b16 %v1027, %v1026
      %v1051 = vpack.c.b16 %v1029, %v1028
      %v1052 = vpack.c.b16 %v1031, %v1030
      %v1053 = vpack.c.b16 %v1033, %v1032
      %v1054 = vpack.c.b16 %v1035, %v1034
      %v1055 = vpack.c.b16 %v1037, %v1036
      %v1056 = vpack.c.b16 %v1039, %v1038
      %v1057 = vpack.c.b16 %v1041, %v1040
      %v1058 = vpack.c.b16 %v1042, %v1042
      %v1060 = vshrl.u32 %v1043, 16
      %v1062 = vshll.u32 %v1043, 16
      %v1064 = vrot.slane %v1062, 1
      %v1065 = vor.u32 %v1060, %v1064
      %v1067 = vshll.u32 %v1044, 16
      %v1069 = vrot.slane %v1067, 1
      %v1070 = vsel %vm286, %v1065, %v1069
      %v1071 = vshrl.u32 %v1044, 16
      %v1073 = vor.u32 %v1071, %v1069
      %v1075 = vshll.u32 %v1045, 16
      %v1077 = vrot.slane %v1075, 1
      %v1078 = vsel %vm286, %v1073, %v1077
      %v1079 = vshrl.u32 %v1045, 16
      %v1081 = vor.u32 %v1079, %v1077
      %v1083 = vshll.u32 %v1046, 16
      %v1085 = vrot.slane %v1083, 1
      %v1086 = vsel %vm286, %v1081, %v1085
      %v1087 = vshrl.u32 %v1046, 16
      %v1089 = vor.u32 %v1087, %v1085
      %v1091 = vshll.u32 %v1047, 16
      %v1093 = vrot.slane %v1091, 1
      %v1094 = vsel %vm286, %v1089, %v1093
      %v1095 = vshrl.u32 %v1047, 16
      %v1097 = vor.u32 %v1095, %v1093
      %v1099 = vshll.u32 %v1048, 16
      %v1101 = vrot.slane %v1099, 1
      %v1102 = vsel %vm286, %v1097, %v1101
      %v1103 = vshrl.u32 %v1048, 16
      %v1105 = vor.u32 %v1103, %v1101
      %v1107 = vshll.u32 %v1049, 16
      %v1109 = vrot.slane %v1107, 1
      %v1110 = vsel %vm286, %v1105, %v1109
      %v1111 = vshrl.u32 %v1049, 16
      %v1113 = vor.u32 %v1111, %v1109
      %v1115 = vshll.u32 %v1050, 16
      %v1117 = vrot.slane %v1115, 1
      %v1118 = vsel %vm286, %v1113, %v1117
      %v1119 = vshrl.u32 %v1050, 16
      %v1121 = vor.u32 %v1119, %v1117
      %v1123 = vshll.u32 %v1051, 16
      %v1125 = vrot.slane %v1123, 1
      %v1126 = vsel %vm286, %v1121, %v1125
      %v1127 = vshrl.u32 %v1051, 16
      %v1129 = vor.u32 %v1127, %v1125
      %v1131 = vshll.u32 %v1052, 16
      %v1133 = vrot.slane %v1131, 1
      %v1134 = vsel %vm286, %v1129, %v1133
      %v1135 = vshrl.u32 %v1052, 16
      %v1137 = vor.u32 %v1135, %v1133
      %v1139 = vshll.u32 %v1053, 16
      %v1141 = vrot.slane %v1139, 1
      %v1142 = vsel %vm286, %v1137, %v1141
      %v1143 = vshrl.u32 %v1053, 16
      %v1145 = vor.u32 %v1143, %v1141
      %v1147 = vshll.u32 %v1054, 16
      %v1149 = vrot.slane %v1147, 1
      %v1150 = vsel %vm286, %v1145, %v1149
      %v1151 = vshrl.u32 %v1054, 16
      %v1153 = vor.u32 %v1151, %v1149
      %v1155 = vshll.u32 %v1055, 16
      %v1157 = vrot.slane %v1155, 1
      %v1158 = vsel %vm286, %v1153, %v1157
      %v1159 = vshrl.u32 %v1055, 16
      %v1161 = vor.u32 %v1159, %v1157
      %v1163 = vshll.u32 %v1056, 16
      %v1165 = vrot.slane %v1163, 1
      %v1166 = vsel %vm286, %v1161, %v1165
      %v1167 = vshrl.u32 %v1056, 16
      %v1169 = vor.u32 %v1167, %v1165
      %v1171 = vshll.u32 %v1057, 16
      %v1173 = vrot.slane %v1171, 1
      %v1174 = vsel %vm286, %v1169, %v1173
      %v1175 = vshrl.u32 %v1057, 16
      %v1177 = vor.u32 %v1175, %v1173
      %v1179 = vshll.u32 %v1058, 16
      %v1181 = vrot.slane %v1179, 1
      %v1182 = vsel %vm286, %v1177, %v1181
      %v1185 = vunpack.c.l.b16 %v979
      %v1186 = vunpack.c.l.b16 %v980
      %v1187 = vpack.c.b16 %v1186, %v1185
      %v1189 = vsel %vm416, %v1070, 0
      %v1192 = vsel %vm416, %v1078, 0
      %v1195 = vsel %vm416, %v1086, 0
      %v1198 = vsel %vm416, %v1094, 0
      %v1201 = vsel %vm416, %v1102, 0
      %v1204 = vsel %vm416, %v1110, 0
      %v1207 = vsel %vm416, %v1118, 0
      %v1210 = vsel %vm416, %v1126, 0
      %v1213 = vsel %vm416, %v1134, 0
      %v1216 = vsel %vm416, %v1142, 0
      %v1219 = vsel %vm416, %v1150, 0
      %v1222 = vsel %vm416, %v1158, 0
      %v1225 = vsel %vm416, %v1166, 0
      %v1228 = vsel %vm416, %v1174, 0
      %v1231 = vsel %vm416, %v1182, 0
      %v1234 = vsel %vm462, %v1187, 0
      %1236 = vmatpush.bf16.msra.mxu0 0
      %1237 = vmatpush.bf16.msra.mxu0 0
      %1238 = vmatpush.bf16.msra.mxu0 0
      %1239 = vmatpush.bf16.msra.mxu0 0
      %1240 = vmatpush.bf16.msra.mxu0 0
      %1241 = vmatpush.bf16.msra.mxu0 0
      %1242 = vmatpush.bf16.msra.mxu0 0
      %1243 = vmatpush.bf16.msra.mxu0 %v1234
      %1244 = vmatmul.bf16.gmra.mxu0 %v1189
      %v1245 = vpop.f32.mrf.mxu0
      %v1246 = vadd.f32 0.0, %v1245
      %v1247 = vpop.f32.mrf.mxu0
      %v1248 = vadd.f32 0.0, %v1247
      %1249 = vmatmul.bf16.gmra.mxu0 %v1192
      %v1250 = vpop.f32.mrf.mxu0
      %v1251 = vadd.f32 0.0, %v1250
      %v1252 = vpop.f32.mrf.mxu0
      %v1253 = vadd.f32 0.0, %v1252
      %1254 = vmatmul.bf16.gmra.mxu0 %v1195
      %v1255 = vpop.f32.mrf.mxu0
      %v1256 = vadd.f32 0.0, %v1255
      %v1257 = vpop.f32.mrf.mxu0
      %v1258 = vadd.f32 0.0, %v1257
      %1259 = vmatmul.bf16.gmra.mxu0 %v1198
      %v1260 = vpop.f32.mrf.mxu0
      %v1261 = vadd.f32 0.0, %v1260
      %v1262 = vpop.f32.mrf.mxu0
      %v1263 = vadd.f32 0.0, %v1262
      %1264 = vmatmul.bf16.gmra.mxu0 %v1201
      %v1265 = vpop.f32.mrf.mxu0
      %v1266 = vadd.f32 0.0, %v1265
      %v1267 = vpop.f32.mrf.mxu0
      %v1268 = vadd.f32 0.0, %v1267
      %1269 = vmatmul.bf16.gmra.mxu0 %v1204
      %v1270 = vpop.f32.mrf.mxu0
      %v1271 = vadd.f32 0.0, %v1270
      %v1272 = vpop.f32.mrf.mxu0
      %v1273 = vadd.f32 0.0, %v1272
      %1274 = vmatmul.bf16.gmra.mxu0 %v1207
      %v1275 = vpop.f32.mrf.mxu0
      %v1276 = vadd.f32 0.0, %v1275
      %v1277 = vpop.f32.mrf.mxu0
      %v1278 = vadd.f32 0.0, %v1277
      %1279 = vmatmul.bf16.gmra.mxu0 %v1210
      %v1280 = vpop.f32.mrf.mxu0
      %v1281 = vadd.f32 0.0, %v1280
      %v1282 = vpop.f32.mrf.mxu0
      %v1283 = vadd.f32 0.0, %v1282
      %1284 = vmatmul.bf16.gmra.mxu0 %v1213
      %v1285 = vpop.f32.mrf.mxu0
      %v1286 = vadd.f32 0.0, %v1285
      %v1287 = vpop.f32.mrf.mxu0
      %v1288 = vadd.f32 0.0, %v1287
      %1289 = vmatmul.bf16.gmra.mxu0 %v1216
      %v1290 = vpop.f32.mrf.mxu0
      %v1291 = vadd.f32 0.0, %v1290
      %v1292 = vpop.f32.mrf.mxu0
      %v1293 = vadd.f32 0.0, %v1292
      %1294 = vmatmul.bf16.gmra.mxu0 %v1219
      %v1295 = vpop.f32.mrf.mxu0
      %v1296 = vadd.f32 0.0, %v1295
      %v1297 = vpop.f32.mrf.mxu0
      %v1298 = vadd.f32 0.0, %v1297
      %1299 = vmatmul.bf16.gmra.mxu0 %v1222
      %v1300 = vpop.f32.mrf.mxu0
      %v1301 = vadd.f32 0.0, %v1300
      %v1302 = vpop.f32.mrf.mxu0
      %v1303 = vadd.f32 0.0, %v1302
      %1304 = vmatmul.bf16.gmra.mxu0 %v1225
      %v1305 = vpop.f32.mrf.mxu0
      %v1306 = vadd.f32 0.0, %v1305
      %v1307 = vpop.f32.mrf.mxu0
      %v1308 = vadd.f32 0.0, %v1307
      %1309 = vmatmul.bf16.gmra.mxu0 %v1228
      %v1310 = vpop.f32.mrf.mxu0
      %v1311 = vadd.f32 0.0, %v1310
      %v1312 = vpop.f32.mrf.mxu0
      %v1313 = vadd.f32 0.0, %v1312
      %1314 = vmatmul.bf16.gmra.mxu0 %v1231
      %v1315 = vpop.f32.mrf.mxu0
      %v1316 = vadd.f32 0.0, %v1315
      %v1317 = vpop.f32.mrf.mxu0
      %v1318 = vadd.f32 0.0, %v1317
      %1319 = vdwg.mxu0
      %v1320 = vadd.f32 %v917, %v1246
      %v1321 = vadd.f32 %v918, %v1248
      %v1322 = vadd.f32 %v919, %v1251
      %v1323 = vadd.f32 %v920, %v1253
      %v1324 = vadd.f32 %v921, %v1256
      %v1325 = vadd.f32 %v922, %v1258
      %v1326 = vadd.f32 %v923, %v1261
      %v1327 = vadd.f32 %v924, %v1263
      %v1328 = vadd.f32 %v925, %v1266
      %v1329 = vadd.f32 %v926, %v1268
      %v1330 = vadd.f32 %v927, %v1271
      %v1331 = vadd.f32 %v928, %v1273
      %v1332 = vadd.f32 %v929, %v1276
      %v1333 = vadd.f32 %v930, %v1278
      %v1334 = vadd.f32 %v931, %v1281
      %v1335 = vadd.f32 %v932, %v1283
      %v1336 = vadd.f32 %v933, %v1286
      %v1337 = vadd.f32 %v934, %v1288
      %v1338 = vadd.f32 %v935, %v1291
      %v1339 = vadd.f32 %v936, %v1293
      %v1340 = vadd.f32 %v937, %v1296
      %v1341 = vadd.f32 %v938, %v1298
      %v1342 = vadd.f32 %v939, %v1301
      %v1343 = vadd.f32 %v940, %v1303
      %v1344 = vadd.f32 %v941, %v1306
      %v1345 = vadd.f32 %v942, %v1308
      %v1346 = vadd.f32 %v943, %v1311
      %v1347 = vadd.f32 %v944, %v1313
      %v1348 = vadd.f32 %v945, %v1316
      %v1349 = vadd.f32 %v946, %v1318
      %v1350 = vld [vmem:[%s2] sm:$0x1]
      %v1352 = vperm.slane %v1350, 0
      %v1354 = vadd.f32 %v1320, %v1352
      %v1355 = vadd.f32 %v1321, %v1352
      %v1356 = vadd.f32 %v1322, %v1352
      %v1357 = vadd.f32 %v1323, %v1352
      %v1358 = vadd.f32 %v1324, %v1352
      %v1359 = vadd.f32 %v1325, %v1352
      %v1360 = vadd.f32 %v1326, %v1352
      %v1361 = vadd.f32 %v1327, %v1352
      %v1362 = vadd.f32 %v1328, %v1352
      %v1363 = vadd.f32 %v1329, %v1352
      %v1364 = vadd.f32 %v1330, %v1352
      %v1365 = vadd.f32 %v1331, %v1352
      %v1366 = vadd.f32 %v1332, %v1352
      %v1367 = vadd.f32 %v1333, %v1352
      %v1368 = vadd.f32 %v1334, %v1352
      %v1369 = vadd.f32 %v1335, %v1352
      %v1370 = vadd.f32 %v1336, %v1352
      %v1371 = vadd.f32 %v1337, %v1352
      %v1372 = vadd.f32 %v1338, %v1352
      %v1373 = vadd.f32 %v1339, %v1352
      %v1374 = vadd.f32 %v1340, %v1352
      %v1375 = vadd.f32 %v1341, %v1352
      %v1376 = vadd.f32 %v1342, %v1352
      %v1377 = vadd.f32 %v1343, %v1352
      %v1378 = vadd.f32 %v1344, %v1352
      %v1379 = vadd.f32 %v1345, %v1352
      %v1380 = vadd.f32 %v1346, %v1352
      %v1381 = vadd.f32 %v1347, %v1352
      %v1382 = vadd.f32 %v1348, %v1352
      %v1383 = vadd.f32 %v1349, %v1352
      %v1384 = vmul.f32 %v1354, 0.2
      %v1385 = vmul.f32 %v1355, 0.2
      %v1386 = vmul.f32 %v1356, 0.2
      %v1387 = vmul.f32 %v1357, 0.2
      %v1388 = vmul.f32 %v1358, 0.2
      %v1389 = vmul.f32 %v1359, 0.2
      %v1390 = vmul.f32 %v1360, 0.2
      %v1391 = vmul.f32 %v1361, 0.2
      %v1392 = vmul.f32 %v1362, 0.2
      %v1393 = vmul.f32 %v1363, 0.2
      %v1394 = vmul.f32 %v1364, 0.2
      %v1395 = vmul.f32 %v1365, 0.2
      %v1396 = vmul.f32 %v1366, 0.2
      %v1397 = vmul.f32 %v1367, 0.2
      %v1398 = vmul.f32 %v1368, 0.2
      %v1399 = vmul.f32 %v1369, 0.2
      %v1400 = vmul.f32 %v1370, 0.2
      %v1401 = vmul.f32 %v1371, 0.2
      %v1402 = vmul.f32 %v1372, 0.2
      %v1403 = vmul.f32 %v1373, 0.2
      %v1404 = vmul.f32 %v1374, 0.2
      %v1405 = vmul.f32 %v1375, 0.2
      %v1406 = vmul.f32 %v1376, 0.2
      %v1407 = vmul.f32 %v1377, 0.2
      %v1408 = vmul.f32 %v1378, 0.2
      %v1409 = vmul.f32 %v1379, 0.2
      %v1410 = vmul.f32 %v1380, 0.2
      %v1411 = vmul.f32 %v1381, 0.2
      %v1412 = vmul.f32 %v1382, 0.2
      %v1413 = vmul.f32 %v1383, 0.2
      %v1414 = vmax.f32 %v1354, %v1384
      %v1415 = vmax.f32 %v1355, %v1385
      %v1416 = vmax.f32 %v1356, %v1386
      %v1417 = vmax.f32 %v1357, %v1387
      %v1418 = vmax.f32 %v1358, %v1388
      %v1419 = vmax.f32 %v1359, %v1389
      %v1420 = vmax.f32 %v1360, %v1390
      %v1421 = vmax.f32 %v1361, %v1391
      %v1422 = vmax.f32 %v1362, %v1392
      %v1423 = vmax.f32 %v1363, %v1393
      %v1424 = vmax.f32 %v1364, %v1394
      %v1425 = vmax.f32 %v1365, %v1395
      %v1426 = vmax.f32 %v1366, %v1396
      %v1427 = vmax.f32 %v1367, %v1397
      %v1428 = vmax.f32 %v1368, %v1398
      %v1429 = vmax.f32 %v1369, %v1399
      %v1430 = vmax.f32 %v1370, %v1400
      %v1431 = vmax.f32 %v1371, %v1401
      %v1432 = vmax.f32 %v1372, %v1402
      %v1433 = vmax.f32 %v1373, %v1403
      %v1434 = vmax.f32 %v1374, %v1404
      %v1435 = vmax.f32 %v1375, %v1405
      %v1436 = vmax.f32 %v1376, %v1406
      %v1437 = vmax.f32 %v1377, %v1407
      %v1438 = vmax.f32 %v1378, %v1408
      %v1439 = vmax.f32 %v1379, %v1409
      %v1440 = vmax.f32 %v1380, %v1410
      %v1441 = vmax.f32 %v1381, %v1411
      %v1442 = vmax.f32 %v1382, %v1412
      %v1443 = vmax.f32 %v1383, %v1413
      %v1444 = vpack.c.bf16 %v1414, %v1414
      %v1445 = vpack.c.bf16 %v1415, %v1415
      %v1446 = vpack.c.bf16 %v1416, %v1416
      %v1447 = vpack.c.bf16 %v1417, %v1417
      %v1448 = vpack.c.bf16 %v1418, %v1418
      %v1449 = vpack.c.bf16 %v1419, %v1419
      %v1450 = vpack.c.bf16 %v1420, %v1420
      %v1451 = vpack.c.bf16 %v1421, %v1421
      %v1452 = vpack.c.bf16 %v1422, %v1422
      %v1453 = vpack.c.bf16 %v1423, %v1423
      %v1454 = vpack.c.bf16 %v1424, %v1424
      %v1455 = vpack.c.bf16 %v1425, %v1425
      %v1456 = vpack.c.bf16 %v1426, %v1426
      %v1457 = vpack.c.bf16 %v1427, %v1427
      %v1458 = vpack.c.bf16 %v1428, %v1428
      %v1459 = vpack.c.bf16 %v1429, %v1429
      %v1460 = vpack.c.bf16 %v1430, %v1430
      %v1461 = vpack.c.bf16 %v1431, %v1431
      %v1462 = vpack.c.bf16 %v1432, %v1432
      %v1463 = vpack.c.bf16 %v1433, %v1433
      %v1464 = vpack.c.bf16 %v1434, %v1434
      %v1465 = vpack.c.bf16 %v1435, %v1435
      %v1466 = vpack.c.bf16 %v1436, %v1436
      %v1467 = vpack.c.bf16 %v1437, %v1437
      %v1468 = vpack.c.bf16 %v1438, %v1438
      %v1469 = vpack.c.bf16 %v1439, %v1439
      %v1470 = vpack.c.bf16 %v1440, %v1440
      %v1471 = vpack.c.bf16 %v1441, %v1441
      %v1472 = vpack.c.bf16 %v1442, %v1442
      %v1473 = vpack.c.bf16 %v1443, %v1443
      %vm1474 = vcmask 519168
      %1475 = vst.msk [vmem:[%s170] sm:$0xf] %vm1474, %v1444
      %1476 = vst.msk [vmem:[%s170 + $0x4] sm:$0xf] %vm1474, %v1445
      %1477 = vst.msk [vmem:[%s170 + $0x8] sm:$0xf] %vm1474, %v1446
      %1478 = vst.msk [vmem:[%s170 + $0xc] sm:$0xf] %vm1474, %v1447
      %1479 = vst.msk [vmem:[%s170 + $0x10] sm:$0xf] %vm1474, %v1448
      %1480 = vst.msk [vmem:[%s170 + $0x14] sm:$0xf] %vm1474, %v1449
      %1481 = vst.msk [vmem:[%s170 + $0x18] sm:$0xf] %vm1474, %v1450
      %1482 = vst.msk [vmem:[%s170 + $0x1c] sm:$0xf] %vm1474, %v1451
      %1483 = vst.msk [vmem:[%s170 + $0x20] sm:$0xf] %vm1474, %v1452
      %1484 = vst.msk [vmem:[%s170 + $0x24] sm:$0xf] %vm1474, %v1453
      %1485 = vst.msk [vmem:[%s170 + $0x28] sm:$0xf] %vm1474, %v1454
      %1486 = vst.msk [vmem:[%s170 + $0x2c] sm:$0xf] %vm1474, %v1455
      %1487 = vst.msk [vmem:[%s170 + $0x30] sm:$0xf] %vm1474, %v1456
      %1488 = vst.msk [vmem:[%s170 + $0x34] sm:$0xf] %vm1474, %v1457
      %1489 = vst.msk [vmem:[%s170 + $0x38] sm:$0xf] %vm1474, %v1458
      %1490 = vst.msk [vmem:[%s170 + $0x3c] sm:$0xf] %vm1474, %v1459
      %1491 = vst.msk [vmem:[%s170 + $0x40] sm:$0xf] %vm1474, %v1460
      %1492 = vst.msk [vmem:[%s170 + $0x44] sm:$0xf] %vm1474, %v1461
      %1493 = vst.msk [vmem:[%s170 + $0x48] sm:$0xf] %vm1474, %v1462
      %1494 = vst.msk [vmem:[%s170 + $0x4c] sm:$0xf] %vm1474, %v1463
      %1495 = vst.msk [vmem:[%s170 + $0x50] sm:$0xf] %vm1474, %v1464
      %1496 = vst.msk [vmem:[%s170 + $0x54] sm:$0xf] %vm1474, %v1465
      %1497 = vst.msk [vmem:[%s170 + $0x58] sm:$0xf] %vm1474, %v1466
      %1498 = vst.msk [vmem:[%s170 + $0x5c] sm:$0xf] %vm1474, %v1467
      %1499 = vst.msk [vmem:[%s170 + $0x60] sm:$0xf] %vm1474, %v1468
      %1500 = vst.msk [vmem:[%s170 + $0x64] sm:$0xf] %vm1474, %v1469
      %1501 = vst.msk [vmem:[%s170 + $0x68] sm:$0xf] %vm1474, %v1470
      %1502 = vst.msk [vmem:[%s170 + $0x6c] sm:$0xf] %vm1474, %v1471
      %1503 = vst.msk [vmem:[%s170 + $0x70] sm:$0xf] %vm1474, %v1472
      %1504 = vst.msk [vmem:[%s170 + $0x74] sm:$0xf] %vm1474, %v1473
      %p1505 = scmp.lt.s32.totalorder %s14, 1
      %s1506 = scalar_select %p1505, %s14, 1
      %s1507 = smul.addr %s1506, 30
      %s1508 = smul.addr %s1507, 4
      %s1509 = scalar_lea.vmem %s3, %s1508
      // Predicated region
      $region33: #{encoder_forward.4} parent=31 // pred_check
        %p1510 = pneg %p100
      $region34: #{encoder_forward.4} parent=31 // pred_check_branch
        %1512 = sbr.rel (%p1510) target = $region36
      $region35: #{encoder_forward.4} parent=31 // pred_region
        _
      $region36: #{encoder_forward.4} parent=31 // pred_fallthru
        _
    $region32: #{encoder_forward.4} parent=5 // pred_fallthru
      _
    %p1513 = scmp.le.s32.totalorder 2, %s9
    // Predicated region
    $region37: #{encoder_forward.4} parent=5 // pred_check
      %p1514 = pneg %p1513
    $region38: #{encoder_forward.4} parent=5 // pred_check_branch
      %1516 = sbr.rel (%p1514) target = $region40
    $region39: #{encoder_forward.4} parent=5 // pred_region
      %s1517 = ssub.s32 %s9, 2
      // Predicated region
      $region41: #{encoder_forward.4} parent=39 // pred_check
        %p1518 = pneg %p106
      $region42: #{encoder_forward.4} parent=39 // pred_check_branch
        %1520 = sbr.rel (%p1518) target = $region44
      $region43: #{encoder_forward.4} parent=39 // pred_region
        %p1521 = scmp.lt.s32.totalorder %s15, 1
        %s1522 = scalar_select %p1521, %s15, 1
        %s1523 = smul.addr %s1522, 30
        %s1524 = smul.addr %s1523, 4
        %s1525 = scalar_lea.vmem %s3, %s1524
      $region44: #{encoder_forward.4} parent=39 // pred_fallthru
        _
    $region40: #{encoder_forward.4} parent=5 // pred_fallthru
      _
  $region6: #{encoder_forward.4} parent=0 // loop_footer
    %s13 = sadd.s32 1, %s9
  $region7: #{encoder_forward.4} parent=0 // loop_footer_branch
    %8 = sbr.rel target = $region3
  $region8: #{encoder_forward.4} parent=0 // loop_exit
    _

// kernel: encoder_forward.5
$region0: #{encoder_forward.5}
  #allocation0 [shape = 'u32[]', space=smem, size = 0x4, offset = 0x4, fixed_abs, tag = 'smem constant byte address 0x4 - core index']
  #allocation1 [shape = 'u32[72,128]{1,0:T(1,128)}', space=vmem, size = 0x9000, scoped, tag = 'internal scratch']
  %s0 = inlined_call_operand.vmem [shape: bf16[2,88,256], index: 0, kind: input, shape index: {}]
  %s1 = inlined_call_operand.vmem [shape: bf16[4,256,128], index: 1, kind: input, shape index: {}]
  %s2 = inlined_call_operand.vmem [shape: f32[1,128], index: 2, kind: input, shape index: {}]
  %s3 = inlined_call_operand.vmem [shape: bf16[2,64,128], index: 3, kind: output, shape index: {}]
  %s4 = sld [smem:[#allocation0]]
  $region45: #{encoder_forward.5} parent=0
    _
  %s6 = ssub.s32 1, %s4
  %s7 = scalar_select 0, %s6, %s4
  loop: start=0, step=1, limit=4
  $region2: #{encoder_forward.5} parent=0 // loop_pre_header
    _
  $region3: #{encoder_forward.5} parent=0 // loop_header
    %s9 = sphi 0, %s13
    %p10 = scmp.ge.s32.totalorder %s9, 4
    %s19 = sphi 0, %s21
    %s22 = sphi 0, %s19
    %s23 = sphi 0, %s22
    %s39 = sphi 0, %s23
    %s43 = sphi 0, %s43
    %s45 = sphi 0, %s43
    %s46 = sphi 0, %s45
    %s60 = sphi 0, %s46
    %s64 = sphi 0, %s64
    %s66 = sphi 0, %s64
    %s67 = sphi 0, %s66
    %s81 = sphi 0, %s67
    %s87 = sphi 0, %s89
    %s90 = sphi 0, %s87
    %s91 = sphi 0, %s90
    %s107 = sphi 0, %s91
  $region4: #{encoder_forward.5} parent=0 // loop_header_branch
    %12 = sbr.rel (%p10) target = $region8
  $region5: #{encoder_forward.5} parent=0 // loop_body
    %s14 = ssub.s32 %s9, 1
    %s15 = ssub.s32 %s9, 2
    %s16 = sadd.s32 %s9, 1
    %s17 = ssub.s32 %s9, %s16
    %p18 = scmp.eq.s32.totalorder %s17, 0
    %s20 = sadd.s32 %s19, 1
    %s21 = scalar_select %p18, %s19, %s20
    %p24 = pneg %p18
    %p25 = scmp.eq.s32.totalorder %s9, 1
    %p26 = por %p24, %p25
    %p27 = scmp.ne.s32.totalorder %s19, %s22
    %p28 = scmp.eq.s32.totalorder %s9, 0
    %p29 = por %p27, %p28
    %p30 = scmp.ne.s32.totalorder %s19, %s22
    %p31 = scmp.eq.s32.totalorder %s14, 1
    %p32 = por %p30, %p31
    %p33 = scmp.ne.s32.totalorder %s22, %s23
    %p34 = scmp.eq.s32.totalorder %s14, 0
    %p35 = por %p33, %p34
    %p36 = scmp.ne.s32.totalorder %s22, %s23
    %p37 = scmp.eq.s32.totalorder %s15, 1
    %p38 = por %p36, %p37
    %p40 = scmp.ne.s32.totalorder %s23, %s39
    %p41 = scmp.eq.s32.totalorder %s15, 0
    %p42 = por %p40, %p41
    %s44 = sadd.s32 %s43, 1
    %p47 = scmp.eq.s32.totalorder %s9, 1
    %p48 = scmp.ne.s32.totalorder %s43, %s45
    %p49 = scmp.eq.s32.totalorder %s9, 0
    %p50 = por %p48, %p49
    %p51 = scmp.ne.s32.totalorder %s43, %s45
    %p52 = scmp.eq.s32.totalorder %s14, 1
    %p53 = por %p51, %p52
    %p54 = scmp.ne.s32.totalorder %s45, %s46
    %p55 = scmp.eq.s32.totalorder %s14, 0
    %p56 = por %p54, %p55
    %p57 = scmp.ne.s32.totalorder %s45, %s46
    %p58 = scmp.eq.s32.totalorder %s15, 1
    %p59 = por %p57, %p58
    %p61 = scmp.ne.s32.totalorder %s46, %s60
    %p62 = scmp.eq.s32.totalorder %s15, 0
    %p63 = por %p61, %p62
    %s65 = sadd.s32 %s64, 1
    %p68 = scmp.eq.s32.totalorder %s9, 1
    %p69 = scmp.ne.s32.totalorder %s64, %s66
    %p70 = scmp.eq.s32.totalorder %s9, 0
    %p71 = por %p69, %p70
    %p72 = scmp.ne.s32.totalorder %s64, %s66
    %p73 = scmp.eq.s32.totalorder %s14, 1
    %p74 = por %p72, %p73
    %p75 = scmp.ne.s32.totalorder %s66, %s67
    %p76 = scmp.eq.s32.totalorder %s14, 0
    %p77 = por %p75, %p76
    %p78 = scmp.ne.s32.totalorder %s66, %s67
    %p79 = scmp.eq.s32.totalorder %s15, 1
    %p80 = por %p78, %p79
    %p82 = scmp.ne.s32.totalorder %s67, %s81
    %p83 = scmp.eq.s32.totalorder %s15, 0
    %p84 = por %p82, %p83
    %s85 = ssub.s32 %s9, %s16
    %p86 = scmp.eq.s32.totalorder %s85, 0
    %s88 = sadd.s32 %s87, 1
    %s89 = scalar_select %p86, %s87, %s88
    %p92 = pneg %p86
    %p93 = scmp.eq.s32.totalorder %s9, 1
    %p94 = por %p92, %p93
    %p95 = scmp.ne.s32.totalorder %s87, %s90
    %p96 = scmp.eq.s32.totalorder %s9, 0
    %p97 = por %p95, %p96
    %p98 = scmp.ne.s32.totalorder %s87, %s90
    %p99 = scmp.eq.s32.totalorder %s14, 1
    %p100 = por %p98, %p99
    %p101 = scmp.ne.s32.totalorder %s90, %s91
    %p102 = scmp.eq.s32.totalorder %s14, 0
    %p103 = por %p101, %p102
    %p104 = scmp.ne.s32.totalorder %s90, %s91
    %p105 = scmp.eq.s32.totalorder %s15, 1
    %p106 = por %p104, %p105
    %p108 = scmp.ne.s32.totalorder %s91, %s107
    %p109 = scmp.eq.s32.totalorder %s15, 0
    %p110 = por %p108, %p109
    %p111 = scmp.le.s32.totalorder 1, %s9
    %p112 = scmp.lt.s32.totalorder %s9, 3
    %p113 = pnand %p111, %p112
    %p114 = pneg %p113
    // Predicated region
    $region9: #{encoder_forward.5} parent=5 // pred_check
      _
    $region10: #{encoder_forward.5} parent=5 // pred_check_branch
      %116 = sbr.rel (%p113) target = $region12
    $region11: #{encoder_forward.5} parent=5 // pred_region
      %s117 = ssub.s32 %s9, 1
      // Predicated region
      $region13: #{encoder_forward.5} parent=11 // pred_check
        %p118 = pneg %p56
      $region14: #{encoder_forward.5} parent=11 // pred_check_branch
        %120 = sbr.rel (%p118) target = $region16
      $region15: #{encoder_forward.5} parent=11 // pred_region
        _
      $region16: #{encoder_forward.5} parent=11 // pred_fallthru
        _
      // Predicated region
      $region17: #{encoder_forward.5} parent=11 // pred_check
        %p121 = pneg %p77
      $region18: #{encoder_forward.5} parent=11 // pred_check_branch
        %123 = sbr.rel (%p121) target = $region20
      $region19: #{encoder_forward.5} parent=11 // pred_region
        _
      $region20: #{encoder_forward.5} parent=11 // pred_fallthru
        _
    $region12: #{encoder_forward.5} parent=5 // pred_fallthru
      _
    %p124 = scmp.lt.s32.totalorder %s9, 2
    // Predicated region
    $region21: #{encoder_forward.5} parent=5 // pred_check
      %p125 = pneg %p124
    $region22: #{encoder_forward.5} parent=5 // pred_check_branch
      %127 = sbr.rel (%p125) target = $region24
    $region23: #{encoder_forward.5} parent=5 // pred_region
      // Predicated region
      $region25: #{encoder_forward.5} parent=23 // pred_check
        %p128 = pneg %p29
      $region26: #{encoder_forward.5} parent=23 // pred_check_branch
        %130 = sbr.rel (%p128) target = $region28
      $region27: #{encoder_forward.5} parent=23 // pred_region
        %p131 = scmp.lt.s32.totalorder %s9, 1
        %s132 = scalar_select %p131, %s9, 1
        %s133 = smul.addr %s132, 22
        %s134 = smul.addr %s133, 4
        %s135 = scalar_lea.vmem %s0, %s134
      $region28: #{encoder_forward.5} parent=23 // pred_fallthru
        _
    $region24: #{encoder_forward.5} parent=5 // pred_fallthru
      _
    %p136 = scmp.le.s32.totalorder 1, %s9
    %p137 = scmp.lt.s32.totalorder %s9, 3
    %p138 = pnand %p136, %p137
    %p139 = pneg %p138
    // Predicated region
    $region29: #{encoder_forward.5} parent=5 // pred_check
      _
    $region30: #{encoder_forward.5} parent=5 // pred_check_branch
      %141 = sbr.rel (%p138) target = $region32
    $region31: #{encoder_forward.5} parent=5 // pred_region
      %s142 = ssub.s32 %s9, 1
      %p143 = scmp.lt.s32.totalorder %s14, 1
      %s144 = scalar_select %p143, %s14, 1
      %s145 = smul.addr %s144, 22
      %s146 = smul.addr %s145, 4
      %s147 = scalar_lea.vmem %s0, %s146
      %p148 = pneg %p35
      %p149 = pneg %p32
      %p150 = pneg %p56
      %p151 = pneg %p53
      %p152 = pneg %p77
      %p153 = pneg %p74
      %p154 = pneg %p103
      %p155 = pneg %p100
      %p156 = scmp.lt.s32.totalorder %s14, 1
      %s157 = scalar_select %p156, %s14, 1
      %s158 = smul.addr %s157, 8
      %s159 = smul.addr %s158, 4
      %s160 = scalar_lea.vmem %s3, %s159
      %p161 = scmp.lt.s32.totalorder %s14, 1
      %s162 = scalar_select %p161, %s14, 1
      %s163 = smul.addr %s162, 22
      %s164 = smul.addr %s163, 4
      %s165 = scalar_lea.vmem %s0, %s164
      %p166 = scmp.lt.s32.totalorder %s14, 1
      %s167 = scalar_select %p166, %s14, 1
      %s168 = smul.addr %s167, 8
      %s169 = smul.addr %s168, 4
      %s170 = scalar_lea.vmem %s3, %s169
      %v171 = vld [vmem:[%s165] sm:$0xff]
      %v172 = vld [vmem:[%s165 + $0x8] sm:$0xff]
      %v173 = vld [vmem:[%s165 + $0x10] sm:$0xff]
      %v174 = vld [vmem:[%s165 + $0x18] sm:$0xff]
      %v175 = vld [vmem:[%s165 + $0x20] sm:$0xff]
      %v176 = vld [vmem:[%s165 + $0x28] sm:$0xff]
      %v177 = vld [vmem:[%s165 + $0x30] sm:$0xff]
      %v178 = vld [vmem:[%s165 + $0x38] sm:$0xff]
      %v179 = vld [vmem:[%s1] sm:$0xf]
      %v180 = vld [vmem:[%s1 + $0x4] sm:$0xf]
      %v181 = vld [vmem:[%s1 + $0x8] sm:$0xf]
      %v182 = vld [vmem:[%s1 + $0xc] sm:$0xf]
      %v183 = vld [vmem:[%s1 + $0x10] sm:$0xf]
      %v184 = vld [vmem:[%s1 + $0x14] sm:$0xf]
      %v185 = vld [vmem:[%s1 + $0x18] sm:$0xf]
      %v186 = vld [vmem:[%s1 + $0x1c] sm:$0xf]
      %v187 = vld [vmem:[%s1 + $0x20] sm:$0xf]
      %v188 = vld [vmem:[%s1 + $0x24] sm:$0xf]
      %v189 = vld [vmem:[%s1 + $0x28] sm:$0xf]
      %v190 = vld [vmem:[%s1 + $0x2c] sm:$0xf]
      %v191 = vld [vmem:[%s1 + $0x30] sm:$0xf]
      %v192 = vld [vmem:[%s1 + $0x34] sm:$0xf]
      %v193 = vld [vmem:[%s1 + $0x38] sm:$0xf]
      %v194 = vld [vmem:[%s1 + $0x3c] sm:$0xf]
      %v195 = vld [vmem:[%s1 + $0x40] sm:$0xf]
      %v196 = vld [vmem:[%s1 + $0x44] sm:$0xf]
      %v197 = vld [vmem:[%s1 + $0x48] sm:$0xf]
      %v198 = vld [vmem:[%s1 + $0x4c] sm:$0xf]
      %v199 = vld [vmem:[%s1 + $0x50] sm:$0xf]
      %v200 = vld [vmem:[%s1 + $0x54] sm:$0xf]
      %v201 = vld [vmem:[%s1 + $0x58] sm:$0xf]
      %v202 = vld [vmem:[%s1 + $0x5c] sm:$0xf]
      %v203 = vld [vmem:[%s1 + $0x60] sm:$0xf]
      %v204 = vld [vmem:[%s1 + $0x64] sm:$0xf]
      %v205 = vld [vmem:[%s1 + $0x68] sm:$0xf]
      %v206 = vld [vmem:[%s1 + $0x6c] sm:$0xf]
      %v207 = vld [vmem:[%s1 + $0x70] sm:$0xf]
      %v208 = vld [vmem:[%s1 + $0x74] sm:$0xf]
      %v209 = vld [vmem:[%s1 + $0x78] sm:$0xf]
      %v210 = vld [vmem:[%s1 + $0x7c] sm:$0xf]
      %v211 = vld [vmem:[%s165 + $0x40] sm:$0x11]
      %s212 = scalar_lea.vmem %s1, 128
      %v213 = vld [vmem:[%s212] sm:$0xf]
      %v214 = vld [vmem:[%s212 + $0x4] sm:$0xf]
      %v215 = vld [vmem:[%s212 + $0x8] sm:$0xf]
      %v216 = vld [vmem:[%s212 + $0xc] sm:$0xf]
      %v217 = vld [vmem:[%s212 + $0x10] sm:$0xf]
      %v218 = vld [vmem:[%s212 + $0x14] sm:$0xf]
      %v219 = vld [vmem:[%s212 + $0x18] sm:$0xf]
      %v220 = vld [vmem:[%s212 + $0x1c] sm:$0xf]
      %v221 = vld [vmem:[%s212 + $0x20] sm:$0xf]
      %v222 = vld [vmem:[%s212 + $0x24] sm:$0xf]
      %v223 = vld [vmem:[%s212 + $0x28] sm:$0xf]
      %v224 = vld [vmem:[%s212 + $0x2c] sm:$0xf]
      %v225 = vld [vmem:[%s212 + $0x30] sm:$0xf]
      %v226 = vld [vmem:[%s212 + $0x34] sm:$0xf]
      %v227 = vld [vmem:[%s212 + $0x38] sm:$0xf]
      %v228 = vld [vmem:[%s212 + $0x3c] sm:$0xf]
      %v229 = vld [vmem:[%s212 + $0x40] sm:$0xf]
      %v230 = vld [vmem:[%s212 + $0x44] sm:$0xf]
      %v231 = vld [vmem:[%s212 + $0x48] sm:$0xf]
      %v232 = vld [vmem:[%s212 + $0x4c] sm:$0xf]
      %v233 = vld [vmem:[%s212 + $0x50] sm:$0xf]
      %v234 = vld [vmem:[%s212 + $0x54] sm:$0xf]
      %v235 = vld [vmem:[%s212 + $0x58] sm:$0xf]
      %v236 = vld [vmem:[%s212 + $0x5c] sm:$0xf]
      %v237 = vld [vmem:[%s212 + $0x60] sm:$0xf]
      %v238 = vld [vmem:[%s212 + $0x64] sm:$0xf]
      %v239 = vld [vmem:[%s212 + $0x68] sm:$0xf]
      %v240 = vld [vmem:[%s212 + $0x6c] sm:$0xf]
      %v241 = vld [vmem:[%s212 + $0x70] sm:$0xf]
      %v242 = vld [vmem:[%s212 + $0x74] sm:$0xf]
      %v243 = vld [vmem:[%s212 + $0x78] sm:$0xf]
      %v244 = vld [vmem:[%s212 + $0x7c] sm:$0xf]
      %v254 = vunpack.c.l.b16 %v171
      %v255 = vunpack.c.h.b16 %v171
      %v256 = vunpack.c.l.b16 %v172
      %v257 = vunpack.c.h.b16 %v172
      %v258 = vunpack.c.l.b16 %v173
      %v259 = vunpack.c.h.b16 %v173
      %v260 = vunpack.c.l.b16 %v174
      %v261 = vunpack.c.h.b16 %v174
      %v262 = vunpack.c.l.b16 %v175
      %v263 = vunpack.c.h.b16 %v175
      %v264 = vunpack.c.l.b16 %v176
      %v265 = vunpack.c.h.b16 %v176
      %v266 = vunpack.c.l.b16 %v177
      %v267 = vunpack.c.h.b16 %v177
      %v268 = vunpack.c.l.b16 %v178
      %v269 = vunpack.c.h.b16 %v178
      %v270 = vunpack.c.l.b16 %v211
      %v271 = vunpack.c.h.b16 %v211
      %v272 = vpack.c.b16 %v256, %v254
      %v273 = vpack.c.b16 %v257, %v255
      %v274 = vpack.c.b16 %v260, %v258
      %v275 = vpack.c.b16 %v261, %v259
      %v276 = vpack.c.b16 %v264, %v262
      %v277 = vpack.c.b16 %v265, %v263
      %v278 = vpack.c.b16 %v268, %v266
      %v279 = vpack.c.b16 %v269, %v267
      %v280 = vpack.c.b16 %v270, %v270
      %v281 = vpack.c.b16 %v271, %v271
      %vm282 = vsmask.f32 7424
      %v284 = vshrl.u32 %v272, 16
      %v286 = vshll.u32 %v272, 16
      %v288 = vrot.slane %v286, 1
      %v289 = vor.u32 %v284, %v288
      %v291 = vshll.u32 %v274, 16
      %v293 = vrot.slane %v291, 1
      %v294 = vsel %vm282, %v289, %v293
      %v296 = vshrl.u32 %v273, 16
      %v298 = vshll.u32 %v273, 16
      %v300 = vrot.slane %v298, 1
      %v301 = vor.u32 %v296, %v300
      %v303 = vshll.u32 %v275, 16
      %v305 = vrot.slane %v303, 1
      %v306 = vsel %vm282, %v301, %v305
      %v307 = vshrl.u32 %v274, 16
      %v309 = vor.u32 %v307, %v293
      %v311 = vshll.u32 %v276, 16
      %v313 = vrot.slane %v311, 1
      %v314 = vsel %vm282, %v309, %v313
      %v315 = vshrl.u32 %v275, 16
      %v317 = vor.u32 %v315, %v305
      %v319 = vshll.u32 %v277, 16
      %v321 = vrot.slane %v319, 1
      %v322 = vsel %vm282, %v317, %v321
      %v323 = vshrl.u32 %v276, 16
      %v325 = vor.u32 %v323, %v313
      %v327 = vshll.u32 %v278, 16
      %v329 = vrot.slane %v327, 1
      %v330 = vsel %vm282, %v325, %v329
      %v331 = vshrl.u32 %v277, 16
      %v333 = vor.u32 %v331, %v321
      %v335 = vshll.u32 %v279, 16
      %v337 = vrot.slane %v335, 1
      %v338 = vsel %vm282, %v333, %v337
      %v339 = vshrl.u32 %v278, 16
      %v341 = vor.u32 %v339, %v329
      %v343 = vshll.u32 %v280, 16
      %v345 = vrot.slane %v343, 1
      %v346 = vsel %vm282, %v341, %v345
      %v347 = vshrl.u32 %v279, 16
      %v349 = vor.u32 %v347, %v337
      %v351 = vshll.u32 %v281, 16
      %v353 = vrot.slane %v351, 1
      %v354 = vsel %vm282, %v349, %v353
      %v395 = vunpack.c.l.b16 %v213
      %v396 = vunpack.c.l.b16 %v214
      %v397 = vunpack.c.l.b16 %v215
      %v398 = vunpack.c.l.b16 %v216
      %v399 = vunpack.c.l.b16 %v217
      %v400 = vunpack.c.l.b16 %v218
      %v401 = vunpack.c.l.b16 %v219
      %v402 = vunpack.c.l.b16 %v220
      %v403 = vunpack.c.l.b16 %v221
      %v404 = vunpack.c.l.b16 %v222
      %v405 = vunpack.c.l.b16 %v223
      %v406 = vunpack.c.l.b16 %v224
      %v407 = vunpack.c.l.b16 %v225
      %v408 = vunpack.c.l.b16 %v226
      %v409 = vunpack.c.l.b16 %v227
      %v410 = vunpack.c.l.b16 %v228
      %v411 = vunpack.c.l.b16 %v229
      %v412 = vunpack.c.l.b16 %v230
      %v413 = vunpack.c.l.b16 %v231
      %v414 = vunpack.c.l.b16 %v232
      %v415 = vunpack.c.l.b16 %v233
      %v416 = vunpack.c.l.b16 %v234
      %v417 = vunpack.c.l.b16 %v235
      %v418 = vunpack.c.l.b16 %v236
      %v419 = vunpack.c.l.b16 %v237
      %v420 = vunpack.c.l.b16 %v238
      %v421 = vunpack.c.l.b16 %v239
      %v422 = vunpack.c.l.b16 %v240
      %v423 = vunpack.c.l.b16 %v241
      %v424 = vunpack.c.l.b16 %v242
      %v425 = vunpack.c.l.b16 %v243
      %v426 = vunpack.c.l.b16 %v244
      %v427 = vpack.c.b16 %v396, %v395
      %v428 = vpack.c.b16 %v398, %v397
      %v429 = vpack.c.b16 %v400, %v399
      %v430 = vpack.c.b16 %v402, %v401
      %v431 = vpack.c.b16 %v404, %v403
      %v432 = vpack.c.b16 %v406, %v405
      %v433 = vpack.c.b16 %v408, %v407
      %v434 = vpack.c.b16 %v410, %v409
      %v435 = vpack.c.b16 %v412, %v411
      %v436 = vpack.c.b16 %v414, %v413
      %v437 = vpack.c.b16 %v416, %v415
      %v438 = vpack.c.b16 %v418, %v417
      %v439 = vpack.c.b16 %v420, %v419
      %v440 = vpack.c.b16 %v422, %v421
      %v441 = vpack.c.b16 %v424, %v423
      %v442 = vpack.c.b16 %v426, %v425
      %459 = vmatpush.bf16.msra.mxu0 %v434
      %460 = vmatpush.bf16.msra.mxu0 %v433
      %461 = vmatpush.bf16.msra.mxu0 %v432
      %462 = vmatpush.bf16.msra.mxu0 %v431
      %463 = vmatpush.bf16.msra.mxu0 %v430
      %464 = vmatpush.bf16.msra.mxu0 %v429
      %465 = vmatpush.bf16.msra.mxu0 %v428
      %466 = vmatpush.bf16.msra.mxu0 %v427
      %467 = vmatmul.bf16.gmra.mxu0 %v294
      %v468 = vpop.f32.mrf.mxu0
      %v469 = vadd.f32 0.0, %v468
      %v470 = vpop.f32.mrf.mxu0
      %v471 = vadd.f32 0.0, %v470
      %472 = vmatmul.bf16.gmra.mxu0 %v314
      %v473 = vpop.f32.mrf.mxu0
      %v474 = vadd.f32 0.0, %v473
      %v475 = vpop.f32.mrf.mxu0
      %v476 = vadd.f32 0.0, %v475
      %477 = vmatmul.bf16.gmra.mxu0 %v330
      %v478 = vpop.f32.mrf.mxu0
      %v479 = vadd.f32 0.0, %v478
      %v480 = vpop.f32.mrf.mxu0
      %v481 = vadd.f32 0.0, %v480
      %482 = vmatmul.bf16.gmra.mxu0 %v346
      %v483 = vpop.f32.mrf.mxu0
      %v484 = vadd.f32 0.0, %v483
      %v485 = vpop.f32.mrf.mxu0
      %v486 = vadd.f32 0.0, %v485
      %487 = vdwg.mxu0
      %488 = vmatpush.bf16.msra.mxu0 %v442
      %489 = vmatpush.bf16.msra.mxu0 %v441
      %490 = vmatpush.bf16.msra.mxu0 %v440
      %491 = vmatpush.bf16.msra.mxu0 %v439
      %492 = vmatpush.bf16.msra.mxu0 %v438
      %493 = vmatpush.bf16.msra.mxu0 %v437
      %494 = vmatpush.bf16.msra.mxu0 %v436
      %495 = vmatpush.bf16.msra.mxu0 %v435
      %496 = vmatmul.bf16.gmra.mxu0 %v306
      %v497 = vpop.f32.mrf.mxu0
      %v498 = vadd.f32 %v469, %v497
      %v499 = vpop.f32.mrf.mxu0
      %v500 = vadd.f32 %v471, %v499
      %501 = vmatmul.bf16.gmra.mxu0 %v322
      %v502 = vpop.f32.mrf.mxu0
      %v503 = vadd.f32 %v474, %v502
      %v504 = vpop.f32.mrf.mxu0
      %v505 = vadd.f32 %v476, %v504
      %506 = vmatmul.bf16.gmra.mxu0 %v338
      %v507 = vpop.f32.mrf.mxu0
      %v508 = vadd.f32 %v479, %v507
      %v509 = vpop.f32.mrf.mxu0
      %v510 = vadd.f32 %v481, %v509
      %511 = vmatmul.bf16.gmra.mxu0 %v354
      %v512 = vpop.f32.mrf.mxu0
      %v513 = vadd.f32 %v484, %v512
      %v514 = vpop.f32.mrf.mxu0
      %v515 = vadd.f32 %v486, %v514
      %516 = vdwg.mxu0
      %v557 = vunpack.c.l.b16 %v179
      %v558 = vunpack.c.l.b16 %v180
      %v559 = vunpack.c.l.b16 %v181
      %v560 = vunpack.c.l.b16 %v182
      %v561 = vunpack.c.l.b16 %v183
      %v562 = vunpack.c.l.b16 %v184
      %v563 = vunpack.c.l.b16 %v185
      %v564 = vunpack.c.l.b16 %v186
      %v565 = vunpack.c.l.b16 %v187
      %v566 = vunpack.c.l.b16 %v188
      %v567 = vunpack.c.l.b16 %v189
      %v568 = vunpack.c.l.b16 %v190
      %v569 = vunpack.c.l.b16 %v191
      %v570 = vunpack.c.l.b16 %v192
      %v571 = vunpack.c.l.b16 %v193
      %v572 = vunpack.c.l.b16 %v194
      %v573 = vunpack.c.l.b16 %v195
      %v574 = vunpack.c.l.b16 %v196
      %v575 = vunpack.c.l.b16 %v197
      %v576 = vunpack.c.l.b16 %v198
      %v577 = vunpack.c.l.b16 %v199
      %v578 = vunpack.c.l.b16 %v200
      %v579 = vunpack.c.l.b16 %v201
      %v580 = vunpack.c.l.b16 %v202
      %v581 = vunpack.c.l.b16 %v203
      %v582 = vunpack.c.l.b16 %v204
      %v583 = vunpack.c.l.b16 %v205
      %v584 = vunpack.c.l.b16 %v206
      %v585 = vunpack.c.l.b16 %v207
      %v586 = vunpack.c.l.b16 %v208
      %v587 = vunpack.c.l.b16 %v209
      %v588 = vunpack.c.l.b16 %v210
      %v589 = vpack.c.b16 %v558, %v557
      %v590 = vpack.c.b16 %v560, %v559
      %v591 = vpack.c.b16 %v562, %v561
      %v592 = vpack.c.b16 %v564, %v563
      %v593 = vpack.c.b16 %v566, %v565
      %v594 = vpack.c.b16 %v568, %v567
      %v595 = vpack.c.b16 %v570, %v569
      %v596 = vpack.c.b16 %v572, %v571
      %v597 = vpack.c.b16 %v574, %v573
      %v598 = vpack.c.b16 %v576, %v575
      %v599 = vpack.c.b16 %v578, %v577
      %v600 = vpack.c.b16 %v580, %v579
      %v601 = vpack.c.b16 %v582, %v581
      %v602 = vpack.c.b16 %v584, %v583
      %v603 = vpack.c.b16 %v586, %v585
      %v604 = vpack.c.b16 %v588, %v587
      %621 = vmatpush.bf16.msra.mxu0 %v596
      %622 = vmatpush.bf16.msra.mxu0 %v595
      %623 = vmatpush.bf16.msra.mxu0 %v594
      %624 = vmatpush.bf16.msra.mxu0 %v593
      %625 = vmatpush.bf16.msra.mxu0 %v592
      %626 = vmatpush.bf16.msra.mxu0 %v591
      %627 = vmatpush.bf16.msra.mxu0 %v590
      %628 = vmatpush.bf16.msra.mxu0 %v589
      %629 = vmatmul.bf16.gmra.mxu0 %v272
      %v630 = vpop.f32.mrf.mxu0
      %v631 = vadd.f32 %v498, %v630
      %v632 = vpop.f32.mrf.mxu0
      %v633 = vadd.f32 %v500, %v632
      %634 = vmatmul.bf16.gmra.mxu0 %v274
      %v635 = vpop.f32.mrf.mxu0
      %v636 = vadd.f32 %v503, %v635
      %v637 = vpop.f32.mrf.mxu0
      %v638 = vadd.f32 %v505, %v637
      %639 = vmatmul.bf16.gmra.mxu0 %v276
      %v640 = vpop.f32.mrf.mxu0
      %v641 = vadd.f32 %v508, %v640
      %v642 = vpop.f32.mrf.mxu0
      %v643 = vadd.f32 %v510, %v642
      %644 = vmatmul.bf16.gmra.mxu0 %v278
      %v645 = vpop.f32.mrf.mxu0
      %v646 = vadd.f32 %v513, %v645
      %v647 = vpop.f32.mrf.mxu0
      %v648 = vadd.f32 %v515, %v647
      %649 = vdwg.mxu0
      %650 = vmatpush.bf16.msra.mxu0 %v604
      %651 = vmatpush.bf16.msra.mxu0 %v603
      %652 = vmatpush.bf16.msra.mxu0 %v602
      %653 = vmatpush.bf16.msra.mxu0 %v601
      %654 = vmatpush.bf16.msra.mxu0 %v600
      %655 = vmatpush.bf16.msra.mxu0 %v599
      %656 = vmatpush.bf16.msra.mxu0 %v598
      %657 = vmatpush.bf16.msra.mxu0 %v597
      %658 = vmatmul.bf16.gmra.mxu0 %v273
      %v659 = vpop.f32.mrf.mxu0
      %v660 = vadd.f32 %v631, %v659
      %v661 = vpop.f32.mrf.mxu0
      %v662 = vadd.f32 %v633, %v661
      %663 = vmatmul.bf16.gmra.mxu0 %v275
      %v664 = vpop.f32.mrf.mxu0
      %v665 = vadd.f32 %v636, %v664
      %v666 = vpop.f32.mrf.mxu0
      %v667 = vadd.f32 %v638, %v666
      %668 = vmatmul.bf16.gmra.mxu0 %v277
      %v669 = vpop.f32.mrf.mxu0
      %v670 = vadd.f32 %v641, %v669
      %v671 = vpop.f32.mrf.mxu0
      %v672 = vadd.f32 %v643, %v671
      %673 = vmatmul.bf16.gmra.mxu0 %v279
      %v674 = vpop.f32.mrf.mxu0
      %v675 = vadd.f32 %v646, %v674
      %v676 = vpop.f32.mrf.mxu0
      %v677 = vadd.f32 %v648, %v676
      %678 = vdwg.mxu0
      %v679 = vld [vmem:[%s165 + $0x8] sm:$0xff]
      %v680 = vld [vmem:[%s165 + $0x10] sm:$0xff]
      %v681 = vld [vmem:[%s165 + $0x18] sm:$0xff]
      %v682 = vld [vmem:[%s165 + $0x20] sm:$0xff]
      %v683 = vld [vmem:[%s165 + $0x28] sm:$0xff]
      %v684 = vld [vmem:[%s165 + $0x30] sm:$0xff]
      %v685 = vld [vmem:[%s165 + $0x38] sm:$0xff]
      %v686 = vld [vmem:[%s165 + $0x40] sm:$0xff]
      %v687 = vld [vmem:[%s165 + $0x48] sm:$0x11]
      %s688 = scalar_lea.vmem %s1, 256
      %v689 = vld [vmem:[%s688] sm:$0xf]
      %v690 = vld [vmem:[%s688 + $0x4] sm:$0xf]
      %v691 = vld [vmem:[%s688 + $0x8] sm:$0xf]
      %v692 = vld [vmem:[%s688 + $0xc] sm:$0xf]
      %v693 = vld [vmem:[%s688 + $0x10] sm:$0xf]
      %v694 = vld [vmem:[%s688 + $0x14] sm:$0xf]
      %v695 = vld [vmem:[%s688 + $0x18] sm:$0xf]
      %v696 = vld [vmem:[%s688 + $0x1c] sm:$0xf]
      %v697 = vld [vmem:[%s688 + $0x20] sm:$0xf]
      %v698 = vld [vmem:[%s688 + $0x24] sm:$0xf]
      %v699 = vld [vmem:[%s688 + $0x28] sm:$0xf]
      %v700 = vld [vmem:[%s688 + $0x2c] sm:$0xf]
      %v701 = vld [vmem:[%s688 + $0x30] sm:$0xf]
      %v702 = vld [vmem:[%s688 + $0x34] sm:$0xf]
      %v703 = vld [vmem:[%s688 + $0x38] sm:$0xf]
      %v704 = vld [vmem:[%s688 + $0x3c] sm:$0xf]
      %v705 = vld [vmem:[%s688 + $0x40] sm:$0xf]
      %v706 = vld [vmem:[%s688 + $0x44] sm:$0xf]
      %v707 = vld [vmem:[%s688 + $0x48] sm:$0xf]
      %v708 = vld [vmem:[%s688 + $0x4c] sm:$0xf]
      %v709 = vld [vmem:[%s688 + $0x50] sm:$0xf]
      %v710 = vld [vmem:[%s688 + $0x54] sm:$0xf]
      %v711 = vld [vmem:[%s688 + $0x58] sm:$0xf]
      %v712 = vld [vmem:[%s688 + $0x5c] sm:$0xf]
      %v713 = vld [vmem:[%s688 + $0x60] sm:$0xf]
      %v714 = vld [vmem:[%s688 + $0x64] sm:$0xf]
      %v715 = vld [vmem:[%s688 + $0x68] sm:$0xf]
      %v716 = vld [vmem:[%s688 + $0x6c] sm:$0xf]
      %v717 = vld [vmem:[%s688 + $0x70] sm:$0xf]
      %v718 = vld [vmem:[%s688 + $0x74] sm:$0xf]
      %v719 = vld [vmem:[%s688 + $0x78] sm:$0xf]
      %v720 = vld [vmem:[%s688 + $0x7c] sm:$0xf]
      %v730 = vunpack.c.l.b16 %v679
      %v731 = vunpack.c.h.b16 %v679
      %v732 = vunpack.c.l.b16 %v680
      %v733 = vunpack.c.h.b16 %v680
      %v734 = vunpack.c.l.b16 %v681
      %v735 = vunpack.c.h.b16 %v681
      %v736 = vunpack.c.l.b16 %v682
      %v737 = vunpack.c.h.b16 %v682
      %v738 = vunpack.c.l.b16 %v683
      %v739 = vunpack.c.h.b16 %v683
      %v740 = vunpack.c.l.b16 %v684
      %v741 = vunpack.c.h.b16 %v684
      %v742 = vunpack.c.l.b16 %v685
      %v743 = vunpack.c.h.b16 %v685
      %v744 = vunpack.c.l.b16 %v686
      %v745 = vunpack.c.h.b16 %v686
      %v746 = vunpack.c.l.b16 %v687
      %v747 = vunpack.c.h.b16 %v687
      %v748 = vpack.c.b16 %v732, %v730
      %v749 = vpack.c.b16 %v733, %v731
      %v750 = vpack.c.b16 %v736, %v734
      %v751 = vpack.c.b16 %v737, %v735
      %v752 = vpack.c.b16 %v740, %v738
      %v753 = vpack.c.b16 %v741, %v739
      %v754 = vpack.c.b16 %v744, %v742
      %v755 = vpack.c.b16 %v745, %v743
      %v756 = vpack.c.b16 %v746, %v746
      %v757 = vpack.c.b16 %v747, %v747
      %v759 = vshrl.u32 %v748, 16
      %v761 = vshll.u32 %v748, 16
      %v763 = vrot.slane %v761, 1
      %v764 = vor.u32 %v759, %v763
      %v766 = vshll.u32 %v750, 16
      %v768 = vrot.slane %v766, 1
      %v769 = vsel %vm282, %v764, %v768
      %v771 = vshrl.u32 %v749, 16
      %v773 = vshll.u32 %v749, 16
      %v775 = vrot.slane %v773, 1
      %v776 = vor.u32 %v771, %v775
      %v778 = vshll.u32 %v751, 16
      %v780 = vrot.slane %v778, 1
      %v781 = vsel %vm282, %v776, %v780
      %v782 = vshrl.u32 %v750, 16
      %v784 = vor.u32 %v782, %v768
      %v786 = vshll.u32 %v752, 16
      %v788 = vrot.slane %v786, 1
      %v789 = vsel %vm282, %v784, %v788
      %v790 = vshrl.u32 %v751, 16
      %v792 = vor.u32 %v790, %v780
      %v794 = vshll.u32 %v753, 16
      %v796 = vrot.slane %v794, 1
      %v797 = vsel %vm282, %v792, %v796
      %v798 = vshrl.u32 %v752, 16
      %v800 = vor.u32 %v798, %v788
      %v802 = vshll.u32 %v754, 16
      %v804 = vrot.slane %v802, 1
      %v805 = vsel %vm282, %v800, %v804
      %v806 = vshrl.u32 %v753, 16
      %v808 = vor.u32 %v806, %v796
      %v810 = vshll.u32 %v755, 16
      %v812 = vrot.slane %v810, 1
      %v813 = vsel %vm282, %v808, %v812
      %v814 = vshrl.u32 %v754, 16
      %v816 = vor.u32 %v814, %v804
      %v818 = vshll.u32 %v756, 16
      %v820 = vrot.slane %v818, 1
      %v821 = vsel %vm282, %v816, %v820
      %v822 = vshrl.u32 %v755, 16
      %v824 = vor.u32 %v822, %v812
      %v826 = vshll.u32 %v757, 16
      %v828 = vrot.slane %v826, 1
      %v829 = vsel %vm282, %v824, %v828
      %v870 = vunpack.c.l.b16 %v689
      %v871 = vunpack.c.l.b16 %v690
      %v872 = vunpack.c.l.b16 %v691
      %v873 = vunpack.c.l.b16 %v692
      %v874 = vunpack.c.l.b16 %v693
      %v875 = vunpack.c.l.b16 %v694
      %v876 = vunpack.c.l.b16 %v695
      %v877 = vunpack.c.l.b16 %v696
      %v878 = vunpack.c.l.b16 %v697
      %v879 = vunpack.c.l.b16 %v698
      %v880 = vunpack.c.l.b16 %v699
      %v881 = vunpack.c.l.b16 %v700
      %v882 = vunpack.c.l.b16 %v701
      %v883 = vunpack.c.l.b16 %v702
      %v884 = vunpack.c.l.b16 %v703
      %v885 = vunpack.c.l.b16 %v704
      %v886 = vunpack.c.l.b16 %v705
      %v887 = vunpack.c.l.b16 %v706
      %v888 = vunpack.c.l.b16 %v707
      %v889 = vunpack.c.l.b16 %v708
      %v890 = vunpack.c.l.b16 %v709
      %v891 = vunpack.c.l.b16 %v710
      %v892 = vunpack.c.l.b16 %v711
      %v893 = vunpack.c.l.b16 %v712
      %v894 = vunpack.c.l.b16 %v713
      %v895 = vunpack.c.l.b16 %v714
      %v896 = vunpack.c.l.b16 %v715
      %v897 = vunpack.c.l.b16 %v716
      %v898 = vunpack.c.l.b16 %v717
      %v899 = vunpack.c.l.b16 %v718
      %v900 = vunpack.c.l.b16 %v719
      %v901 = vunpack.c.l.b16 %v720
      %v902 = vpack.c.b16 %v871, %v870
      %v903 = vpack.c.b16 %v873, %v872
      %v904 = vpack.c.b16 %v875, %v874
      %v905 = vpack.c.b16 %v877, %v876
      %v906 = vpack.c.b16 %v879, %v878
      %v907 = vpack.c.b16 %v881, %v880
      %v908 = vpack.c.b16 %v883, %v882
      %v909 = vpack.c.b16 %v885, %v884
      %v910 = vpack.c.b16 %v887, %v886
      %v911 = vpack.c.b16 %v889, %v888
      %v912 = vpack.c.b16 %v891, %v890
      %v913 = vpack.c.b16 %v893, %v892
      %v914 = vpack.c.b16 %v895, %v894
      %v915 = vpack.c.b16 %v897, %v896
      %v916 = vpack.c.b16 %v899, %v898
      %v917 = vpack.c.b16 %v901, %v900
      %934 = vmatpush.bf16.msra.mxu0 %v909
      %935 = vmatpush.bf16.msra.mxu0 %v908
      %936 = vmatpush.bf16.msra.mxu0 %v907
      %937 = vmatpush.bf16.msra.mxu0 %v906
      %938 = vmatpush.bf16.msra.mxu0 %v905
      %939 = vmatpush.bf16.msra.mxu0 %v904
      %940 = vmatpush.bf16.msra.mxu0 %v903
      %941 = vmatpush.bf16.msra.mxu0 %v902
      %942 = vmatmul.bf16.gmra.mxu0 %v769
      %v943 = vpop.f32.mrf.mxu0
      %v944 = vadd.f32 0.0, %v943
      %v945 = vpop.f32.mrf.mxu0
      %v946 = vadd.f32 0.0, %v945
      %947 = vmatmul.bf16.gmra.mxu0 %v789
      %v948 = vpop.f32.mrf.mxu0
      %v949 = vadd.f32 0.0, %v948
      %v950 = vpop.f32.mrf.mxu0
      %v951 = vadd.f32 0.0, %v950
      %952 = vmatmul.bf16.gmra.mxu0 %v805
      %v953 = vpop.f32.mrf.mxu0
      %v954 = vadd.f32 0.0, %v953
      %v955 = vpop.f32.mrf.mxu0
      %v956 = vadd.f32 0.0, %v955
      %957 = vmatmul.bf16.gmra.mxu0 %v821
      %v958 = vpop.f32.mrf.mxu0
      %v959 = vadd.f32 0.0, %v958
      %v960 = vpop.f32.mrf.mxu0
      %v961 = vadd.f32 0.0, %v960
      %962 = vdwg.mxu0
      %963 = vmatpush.bf16.msra.mxu0 %v917
      %964 = vmatpush.bf16.msra.mxu0 %v916
      %965 = vmatpush.bf16.msra.mxu0 %v915
      %966 = vmatpush.bf16.msra.mxu0 %v914
      %967 = vmatpush.bf16.msra.mxu0 %v913
      %968 = vmatpush.bf16.msra.mxu0 %v912
      %969 = vmatpush.bf16.msra.mxu0 %v911
      %970 = vmatpush.bf16.msra.mxu0 %v910
      %971 = vmatmul.bf16.gmra.mxu0 %v781
      %v972 = vpop.f32.mrf.mxu0
      %v973 = vadd.f32 %v944, %v972
      %v974 = vpop.f32.mrf.mxu0
      %v975 = vadd.f32 %v946, %v974
      %976 = vmatmul.bf16.gmra.mxu0 %v797
      %v977 = vpop.f32.mrf.mxu0
      %v978 = vadd.f32 %v949, %v977
      %v979 = vpop.f32.mrf.mxu0
      %v980 = vadd.f32 %v951, %v979
      %981 = vmatmul.bf16.gmra.mxu0 %v813
      %v982 = vpop.f32.mrf.mxu0
      %v983 = vadd.f32 %v954, %v982
      %v984 = vpop.f32.mrf.mxu0
      %v985 = vadd.f32 %v956, %v984
      %986 = vmatmul.bf16.gmra.mxu0 %v829
      %v987 = vpop.f32.mrf.mxu0
      %v988 = vadd.f32 %v959, %v987
      %v989 = vpop.f32.mrf.mxu0
      %v990 = vadd.f32 %v961, %v989
      %991 = vdwg.mxu0
      %v992 = vadd.f32 %v660, %v973
      %v993 = vadd.f32 %v662, %v975
      %v994 = vadd.f32 %v665, %v978
      %v995 = vadd.f32 %v667, %v980
      %v996 = vadd.f32 %v670, %v983
      %v997 = vadd.f32 %v672, %v985
      %v998 = vadd.f32 %v675, %v988
      %v999 = vadd.f32 %v677, %v990
      %v1000 = vld [vmem:[%s165 + $0x8] sm:$0xee]
      %s1001 = scalar_lea.vmem %s1, 384
      %v1002 = vld [vmem:[%s1001] sm:$0xf]
      %v1003 = vld [vmem:[%s1001 + $0x4] sm:$0xf]
      %v1004 = vld [vmem:[%s1001 + $0x8] sm:$0xf]
      %v1005 = vld [vmem:[%s1001 + $0xc] sm:$0xf]
      %v1006 = vld [vmem:[%s1001 + $0x10] sm:$0xf]
      %v1007 = vld [vmem:[%s1001 + $0x14] sm:$0xf]
      %v1008 = vld [vmem:[%s1001 + $0x18] sm:$0xf]
      %v1009 = vld [vmem:[%s1001 + $0x1c] sm:$0xf]
      %v1010 = vld [vmem:[%s1001 + $0x20] sm:$0xf]
      %v1011 = vld [vmem:[%s1001 + $0x24] sm:$0xf]
      %v1012 = vld [vmem:[%s1001 + $0x28] sm:$0xf]
      %v1013 = vld [vmem:[%s1001 + $0x2c] sm:$0xf]
      %v1014 = vld [vmem:[%s1001 + $0x30] sm:$0xf]
      %v1015 = vld [vmem:[%s1001 + $0x34] sm:$0xf]
      %v1016 = vld [vmem:[%s1001 + $0x38] sm:$0xf]
      %v1017 = vld [vmem:[%s1001 + $0x3c] sm:$0xf]
      %v1018 = vld [vmem:[%s1001 + $0x40] sm:$0xf]
      %v1019 = vld [vmem:[%s1001 + $0x44] sm:$0xf]
      %v1020 = vld [vmem:[%s1001 + $0x48] sm:$0xf]
      %v1021 = vld [vmem:[%s1001 + $0x4c] sm:$0xf]
      %v1022 = vld [vmem:[%s1001 + $0x50] sm:$0xf]
      %v1023 = vld [vmem:[%s1001 + $0x54] sm:$0xf]
      %v1024 = vld [vmem:[%s1001 + $0x58] sm:$0xf]
      %v1025 = vld [vmem:[%s1001 + $0x5c] sm:$0xf]
      %v1026 = vld [vmem:[%s1001 + $0x60] sm:$0xf]
      %v1027 = vld [vmem:[%s1001 + $0x64] sm:$0xf]
      %v1028 = vld [vmem:[%s1001 + $0x68] sm:$0xf]
      %v1029 = vld [vmem:[%s1001 + $0x6c] sm:$0xf]
      %v1030 = vld [vmem:[%s1001 + $0x70] sm:$0xf]
      %v1031 = vld [vmem:[%s1001 + $0x74] sm:$0xf]
      %v1032 = vld [vmem:[%s1001 + $0x78] sm:$0xf]
      %v1033 = vld [vmem:[%s1001 + $0x7c] sm:$0xf]
      %v1035 = vunpack.c.l.b16 %v1000
      %v1036 = vunpack.c.h.b16 %v1000
      %v1037 = vpack.c.b16 %v732, %v1035
      %v1038 = vpack.c.b16 %v733, %v1036
      %vm1039 = vcmask 1046528
      %v1040 = vrot.slane %v1037, 1
      %v1041 = vrot.slane %v750, 1
      %v1042 = vsel %vm1039, %v1040, %v1041
      %v1043 = vrot.slane %v1038, 1
      %v1044 = vrot.slane %v751, 1
      %v1045 = vsel %vm1039, %v1043, %v1044
      %v1046 = vrot.slane %v752, 1
      %v1047 = vsel %vm1039, %v1041, %v1046
      %v1048 = vrot.slane %v753, 1
      %v1049 = vsel %vm1039, %v1044, %v1048
      %v1050 = vrot.slane %v754, 1
      %v1051 = vsel %vm1039, %v1046, %v1050
      %v1052 = vrot.slane %v755, 1
      %v1053 = vsel %vm1039, %v1048, %v1052
      %v1054 = vrot.slane %v756, 1
      %v1055 = vsel %vm1039, %v1050, %v1054
      %v1056 = vrot.slane %v757, 1
      %v1057 = vsel %vm1039, %v1052, %v1056
      %v1098 = vunpack.c.l.b16 %v1002
      %v1099 = vunpack.c.l.b16 %v1003
      %v1100 = vunpack.c.l.b16 %v1004
      %v1101 = vunpack.c.l.b16 %v1005
      %v1102 = vunpack.c.l.b16 %v1006
      %v1103 = vunpack.c.l.b16 %v1007
      %v1104 = vunpack.c.l.b16 %v1008
      %v1105 = vunpack.c.l.b16 %v1009
      %v1106 = vunpack.c.l.b16 %v1010
      %v1107 = vunpack.c.l.b16 %v1011
      %v1108 = vunpack.c.l.b16 %v1012
      %v1109 = vunpack.c.l.b16 %v1013
      %v1110 = vunpack.c.l.b16 %v1014
      %v1111 = vunpack.c.l.b16 %v1015
      %v1112 = vunpack.c.l.b16 %v1016
      %v1113 = vunpack.c.l.b16 %v1017
      %v1114 = vunpack.c.l.b16 %v1018
      %v1115 = vunpack.c.l.b16 %v1019
      %v1116 = vunpack.c.l.b16 %v1020
      %v1117 = vunpack.c.l.b16 %v1021
      %v1118 = vunpack.c.l.b16 %v1022
      %v1119 = vunpack.c.l.b16 %v1023
      %v1120 = vunpack.c.l.b16 %v1024
      %v1121 = vunpack.c.l.b16 %v1025
      %v1122 = vunpack.c.l.b16 %v1026
      %v1123 = vunpack.c.l.b16 %v1027
      %v1124 = vunpack.c.l.b16 %v1028
      %v1125 = vunpack.c.l.b16 %v1029
      %v1126 = vunpack.c.l.b16 %v1030
      %v1127 = vunpack.c.l.b16 %v1031
      %v1128 = vunpack.c.l.b16 %v1032
      %v1129 = vunpack.c.l.b16 %v1033
      %v1130 = vpack.c.b16 %v1099, %v1098
      %v1131 = vpack.c.b16 %v1101, %v1100
      %v1132 = vpack.c.b16 %v1103, %v1102
      %v1133 = vpack.c.b16 %v1105, %v1104
      %v1134 = vpack.c.b16 %v1107, %v1106
      %v1135 = vpack.c.b16 %v1109, %v1108
      %v1136 = vpack.c.b16 %v1111, %v1110
      %v1137 = vpack.c.b16 %v1113, %v1112
      %v1138 = vpack.c.b16 %v1115, %v1114
      %v1139 = vpack.c.b16 %v1117, %v1116
      %v1140 = vpack.c.b16 %v1119, %v1118
      %v1141 = vpack.c.b16 %v1121, %v1120
      %v1142 = vpack.c.b16 %v1123, %v1122
      %v1143 = vpack.c.b16 %v1125, %v1124
      %v1144 = vpack.c.b16 %v1127, %v1126
      %v1145 = vpack.c.b16 %v1129, %v1128
      %1162 = vmatpush.bf16.msra.mxu0 %v1137
      %1163 = vmatpush.bf16.msra.mxu0 %v1136
      %1164 = vmatpush.bf16.msra.mxu0 %v1135
      %1165 = vmatpush.bf16.msra.mxu0 %v1134
      %1166 = vmatpush.bf16.msra.mxu0 %v1133
      %1167 = vmatpush.bf16.msra.mxu0 %v1132
      %1168 = vmatpush.bf16.msra.mxu0 %v1131
      %1169 = vmatpush.bf16.msra.mxu0 %v1130
      %1170 = vmatmul.bf16.gmra.mxu0 %v1042
      %v1171 = vpop.f32.mrf.mxu0
      %v1172 = vadd.f32 0.0, %v1171
      %v1173 = vpop.f32.mrf.mxu0
      %v1174 = vadd.f32 0.0, %v1173
      %1175 = vmatmul.bf16.gmra.mxu0 %v1047
      %v1176 = vpop.f32.mrf.mxu0
      %v1177 = vadd.f32 0.0, %v1176
      %v1178 = vpop.f32.mrf.mxu0
      %v1179 = vadd.f32 0.0, %v1178
      %1180 = vmatmul.bf16.gmra.mxu0 %v1051
      %v1181 = vpop.f32.mrf.mxu0
      %v1182 = vadd.f32 0.0, %v1181
      %v1183 = vpop.f32.mrf.mxu0
      %v1184 = vadd.f32 0.0, %v1183
      %1185 = vmatmul.bf16.gmra.mxu0 %v1055
      %v1186 = vpop.f32.mrf.mxu0
      %v1187 = vadd.f32 0.0, %v1186
      %v1188 = vpop.f32.mrf.mxu0
      %v1189 = vadd.f32 0.0, %v1188
      %1190 = vdwg.mxu0
      %1191 = vmatpush.bf16.msra.mxu0 %v1145
      %1192 = vmatpush.bf16.msra.mxu0 %v1144
      %1193 = vmatpush.bf16.msra.mxu0 %v1143
      %1194 = vmatpush.bf16.msra.mxu0 %v1142
      %1195 = vmatpush.bf16.msra.mxu0 %v1141
      %1196 = vmatpush.bf16.msra.mxu0 %v1140
      %1197 = vmatpush.bf16.msra.mxu0 %v1139
      %1198 = vmatpush.bf16.msra.mxu0 %v1138
      %1199 = vmatmul.bf16.gmra.mxu0 %v1045
      %v1200 = vpop.f32.mrf.mxu0
      %v1201 = vadd.f32 %v1172, %v1200
      %v1202 = vpop.f32.mrf.mxu0
      %v1203 = vadd.f32 %v1174, %v1202
      %1204 = vmatmul.bf16.gmra.mxu0 %v1049
      %v1205 = vpop.f32.mrf.mxu0
      %v1206 = vadd.f32 %v1177, %v1205
      %v1207 = vpop.f32.mrf.mxu0
      %v1208 = vadd.f32 %v1179, %v1207
      %1209 = vmatmul.bf16.gmra.mxu0 %v1053
      %v1210 = vpop.f32.mrf.mxu0
      %v1211 = vadd.f32 %v1182, %v1210
      %v1212 = vpop.f32.mrf.mxu0
      %v1213 = vadd.f32 %v1184, %v1212
      %1214 = vmatmul.bf16.gmra.mxu0 %v1057
      %v1215 = vpop.f32.mrf.mxu0
      %v1216 = vadd.f32 %v1187, %v1215
      %v1217 = vpop.f32.mrf.mxu0
      %v1218 = vadd.f32 %v1189, %v1217
      %1219 = vdwg.mxu0
      %v1220 = vadd.f32 %v992, %v1201
      %v1221 = vadd.f32 %v993, %v1203
      %v1222 = vadd.f32 %v994, %v1206
      %v1223 = vadd.f32 %v995, %v1208
      %v1224 = vadd.f32 %v996, %v1211
      %v1225 = vadd.f32 %v997, %v1213
      %v1226 = vadd.f32 %v998, %v1216
      %v1227 = vadd.f32 %v999, %v1218
      %v1228 = vld [vmem:[%s2] sm:$0x1]
      %v1230 = vperm.slane %v1228, 0
      %v1232 = vadd.f32 %v1220, %v1230
      %v1233 = vadd.f32 %v1221, %v1230
      %v1234 = vadd.f32 %v1222, %v1230
      %v1235 = vadd.f32 %v1223, %v1230
      %v1236 = vadd.f32 %v1224, %v1230
      %v1237 = vadd.f32 %v1225, %v1230
      %v1238 = vadd.f32 %v1226, %v1230
      %v1239 = vadd.f32 %v1227, %v1230
      %v1240 = vmul.f32 %v1232, 0.2
      %v1241 = vmul.f32 %v1233, 0.2
      %v1242 = vmul.f32 %v1234, 0.2
      %v1243 = vmul.f32 %v1235, 0.2
      %v1244 = vmul.f32 %v1236, 0.2
      %v1245 = vmul.f32 %v1237, 0.2
      %v1246 = vmul.f32 %v1238, 0.2
      %v1247 = vmul.f32 %v1239, 0.2
      %v1248 = vmax.f32 %v1232, %v1240
      %v1249 = vmax.f32 %v1233, %v1241
      %v1250 = vmax.f32 %v1234, %v1242
      %v1251 = vmax.f32 %v1235, %v1243
      %v1252 = vmax.f32 %v1236, %v1244
      %v1253 = vmax.f32 %v1237, %v1245
      %v1254 = vmax.f32 %v1238, %v1246
      %v1255 = vmax.f32 %v1239, %v1247
      %v1256 = vpack.c.bf16 %v1248, %v1248
      %v1257 = vpack.c.bf16 %v1249, %v1249
      %v1258 = vpack.c.bf16 %v1250, %v1250
      %v1259 = vpack.c.bf16 %v1251, %v1251
      %v1260 = vpack.c.bf16 %v1252, %v1252
      %v1261 = vpack.c.bf16 %v1253, %v1253
      %v1262 = vpack.c.bf16 %v1254, %v1254
      %v1263 = vpack.c.bf16 %v1255, %v1255
      %1264 = vst [vmem:[%s170] sm:$0xf] %v1256
      %1265 = vst [vmem:[%s170 + $0x4] sm:$0xf] %v1257
      %1266 = vst [vmem:[%s170 + $0x8] sm:$0xf] %v1258
      %1267 = vst [vmem:[%s170 + $0xc] sm:$0xf] %v1259
      %1268 = vst [vmem:[%s170 + $0x10] sm:$0xf] %v1260
      %1269 = vst [vmem:[%s170 + $0x14] sm:$0xf] %v1261
      %1270 = vst [vmem:[%s170 + $0x18] sm:$0xf] %v1262
      %1271 = vst [vmem:[%s170 + $0x1c] sm:$0xf] %v1263
      %p1272 = scmp.lt.s32.totalorder %s14, 1
      %s1273 = scalar_select %p1272, %s14, 1
      %s1274 = smul.addr %s1273, 8
      %s1275 = smul.addr %s1274, 4
      %s1276 = scalar_lea.vmem %s3, %s1275
      // Predicated region
      $region33: #{encoder_forward.5} parent=31 // pred_check
        %p1277 = pneg %p100
      $region34: #{encoder_forward.5} parent=31 // pred_check_branch
        %1279 = sbr.rel (%p1277) target = $region36
      $region35: #{encoder_forward.5} parent=31 // pred_region
        _
      $region36: #{encoder_forward.5} parent=31 // pred_fallthru
        _
    $region32: #{encoder_forward.5} parent=5 // pred_fallthru
      _
    %p1280 = scmp.le.s32.totalorder 2, %s9
    // Predicated region
    $region37: #{encoder_forward.5} parent=5 // pred_check
      %p1281 = pneg %p1280
    $region38: #{encoder_forward.5} parent=5 // pred_check_branch
      %1283 = sbr.rel (%p1281) target = $region40
    $region39: #{encoder_forward.5} parent=5 // pred_region
      %s1284 = ssub.s32 %s9, 2
      // Predicated region
      $region41: #{encoder_forward.5} parent=39 // pred_check
        %p1285 = pneg %p106
      $region42: #{encoder_forward.5} parent=39 // pred_check_branch
        %1287 = sbr.rel (%p1285) target = $region44
      $region43: #{encoder_forward.5} parent=39 // pred_region
        %p1288 = scmp.lt.s32.totalorder %s15, 1
        %s1289 = scalar_select %p1288, %s15, 1
        %s1290 = smul.addr %s1289, 8
        %s1291 = smul.addr %s1290, 4
        %s1292 = scalar_lea.vmem %s3, %s1291
      $region44: #{encoder_forward.5} parent=39 // pred_fallthru
        _
    $region40: #{encoder_forward.5} parent=5 // pred_fallthru
      _
  $region6: #{encoder_forward.5} parent=0 // loop_footer
    %s13 = sadd.s32 1, %s9
  $region7: #{encoder_forward.5} parent=0 // loop_footer_branch
    %8 = sbr.rel target = $region3
  $region8: #{encoder_forward.5} parent=0 // loop_exit
    _

// kernel: encoder_forward.6
$region0: #{encoder_forward.6}
  #allocation0 [shape = 'u32[]', space=smem, size = 0x4, offset = 0x4, fixed_abs, tag = 'smem constant byte address 0x4 - core index']
  #allocation1 [shape = 'u32[72,128]{1,0:T(1,128)}', space=vmem, size = 0x9000, scoped, tag = 'internal scratch']
  %s0 = inlined_call_operand.vmem [shape: bf16[2,32,512], index: 0, kind: input, shape index: {}]
  %s1 = inlined_call_operand.vmem [shape: bf16[4,512,256], index: 1, kind: input, shape index: {}]
  %s2 = inlined_call_operand.vmem [shape: f32[1,256], index: 2, kind: input, shape index: {}]
  %s3 = inlined_call_operand.vmem [shape: bf16[2,24,256], index: 3, kind: output, shape index: {}]
  %s4 = sld [smem:[#allocation0]]
  $region45: #{encoder_forward.6} parent=0
    _
  %s6 = ssub.s32 1, %s4
  %s7 = scalar_select 0, %s6, %s4
  loop: start=0, step=1, limit=4
  $region2: #{encoder_forward.6} parent=0 // loop_pre_header
    _
  $region3: #{encoder_forward.6} parent=0 // loop_header
    %s9 = sphi 0, %s13
    %p10 = scmp.ge.s32.totalorder %s9, 4
    %s19 = sphi 0, %s21
    %s22 = sphi 0, %s19
    %s23 = sphi 0, %s22
    %s39 = sphi 0, %s23
    %s43 = sphi 0, %s43
    %s45 = sphi 0, %s43
    %s46 = sphi 0, %s45
    %s60 = sphi 0, %s46
    %s64 = sphi 0, %s64
    %s66 = sphi 0, %s64
    %s67 = sphi 0, %s66
    %s81 = sphi 0, %s67
    %s87 = sphi 0, %s89
    %s90 = sphi 0, %s87
    %s91 = sphi 0, %s90
    %s107 = sphi 0, %s91
  $region4: #{encoder_forward.6} parent=0 // loop_header_branch
    %12 = sbr.rel (%p10) target = $region8
  $region5: #{encoder_forward.6} parent=0 // loop_body
    %s14 = ssub.s32 %s9, 1
    %s15 = ssub.s32 %s9, 2
    %s16 = sadd.s32 %s9, 1
    %s17 = ssub.s32 %s9, %s16
    %p18 = scmp.eq.s32.totalorder %s17, 0
    %s20 = sadd.s32 %s19, 1
    %s21 = scalar_select %p18, %s19, %s20
    %p24 = pneg %p18
    %p25 = scmp.eq.s32.totalorder %s9, 1
    %p26 = por %p24, %p25
    %p27 = scmp.ne.s32.totalorder %s19, %s22
    %p28 = scmp.eq.s32.totalorder %s9, 0
    %p29 = por %p27, %p28
    %p30 = scmp.ne.s32.totalorder %s19, %s22
    %p31 = scmp.eq.s32.totalorder %s14, 1
    %p32 = por %p30, %p31
    %p33 = scmp.ne.s32.totalorder %s22, %s23
    %p34 = scmp.eq.s32.totalorder %s14, 0
    %p35 = por %p33, %p34
    %p36 = scmp.ne.s32.totalorder %s22, %s23
    %p37 = scmp.eq.s32.totalorder %s15, 1
    %p38 = por %p36, %p37
    %p40 = scmp.ne.s32.totalorder %s23, %s39
    %p41 = scmp.eq.s32.totalorder %s15, 0
    %p42 = por %p40, %p41
    %s44 = sadd.s32 %s43, 1
    %p47 = scmp.eq.s32.totalorder %s9, 1
    %p48 = scmp.ne.s32.totalorder %s43, %s45
    %p49 = scmp.eq.s32.totalorder %s9, 0
    %p50 = por %p48, %p49
    %p51 = scmp.ne.s32.totalorder %s43, %s45
    %p52 = scmp.eq.s32.totalorder %s14, 1
    %p53 = por %p51, %p52
    %p54 = scmp.ne.s32.totalorder %s45, %s46
    %p55 = scmp.eq.s32.totalorder %s14, 0
    %p56 = por %p54, %p55
    %p57 = scmp.ne.s32.totalorder %s45, %s46
    %p58 = scmp.eq.s32.totalorder %s15, 1
    %p59 = por %p57, %p58
    %p61 = scmp.ne.s32.totalorder %s46, %s60
    %p62 = scmp.eq.s32.totalorder %s15, 0
    %p63 = por %p61, %p62
    %s65 = sadd.s32 %s64, 1
    %p68 = scmp.eq.s32.totalorder %s9, 1
    %p69 = scmp.ne.s32.totalorder %s64, %s66
    %p70 = scmp.eq.s32.totalorder %s9, 0
    %p71 = por %p69, %p70
    %p72 = scmp.ne.s32.totalorder %s64, %s66
    %p73 = scmp.eq.s32.totalorder %s14, 1
    %p74 = por %p72, %p73
    %p75 = scmp.ne.s32.totalorder %s66, %s67
    %p76 = scmp.eq.s32.totalorder %s14, 0
    %p77 = por %p75, %p76
    %p78 = scmp.ne.s32.totalorder %s66, %s67
    %p79 = scmp.eq.s32.totalorder %s15, 1
    %p80 = por %p78, %p79
    %p82 = scmp.ne.s32.totalorder %s67, %s81
    %p83 = scmp.eq.s32.totalorder %s15, 0
    %p84 = por %p82, %p83
    %s85 = ssub.s32 %s9, %s16
    %p86 = scmp.eq.s32.totalorder %s85, 0
    %s88 = sadd.s32 %s87, 1
    %s89 = scalar_select %p86, %s87, %s88
    %p92 = pneg %p86
    %p93 = scmp.eq.s32.totalorder %s9, 1
    %p94 = por %p92, %p93
    %p95 = scmp.ne.s32.totalorder %s87, %s90
    %p96 = scmp.eq.s32.totalorder %s9, 0
    %p97 = por %p95, %p96
    %p98 = scmp.ne.s32.totalorder %s87, %s90
    %p99 = scmp.eq.s32.totalorder %s14, 1
    %p100 = por %p98, %p99
    %p101 = scmp.ne.s32.totalorder %s90, %s91
    %p102 = scmp.eq.s32.totalorder %s14, 0
    %p103 = por %p101, %p102
    %p104 = scmp.ne.s32.totalorder %s90, %s91
    %p105 = scmp.eq.s32.totalorder %s15, 1
    %p106 = por %p104, %p105
    %p108 = scmp.ne.s32.totalorder %s91, %s107
    %p109 = scmp.eq.s32.totalorder %s15, 0
    %p110 = por %p108, %p109
    %p111 = scmp.le.s32.totalorder 1, %s9
    %p112 = scmp.lt.s32.totalorder %s9, 3
    %p113 = pnand %p111, %p112
    %p114 = pneg %p113
    // Predicated region
    $region9: #{encoder_forward.6} parent=5 // pred_check
      _
    $region10: #{encoder_forward.6} parent=5 // pred_check_branch
      %116 = sbr.rel (%p113) target = $region12
    $region11: #{encoder_forward.6} parent=5 // pred_region
      %s117 = ssub.s32 %s9, 1
      // Predicated region
      $region13: #{encoder_forward.6} parent=11 // pred_check
        %p118 = pneg %p56
      $region14: #{encoder_forward.6} parent=11 // pred_check_branch
        %120 = sbr.rel (%p118) target = $region16
      $region15: #{encoder_forward.6} parent=11 // pred_region
        _
      $region16: #{encoder_forward.6} parent=11 // pred_fallthru
        _
      // Predicated region
      $region17: #{encoder_forward.6} parent=11 // pred_check
        %p121 = pneg %p77
      $region18: #{encoder_forward.6} parent=11 // pred_check_branch
        %123 = sbr.rel (%p121) target = $region20
      $region19: #{encoder_forward.6} parent=11 // pred_region
        _
      $region20: #{encoder_forward.6} parent=11 // pred_fallthru
        _
    $region12: #{encoder_forward.6} parent=5 // pred_fallthru
      _
    %p124 = scmp.lt.s32.totalorder %s9, 2
    // Predicated region
    $region21: #{encoder_forward.6} parent=5 // pred_check
      %p125 = pneg %p124
    $region22: #{encoder_forward.6} parent=5 // pred_check_branch
      %127 = sbr.rel (%p125) target = $region24
    $region23: #{encoder_forward.6} parent=5 // pred_region
      // Predicated region
      $region25: #{encoder_forward.6} parent=23 // pred_check
        %p128 = pneg %p29
      $region26: #{encoder_forward.6} parent=23 // pred_check_branch
        %130 = sbr.rel (%p128) target = $region28
      $region27: #{encoder_forward.6} parent=23 // pred_region
        %p131 = scmp.lt.s32.totalorder %s9, 1
        %s132 = scalar_select %p131, %s9, 1
        %s133 = smul.addr %s132, 16
        %s134 = smul.addr %s133, 4
        %s135 = scalar_lea.vmem %s0, %s134
      $region28: #{encoder_forward.6} parent=23 // pred_fallthru
        _
    $region24: #{encoder_forward.6} parent=5 // pred_fallthru
      _
    %p136 = scmp.le.s32.totalorder 1, %s9
    %p137 = scmp.lt.s32.totalorder %s9, 3
    %p138 = pnand %p136, %p137
    %p139 = pneg %p138
    // Predicated region
    $region29: #{encoder_forward.6} parent=5 // pred_check
      _
    $region30: #{encoder_forward.6} parent=5 // pred_check_branch
      %141 = sbr.rel (%p138) target = $region32
    $region31: #{encoder_forward.6} parent=5 // pred_region
      %s142 = ssub.s32 %s9, 1
      %p143 = scmp.lt.s32.totalorder %s14, 1
      %s144 = scalar_select %p143, %s14, 1
      %s145 = smul.addr %s144, 16
      %s146 = smul.addr %s145, 4
      %s147 = scalar_lea.vmem %s0, %s146
      %p148 = pneg %p35
      %p149 = pneg %p32
      %p150 = pneg %p56
      %p151 = pneg %p53
      %p152 = pneg %p77
      %p153 = pneg %p74
      %p154 = pneg %p103
      %p155 = pneg %p100
      %p156 = scmp.lt.s32.totalorder %s14, 1
      %s157 = scalar_select %p156, %s14, 1
      %s158 = smul.addr %s157, 6
      %s159 = smul.addr %s158, 4
      %s160 = scalar_lea.vmem %s3, %s159
      %p161 = scmp.lt.s32.totalorder %s14, 1
      %s162 = scalar_select %p161, %s14, 1
      %s163 = smul.addr %s162, 16
      %s164 = smul.addr %s163, 4
      %s165 = scalar_lea.vmem %s0, %s164
      %p166 = scmp.lt.s32.totalorder %s14, 1
      %s167 = scalar_select %p166, %s14, 1
      %s168 = smul.addr %s167, 6
      %s169 = smul.addr %s168, 4
      %s170 = scalar_lea.vmem %s3, %s169
      %v171 = vld [vmem:[%s165] sm:$0xff]
      %v172 = vld [vmem:[%s165 + $0x8] sm:$0xff]
      %v173 = vld [vmem:[%s165 + $0x10] sm:$0xff]
      %v174 = vld [vmem:[%s165 + $0x18] sm:$0xff]
      %v175 = vld [vmem:[%s165 + $0x20] sm:$0xff]
      %v176 = vld [vmem:[%s165 + $0x28] sm:$0xff]
      %v177 = vld [vmem:[%s1] sm:$0xff]
      %v178 = vld [vmem:[%s1 + $0x8] sm:$0xff]
      %v179 = vld [vmem:[%s1 + $0x10] sm:$0xff]
      %v180 = vld [vmem:[%s1 + $0x18] sm:$0xff]
      %v181 = vld [vmem:[%s1 + $0x20] sm:$0xff]
      %v182 = vld [vmem:[%s1 + $0x28] sm:$0xff]
      %v183 = vld [vmem:[%s1 + $0x30] sm:$0xff]
      %v184 = vld [vmem:[%s1 + $0x38] sm:$0xff]
      %v185 = vld [vmem:[%s1 + $0x40] sm:$0xff]
      %v186 = vld [vmem:[%s1 + $0x48] sm:$0xff]
      %v187 = vld [vmem:[%s1 + $0x50] sm:$0xff]
      %v188 = vld [vmem:[%s1 + $0x58] sm:$0xff]
      %v189 = vld [vmem:[%s1 + $0x60] sm:$0xff]
      %v190 = vld [vmem:[%s1 + $0x68] sm:$0xff]
      %v191 = vld [vmem:[%s1 + $0x70] sm:$0xff]
      %v192 = vld [vmem:[%s1 + $0x78] sm:$0xff]
      %v193 = vld [vmem:[%s1 + $0x80] sm:$0xff]
      %v194 = vld [vmem:[%s1 + $0x88] sm:$0xff]
      %v195 = vld [vmem:[%s1 + $0x90] sm:$0xff]
      %v196 = vld [vmem:[%s1 + $0x98] sm:$0xff]
      %v197 = vld [vmem:[%s1 + $0xa0] sm:$0xff]
      %v198 = vld [vmem:[%s1 + $0xa8] sm:$0xff]
      %v199 = vld [vmem:[%s1 + $0xb0] sm:$0xff]
      %v200 = vld [vmem:[%s1 + $0xb8] sm:$0xff]
      %v201 = vld [vmem:[%s1 + $0xc0] sm:$0xff]
      %v202 = vld [vmem:[%s1 + $0xc8] sm:$0xff]
      %v203 = vld [vmem:[%s1 + $0xd0] sm:$0xff]
      %v204 = vld [vmem:[%s1 + $0xd8] sm:$0xff]
      %v205 = vld [vmem:[%s1 + $0xe0] sm:$0xff]
      %v206 = vld [vmem:[%s1 + $0xe8] sm:$0xff]
      %v207 = vld [vmem:[%s1 + $0xf0] sm:$0xff]
      %v208 = vld [vmem:[%s1 + $0xf8] sm:$0xff]
      %v209 = vld [vmem:[%s1 + $0x100] sm:$0xff]
      %v210 = vld [vmem:[%s1 + $0x108] sm:$0xff]
      %v211 = vld [vmem:[%s1 + $0x110] sm:$0xff]
      %v212 = vld [vmem:[%s1 + $0x118] sm:$0xff]
      %v213 = vld [vmem:[%s1 + $0x120] sm:$0xff]
      %v214 = vld [vmem:[%s1 + $0x128] sm:$0xff]
      %v215 = vld [vmem:[%s1 + $0x130] sm:$0xff]
      %v216 = vld [vmem:[%s1 + $0x138] sm:$0xff]
      %v217 = vld [vmem:[%s1 + $0x140] sm:$0xff]
      %v218 = vld [vmem:[%s1 + $0x148] sm:$0xff]
      %v219 = vld [vmem:[%s1 + $0x150] sm:$0xff]
      %v220 = vld [vmem:[%s1 + $0x158] sm:$0xff]
      %v221 = vld [vmem:[%s1 + $0x160] sm:$0xff]
      %v222 = vld [vmem:[%s1 + $0x168] sm:$0xff]
      %v223 = vld [vmem:[%s1 + $0x170] sm:$0xff]
      %v224 = vld [vmem:[%s1 + $0x178] sm:$0xff]
      %v225 = vld [vmem:[%s1 + $0x180] sm:$0xff]
      %v226 = vld [vmem:[%s1 + $0x188] sm:$0xff]
      %v227 = vld [vmem:[%s1 + $0x190] sm:$0xff]
      %v228 = vld [vmem:[%s1 + $0x198] sm:$0xff]
      %v229 = vld [vmem:[%s1 + $0x1a0] sm:$0xff]
      %v230 = vld [vmem:[%s1 + $0x1a8] sm:$0xff]
      %v231 = vld [vmem:[%s1 + $0x1b0] sm:$0xff]
      %v232 = vld [vmem:[%s1 + $0x1b8] sm:$0xff]
      %v233 = vld [vmem:[%s1 + $0x1c0] sm:$0xff]
      %v234 = vld [vmem:[%s1 + $0x1c8] sm:$0xff]
      %v235 = vld [vmem:[%s1 + $0x1d0] sm:$0xff]
      %v236 = vld [vmem:[%s1 + $0x1d8] sm:$0xff]
      %v237 = vld [vmem:[%s1 + $0x1e0] sm:$0xff]
      %v238 = vld [vmem:[%s1 + $0x1e8] sm:$0xff]
      %v239 = vld [vmem:[%s1 + $0x1f0] sm:$0xff]
      %v240 = vld [vmem:[%s1 + $0x1f8] sm:$0xff]
      %v241 = vld [vmem:[%s165] sm:$0xff]
      %v242 = vld [vmem:[%s165 + $0x8] sm:$0xff]
      %v243 = vld [vmem:[%s165 + $0x10] sm:$0xff]
      %v244 = vld [vmem:[%s165 + $0x18] sm:$0xff]
      %v245 = vld [vmem:[%s165 + $0x20] sm:$0xff]
      %v246 = vld [vmem:[%s165 + $0x28] sm:$0xff]
      %v247 = vld [vmem:[%s165 + $0x30] sm:$0x11]
      %v248 = vld [vmem:[%s165 + $0x38] sm:$0x11]
      %s249 = scalar_lea.vmem %s1, 512
      %v250 = vld [vmem:[%s249] sm:$0xff]
      %v251 = vld [vmem:[%s249 + $0x8] sm:$0xff]
      %v252 = vld [vmem:[%s249 + $0x10] sm:$0xff]
      %v253 = vld [vmem:[%s249 + $0x18] sm:$0xff]
      %v254 = vld [vmem:[%s249 + $0x20] sm:$0xff]
      %v255 = vld [vmem:[%s249 + $0x28] sm:$0xff]
      %v256 = vld [vmem:[%s249 + $0x30] sm:$0xff]
      %v257 = vld [vmem:[%s249 + $0x38] sm:$0xff]
      %v258 = vld [vmem:[%s249 + $0x40] sm:$0xff]
      %v259 = vld [vmem:[%s249 + $0x48] sm:$0xff]
      %v260 = vld [vmem:[%s249 + $0x50] sm:$0xff]
      %v261 = vld [vmem:[%s249 + $0x58] sm:$0xff]
      %v262 = vld [vmem:[%s249 + $0x60] sm:$0xff]
      %v263 = vld [vmem:[%s249 + $0x68] sm:$0xff]
      %v264 = vld [vmem:[%s249 + $0x70] sm:$0xff]
      %v265 = vld [vmem:[%s249 + $0x78] sm:$0xff]
      %v266 = vld [vmem:[%s249 + $0x80] sm:$0xff]
      %v267 = vld [vmem:[%s249 + $0x88] sm:$0xff]
      %v268 = vld [vmem:[%s249 + $0x90] sm:$0xff]
      %v269 = vld [vmem:[%s249 + $0x98] sm:$0xff]
      %v270 = vld [vmem:[%s249 + $0xa0] sm:$0xff]
      %v271 = vld [vmem:[%s249 + $0xa8] sm:$0xff]
      %v272 = vld [vmem:[%s249 + $0xb0] sm:$0xff]
      %v273 = vld [vmem:[%s249 + $0xb8] sm:$0xff]
      %v274 = vld [vmem:[%s249 + $0xc0] sm:$0xff]
      %v275 = vld [vmem:[%s249 + $0xc8] sm:$0xff]
      %v276 = vld [vmem:[%s249 + $0xd0] sm:$0xff]
      %v277 = vld [vmem:[%s249 + $0xd8] sm:$0xff]
      %v278 = vld [vmem:[%s249 + $0xe0] sm:$0xff]
      %v279 = vld [vmem:[%s249 + $0xe8] sm:$0xff]
      %v280 = vld [vmem:[%s249 + $0xf0] sm:$0xff]
      %v281 = vld [vmem:[%s249 + $0xf8] sm:$0xff]
      %v282 = vld [vmem:[%s249 + $0x100] sm:$0xff]
      %v283 = vld [vmem:[%s249 + $0x108] sm:$0xff]
      %v284 = vld [vmem:[%s249 + $0x110] sm:$0xff]
      %v285 = vld [vmem:[%s249 + $0x118] sm:$0xff]
      %v286 = vld [vmem:[%s249 + $0x120] sm:$0xff]
      %v287 = vld [vmem:[%s249 + $0x128] sm:$0xff]
      %v288 = vld [vmem:[%s249 + $0x130] sm:$0xff]
      %v289 = vld [vmem:[%s249 + $0x138] sm:$0xff]
      %v290 = vld [vmem:[%s249 + $0x140] sm:$0xff]
      %v291 = vld [vmem:[%s249 + $0x148] sm:$0xff]
      %v292 = vld [vmem:[%s249 + $0x150] sm:$0xff]
      %v293 = vld [vmem:[%s249 + $0x158] sm:$0xff]
      %v294 = vld [vmem:[%s249 + $0x160] sm:$0xff]
      %v295 = vld [vmem:[%s249 + $0x168] sm:$0xff]
      %v296 = vld [vmem:[%s249 + $0x170] sm:$0xff]
      %v297 = vld [vmem:[%s249 + $0x178] sm:$0xff]
      %v298 = vld [vmem:[%s249 + $0x180] sm:$0xff]
      %v299 = vld [vmem:[%s249 + $0x188] sm:$0xff]
      %v300 = vld [vmem:[%s249 + $0x190] sm:$0xff]
      %v301 = vld [vmem:[%s249 + $0x198] sm:$0xff]
      %v302 = vld [vmem:[%s249 + $0x1a0] sm:$0xff]
      %v303 = vld [vmem:[%s249 + $0x1a8] sm:$0xff]
      %v304 = vld [vmem:[%s249 + $0x1b0] sm:$0xff]
      %v305 = vld [vmem:[%s249 + $0x1b8] sm:$0xff]
      %v306 = vld [vmem:[%s249 + $0x1c0] sm:$0xff]
      %v307 = vld [vmem:[%s249 + $0x1c8] sm:$0xff]
      %v308 = vld [vmem:[%s249 + $0x1d0] sm:$0xff]
      %v309 = vld [vmem:[%s249 + $0x1d8] sm:$0xff]
      %v310 = vld [vmem:[%s249 + $0x1e0] sm:$0xff]
      %v311 = vld [vmem:[%s249 + $0x1e8] sm:$0xff]
      %v312 = vld [vmem:[%s249 + $0x1f0] sm:$0xff]
      %v313 = vld [vmem:[%s249 + $0x1f8] sm:$0xff]
      %v322 = vunpack.c.l.b16 %v241
      %v323 = vunpack.c.h.b16 %v241
      %v324 = vunpack.c.l.b16 %v242
      %v325 = vunpack.c.h.b16 %v242
      %v326 = vunpack.c.l.b16 %v243
      %v327 = vunpack.c.h.b16 %v243
      %v328 = vunpack.c.l.b16 %v244
      %v329 = vunpack.c.h.b16 %v244
      %v330 = vunpack.c.l.b16 %v245
      %v331 = vunpack.c.h.b16 %v245
      %v332 = vunpack.c.l.b16 %v246
      %v333 = vunpack.c.h.b16 %v246
      %v334 = vunpack.c.l.b16 %v247
      %v335 = vunpack.c.h.b16 %v247
      %v336 = vunpack.c.l.b16 %v248
      %v337 = vunpack.c.h.b16 %v248
      %v338 = vpack.c.b16 %v326, %v322
      %v339 = vpack.c.b16 %v327, %v323
      %v340 = vpack.c.b16 %v328, %v324
      %v341 = vpack.c.b16 %v329, %v325
      %v342 = vpack.c.b16 %v334, %v330
      %v343 = vpack.c.b16 %v335, %v331
      %v344 = vpack.c.b16 %v336, %v332
      %v345 = vpack.c.b16 %v337, %v333
      %vm346 = vsmask.f32 7424
      %v348 = vshrl.u32 %v338, 16
      %v350 = vshll.u32 %v338, 16
      %v352 = vrot.slane %v350, 1
      %v353 = vor.u32 %v348, %v352
      %v355 = vshll.u32 %v342, 16
      %v357 = vrot.slane %v355, 1
      %v358 = vsel %vm346, %v353, %v357
      %v360 = vshrl.u32 %v339, 16
      %v362 = vshll.u32 %v339, 16
      %v364 = vrot.slane %v362, 1
      %v365 = vor.u32 %v360, %v364
      %v367 = vshll.u32 %v343, 16
      %v369 = vrot.slane %v367, 1
      %v370 = vsel %vm346, %v365, %v369
      %v372 = vshrl.u32 %v340, 16
      %v374 = vshll.u32 %v340, 16
      %v376 = vrot.slane %v374, 1
      %v377 = vor.u32 %v372, %v376
      %v379 = vshll.u32 %v344, 16
      %v381 = vrot.slane %v379, 1
      %v382 = vsel %vm346, %v377, %v381
      %v384 = vshrl.u32 %v341, 16
      %v386 = vshll.u32 %v341, 16
      %v388 = vrot.slane %v386, 1
      %v389 = vor.u32 %v384, %v388
      %v391 = vshll.u32 %v345, 16
      %v393 = vrot.slane %v391, 1
      %v394 = vsel %vm346, %v389, %v393
      %v395 = vshrl.u32 %v342, 16
      %v397 = vor.u32 %v395, %v357
      %v398 = vshrl.u32 %v343, 16
      %v400 = vor.u32 %v398, %v369
      %v401 = vshrl.u32 %v344, 16
      %v403 = vor.u32 %v401, %v381
      %v404 = vshrl.u32 %v345, 16
      %v406 = vor.u32 %v404, %v393
      %v479 = vunpack.c.l.b16 %v250
      %v480 = vunpack.c.h.b16 %v250
      %v481 = vunpack.c.l.b16 %v251
      %v482 = vunpack.c.h.b16 %v251
      %v483 = vunpack.c.l.b16 %v252
      %v484 = vunpack.c.h.b16 %v252
      %v485 = vunpack.c.l.b16 %v253
      %v486 = vunpack.c.h.b16 %v253
      %v487 = vunpack.c.l.b16 %v254
      %v488 = vunpack.c.h.b16 %v254
      %v489 = vunpack.c.l.b16 %v255
      %v490 = vunpack.c.h.b16 %v255
      %v491 = vunpack.c.l.b16 %v256
      %v492 = vunpack.c.h.b16 %v256
      %v493 = vunpack.c.l.b16 %v257
      %v494 = vunpack.c.h.b16 %v257
      %v495 = vunpack.c.l.b16 %v258
      %v496 = vunpack.c.h.b16 %v258
      %v497 = vunpack.c.l.b16 %v259
      %v498 = vunpack.c.h.b16 %v259
      %v499 = vunpack.c.l.b16 %v260
      %v500 = vunpack.c.h.b16 %v260
      %v501 = vunpack.c.l.b16 %v261
      %v502 = vunpack.c.h.b16 %v261
      %v503 = vunpack.c.l.b16 %v262
      %v504 = vunpack.c.h.b16 %v262
      %v505 = vunpack.c.l.b16 %v263
      %v506 = vunpack.c.h.b16 %v263
      %v507 = vunpack.c.l.b16 %v264
      %v508 = vunpack.c.h.b16 %v264
      %v509 = vunpack.c.l.b16 %v265
      %v510 = vunpack.c.h.b16 %v265
      %v511 = vunpack.c.l.b16 %v266
      %v512 = vunpack.c.h.b16 %v266
      %v513 = vunpack.c.l.b16 %v267
      %v514 = vunpack.c.h.b16 %v267
      %v515 = vunpack.c.l.b16 %v268
      %v516 = vunpack.c.h.b16 %v268
      %v517 = vunpack.c.l.b16 %v269
      %v518 = vunpack.c.h.b16 %v269
      %v519 = vunpack.c.l.b16 %v270
      %v520 = vunpack.c.h.b16 %v270
      %v521 = vunpack.c.l.b16 %v271
      %v522 = vunpack.c.h.b16 %v271
      %v523 = vunpack.c.l.b16 %v272
      %v524 = vunpack.c.h.b16 %v272
      %v525 = vunpack.c.l.b16 %v273
      %v526 = vunpack.c.h.b16 %v273
      %v527 = vunpack.c.l.b16 %v274
      %v528 = vunpack.c.h.b16 %v274
      %v529 = vunpack.c.l.b16 %v275
      %v530 = vunpack.c.h.b16 %v275
      %v531 = vunpack.c.l.b16 %v276
      %v532 = vunpack.c.h.b16 %v276
      %v533 = vunpack.c.l.b16 %v277
      %v534 = vunpack.c.h.b16 %v277
      %v535 = vunpack.c.l.b16 %v278
      %v536 = vunpack.c.h.b16 %v278
      %v537 = vunpack.c.l.b16 %v279
      %v538 = vunpack.c.h.b16 %v279
      %v539 = vunpack.c.l.b16 %v280
      %v540 = vunpack.c.h.b16 %v280
      %v541 = vunpack.c.l.b16 %v281
      %v542 = vunpack.c.h.b16 %v281
      %v543 = vunpack.c.l.b16 %v282
      %v544 = vunpack.c.h.b16 %v282
      %v545 = vunpack.c.l.b16 %v283
      %v546 = vunpack.c.h.b16 %v283
      %v547 = vunpack.c.l.b16 %v284
      %v548 = vunpack.c.h.b16 %v284
      %v549 = vunpack.c.l.b16 %v285
      %v550 = vunpack.c.h.b16 %v285
      %v551 = vunpack.c.l.b16 %v286
      %v552 = vunpack.c.h.b16 %v286
      %v553 = vunpack.c.l.b16 %v287
      %v554 = vunpack.c.h.b16 %v287
      %v555 = vunpack.c.l.b16 %v288
      %v556 = vunpack.c.h.b16 %v288
      %v557 = vunpack.c.l.b16 %v289
      %v558 = vunpack.c.h.b16 %v289
      %v559 = vunpack.c.l.b16 %v290
      %v560 = vunpack.c.h.b16 %v290
      %v561 = vunpack.c.l.b16 %v291
      %v562 = vunpack.c.h.b16 %v291
      %v563 = vunpack.c.l.b16 %v292
      %v564 = vunpack.c.h.b16 %v292
      %v565 = vunpack.c.l.b16 %v293
      %v566 = vunpack.c.h.b16 %v293
      %v567 = vunpack.c.l.b16 %v294
      %v568 = vunpack.c.h.b16 %v294
      %v569 = vunpack.c.l.b16 %v295
      %v570 = vunpack.c.h.b16 %v295
      %v571 = vunpack.c.l.b16 %v296
      %v572 = vunpack.c.h.b16 %v296
      %v573 = vunpack.c.l.b16 %v297
      %v574 = vunpack.c.h.b16 %v297
      %v575 = vunpack.c.l.b16 %v298
      %v576 = vunpack.c.h.b16 %v298
      %v577 = vunpack.c.l.b16 %v299
      %v578 = vunpack.c.h.b16 %v299
      %v579 = vunpack.c.l.b16 %v300
      %v580 = vunpack.c.h.b16 %v300
      %v581 = vunpack.c.l.b16 %v301
      %v582 = vunpack.c.h.b16 %v301
      %v583 = vunpack.c.l.b16 %v302
      %v584 = vunpack.c.h.b16 %v302
      %v585 = vunpack.c.l.b16 %v303
      %v586 = vunpack.c.h.b16 %v303
      %v587 = vunpack.c.l.b16 %v304
      %v588 = vunpack.c.h.b16 %v304
      %v589 = vunpack.c.l.b16 %v305
      %v590 = vunpack.c.h.b16 %v305
      %v591 = vunpack.c.l.b16 %v306
      %v592 = vunpack.c.h.b16 %v306
      %v593 = vunpack.c.l.b16 %v307
      %v594 = vunpack.c.h.b16 %v307
      %v595 = vunpack.c.l.b16 %v308
      %v596 = vunpack.c.h.b16 %v308
      %v597 = vunpack.c.l.b16 %v309
      %v598 = vunpack.c.h.b16 %v309
      %v599 = vunpack.c.l.b16 %v310
      %v600 = vunpack.c.h.b16 %v310
      %v601 = vunpack.c.l.b16 %v311
      %v602 = vunpack.c.h.b16 %v311
      %v603 = vunpack.c.l.b16 %v312
      %v604 = vunpack.c.h.b16 %v312
      %v605 = vunpack.c.l.b16 %v313
      %v606 = vunpack.c.h.b16 %v313
      %v607 = vpack.c.b16 %v481, %v479
      %v608 = vpack.c.b16 %v482, %v480
      %v609 = vpack.c.b16 %v485, %v483
      %v610 = vpack.c.b16 %v486, %v484
      %v611 = vpack.c.b16 %v489, %v487
      %v612 = vpack.c.b16 %v490, %v488
      %v613 = vpack.c.b16 %v493, %v491
      %v614 = vpack.c.b16 %v494, %v492
      %v615 = vpack.c.b16 %v497, %v495
      %v616 = vpack.c.b16 %v498, %v496
      %v617 = vpack.c.b16 %v501, %v499
      %v618 = vpack.c.b16 %v502, %v500
      %v619 = vpack.c.b16 %v505, %v503
      %v620 = vpack.c.b16 %v506, %v504
      %v621 = vpack.c.b16 %v509, %v507
      %v622 = vpack.c.b16 %v510, %v508
      %v623 = vpack.c.b16 %v513, %v511
      %v624 = vpack.c.b16 %v514, %v512
      %v625 = vpack.c.b16 %v517, %v515
      %v626 = vpack.c.b16 %v518, %v516
      %v627 = vpack.c.b16 %v521, %v519
      %v628 = vpack.c.b16 %v522, %v520
      %v629 = vpack.c.b16 %v525, %v523
      %v630 = vpack.c.b16 %v526, %v524
      %v631 = vpack.c.b16 %v529, %v527
      %v632 = vpack.c.b16 %v530, %v528
      %v633 = vpack.c.b16 %v533, %v531
      %v634 = vpack.c.b16 %v534, %v532
      %v635 = vpack.c.b16 %v537, %v535
      %v636 = vpack.c.b16 %v538, %v536
      %v637 = vpack.c.b16 %v541, %v539
      %v638 = vpack.c.b16 %v542, %v540
      %v639 = vpack.c.b16 %v545, %v543
      %v640 = vpack.c.b16 %v546, %v544
      %v641 = vpack.c.b16 %v549, %v547
      %v642 = vpack.c.b16 %v550, %v548
      %v643 = vpack.c.b16 %v553, %v551
      %v644 = vpack.c.b16 %v554, %v552
      %v645 = vpack.c.b16 %v557, %v555
      %v646 = vpack.c.b16 %v558, %v556
      %v647 = vpack.c.b16 %v561, %v559
      %v648 = vpack.c.b16 %v562, %v560
      %v649 = vpack.c.b16 %v565, %v563
      %v650 = vpack.c.b16 %v566, %v564
      %v651 = vpack.c.b16 %v569, %v567
      %v652 = vpack.c.b16 %v570, %v568
      %v653 = vpack.c.b16 %v573, %v571
      %v654 = vpack.c.b16 %v574, %v572
      %v655 = vpack.c.b16 %v577, %v575
      %v656 = vpack.c.b16 %v578, %v576
      %v657 = vpack.c.b16 %v581, %v579
      %v658 = vpack.c.b16 %v582, %v580
      %v659 = vpack.c.b16 %v585, %v583
      %v660 = vpack.c.b16 %v586, %v584
      %v661 = vpack.c.b16 %v589, %v587
      %v662 = vpack.c.b16 %v590, %v588
      %v663 = vpack.c.b16 %v593, %v591
      %v664 = vpack.c.b16 %v594, %v592
      %v665 = vpack.c.b16 %v597, %v595
      %v666 = vpack.c.b16 %v598, %v596
      %v667 = vpack.c.b16 %v601, %v599
      %v668 = vpack.c.b16 %v602, %v600
      %v669 = vpack.c.b16 %v605, %v603
      %v670 = vpack.c.b16 %v606, %v604
      %735 = vmatpush.bf16.msra.mxu0 %v621
      %736 = vmatpush.bf16.msra.mxu0 %v619
      %737 = vmatpush.bf16.msra.mxu0 %v617
      %738 = vmatpush.bf16.msra.mxu0 %v615
      %739 = vmatpush.bf16.msra.mxu0 %v613
      %740 = vmatpush.bf16.msra.mxu0 %v611
      %741 = vmatpush.bf16.msra.mxu0 %v609
      %742 = vmatpush.bf16.msra.mxu0 %v607
      %743 = vmatmul.bf16.gmra.mxu0 %v358
      %v744 = vpop.f32.mrf.mxu0
      %v745 = vadd.f32 0.0, %v744
      %v746 = vpop.f32.mrf.mxu0
      %v747 = vadd.f32 0.0, %v746
      %748 = vmatmul.bf16.gmra.mxu0 %v397
      %v749 = vpop.f32.mrf.mxu0
      %v750 = vadd.f32 0.0, %v749
      %v751 = vpop.f32.mrf.mxu0
      %752 = vdwg.mxu0
      %753 = vmatpush.bf16.msra.mxu0 %v637
      %754 = vmatpush.bf16.msra.mxu0 %v635
      %755 = vmatpush.bf16.msra.mxu0 %v633
      %756 = vmatpush.bf16.msra.mxu0 %v631
      %757 = vmatpush.bf16.msra.mxu0 %v629
      %758 = vmatpush.bf16.msra.mxu0 %v627
      %759 = vmatpush.bf16.msra.mxu0 %v625
      %760 = vmatpush.bf16.msra.mxu0 %v623
      %761 = vmatmul.bf16.gmra.mxu0 %v370
      %v762 = vpop.f32.mrf.mxu0
      %v763 = vadd.f32 %v745, %v762
      %v764 = vpop.f32.mrf.mxu0
      %v765 = vadd.f32 %v747, %v764
      %766 = vmatmul.bf16.gmra.mxu0 %v400
      %v767 = vpop.f32.mrf.mxu0
      %v768 = vadd.f32 %v750, %v767
      %v769 = vpop.f32.mrf.mxu0
      %770 = vdwg.mxu0
      %771 = vmatpush.bf16.msra.mxu0 %v653
      %772 = vmatpush.bf16.msra.mxu0 %v651
      %773 = vmatpush.bf16.msra.mxu0 %v649
      %774 = vmatpush.bf16.msra.mxu0 %v647
      %775 = vmatpush.bf16.msra.mxu0 %v645
      %776 = vmatpush.bf16.msra.mxu0 %v643
      %777 = vmatpush.bf16.msra.mxu0 %v641
      %778 = vmatpush.bf16.msra.mxu0 %v639
      %779 = vmatmul.bf16.gmra.mxu0 %v382
      %v780 = vpop.f32.mrf.mxu0
      %v781 = vadd.f32 %v763, %v780
      %v782 = vpop.f32.mrf.mxu0
      %v783 = vadd.f32 %v765, %v782
      %784 = vmatmul.bf16.gmra.mxu0 %v403
      %v785 = vpop.f32.mrf.mxu0
      %v786 = vadd.f32 %v768, %v785
      %v787 = vpop.f32.mrf.mxu0
      %788 = vdwg.mxu0
      %789 = vmatpush.bf16.msra.mxu0 %v669
      %790 = vmatpush.bf16.msra.mxu0 %v667
      %791 = vmatpush.bf16.msra.mxu0 %v665
      %792 = vmatpush.bf16.msra.mxu0 %v663
      %793 = vmatpush.bf16.msra.mxu0 %v661
      %794 = vmatpush.bf16.msra.mxu0 %v659
      %795 = vmatpush.bf16.msra.mxu0 %v657
      %796 = vmatpush.bf16.msra.mxu0 %v655
      %797 = vmatmul.bf16.gmra.mxu0 %v394
      %v798 = vpop.f32.mrf.mxu0
      %v799 = vadd.f32 %v781, %v798
      %v800 = vpop.f32.mrf.mxu0
      %v801 = vadd.f32 %v783, %v800
      %802 = vmatmul.bf16.gmra.mxu0 %v406
      %v803 = vpop.f32.mrf.mxu0
      %v804 = vadd.f32 %v786, %v803
      %v805 = vpop.f32.mrf.mxu0
      %806 = vdwg.mxu0
      %807 = vmatpush.bf16.msra.mxu0 %v622
      %808 = vmatpush.bf16.msra.mxu0 %v620
      %809 = vmatpush.bf16.msra.mxu0 %v618
      %810 = vmatpush.bf16.msra.mxu0 %v616
      %811 = vmatpush.bf16.msra.mxu0 %v614
      %812 = vmatpush.bf16.msra.mxu0 %v612
      %813 = vmatpush.bf16.msra.mxu0 %v610
      %814 = vmatpush.bf16.msra.mxu0 %v608
      %815 = vmatmul.bf16.gmra.mxu0 %v358
      %v816 = vpop.f32.mrf.mxu0
      %v817 = vadd.f32 0.0, %v816
      %v818 = vpop.f32.mrf.mxu0
      %v819 = vadd.f32 0.0, %v818
      %820 = vmatmul.bf16.gmra.mxu0 %v397
      %v821 = vpop.f32.mrf.mxu0
      %v822 = vadd.f32 0.0, %v821
      %v823 = vpop.f32.mrf.mxu0
      %824 = vdwg.mxu0
      %825 = vmatpush.bf16.msra.mxu0 %v638
      %826 = vmatpush.bf16.msra.mxu0 %v636
      %827 = vmatpush.bf16.msra.mxu0 %v634
      %828 = vmatpush.bf16.msra.mxu0 %v632
      %829 = vmatpush.bf16.msra.mxu0 %v630
      %830 = vmatpush.bf16.msra.mxu0 %v628
      %831 = vmatpush.bf16.msra.mxu0 %v626
      %832 = vmatpush.bf16.msra.mxu0 %v624
      %833 = vmatmul.bf16.gmra.mxu0 %v370
      %v834 = vpop.f32.mrf.mxu0
      %v835 = vadd.f32 %v817, %v834
      %v836 = vpop.f32.mrf.mxu0
      %v837 = vadd.f32 %v819, %v836
      %838 = vmatmul.bf16.gmra.mxu0 %v400
      %v839 = vpop.f32.mrf.mxu0
      %v840 = vadd.f32 %v822, %v839
      %v841 = vpop.f32.mrf.mxu0
      %842 = vdwg.mxu0
      %843 = vmatpush.bf16.msra.mxu0 %v654
      %844 = vmatpush.bf16.msra.mxu0 %v652
      %845 = vmatpush.bf16.msra.mxu0 %v650
      %846 = vmatpush.bf16.msra.mxu0 %v648
      %847 = vmatpush.bf16.msra.mxu0 %v646
      %848 = vmatpush.bf16.msra.mxu0 %v644
      %849 = vmatpush.bf16.msra.mxu0 %v642
      %850 = vmatpush.bf16.msra.mxu0 %v640
      %851 = vmatmul.bf16.gmra.mxu0 %v382
      %v852 = vpop.f32.mrf.mxu0
      %v853 = vadd.f32 %v835, %v852
      %v854 = vpop.f32.mrf.mxu0
      %v855 = vadd.f32 %v837, %v854
      %856 = vmatmul.bf16.gmra.mxu0 %v403
      %v857 = vpop.f32.mrf.mxu0
      %v858 = vadd.f32 %v840, %v857
      %v859 = vpop.f32.mrf.mxu0
      %860 = vdwg.mxu0
      %861 = vmatpush.bf16.msra.mxu0 %v670
      %862 = vmatpush.bf16.msra.mxu0 %v668
      %863 = vmatpush.bf16.msra.mxu0 %v666
      %864 = vmatpush.bf16.msra.mxu0 %v664
      %865 = vmatpush.bf16.msra.mxu0 %v662
      %866 = vmatpush.bf16.msra.mxu0 %v660
      %867 = vmatpush.bf16.msra.mxu0 %v658
      %868 = vmatpush.bf16.msra.mxu0 %v656
      %869 = vmatmul.bf16.gmra.mxu0 %v394
      %v870 = vpop.f32.mrf.mxu0
      %v871 = vadd.f32 %v853, %v870
      %v872 = vpop.f32.mrf.mxu0
      %v873 = vadd.f32 %v855, %v872
      %874 = vmatmul.bf16.gmra.mxu0 %v406
      %v875 = vpop.f32.mrf.mxu0
      %v876 = vadd.f32 %v858, %v875
      %v877 = vpop.f32.mrf.mxu0
      %878 = vdwg.mxu0
      %v885 = vunpack.c.l.b16 %v171
      %v886 = vunpack.c.h.b16 %v171
      %v887 = vunpack.c.l.b16 %v172
      %v888 = vunpack.c.h.b16 %v172
      %v889 = vunpack.c.l.b16 %v173
      %v890 = vunpack.c.h.b16 %v173
      %v891 = vunpack.c.l.b16 %v174
      %v892 = vunpack.c.h.b16 %v174
      %v893 = vunpack.c.l.b16 %v175
      %v894 = vunpack.c.h.b16 %v175
      %v895 = vunpack.c.l.b16 %v176
      %v896 = vunpack.c.h.b16 %v176
      %v897 = vpack.c.b16 %v889, %v885
      %v898 = vpack.c.b16 %v890, %v886
      %v899 = vpack.c.b16 %v891, %v887
      %v900 = vpack.c.b16 %v892, %v888
      %v901 = vpack.c.b16 %v893, %v893
      %v902 = vpack.c.b16 %v894, %v894
      %v903 = vpack.c.b16 %v895, %v895
      %v904 = vpack.c.b16 %v896, %v896
      %v977 = vunpack.c.l.b16 %v177
      %v978 = vunpack.c.h.b16 %v177
      %v979 = vunpack.c.l.b16 %v178
      %v980 = vunpack.c.h.b16 %v178
      %v981 = vunpack.c.l.b16 %v179
      %v982 = vunpack.c.h.b16 %v179
      %v983 = vunpack.c.l.b16 %v180
      %v984 = vunpack.c.h.b16 %v180
      %v985 = vunpack.c.l.b16 %v181
      %v986 = vunpack.c.h.b16 %v181
      %v987 = vunpack.c.l.b16 %v182
      %v988 = vunpack.c.h.b16 %v182
      %v989 = vunpack.c.l.b16 %v183
      %v990 = vunpack.c.h.b16 %v183
      %v991 = vunpack.c.l.b16 %v184
      %v992 = vunpack.c.h.b16 %v184
      %v993 = vunpack.c.l.b16 %v185
      %v994 = vunpack.c.h.b16 %v185
      %v995 = vunpack.c.l.b16 %v186
      %v996 = vunpack.c.h.b16 %v186
      %v997 = vunpack.c.l.b16 %v187
      %v998 = vunpack.c.h.b16 %v187
      %v999 = vunpack.c.l.b16 %v188
      %v1000 = vunpack.c.h.b16 %v188
      %v1001 = vunpack.c.l.b16 %v189
      %v1002 = vunpack.c.h.b16 %v189
      %v1003 = vunpack.c.l.b16 %v190
      %v1004 = vunpack.c.h.b16 %v190
      %v1005 = vunpack.c.l.b16 %v191
      %v1006 = vunpack.c.h.b16 %v191
      %v1007 = vunpack.c.l.b16 %v192
      %v1008 = vunpack.c.h.b16 %v192
      %v1009 = vunpack.c.l.b16 %v193
      %v1010 = vunpack.c.h.b16 %v193
      %v1011 = vunpack.c.l.b16 %v194
      %v1012 = vunpack.c.h.b16 %v194
      %v1013 = vunpack.c.l.b16 %v195
      %v1014 = vunpack.c.h.b16 %v195
      %v1015 = vunpack.c.l.b16 %v196
      %v1016 = vunpack.c.h.b16 %v196
      %v1017 = vunpack.c.l.b16 %v197
      %v1018 = vunpack.c.h.b16 %v197
      %v1019 = vunpack.c.l.b16 %v198
      %v1020 = vunpack.c.h.b16 %v198
      %v1021 = vunpack.c.l.b16 %v199
      %v1022 = vunpack.c.h.b16 %v199
      %v1023 = vunpack.c.l.b16 %v200
      %v1024 = vunpack.c.h.b16 %v200
      %v1025 = vunpack.c.l.b16 %v201
      %v1026 = vunpack.c.h.b16 %v201
      %v1027 = vunpack.c.l.b16 %v202
      %v1028 = vunpack.c.h.b16 %v202
      %v1029 = vunpack.c.l.b16 %v203
      %v1030 = vunpack.c.h.b16 %v203
      %v1031 = vunpack.c.l.b16 %v204
      %v1032 = vunpack.c.h.b16 %v204
      %v1033 = vunpack.c.l.b16 %v205
      %v1034 = vunpack.c.h.b16 %v205
      %v1035 = vunpack.c.l.b16 %v206
      %v1036 = vunpack.c.h.b16 %v206
      %v1037 = vunpack.c.l.b16 %v207
      %v1038 = vunpack.c.h.b16 %v207
      %v1039 = vunpack.c.l.b16 %v208
      %v1040 = vunpack.c.h.b16 %v208
      %v1041 = vunpack.c.l.b16 %v209
      %v1042 = vunpack.c.h.b16 %v209
      %v1043 = vunpack.c.l.b16 %v210
      %v1044 = vunpack.c.h.b16 %v210
      %v1045 = vunpack.c.l.b16 %v211
      %v1046 = vunpack.c.h.b16 %v211
      %v1047 = vunpack.c.l.b16 %v212
      %v1048 = vunpack.c.h.b16 %v212
      %v1049 = vunpack.c.l.b16 %v213
      %v1050 = vunpack.c.h.b16 %v213
      %v1051 = vunpack.c.l.b16 %v214
      %v1052 = vunpack.c.h.b16 %v214
      %v1053 = vunpack.c.l.b16 %v215
      %v1054 = vunpack.c.h.b16 %v215
      %v1055 = vunpack.c.l.b16 %v216
      %v1056 = vunpack.c.h.b16 %v216
      %v1057 = vunpack.c.l.b16 %v217
      %v1058 = vunpack.c.h.b16 %v217
      %v1059 = vunpack.c.l.b16 %v218
      %v1060 = vunpack.c.h.b16 %v218
      %v1061 = vunpack.c.l.b16 %v219
      %v1062 = vunpack.c.h.b16 %v219
      %v1063 = vunpack.c.l.b16 %v220
      %v1064 = vunpack.c.h.b16 %v220
      %v1065 = vunpack.c.l.b16 %v221
      %v1066 = vunpack.c.h.b16 %v221
      %v1067 = vunpack.c.l.b16 %v222
      %v1068 = vunpack.c.h.b16 %v222
      %v1069 = vunpack.c.l.b16 %v223
      %v1070 = vunpack.c.h.b16 %v223
      %v1071 = vunpack.c.l.b16 %v224
      %v1072 = vunpack.c.h.b16 %v224
      %v1073 = vunpack.c.l.b16 %v225
      %v1074 = vunpack.c.h.b16 %v225
      %v1075 = vunpack.c.l.b16 %v226
      %v1076 = vunpack.c.h.b16 %v226
      %v1077 = vunpack.c.l.b16 %v227
      %v1078 = vunpack.c.h.b16 %v227
      %v1079 = vunpack.c.l.b16 %v228
      %v1080 = vunpack.c.h.b16 %v228
      %v1081 = vunpack.c.l.b16 %v229
      %v1082 = vunpack.c.h.b16 %v229
      %v1083 = vunpack.c.l.b16 %v230
      %v1084 = vunpack.c.h.b16 %v230
      %v1085 = vunpack.c.l.b16 %v231
      %v1086 = vunpack.c.h.b16 %v231
      %v1087 = vunpack.c.l.b16 %v232
      %v1088 = vunpack.c.h.b16 %v232
      %v1089 = vunpack.c.l.b16 %v233
      %v1090 = vunpack.c.h.b16 %v233
      %v1091 = vunpack.c.l.b16 %v234
      %v1092 = vunpack.c.h.b16 %v234
      %v1093 = vunpack.c.l.b16 %v235
      %v1094 = vunpack.c.h.b16 %v235
      %v1095 = vunpack.c.l.b16 %v236
      %v1096 = vunpack.c.h.b16 %v236
      %v1097 = vunpack.c.l.b16 %v237
      %v1098 = vunpack.c.h.b16 %v237
      %v1099 = vunpack.c.l.b16 %v238
      %v1100 = vunpack.c.h.b16 %v238
      %v1101 = vunpack.c.l.b16 %v239
      %v1102 = vunpack.c.h.b16 %v239
      %v1103 = vunpack.c.l.b16 %v240
      %v1104 = vunpack.c.h.b16 %v240
      %v1105 = vpack.c.b16 %v979, %v977
      %v1106 = vpack.c.b16 %v980, %v978
      %v1107 = vpack.c.b16 %v983, %v981
      %v1108 = vpack.c.b16 %v984, %v982
      %v1109 = vpack.c.b16 %v987, %v985
      %v1110 = vpack.c.b16 %v988, %v986
      %v1111 = vpack.c.b16 %v991, %v989
      %v1112 = vpack.c.b16 %v992, %v990
      %v1113 = vpack.c.b16 %v995, %v993
      %v1114 = vpack.c.b16 %v996, %v994
      %v1115 = vpack.c.b16 %v999, %v997
      %v1116 = vpack.c.b16 %v1000, %v998
      %v1117 = vpack.c.b16 %v1003, %v1001
      %v1118 = vpack.c.b16 %v1004, %v1002
      %v1119 = vpack.c.b16 %v1007, %v1005
      %v1120 = vpack.c.b16 %v1008, %v1006
      %v1121 = vpack.c.b16 %v1011, %v1009
      %v1122 = vpack.c.b16 %v1012, %v1010
      %v1123 = vpack.c.b16 %v1015, %v1013
      %v1124 = vpack.c.b16 %v1016, %v1014
      %v1125 = vpack.c.b16 %v1019, %v1017
      %v1126 = vpack.c.b16 %v1020, %v1018
      %v1127 = vpack.c.b16 %v1023, %v1021
      %v1128 = vpack.c.b16 %v1024, %v1022
      %v1129 = vpack.c.b16 %v1027, %v1025
      %v1130 = vpack.c.b16 %v1028, %v1026
      %v1131 = vpack.c.b16 %v1031, %v1029
      %v1132 = vpack.c.b16 %v1032, %v1030
      %v1133 = vpack.c.b16 %v1035, %v1033
      %v1134 = vpack.c.b16 %v1036, %v1034
      %v1135 = vpack.c.b16 %v1039, %v1037
      %v1136 = vpack.c.b16 %v1040, %v1038
      %v1137 = vpack.c.b16 %v1043, %v1041
      %v1138 = vpack.c.b16 %v1044, %v1042
      %v1139 = vpack.c.b16 %v1047, %v1045
      %v1140 = vpack.c.b16 %v1048, %v1046
      %v1141 = vpack.c.b16 %v1051, %v1049
      %v1142 = vpack.c.b16 %v1052, %v1050
      %v1143 = vpack.c.b16 %v1055, %v1053
      %v1144 = vpack.c.b16 %v1056, %v1054
      %v1145 = vpack.c.b16 %v1059, %v1057
      %v1146 = vpack.c.b16 %v1060, %v1058
      %v1147 = vpack.c.b16 %v1063, %v1061
      %v1148 = vpack.c.b16 %v1064, %v1062
      %v1149 = vpack.c.b16 %v1067, %v1065
      %v1150 = vpack.c.b16 %v1068, %v1066
      %v1151 = vpack.c.b16 %v1071, %v1069
      %v1152 = vpack.c.b16 %v1072, %v1070
      %v1153 = vpack.c.b16 %v1075, %v1073
      %v1154 = vpack.c.b16 %v1076, %v1074
      %v1155 = vpack.c.b16 %v1079, %v1077
      %v1156 = vpack.c.b16 %v1080, %v1078
      %v1157 = vpack.c.b16 %v1083, %v1081
      %v1158 = vpack.c.b16 %v1084, %v1082
      %v1159 = vpack.c.b16 %v1087, %v1085
      %v1160 = vpack.c.b16 %v1088, %v1086
      %v1161 = vpack.c.b16 %v1091, %v1089
      %v1162 = vpack.c.b16 %v1092, %v1090
      %v1163 = vpack.c.b16 %v1095, %v1093
      %v1164 = vpack.c.b16 %v1096, %v1094
      %v1165 = vpack.c.b16 %v1099, %v1097
      %v1166 = vpack.c.b16 %v1100, %v1098
      %v1167 = vpack.c.b16 %v1103, %v1101
      %v1168 = vpack.c.b16 %v1104, %v1102
      %1233 = vmatpush.bf16.msra.mxu0 %v1119
      %1234 = vmatpush.bf16.msra.mxu0 %v1117
      %1235 = vmatpush.bf16.msra.mxu0 %v1115
      %1236 = vmatpush.bf16.msra.mxu0 %v1113
      %1237 = vmatpush.bf16.msra.mxu0 %v1111
      %1238 = vmatpush.bf16.msra.mxu0 %v1109
      %1239 = vmatpush.bf16.msra.mxu0 %v1107
      %1240 = vmatpush.bf16.msra.mxu0 %v1105
      %1241 = vmatmul.bf16.gmra.mxu0 %v897
      %v1242 = vpop.f32.mrf.mxu0
      %v1243 = vadd.f32 %v799, %v1242
      %v1244 = vpop.f32.mrf.mxu0
      %v1245 = vadd.f32 %v801, %v1244
      %1246 = vmatmul.bf16.gmra.mxu0 %v901
      %v1247 = vpop.f32.mrf.mxu0
      %v1248 = vadd.f32 %v804, %v1247
      %v1249 = vpop.f32.mrf.mxu0
      %1250 = vdwg.mxu0
      %1251 = vmatpush.bf16.msra.mxu0 %v1135
      %1252 = vmatpush.bf16.msra.mxu0 %v1133
      %1253 = vmatpush.bf16.msra.mxu0 %v1131
      %1254 = vmatpush.bf16.msra.mxu0 %v1129
      %1255 = vmatpush.bf16.msra.mxu0 %v1127
      %1256 = vmatpush.bf16.msra.mxu0 %v1125
      %1257 = vmatpush.bf16.msra.mxu0 %v1123
      %1258 = vmatpush.bf16.msra.mxu0 %v1121
      %1259 = vmatmul.bf16.gmra.mxu0 %v898
      %v1260 = vpop.f32.mrf.mxu0
      %v1261 = vadd.f32 %v1243, %v1260
      %v1262 = vpop.f32.mrf.mxu0
      %v1263 = vadd.f32 %v1245, %v1262
      %1264 = vmatmul.bf16.gmra.mxu0 %v902
      %v1265 = vpop.f32.mrf.mxu0
      %v1266 = vadd.f32 %v1248, %v1265
      %v1267 = vpop.f32.mrf.mxu0
      %1268 = vdwg.mxu0
      %1269 = vmatpush.bf16.msra.mxu0 %v1151
      %1270 = vmatpush.bf16.msra.mxu0 %v1149
      %1271 = vmatpush.bf16.msra.mxu0 %v1147
      %1272 = vmatpush.bf16.msra.mxu0 %v1145
      %1273 = vmatpush.bf16.msra.mxu0 %v1143
      %1274 = vmatpush.bf16.msra.mxu0 %v1141
      %1275 = vmatpush.bf16.msra.mxu0 %v1139
      %1276 = vmatpush.bf16.msra.mxu0 %v1137
      %1277 = vmatmul.bf16.gmra.mxu0 %v899
      %v1278 = vpop.f32.mrf.mxu0
      %v1279 = vadd.f32 %v1261, %v1278
      %v1280 = vpop.f32.mrf.mxu0
      %v1281 = vadd.f32 %v1263, %v1280
      %1282 = vmatmul.bf16.gmra.mxu0 %v903
      %v1283 = vpop.f32.mrf.mxu0
      %v1284 = vadd.f32 %v1266, %v1283
      %v1285 = vpop.f32.mrf.mxu0
      %1286 = vdwg.mxu0
      %1287 = vmatpush.bf16.msra.mxu0 %v1167
      %1288 = vmatpush.bf16.msra.mxu0 %v1165
      %1289 = vmatpush.bf16.msra.mxu0 %v1163
      %1290 = vmatpush.bf16.msra.mxu0 %v1161
      %1291 = vmatpush.bf16.msra.mxu0 %v1159
      %1292 = vmatpush.bf16.msra.mxu0 %v1157
      %1293 = vmatpush.bf16.msra.mxu0 %v1155
      %1294 = vmatpush.bf16.msra.mxu0 %v1153
      %1295 = vmatmul.bf16.gmra.mxu0 %v900
      %v1296 = vpop.f32.mrf.mxu0
      %v1297 = vadd.f32 %v1279, %v1296
      %v1298 = vpop.f32.mrf.mxu0
      %v1299 = vadd.f32 %v1281, %v1298
      %1300 = vmatmul.bf16.gmra.mxu0 %v904
      %v1301 = vpop.f32.mrf.mxu0
      %v1302 = vadd.f32 %v1284, %v1301
      %v1303 = vpop.f32.mrf.mxu0
      %1304 = vdwg.mxu0
      %1305 = vmatpush.bf16.msra.mxu0 %v1120
      %1306 = vmatpush.bf16.msra.mxu0 %v1118
      %1307 = vmatpush.bf16.msra.mxu0 %v1116
      %1308 = vmatpush.bf16.msra.mxu0 %v1114
      %1309 = vmatpush.bf16.msra.mxu0 %v1112
      %1310 = vmatpush.bf16.msra.mxu0 %v1110
      %1311 = vmatpush.bf16.msra.mxu0 %v1108
      %1312 = vmatpush.bf16.msra.mxu0 %v1106
      %1313 = vmatmul.bf16.gmra.mxu0 %v897
      %v1314 = vpop.f32.mrf.mxu0
      %v1315 = vadd.f32 %v871, %v1314
      %v1316 = vpop.f32.mrf.mxu0
      %v1317 = vadd.f32 %v873, %v1316
      %1318 = vmatmul.bf16.gmra.mxu0 %v901
      %v1319 = vpop.f32.mrf.mxu0
      %v1320 = vadd.f32 %v876, %v1319
      %v1321 = vpop.f32.mrf.mxu0
      %1322 = vdwg.mxu0
      %1323 = vmatpush.bf16.msra.mxu0 %v1136
      %1324 = vmatpush.bf16.msra.mxu0 %v1134
      %1325 = vmatpush.bf16.msra.mxu0 %v1132
      %1326 = vmatpush.bf16.msra.mxu0 %v1130
      %1327 = vmatpush.bf16.msra.mxu0 %v1128
      %1328 = vmatpush.bf16.msra.mxu0 %v1126
      %1329 = vmatpush.bf16.msra.mxu0 %v1124
      %1330 = vmatpush.bf16.msra.mxu0 %v1122
      %1331 = vmatmul.bf16.gmra.mxu0 %v898
      %v1332 = vpop.f32.mrf.mxu0
      %v1333 = vadd.f32 %v1315, %v1332
      %v1334 = vpop.f32.mrf.mxu0
      %v1335 = vadd.f32 %v1317, %v1334
      %1336 = vmatmul.bf16.gmra.mxu0 %v902
      %v1337 = vpop.f32.mrf.mxu0
      %v1338 = vadd.f32 %v1320, %v1337
      %v1339 = vpop.f32.mrf.mxu0
      %1340 = vdwg.mxu0
      %1341 = vmatpush.bf16.msra.mxu0 %v1152
      %1342 = vmatpush.bf16.msra.mxu0 %v1150
      %1343 = vmatpush.bf16.msra.mxu0 %v1148
      %1344 = vmatpush.bf16.msra.mxu0 %v1146
      %1345 = vmatpush.bf16.msra.mxu0 %v1144
      %1346 = vmatpush.bf16.msra.mxu0 %v1142
      %1347 = vmatpush.bf16.msra.mxu0 %v1140
      %1348 = vmatpush.bf16.msra.mxu0 %v1138
      %1349 = vmatmul.bf16.gmra.mxu0 %v899
      %v1350 = vpop.f32.mrf.mxu0
      %v1351 = vadd.f32 %v1333, %v1350
      %v1352 = vpop.f32.mrf.mxu0
      %v1353 = vadd.f32 %v1335, %v1352
      %1354 = vmatmul.bf16.gmra.mxu0 %v903
      %v1355 = vpop.f32.mrf.mxu0
      %v1356 = vadd.f32 %v1338, %v1355
      %v1357 = vpop.f32.mrf.mxu0
      %1358 = vdwg.mxu0
      %1359 = vmatpush.bf16.msra.mxu0 %v1168
      %1360 = vmatpush.bf16.msra.mxu0 %v1166
      %1361 = vmatpush.bf16.msra.mxu0 %v1164
      %1362 = vmatpush.bf16.msra.mxu0 %v1162
      %1363 = vmatpush.bf16.msra.mxu0 %v1160
      %1364 = vmatpush.bf16.msra.mxu0 %v1158
      %1365 = vmatpush.bf16.msra.mxu0 %v1156
      %1366 = vmatpush.bf16.msra.mxu0 %v1154
      %1367 = vmatmul.bf16.gmra.mxu0 %v900
      %v1368 = vpop.f32.mrf.mxu0
      %v1369 = vadd.f32 %v1351, %v1368
      %v1370 = vpop.f32.mrf.mxu0
      %v1371 = vadd.f32 %v1353, %v1370
      %1372 = vmatmul.bf16.gmra.mxu0 %v904
      %v1373 = vpop.f32.mrf.mxu0
      %v1374 = vadd.f32 %v1356, %v1373
      %v1375 = vpop.f32.mrf.mxu0
      %1376 = vdwg.mxu0
      %v1377 = vld [vmem:[%s165] sm:$0xcc]
      %v1378 = vld [vmem:[%s165 + $0x8] sm:$0xcc]
      %v1379 = vld [vmem:[%s165 + $0x30] sm:$0x77]
      %v1380 = vld [vmem:[%s165 + $0x38] sm:$0x77]
      %s1381 = scalar_lea.vmem %s1, 1024
      %v1382 = vld [vmem:[%s1381] sm:$0xff]
      %v1383 = vld [vmem:[%s1381 + $0x8] sm:$0xff]
      %v1384 = vld [vmem:[%s1381 + $0x10] sm:$0xff]
      %v1385 = vld [vmem:[%s1381 + $0x18] sm:$0xff]
      %v1386 = vld [vmem:[%s1381 + $0x20] sm:$0xff]
      %v1387 = vld [vmem:[%s1381 + $0x28] sm:$0xff]
      %v1388 = vld [vmem:[%s1381 + $0x30] sm:$0xff]
      %v1389 = vld [vmem:[%s1381 + $0x38] sm:$0xff]
      %v1390 = vld [vmem:[%s1381 + $0x40] sm:$0xff]
      %v1391 = vld [vmem:[%s1381 + $0x48] sm:$0xff]
      %v1392 = vld [vmem:[%s1381 + $0x50] sm:$0xff]
      %v1393 = vld [vmem:[%s1381 + $0x58] sm:$0xff]
      %v1394 = vld [vmem:[%s1381 + $0x60] sm:$0xff]
      %v1395 = vld [vmem:[%s1381 + $0x68] sm:$0xff]
      %v1396 = vld [vmem:[%s1381 + $0x70] sm:$0xff]
      %v1397 = vld [vmem:[%s1381 + $0x78] sm:$0xff]
      %v1398 = vld [vmem:[%s1381 + $0x80] sm:$0xff]
      %v1399 = vld [vmem:[%s1381 + $0x88] sm:$0xff]
      %v1400 = vld [vmem:[%s1381 + $0x90] sm:$0xff]
      %v1401 = vld [vmem:[%s1381 + $0x98] sm:$0xff]
      %v1402 = vld [vmem:[%s1381 + $0xa0] sm:$0xff]
      %v1403 = vld [vmem:[%s1381 + $0xa8] sm:$0xff]
      %v1404 = vld [vmem:[%s1381 + $0xb0] sm:$0xff]
      %v1405 = vld [vmem:[%s1381 + $0xb8] sm:$0xff]
      %v1406 = vld [vmem:[%s1381 + $0xc0] sm:$0xff]
      %v1407 = vld [vmem:[%s1381 + $0xc8] sm:$0xff]
      %v1408 = vld [vmem:[%s1381 + $0xd0] sm:$0xff]
      %v1409 = vld [vmem:[%s1381 + $0xd8] sm:$0xff]
      %v1410 = vld [vmem:[%s1381 + $0xe0] sm:$0xff]
      %v1411 = vld [vmem:[%s1381 + $0xe8] sm:$0xff]
      %v1412 = vld [vmem:[%s1381 + $0xf0] sm:$0xff]
      %v1413 = vld [vmem:[%s1381 + $0xf8] sm:$0xff]
      %v1414 = vld [vmem:[%s1381 + $0x100] sm:$0xff]
      %v1415 = vld [vmem:[%s1381 + $0x108] sm:$0xff]
      %v1416 = vld [vmem:[%s1381 + $0x110] sm:$0xff]
      %v1417 = vld [vmem:[%s1381 + $0x118] sm:$0xff]
      %v1418 = vld [vmem:[%s1381 + $0x120] sm:$0xff]
      %v1419 = vld [vmem:[%s1381 + $0x128] sm:$0xff]
      %v1420 = vld [vmem:[%s1381 + $0x130] sm:$0xff]
      %v1421 = vld [vmem:[%s1381 + $0x138] sm:$0xff]
      %v1422 = vld [vmem:[%s1381 + $0x140] sm:$0xff]
      %v1423 = vld [vmem:[%s1381 + $0x148] sm:$0xff]
      %v1424 = vld [vmem:[%s1381 + $0x150] sm:$0xff]
      %v1425 = vld [vmem:[%s1381 + $0x158] sm:$0xff]
      %v1426 = vld [vmem:[%s1381 + $0x160] sm:$0xff]
      %v1427 = vld [vmem:[%s1381 + $0x168] sm:$0xff]
      %v1428 = vld [vmem:[%s1381 + $0x170] sm:$0xff]
      %v1429 = vld [vmem:[%s1381 + $0x178] sm:$0xff]
      %v1430 = vld [vmem:[%s1381 + $0x180] sm:$0xff]
      %v1431 = vld [vmem:[%s1381 + $0x188] sm:$0xff]
      %v1432 = vld [vmem:[%s1381 + $0x190] sm:$0xff]
      %v1433 = vld [vmem:[%s1381 + $0x198] sm:$0xff]
      %v1434 = vld [vmem:[%s1381 + $0x1a0] sm:$0xff]
      %v1435 = vld [vmem:[%s1381 + $0x1a8] sm:$0xff]
      %v1436 = vld [vmem:[%s1381 + $0x1b0] sm:$0xff]
      %v1437 = vld [vmem:[%s1381 + $0x1b8] sm:$0xff]
      %v1438 = vld [vmem:[%s1381 + $0x1c0] sm:$0xff]
      %v1439 = vld [vmem:[%s1381 + $0x1c8] sm:$0xff]
      %v1440 = vld [vmem:[%s1381 + $0x1d0] sm:$0xff]
      %v1441 = vld [vmem:[%s1381 + $0x1d8] sm:$0xff]
      %v1442 = vld [vmem:[%s1381 + $0x1e0] sm:$0xff]
      %v1443 = vld [vmem:[%s1381 + $0x1e8] sm:$0xff]
      %v1444 = vld [vmem:[%s1381 + $0x1f0] sm:$0xff]
      %v1445 = vld [vmem:[%s1381 + $0x1f8] sm:$0xff]
      %v1450 = vunpack.c.l.b16 %v1377
      %v1451 = vunpack.c.h.b16 %v1377
      %v1452 = vunpack.c.l.b16 %v1378
      %v1453 = vunpack.c.h.b16 %v1378
      %v1454 = vunpack.c.l.b16 %v1379
      %v1455 = vunpack.c.h.b16 %v1379
      %v1456 = vunpack.c.l.b16 %v1380
      %v1457 = vunpack.c.h.b16 %v1380
      %v1458 = vpack.c.b16 %v326, %v1450
      %v1459 = vpack.c.b16 %v327, %v1451
      %v1460 = vpack.c.b16 %v328, %v1452
      %v1461 = vpack.c.b16 %v329, %v1453
      %v1462 = vpack.c.b16 %v1454, %v330
      %v1463 = vpack.c.b16 %v1455, %v331
      %v1464 = vpack.c.b16 %v1456, %v332
      %v1465 = vpack.c.b16 %v1457, %v333
      %vm1466 = vsmask.f32 5376
      %v1468 = vshrl.u32 %v1458, 16
      %v1470 = vrot.slane %v1468, 2
      %v1471 = vshll.u32 %v1458, 16
      %v1473 = vrot.slane %v1471, 3
      %v1474 = vor.u32 %v1470, %v1473
      %v1476 = vshrl.u32 %v1462, 16
      %v1478 = vrot.slane %v1476, 2
      %v1479 = vshll.u32 %v1462, 16
      %v1481 = vrot.slane %v1479, 3
      %v1482 = vor.u32 %v1478, %v1481
      %v1483 = vsel %vm1466, %v1474, %v1482
      %v1485 = vshrl.u32 %v1459, 16
      %v1487 = vrot.slane %v1485, 2
      %v1488 = vshll.u32 %v1459, 16
      %v1490 = vrot.slane %v1488, 3
      %v1491 = vor.u32 %v1487, %v1490
      %v1493 = vshrl.u32 %v1463, 16
      %v1495 = vrot.slane %v1493, 2
      %v1496 = vshll.u32 %v1463, 16
      %v1498 = vrot.slane %v1496, 3
      %v1499 = vor.u32 %v1495, %v1498
      %v1500 = vsel %vm1466, %v1491, %v1499
      %v1502 = vshrl.u32 %v1460, 16
      %v1504 = vrot.slane %v1502, 2
      %v1505 = vshll.u32 %v1460, 16
      %v1507 = vrot.slane %v1505, 3
      %v1508 = vor.u32 %v1504, %v1507
      %v1510 = vshrl.u32 %v1464, 16
      %v1512 = vrot.slane %v1510, 2
      %v1513 = vshll.u32 %v1464, 16
      %v1515 = vrot.slane %v1513, 3
      %v1516 = vor.u32 %v1512, %v1515
      %v1517 = vsel %vm1466, %v1508, %v1516
      %v1519 = vshrl.u32 %v1461, 16
      %v1521 = vrot.slane %v1519, 2
      %v1522 = vshll.u32 %v1461, 16
      %v1524 = vrot.slane %v1522, 3
      %v1525 = vor.u32 %v1521, %v1524
      %v1527 = vshrl.u32 %v1465, 16
      %v1529 = vrot.slane %v1527, 2
      %v1530 = vshll.u32 %v1465, 16
      %v1532 = vrot.slane %v1530, 3
      %v1533 = vor.u32 %v1529, %v1532
      %v1534 = vsel %vm1466, %v1525, %v1533
      %v1607 = vunpack.c.l.b16 %v1382
      %v1608 = vunpack.c.h.b16 %v1382
      %v1609 = vunpack.c.l.b16 %v1383
      %v1610 = vunpack.c.h.b16 %v1383
      %v1611 = vunpack.c.l.b16 %v1384
      %v1612 = vunpack.c.h.b16 %v1384
      %v1613 = vunpack.c.l.b16 %v1385
      %v1614 = vunpack.c.h.b16 %v1385
      %v1615 = vunpack.c.l.b16 %v1386
      %v1616 = vunpack.c.h.b16 %v1386
      %v1617 = vunpack.c.l.b16 %v1387
      %v1618 = vunpack.c.h.b16 %v1387
      %v1619 = vunpack.c.l.b16 %v1388
      %v1620 = vunpack.c.h.b16 %v1388
      %v1621 = vunpack.c.l.b16 %v1389
      %v1622 = vunpack.c.h.b16 %v1389
      %v1623 = vunpack.c.l.b16 %v1390
      %v1624 = vunpack.c.h.b16 %v1390
      %v1625 = vunpack.c.l.b16 %v1391
      %v1626 = vunpack.c.h.b16 %v1391
      %v1627 = vunpack.c.l.b16 %v1392
      %v1628 = vunpack.c.h.b16 %v1392
      %v1629 = vunpack.c.l.b16 %v1393
      %v1630 = vunpack.c.h.b16 %v1393
      %v1631 = vunpack.c.l.b16 %v1394
      %v1632 = vunpack.c.h.b16 %v1394
      %v1633 = vunpack.c.l.b16 %v1395
      %v1634 = vunpack.c.h.b16 %v1395
      %v1635 = vunpack.c.l.b16 %v1396
      %v1636 = vunpack.c.h.b16 %v1396
      %v1637 = vunpack.c.l.b16 %v1397
      %v1638 = vunpack.c.h.b16 %v1397
      %v1639 = vunpack.c.l.b16 %v1398
      %v1640 = vunpack.c.h.b16 %v1398
      %v1641 = vunpack.c.l.b16 %v1399
      %v1642 = vunpack.c.h.b16 %v1399
      %v1643 = vunpack.c.l.b16 %v1400
      %v1644 = vunpack.c.h.b16 %v1400
      %v1645 = vunpack.c.l.b16 %v1401
      %v1646 = vunpack.c.h.b16 %v1401
      %v1647 = vunpack.c.l.b16 %v1402
      %v1648 = vunpack.c.h.b16 %v1402
      %v1649 = vunpack.c.l.b16 %v1403
      %v1650 = vunpack.c.h.b16 %v1403
      %v1651 = vunpack.c.l.b16 %v1404
      %v1652 = vunpack.c.h.b16 %v1404
      %v1653 = vunpack.c.l.b16 %v1405
      %v1654 = vunpack.c.h.b16 %v1405
      %v1655 = vunpack.c.l.b16 %v1406
      %v1656 = vunpack.c.h.b16 %v1406
      %v1657 = vunpack.c.l.b16 %v1407
      %v1658 = vunpack.c.h.b16 %v1407
      %v1659 = vunpack.c.l.b16 %v1408
      %v1660 = vunpack.c.h.b16 %v1408
      %v1661 = vunpack.c.l.b16 %v1409
      %v1662 = vunpack.c.h.b16 %v1409
      %v1663 = vunpack.c.l.b16 %v1410
      %v1664 = vunpack.c.h.b16 %v1410
      %v1665 = vunpack.c.l.b16 %v1411
      %v1666 = vunpack.c.h.b16 %v1411
      %v1667 = vunpack.c.l.b16 %v1412
      %v1668 = vunpack.c.h.b16 %v1412
      %v1669 = vunpack.c.l.b16 %v1413
      %v1670 = vunpack.c.h.b16 %v1413
      %v1671 = vunpack.c.l.b16 %v1414
      %v1672 = vunpack.c.h.b16 %v1414
      %v1673 = vunpack.c.l.b16 %v1415
      %v1674 = vunpack.c.h.b16 %v1415
      %v1675 = vunpack.c.l.b16 %v1416
      %v1676 = vunpack.c.h.b16 %v1416
      %v1677 = vunpack.c.l.b16 %v1417
      %v1678 = vunpack.c.h.b16 %v1417
      %v1679 = vunpack.c.l.b16 %v1418
      %v1680 = vunpack.c.h.b16 %v1418
      %v1681 = vunpack.c.l.b16 %v1419
      %v1682 = vunpack.c.h.b16 %v1419
      %v1683 = vunpack.c.l.b16 %v1420
      %v1684 = vunpack.c.h.b16 %v1420
      %v1685 = vunpack.c.l.b16 %v1421
      %v1686 = vunpack.c.h.b16 %v1421
      %v1687 = vunpack.c.l.b16 %v1422
      %v1688 = vunpack.c.h.b16 %v1422
      %v1689 = vunpack.c.l.b16 %v1423
      %v1690 = vunpack.c.h.b16 %v1423
      %v1691 = vunpack.c.l.b16 %v1424
      %v1692 = vunpack.c.h.b16 %v1424
      %v1693 = vunpack.c.l.b16 %v1425
      %v1694 = vunpack.c.h.b16 %v1425
      %v1695 = vunpack.c.l.b16 %v1426
      %v1696 = vunpack.c.h.b16 %v1426
      %v1697 = vunpack.c.l.b16 %v1427
      %v1698 = vunpack.c.h.b16 %v1427
      %v1699 = vunpack.c.l.b16 %v1428
      %v1700 = vunpack.c.h.b16 %v1428
      %v1701 = vunpack.c.l.b16 %v1429
      %v1702 = vunpack.c.h.b16 %v1429
      %v1703 = vunpack.c.l.b16 %v1430
      %v1704 = vunpack.c.h.b16 %v1430
      %v1705 = vunpack.c.l.b16 %v1431
      %v1706 = vunpack.c.h.b16 %v1431
      %v1707 = vunpack.c.l.b16 %v1432
      %v1708 = vunpack.c.h.b16 %v1432
      %v1709 = vunpack.c.l.b16 %v1433
      %v1710 = vunpack.c.h.b16 %v1433
      %v1711 = vunpack.c.l.b16 %v1434
      %v1712 = vunpack.c.h.b16 %v1434
      %v1713 = vunpack.c.l.b16 %v1435
      %v1714 = vunpack.c.h.b16 %v1435
      %v1715 = vunpack.c.l.b16 %v1436
      %v1716 = vunpack.c.h.b16 %v1436
      %v1717 = vunpack.c.l.b16 %v1437
      %v1718 = vunpack.c.h.b16 %v1437
      %v1719 = vunpack.c.l.b16 %v1438
      %v1720 = vunpack.c.h.b16 %v1438
      %v1721 = vunpack.c.l.b16 %v1439
      %v1722 = vunpack.c.h.b16 %v1439
      %v1723 = vunpack.c.l.b16 %v1440
      %v1724 = vunpack.c.h.b16 %v1440
      %v1725 = vunpack.c.l.b16 %v1441
      %v1726 = vunpack.c.h.b16 %v1441
      %v1727 = vunpack.c.l.b16 %v1442
      %v1728 = vunpack.c.h.b16 %v1442
      %v1729 = vunpack.c.l.b16 %v1443
      %v1730 = vunpack.c.h.b16 %v1443
      %v1731 = vunpack.c.l.b16 %v1444
      %v1732 = vunpack.c.h.b16 %v1444
      %v1733 = vunpack.c.l.b16 %v1445
      %v1734 = vunpack.c.h.b16 %v1445
      %v1735 = vpack.c.b16 %v1609, %v1607
      %v1736 = vpack.c.b16 %v1610, %v1608
      %v1737 = vpack.c.b16 %v1613, %v1611
      %v1738 = vpack.c.b16 %v1614, %v1612
      %v1739 = vpack.c.b16 %v1617, %v1615
      %v1740 = vpack.c.b16 %v1618, %v1616
      %v1741 = vpack.c.b16 %v1621, %v1619
      %v1742 = vpack.c.b16 %v1622, %v1620
      %v1743 = vpack.c.b16 %v1625, %v1623
      %v1744 = vpack.c.b16 %v1626, %v1624
      %v1745 = vpack.c.b16 %v1629, %v1627
      %v1746 = vpack.c.b16 %v1630, %v1628
      %v1747 = vpack.c.b16 %v1633, %v1631
      %v1748 = vpack.c.b16 %v1634, %v1632
      %v1749 = vpack.c.b16 %v1637, %v1635
      %v1750 = vpack.c.b16 %v1638, %v1636
      %v1751 = vpack.c.b16 %v1641, %v1639
      %v1752 = vpack.c.b16 %v1642, %v1640
      %v1753 = vpack.c.b16 %v1645, %v1643
      %v1754 = vpack.c.b16 %v1646, %v1644
      %v1755 = vpack.c.b16 %v1649, %v1647
      %v1756 = vpack.c.b16 %v1650, %v1648
      %v1757 = vpack.c.b16 %v1653, %v1651
      %v1758 = vpack.c.b16 %v1654, %v1652
      %v1759 = vpack.c.b16 %v1657, %v1655
      %v1760 = vpack.c.b16 %v1658, %v1656
      %v1761 = vpack.c.b16 %v1661, %v1659
      %v1762 = vpack.c.b16 %v1662, %v1660
      %v1763 = vpack.c.b16 %v1665, %v1663
      %v1764 = vpack.c.b16 %v1666, %v1664
      %v1765 = vpack.c.b16 %v1669, %v1667
      %v1766 = vpack.c.b16 %v1670, %v1668
      %v1767 = vpack.c.b16 %v1673, %v1671
      %v1768 = vpack.c.b16 %v1674, %v1672
      %v1769 = vpack.c.b16 %v1677, %v1675
      %v1770 = vpack.c.b16 %v1678, %v1676
      %v1771 = vpack.c.b16 %v1681, %v1679
      %v1772 = vpack.c.b16 %v1682, %v1680
      %v1773 = vpack.c.b16 %v1685, %v1683
      %v1774 = vpack.c.b16 %v1686, %v1684
      %v1775 = vpack.c.b16 %v1689, %v1687
      %v1776 = vpack.c.b16 %v1690, %v1688
      %v1777 = vpack.c.b16 %v1693, %v1691
      %v1778 = vpack.c.b16 %v1694, %v1692
      %v1779 = vpack.c.b16 %v1697, %v1695
      %v1780 = vpack.c.b16 %v1698, %v1696
      %v1781 = vpack.c.b16 %v1701, %v1699
      %v1782 = vpack.c.b16 %v1702, %v1700
      %v1783 = vpack.c.b16 %v1705, %v1703
      %v1784 = vpack.c.b16 %v1706, %v1704
      %v1785 = vpack.c.b16 %v1709, %v1707
      %v1786 = vpack.c.b16 %v1710, %v1708
      %v1787 = vpack.c.b16 %v1713, %v1711
      %v1788 = vpack.c.b16 %v1714, %v1712
      %v1789 = vpack.c.b16 %v1717, %v1715
      %v1790 = vpack.c.b16 %v1718, %v1716
      %v1791 = vpack.c.b16 %v1721, %v1719
      %v1792 = vpack.c.b16 %v1722, %v1720
      %v1793 = vpack.c.b16 %v1725, %v1723
      %v1794 = vpack.c.b16 %v1726, %v1724
      %v1795 = vpack.c.b16 %v1729, %v1727
      %v1796 = vpack.c.b16 %v1730, %v1728
      %v1797 = vpack.c.b16 %v1733, %v1731
      %v1798 = vpack.c.b16 %v1734, %v1732
      %1863 = vmatpush.bf16.msra.mxu0 %v1749
      %1864 = vmatpush.bf16.msra.mxu0 %v1747
      %1865 = vmatpush.bf16.msra.mxu0 %v1745
      %1866 = vmatpush.bf16.msra.mxu0 %v1743
      %1867 = vmatpush.bf16.msra.mxu0 %v1741
      %1868 = vmatpush.bf16.msra.mxu0 %v1739
      %1869 = vmatpush.bf16.msra.mxu0 %v1737
      %1870 = vmatpush.bf16.msra.mxu0 %v1735
      %1871 = vmatmul.bf16.gmra.mxu0 %v1483
      %v1872 = vpop.f32.mrf.mxu0
      %v1873 = vadd.f32 0.0, %v1872
      %v1874 = vpop.f32.mrf.mxu0
      %v1875 = vadd.f32 0.0, %v1874
      %1876 = vmatmul.bf16.gmra.mxu0 %v1482
      %v1877 = vpop.f32.mrf.mxu0
      %v1878 = vadd.f32 0.0, %v1877
      %v1879 = vpop.f32.mrf.mxu0
      %1880 = vdwg.mxu0
      %1881 = vmatpush.bf16.msra.mxu0 %v1765
      %1882 = vmatpush.bf16.msra.mxu0 %v1763
      %1883 = vmatpush.bf16.msra.mxu0 %v1761
      %1884 = vmatpush.bf16.msra.mxu0 %v1759
      %1885 = vmatpush.bf16.msra.mxu0 %v1757
      %1886 = vmatpush.bf16.msra.mxu0 %v1755
      %1887 = vmatpush.bf16.msra.mxu0 %v1753
      %1888 = vmatpush.bf16.msra.mxu0 %v1751
      %1889 = vmatmul.bf16.gmra.mxu0 %v1500
      %v1890 = vpop.f32.mrf.mxu0
      %v1891 = vadd.f32 %v1873, %v1890
      %v1892 = vpop.f32.mrf.mxu0
      %v1893 = vadd.f32 %v1875, %v1892
      %1894 = vmatmul.bf16.gmra.mxu0 %v1499
      %v1895 = vpop.f32.mrf.mxu0
      %v1896 = vadd.f32 %v1878, %v1895
      %v1897 = vpop.f32.mrf.mxu0
      %1898 = vdwg.mxu0
      %1899 = vmatpush.bf16.msra.mxu0 %v1781
      %1900 = vmatpush.bf16.msra.mxu0 %v1779
      %1901 = vmatpush.bf16.msra.mxu0 %v1777
      %1902 = vmatpush.bf16.msra.mxu0 %v1775
      %1903 = vmatpush.bf16.msra.mxu0 %v1773
      %1904 = vmatpush.bf16.msra.mxu0 %v1771
      %1905 = vmatpush.bf16.msra.mxu0 %v1769
      %1906 = vmatpush.bf16.msra.mxu0 %v1767
      %1907 = vmatmul.bf16.gmra.mxu0 %v1517
      %v1908 = vpop.f32.mrf.mxu0
      %v1909 = vadd.f32 %v1891, %v1908
      %v1910 = vpop.f32.mrf.mxu0
      %v1911 = vadd.f32 %v1893, %v1910
      %1912 = vmatmul.bf16.gmra.mxu0 %v1516
      %v1913 = vpop.f32.mrf.mxu0
      %v1914 = vadd.f32 %v1896, %v1913
      %v1915 = vpop.f32.mrf.mxu0
      %1916 = vdwg.mxu0
      %1917 = vmatpush.bf16.msra.mxu0 %v1797
      %1918 = vmatpush.bf16.msra.mxu0 %v1795
      %1919 = vmatpush.bf16.msra.mxu0 %v1793
      %1920 = vmatpush.bf16.msra.mxu0 %v1791
      %1921 = vmatpush.bf16.msra.mxu0 %v1789
      %1922 = vmatpush.bf16.msra.mxu0 %v1787
      %1923 = vmatpush.bf16.msra.mxu0 %v1785
      %1924 = vmatpush.bf16.msra.mxu0 %v1783
      %1925 = vmatmul.bf16.gmra.mxu0 %v1534
      %v1926 = vpop.f32.mrf.mxu0
      %v1927 = vadd.f32 %v1909, %v1926
      %v1928 = vpop.f32.mrf.mxu0
      %v1929 = vadd.f32 %v1911, %v1928
      %1930 = vmatmul.bf16.gmra.mxu0 %v1533
      %v1931 = vpop.f32.mrf.mxu0
      %v1932 = vadd.f32 %v1914, %v1931
      %v1933 = vpop.f32.mrf.mxu0
      %1934 = vdwg.mxu0
      %1935 = vmatpush.bf16.msra.mxu0 %v1750
      %1936 = vmatpush.bf16.msra.mxu0 %v1748
      %1937 = vmatpush.bf16.msra.mxu0 %v1746
      %1938 = vmatpush.bf16.msra.mxu0 %v1744
      %1939 = vmatpush.bf16.msra.mxu0 %v1742
      %1940 = vmatpush.bf16.msra.mxu0 %v1740
      %1941 = vmatpush.bf16.msra.mxu0 %v1738
      %1942 = vmatpush.bf16.msra.mxu0 %v1736
      %1943 = vmatmul.bf16.gmra.mxu0 %v1483
      %v1944 = vpop.f32.mrf.mxu0
      %v1945 = vadd.f32 0.0, %v1944
      %v1946 = vpop.f32.mrf.mxu0
      %v1947 = vadd.f32 0.0, %v1946
      %1948 = vmatmul.bf16.gmra.mxu0 %v1482
      %v1949 = vpop.f32.mrf.mxu0
      %v1950 = vadd.f32 0.0, %v1949
      %v1951 = vpop.f32.mrf.mxu0
      %1952 = vdwg.mxu0
      %1953 = vmatpush.bf16.msra.mxu0 %v1766
      %1954 = vmatpush.bf16.msra.mxu0 %v1764
      %1955 = vmatpush.bf16.msra.mxu0 %v1762
      %1956 = vmatpush.bf16.msra.mxu0 %v1760
      %1957 = vmatpush.bf16.msra.mxu0 %v1758
      %1958 = vmatpush.bf16.msra.mxu0 %v1756
      %1959 = vmatpush.bf16.msra.mxu0 %v1754
      %1960 = vmatpush.bf16.msra.mxu0 %v1752
      %1961 = vmatmul.bf16.gmra.mxu0 %v1500
      %v1962 = vpop.f32.mrf.mxu0
      %v1963 = vadd.f32 %v1945, %v1962
      %v1964 = vpop.f32.mrf.mxu0
      %v1965 = vadd.f32 %v1947, %v1964
      %1966 = vmatmul.bf16.gmra.mxu0 %v1499
      %v1967 = vpop.f32.mrf.mxu0
      %v1968 = vadd.f32 %v1950, %v1967
      %v1969 = vpop.f32.mrf.mxu0
      %1970 = vdwg.mxu0
      %1971 = vmatpush.bf16.msra.mxu0 %v1782
      %1972 = vmatpush.bf16.msra.mxu0 %v1780
      %1973 = vmatpush.bf16.msra.mxu0 %v1778
      %1974 = vmatpush.bf16.msra.mxu0 %v1776
      %1975 = vmatpush.bf16.msra.mxu0 %v1774
      %1976 = vmatpush.bf16.msra.mxu0 %v1772
      %1977 = vmatpush.bf16.msra.mxu0 %v1770
      %1978 = vmatpush.bf16.msra.mxu0 %v1768
      %1979 = vmatmul.bf16.gmra.mxu0 %v1517
      %v1980 = vpop.f32.mrf.mxu0
      %v1981 = vadd.f32 %v1963, %v1980
      %v1982 = vpop.f32.mrf.mxu0
      %v1983 = vadd.f32 %v1965, %v1982
      %1984 = vmatmul.bf16.gmra.mxu0 %v1516
      %v1985 = vpop.f32.mrf.mxu0
      %v1986 = vadd.f32 %v1968, %v1985
      %v1987 = vpop.f32.mrf.mxu0
      %1988 = vdwg.mxu0
      %1989 = vmatpush.bf16.msra.mxu0 %v1798
      %1990 = vmatpush.bf16.msra.mxu0 %v1796
      %1991 = vmatpush.bf16.msra.mxu0 %v1794
      %1992 = vmatpush.bf16.msra.mxu0 %v1792
      %1993 = vmatpush.bf16.msra.mxu0 %v1790
      %1994 = vmatpush.bf16.msra.mxu0 %v1788
      %1995 = vmatpush.bf16.msra.mxu0 %v1786
      %1996 = vmatpush.bf16.msra.mxu0 %v1784
      %1997 = vmatmul.bf16.gmra.mxu0 %v1534
      %v1998 = vpop.f32.mrf.mxu0
      %v1999 = vadd.f32 %v1981, %v1998
      %v2000 = vpop.f32.mrf.mxu0
      %v2001 = vadd.f32 %v1983, %v2000
      %2002 = vmatmul.bf16.gmra.mxu0 %v1533
      %v2003 = vpop.f32.mrf.mxu0
      %v2004 = vadd.f32 %v1986, %v2003
      %v2005 = vpop.f32.mrf.mxu0
      %2006 = vdwg.mxu0
      %v2007 = vadd.f32 %v1297, %v1927
      %v2008 = vadd.f32 %v1369, %v1999
      %v2009 = vadd.f32 %v1299, %v1929
      %v2010 = vadd.f32 %v1371, %v2001
      %v2011 = vadd.f32 %v1302, %v1932
      %v2012 = vadd.f32 %v1374, %v2004
      %v2013 = vld [vmem:[%s165] sm:$0x88]
      %v2014 = vld [vmem:[%s165 + $0x8] sm:$0x88]
      %s2015 = scalar_lea.vmem %s1, 1536
      %v2016 = vld [vmem:[%s2015] sm:$0xff]
      %v2017 = vld [vmem:[%s2015 + $0x8] sm:$0xff]
      %v2018 = vld [vmem:[%s2015 + $0x10] sm:$0xff]
      %v2019 = vld [vmem:[%s2015 + $0x18] sm:$0xff]
      %v2020 = vld [vmem:[%s2015 + $0x20] sm:$0xff]
      %v2021 = vld [vmem:[%s2015 + $0x28] sm:$0xff]
      %v2022 = vld [vmem:[%s2015 + $0x30] sm:$0xff]
      %v2023 = vld [vmem:[%s2015 + $0x38] sm:$0xff]
      %v2024 = vld [vmem:[%s2015 + $0x40] sm:$0xff]
      %v2025 = vld [vmem:[%s2015 + $0x48] sm:$0xff]
      %v2026 = vld [vmem:[%s2015 + $0x50] sm:$0xff]
      %v2027 = vld [vmem:[%s2015 + $0x58] sm:$0xff]
      %v2028 = vld [vmem:[%s2015 + $0x60] sm:$0xff]
      %v2029 = vld [vmem:[%s2015 + $0x68] sm:$0xff]
      %v2030 = vld [vmem:[%s2015 + $0x70] sm:$0xff]
      %v2031 = vld [vmem:[%s2015 + $0x78] sm:$0xff]
      %v2032 = vld [vmem:[%s2015 + $0x80] sm:$0xff]
      %v2033 = vld [vmem:[%s2015 + $0x88] sm:$0xff]
      %v2034 = vld [vmem:[%s2015 + $0x90] sm:$0xff]
      %v2035 = vld [vmem:[%s2015 + $0x98] sm:$0xff]
      %v2036 = vld [vmem:[%s2015 + $0xa0] sm:$0xff]
      %v2037 = vld [vmem:[%s2015 + $0xa8] sm:$0xff]
      %v2038 = vld [vmem:[%s2015 + $0xb0] sm:$0xff]
      %v2039 = vld [vmem:[%s2015 + $0xb8] sm:$0xff]
      %v2040 = vld [vmem:[%s2015 + $0xc0] sm:$0xff]
      %v2041 = vld [vmem:[%s2015 + $0xc8] sm:$0xff]
      %v2042 = vld [vmem:[%s2015 + $0xd0] sm:$0xff]
      %v2043 = vld [vmem:[%s2015 + $0xd8] sm:$0xff]
      %v2044 = vld [vmem:[%s2015 + $0xe0] sm:$0xff]
      %v2045 = vld [vmem:[%s2015 + $0xe8] sm:$0xff]
      %v2046 = vld [vmem:[%s2015 + $0xf0] sm:$0xff]
      %v2047 = vld [vmem:[%s2015 + $0xf8] sm:$0xff]
      %v2048 = vld [vmem:[%s2015 + $0x100] sm:$0xff]
      %v2049 = vld [vmem:[%s2015 + $0x108] sm:$0xff]
      %v2050 = vld [vmem:[%s2015 + $0x110] sm:$0xff]
      %v2051 = vld [vmem:[%s2015 + $0x118] sm:$0xff]
      %v2052 = vld [vmem:[%s2015 + $0x120] sm:$0xff]
      %v2053 = vld [vmem:[%s2015 + $0x128] sm:$0xff]
      %v2054 = vld [vmem:[%s2015 + $0x130] sm:$0xff]
      %v2055 = vld [vmem:[%s2015 + $0x138] sm:$0xff]
      %v2056 = vld [vmem:[%s2015 + $0x140] sm:$0xff]
      %v2057 = vld [vmem:[%s2015 + $0x148] sm:$0xff]
      %v2058 = vld [vmem:[%s2015 + $0x150] sm:$0xff]
      %v2059 = vld [vmem:[%s2015 + $0x158] sm:$0xff]
      %v2060 = vld [vmem:[%s2015 + $0x160] sm:$0xff]
      %v2061 = vld [vmem:[%s2015 + $0x168] sm:$0xff]
      %v2062 = vld [vmem:[%s2015 + $0x170] sm:$0xff]
      %v2063 = vld [vmem:[%s2015 + $0x178] sm:$0xff]
      %v2064 = vld [vmem:[%s2015 + $0x180] sm:$0xff]
      %v2065 = vld [vmem:[%s2015 + $0x188] sm:$0xff]
      %v2066 = vld [vmem:[%s2015 + $0x190] sm:$0xff]
      %v2067 = vld [vmem:[%s2015 + $0x198] sm:$0xff]
      %v2068 = vld [vmem:[%s2015 + $0x1a0] sm:$0xff]
      %v2069 = vld [vmem:[%s2015 + $0x1a8] sm:$0xff]
      %v2070 = vld [vmem:[%s2015 + $0x1b0] sm:$0xff]
      %v2071 = vld [vmem:[%s2015 + $0x1b8] sm:$0xff]
      %v2072 = vld [vmem:[%s2015 + $0x1c0] sm:$0xff]
      %v2073 = vld [vmem:[%s2015 + $0x1c8] sm:$0xff]
      %v2074 = vld [vmem:[%s2015 + $0x1d0] sm:$0xff]
      %v2075 = vld [vmem:[%s2015 + $0x1d8] sm:$0xff]
      %v2076 = vld [vmem:[%s2015 + $0x1e0] sm:$0xff]
      %v2077 = vld [vmem:[%s2015 + $0x1e8] sm:$0xff]
      %v2078 = vld [vmem:[%s2015 + $0x1f0] sm:$0xff]
      %v2079 = vld [vmem:[%s2015 + $0x1f8] sm:$0xff]
      %v2082 = vunpack.c.l.b16 %v2013
      %v2083 = vunpack.c.h.b16 %v2013
      %v2084 = vunpack.c.l.b16 %v2014
      %v2085 = vunpack.c.h.b16 %v2014
      %v2086 = vpack.c.b16 %v326, %v2082
      %v2087 = vpack.c.b16 %v327, %v2083
      %v2088 = vpack.c.b16 %v328, %v2084
      %v2089 = vpack.c.b16 %v329, %v2085
      %vm2090 = vcmask 1044480
      %v2091 = vrot.slane %v2086, 3
      %v2092 = vrot.slane %v1462, 3
      %v2093 = vsel %vm2090, %v2091, %v2092
      %v2094 = vrot.slane %v2087, 3
      %v2095 = vrot.slane %v1463, 3
      %v2096 = vsel %vm2090, %v2094, %v2095
      %v2097 = vrot.slane %v2088, 3
      %v2098 = vrot.slane %v1464, 3
      %v2099 = vsel %vm2090, %v2097, %v2098
      %v2100 = vrot.slane %v2089, 3
      %v2101 = vrot.slane %v1465, 3
      %v2102 = vsel %vm2090, %v2100, %v2101
      %v2175 = vunpack.c.l.b16 %v2016
      %v2176 = vunpack.c.h.b16 %v2016
      %v2177 = vunpack.c.l.b16 %v2017
      %v2178 = vunpack.c.h.b16 %v2017
      %v2179 = vunpack.c.l.b16 %v2018
      %v2180 = vunpack.c.h.b16 %v2018
      %v2181 = vunpack.c.l.b16 %v2019
      %v2182 = vunpack.c.h.b16 %v2019
      %v2183 = vunpack.c.l.b16 %v2020
      %v2184 = vunpack.c.h.b16 %v2020
      %v2185 = vunpack.c.l.b16 %v2021
      %v2186 = vunpack.c.h.b16 %v2021
      %v2187 = vunpack.c.l.b16 %v2022
      %v2188 = vunpack.c.h.b16 %v2022
      %v2189 = vunpack.c.l.b16 %v2023
      %v2190 = vunpack.c.h.b16 %v2023
      %v2191 = vunpack.c.l.b16 %v2024
      %v2192 = vunpack.c.h.b16 %v2024
      %v2193 = vunpack.c.l.b16 %v2025
      %v2194 = vunpack.c.h.b16 %v2025
      %v2195 = vunpack.c.l.b16 %v2026
      %v2196 = vunpack.c.h.b16 %v2026
      %v2197 = vunpack.c.l.b16 %v2027
      %v2198 = vunpack.c.h.b16 %v2027
      %v2199 = vunpack.c.l.b16 %v2028
      %v2200 = vunpack.c.h.b16 %v2028
      %v2201 = vunpack.c.l.b16 %v2029
      %v2202 = vunpack.c.h.b16 %v2029
      %v2203 = vunpack.c.l.b16 %v2030
      %v2204 = vunpack.c.h.b16 %v2030
      %v2205 = vunpack.c.l.b16 %v2031
      %v2206 = vunpack.c.h.b16 %v2031
      %v2207 = vunpack.c.l.b16 %v2032
      %v2208 = vunpack.c.h.b16 %v2032
      %v2209 = vunpack.c.l.b16 %v2033
      %v2210 = vunpack.c.h.b16 %v2033
      %v2211 = vunpack.c.l.b16 %v2034
      %v2212 = vunpack.c.h.b16 %v2034
      %v2213 = vunpack.c.l.b16 %v2035
      %v2214 = vunpack.c.h.b16 %v2035
      %v2215 = vunpack.c.l.b16 %v2036
      %v2216 = vunpack.c.h.b16 %v2036
      %v2217 = vunpack.c.l.b16 %v2037
      %v2218 = vunpack.c.h.b16 %v2037
      %v2219 = vunpack.c.l.b16 %v2038
      %v2220 = vunpack.c.h.b16 %v2038
      %v2221 = vunpack.c.l.b16 %v2039
      %v2222 = vunpack.c.h.b16 %v2039
      %v2223 = vunpack.c.l.b16 %v2040
      %v2224 = vunpack.c.h.b16 %v2040
      %v2225 = vunpack.c.l.b16 %v2041
      %v2226 = vunpack.c.h.b16 %v2041
      %v2227 = vunpack.c.l.b16 %v2042
      %v2228 = vunpack.c.h.b16 %v2042
      %v2229 = vunpack.c.l.b16 %v2043
      %v2230 = vunpack.c.h.b16 %v2043
      %v2231 = vunpack.c.l.b16 %v2044
      %v2232 = vunpack.c.h.b16 %v2044
      %v2233 = vunpack.c.l.b16 %v2045
      %v2234 = vunpack.c.h.b16 %v2045
      %v2235 = vunpack.c.l.b16 %v2046
      %v2236 = vunpack.c.h.b16 %v2046
      %v2237 = vunpack.c.l.b16 %v2047
      %v2238 = vunpack.c.h.b16 %v2047
      %v2239 = vunpack.c.l.b16 %v2048
      %v2240 = vunpack.c.h.b16 %v2048
      %v2241 = vunpack.c.l.b16 %v2049
      %v2242 = vunpack.c.h.b16 %v2049
      %v2243 = vunpack.c.l.b16 %v2050
      %v2244 = vunpack.c.h.b16 %v2050
      %v2245 = vunpack.c.l.b16 %v2051
      %v2246 = vunpack.c.h.b16 %v2051
      %v2247 = vunpack.c.l.b16 %v2052
      %v2248 = vunpack.c.h.b16 %v2052
      %v2249 = vunpack.c.l.b16 %v2053
      %v2250 = vunpack.c.h.b16 %v2053
      %v2251 = vunpack.c.l.b16 %v2054
      %v2252 = vunpack.c.h.b16 %v2054
      %v2253 = vunpack.c.l.b16 %v2055
      %v2254 = vunpack.c.h.b16 %v2055
      %v2255 = vunpack.c.l.b16 %v2056
      %v2256 = vunpack.c.h.b16 %v2056
      %v2257 = vunpack.c.l.b16 %v2057
      %v2258 = vunpack.c.h.b16 %v2057
      %v2259 = vunpack.c.l.b16 %v2058
      %v2260 = vunpack.c.h.b16 %v2058
      %v2261 = vunpack.c.l.b16 %v2059
      %v2262 = vunpack.c.h.b16 %v2059
      %v2263 = vunpack.c.l.b16 %v2060
      %v2264 = vunpack.c.h.b16 %v2060
      %v2265 = vunpack.c.l.b16 %v2061
      %v2266 = vunpack.c.h.b16 %v2061
      %v2267 = vunpack.c.l.b16 %v2062
      %v2268 = vunpack.c.h.b16 %v2062
      %v2269 = vunpack.c.l.b16 %v2063
      %v2270 = vunpack.c.h.b16 %v2063
      %v2271 = vunpack.c.l.b16 %v2064
      %v2272 = vunpack.c.h.b16 %v2064
      %v2273 = vunpack.c.l.b16 %v2065
      %v2274 = vunpack.c.h.b16 %v2065
      %v2275 = vunpack.c.l.b16 %v2066
      %v2276 = vunpack.c.h.b16 %v2066
      %v2277 = vunpack.c.l.b16 %v2067
      %v2278 = vunpack.c.h.b16 %v2067
      %v2279 = vunpack.c.l.b16 %v2068
      %v2280 = vunpack.c.h.b16 %v2068
      %v2281 = vunpack.c.l.b16 %v2069
      %v2282 = vunpack.c.h.b16 %v2069
      %v2283 = vunpack.c.l.b16 %v2070
      %v2284 = vunpack.c.h.b16 %v2070
      %v2285 = vunpack.c.l.b16 %v2071
      %v2286 = vunpack.c.h.b16 %v2071
      %v2287 = vunpack.c.l.b16 %v2072
      %v2288 = vunpack.c.h.b16 %v2072
      %v2289 = vunpack.c.l.b16 %v2073
      %v2290 = vunpack.c.h.b16 %v2073
      %v2291 = vunpack.c.l.b16 %v2074
      %v2292 = vunpack.c.h.b16 %v2074
      %v2293 = vunpack.c.l.b16 %v2075
      %v2294 = vunpack.c.h.b16 %v2075
      %v2295 = vunpack.c.l.b16 %v2076
      %v2296 = vunpack.c.h.b16 %v2076
      %v2297 = vunpack.c.l.b16 %v2077
      %v2298 = vunpack.c.h.b16 %v2077
      %v2299 = vunpack.c.l.b16 %v2078
      %v2300 = vunpack.c.h.b16 %v2078
      %v2301 = vunpack.c.l.b16 %v2079
      %v2302 = vunpack.c.h.b16 %v2079
      %v2303 = vpack.c.b16 %v2177, %v2175
      %v2304 = vpack.c.b16 %v2178, %v2176
      %v2305 = vpack.c.b16 %v2181, %v2179
      %v2306 = vpack.c.b16 %v2182, %v2180
      %v2307 = vpack.c.b16 %v2185, %v2183
      %v2308 = vpack.c.b16 %v2186, %v2184
      %v2309 = vpack.c.b16 %v2189, %v2187
      %v2310 = vpack.c.b16 %v2190, %v2188
      %v2311 = vpack.c.b16 %v2193, %v2191
      %v2312 = vpack.c.b16 %v2194, %v2192
      %v2313 = vpack.c.b16 %v2197, %v2195
      %v2314 = vpack.c.b16 %v2198, %v2196
      %v2315 = vpack.c.b16 %v2201, %v2199
      %v2316 = vpack.c.b16 %v2202, %v2200
      %v2317 = vpack.c.b16 %v2205, %v2203
      %v2318 = vpack.c.b16 %v2206, %v2204
      %v2319 = vpack.c.b16 %v2209, %v2207
      %v2320 = vpack.c.b16 %v2210, %v2208
      %v2321 = vpack.c.b16 %v2213, %v2211
      %v2322 = vpack.c.b16 %v2214, %v2212
      %v2323 = vpack.c.b16 %v2217, %v2215
      %v2324 = vpack.c.b16 %v2218, %v2216
      %v2325 = vpack.c.b16 %v2221, %v2219
      %v2326 = vpack.c.b16 %v2222, %v2220
      %v2327 = vpack.c.b16 %v2225, %v2223
      %v2328 = vpack.c.b16 %v2226, %v2224
      %v2329 = vpack.c.b16 %v2229, %v2227
      %v2330 = vpack.c.b16 %v2230, %v2228
      %v2331 = vpack.c.b16 %v2233, %v2231
      %v2332 = vpack.c.b16 %v2234, %v2232
      %v2333 = vpack.c.b16 %v2237, %v2235
      %v2334 = vpack.c.b16 %v2238, %v2236
      %v2335 = vpack.c.b16 %v2241, %v2239
      %v2336 = vpack.c.b16 %v2242, %v2240
      %v2337 = vpack.c.b16 %v2245, %v2243
      %v2338 = vpack.c.b16 %v2246, %v2244
      %v2339 = vpack.c.b16 %v2249, %v2247
      %v2340 = vpack.c.b16 %v2250, %v2248
      %v2341 = vpack.c.b16 %v2253, %v2251
      %v2342 = vpack.c.b16 %v2254, %v2252
      %v2343 = vpack.c.b16 %v2257, %v2255
      %v2344 = vpack.c.b16 %v2258, %v2256
      %v2345 = vpack.c.b16 %v2261, %v2259
      %v2346 = vpack.c.b16 %v2262, %v2260
      %v2347 = vpack.c.b16 %v2265, %v2263
      %v2348 = vpack.c.b16 %v2266, %v2264
      %v2349 = vpack.c.b16 %v2269, %v2267
      %v2350 = vpack.c.b16 %v2270, %v2268
      %v2351 = vpack.c.b16 %v2273, %v2271
      %v2352 = vpack.c.b16 %v2274, %v2272
      %v2353 = vpack.c.b16 %v2277, %v2275
      %v2354 = vpack.c.b16 %v2278, %v2276
      %v2355 = vpack.c.b16 %v2281, %v2279
      %v2356 = vpack.c.b16 %v2282, %v2280
      %v2357 = vpack.c.b16 %v2285, %v2283
      %v2358 = vpack.c.b16 %v2286, %v2284
      %v2359 = vpack.c.b16 %v2289, %v2287
      %v2360 = vpack.c.b16 %v2290, %v2288
      %v2361 = vpack.c.b16 %v2293, %v2291
      %v2362 = vpack.c.b16 %v2294, %v2292
      %v2363 = vpack.c.b16 %v2297, %v2295
      %v2364 = vpack.c.b16 %v2298, %v2296
      %v2365 = vpack.c.b16 %v2301, %v2299
      %v2366 = vpack.c.b16 %v2302, %v2300
      %2431 = vmatpush.bf16.msra.mxu0 %v2317
      %2432 = vmatpush.bf16.msra.mxu0 %v2315
      %2433 = vmatpush.bf16.msra.mxu0 %v2313
      %2434 = vmatpush.bf16.msra.mxu0 %v2311
      %2435 = vmatpush.bf16.msra.mxu0 %v2309
      %2436 = vmatpush.bf16.msra.mxu0 %v2307
      %2437 = vmatpush.bf16.msra.mxu0 %v2305
      %2438 = vmatpush.bf16.msra.mxu0 %v2303
      %2439 = vmatmul.bf16.gmra.mxu0 %v2093
      %v2440 = vpop.f32.mrf.mxu0
      %v2441 = vadd.f32 0.0, %v2440
      %v2442 = vpop.f32.mrf.mxu0
      %v2443 = vadd.f32 0.0, %v2442
      %2444 = vmatmul.bf16.gmra.mxu0 %v2092
      %v2445 = vpop.f32.mrf.mxu0
      %v2446 = vadd.f32 0.0, %v2445
      %v2447 = vpop.f32.mrf.mxu0
      %2448 = vdwg.mxu0
      %2449 = vmatpush.bf16.msra.mxu0 %v2333
      %2450 = vmatpush.bf16.msra.mxu0 %v2331
      %2451 = vmatpush.bf16.msra.mxu0 %v2329
      %2452 = vmatpush.bf16.msra.mxu0 %v2327
      %2453 = vmatpush.bf16.msra.mxu0 %v2325
      %2454 = vmatpush.bf16.msra.mxu0 %v2323
      %2455 = vmatpush.bf16.msra.mxu0 %v2321
      %2456 = vmatpush.bf16.msra.mxu0 %v2319
      %2457 = vmatmul.bf16.gmra.mxu0 %v2096
      %v2458 = vpop.f32.mrf.mxu0
      %v2459 = vadd.f32 %v2441, %v2458
      %v2460 = vpop.f32.mrf.mxu0
      %v2461 = vadd.f32 %v2443, %v2460
      %2462 = vmatmul.bf16.gmra.mxu0 %v2095
      %v2463 = vpop.f32.mrf.mxu0
      %v2464 = vadd.f32 %v2446, %v2463
      %v2465 = vpop.f32.mrf.mxu0
      %2466 = vdwg.mxu0
      %2467 = vmatpush.bf16.msra.mxu0 %v2349
      %2468 = vmatpush.bf16.msra.mxu0 %v2347
      %2469 = vmatpush.bf16.msra.mxu0 %v2345
      %2470 = vmatpush.bf16.msra.mxu0 %v2343
      %2471 = vmatpush.bf16.msra.mxu0 %v2341
      %2472 = vmatpush.bf16.msra.mxu0 %v2339
      %2473 = vmatpush.bf16.msra.mxu0 %v2337
      %2474 = vmatpush.bf16.msra.mxu0 %v2335
      %2475 = vmatmul.bf16.gmra.mxu0 %v2099
      %v2476 = vpop.f32.mrf.mxu0
      %v2477 = vadd.f32 %v2459, %v2476
      %v2478 = vpop.f32.mrf.mxu0
      %v2479 = vadd.f32 %v2461, %v2478
      %2480 = vmatmul.bf16.gmra.mxu0 %v2098
      %v2481 = vpop.f32.mrf.mxu0
      %v2482 = vadd.f32 %v2464, %v2481
      %v2483 = vpop.f32.mrf.mxu0
      %2484 = vdwg.mxu0
      %2485 = vmatpush.bf16.msra.mxu0 %v2365
      %2486 = vmatpush.bf16.msra.mxu0 %v2363
      %2487 = vmatpush.bf16.msra.mxu0 %v2361
      %2488 = vmatpush.bf16.msra.mxu0 %v2359
      %2489 = vmatpush.bf16.msra.mxu0 %v2357
      %2490 = vmatpush.bf16.msra.mxu0 %v2355
      %2491 = vmatpush.bf16.msra.mxu0 %v2353
      %2492 = vmatpush.bf16.msra.mxu0 %v2351
      %2493 = vmatmul.bf16.gmra.mxu0 %v2102
      %v2494 = vpop.f32.mrf.mxu0
      %v2495 = vadd.f32 %v2477, %v2494
      %v2496 = vpop.f32.mrf.mxu0
      %v2497 = vadd.f32 %v2479, %v2496
      %2498 = vmatmul.bf16.gmra.mxu0 %v2101
      %v2499 = vpop.f32.mrf.mxu0
      %v2500 = vadd.f32 %v2482, %v2499
      %v2501 = vpop.f32.mrf.mxu0
      %2502 = vdwg.mxu0
      %2503 = vmatpush.bf16.msra.mxu0 %v2318
      %2504 = vmatpush.bf16.msra.mxu0 %v2316
      %2505 = vmatpush.bf16.msra.mxu0 %v2314
      %2506 = vmatpush.bf16.msra.mxu0 %v2312
      %2507 = vmatpush.bf16.msra.mxu0 %v2310
      %2508 = vmatpush.bf16.msra.mxu0 %v2308
      %2509 = vmatpush.bf16.msra.mxu0 %v2306
      %2510 = vmatpush.bf16.msra.mxu0 %v2304
      %2511 = vmatmul.bf16.gmra.mxu0 %v2093
      %v2512 = vpop.f32.mrf.mxu0
      %v2513 = vadd.f32 0.0, %v2512
      %v2514 = vpop.f32.mrf.mxu0
      %v2515 = vadd.f32 0.0, %v2514
      %2516 = vmatmul.bf16.gmra.mxu0 %v2092
      %v2517 = vpop.f32.mrf.mxu0
      %v2518 = vadd.f32 0.0, %v2517
      %v2519 = vpop.f32.mrf.mxu0
      %2520 = vdwg.mxu0
      %2521 = vmatpush.bf16.msra.mxu0 %v2334
      %2522 = vmatpush.bf16.msra.mxu0 %v2332
      %2523 = vmatpush.bf16.msra.mxu0 %v2330
      %2524 = vmatpush.bf16.msra.mxu0 %v2328
      %2525 = vmatpush.bf16.msra.mxu0 %v2326
      %2526 = vmatpush.bf16.msra.mxu0 %v2324
      %2527 = vmatpush.bf16.msra.mxu0 %v2322
      %2528 = vmatpush.bf16.msra.mxu0 %v2320
      %2529 = vmatmul.bf16.gmra.mxu0 %v2096
      %v2530 = vpop.f32.mrf.mxu0
      %v2531 = vadd.f32 %v2513, %v2530
      %v2532 = vpop.f32.mrf.mxu0
      %v2533 = vadd.f32 %v2515, %v2532
      %2534 = vmatmul.bf16.gmra.mxu0 %v2095
      %v2535 = vpop.f32.mrf.mxu0
      %v2536 = vadd.f32 %v2518, %v2535
      %v2537 = vpop.f32.mrf.mxu0
      %2538 = vdwg.mxu0
      %2539 = vmatpush.bf16.msra.mxu0 %v2350
      %2540 = vmatpush.bf16.msra.mxu0 %v2348
      %2541 = vmatpush.bf16.msra.mxu0 %v2346
      %2542 = vmatpush.bf16.msra.mxu0 %v2344
      %2543 = vmatpush.bf16.msra.mxu0 %v2342
      %2544 = vmatpush.bf16.msra.mxu0 %v2340
      %2545 = vmatpush.bf16.msra.mxu0 %v2338
      %2546 = vmatpush.bf16.msra.mxu0 %v2336
      %2547 = vmatmul.bf16.gmra.mxu0 %v2099
      %v2548 = vpop.f32.mrf.mxu0
      %v2549 = vadd.f32 %v2531, %v2548
      %v2550 = vpop.f32.mrf.mxu0
      %v2551 = vadd.f32 %v2533, %v2550
      %2552 = vmatmul.bf16.gmra.mxu0 %v2098
      %v2553 = vpop.f32.mrf.mxu0
      %v2554 = vadd.f32 %v2536, %v2553
      %v2555 = vpop.f32.mrf.mxu0
      %2556 = vdwg.mxu0
      %2557 = vmatpush.bf16.msra.mxu0 %v2366
      %2558 = vmatpush.bf16.msra.mxu0 %v2364
      %2559 = vmatpush.bf16.msra.mxu0 %v2362
      %2560 = vmatpush.bf16.msra.mxu0 %v2360
      %2561 = vmatpush.bf16.msra.mxu0 %v2358
      %2562 = vmatpush.bf16.msra.mxu0 %v2356
      %2563 = vmatpush.bf16.msra.mxu0 %v2354
      %2564 = vmatpush.bf16.msra.mxu0 %v2352
      %2565 = vmatmul.bf16.gmra.mxu0 %v2102
      %v2566 = vpop.f32.mrf.mxu0
      %v2567 = vadd.f32 %v2549, %v2566
      %v2568 = vpop.f32.mrf.mxu0
      %v2569 = vadd.f32 %v2551, %v2568
      %2570 = vmatmul.bf16.gmra.mxu0 %v2101
      %v2571 = vpop.f32.mrf.mxu0
      %v2572 = vadd.f32 %v2554, %v2571
      %v2573 = vpop.f32.mrf.mxu0
      %2574 = vdwg.mxu0
      %v2575 = vadd.f32 %v2007, %v2495
      %v2576 = vadd.f32 %v2008, %v2567
      %v2577 = vadd.f32 %v2009, %v2497
      %v2578 = vadd.f32 %v2010, %v2569
      %v2579 = vadd.f32 %v2011, %v2500
      %v2580 = vadd.f32 %v2012, %v2572
      %v2581 = vld [vmem:[%s2] sm:$0x3]
      %v2583 = vperm.slane %v2581, 0
      %v2584 = vperm.slane %v2581, 1
      %v2587 = vadd.f32 %v2575, %v2583
      %v2588 = vadd.f32 %v2576, %v2584
      %v2589 = vadd.f32 %v2577, %v2583
      %v2590 = vadd.f32 %v2578, %v2584
      %v2591 = vadd.f32 %v2579, %v2583
      %v2592 = vadd.f32 %v2580, %v2584
      %v2593 = vmul.f32 %v2587, 0.2
      %v2594 = vmul.f32 %v2588, 0.2
      %v2595 = vmul.f32 %v2589, 0.2
      %v2596 = vmul.f32 %v2590, 0.2
      %v2597 = vmul.f32 %v2591, 0.2
      %v2598 = vmul.f32 %v2592, 0.2
      %v2599 = vmax.f32 %v2587, %v2593
      %v2600 = vmax.f32 %v2588, %v2594
      %v2601 = vmax.f32 %v2589, %v2595
      %v2602 = vmax.f32 %v2590, %v2596
      %v2603 = vmax.f32 %v2591, %v2597
      %v2604 = vmax.f32 %v2592, %v2598
      %v2605 = vpack.c.bf16 %v2600, %v2599
      %v2606 = vpack.c.bf16 %v2602, %v2601
      %v2607 = vpack.c.bf16 %v2604, %v2603
      %2608 = vst [vmem:[%s170] sm:$0xff] %v2605
      %2609 = vst [vmem:[%s170 + $0x8] sm:$0xff] %v2606
      %2610 = vst [vmem:[%s170 + $0x10] sm:$0xff] %v2607
      %p2611 = scmp.lt.s32.totalorder %s14, 1
      %s2612 = scalar_select %p2611, %s14, 1
      %s2613 = smul.addr %s2612, 6
      %s2614 = smul.addr %s2613, 4
      %s2615 = scalar_lea.vmem %s3, %s2614
      // Predicated region
      $region33: #{encoder_forward.6} parent=31 // pred_check
        %p2616 = pneg %p100
      $region34: #{encoder_forward.6} parent=31 // pred_check_branch
        %2618 = sbr.rel (%p2616) target = $region36
      $region35: #{encoder_forward.6} parent=31 // pred_region
        _
      $region36: #{encoder_forward.6} parent=31 // pred_fallthru
        _
    $region32: #{encoder_forward.6} parent=5 // pred_fallthru
      _
    %p2619 = scmp.le.s32.totalorder 2, %s9
    // Predicated region
    $region37: #{encoder_forward.6} parent=5 // pred_check
      %p2620 = pneg %p2619
    $region38: #{encoder_forward.6} parent=5 // pred_check_branch
      %2622 = sbr.rel (%p2620) target = $region40
    $region39: #{encoder_forward.6} parent=5 // pred_region
      %s2623 = ssub.s32 %s9, 2
      // Predicated region
      $region41: #{encoder_forward.6} parent=39 // pred_check
        %p2624 = pneg %p106
      $region42: #{encoder_forward.6} parent=39 // pred_check_branch
        %2626 = sbr.rel (%p2624) target = $region44
      $region43: #{encoder_forward.6} parent=39 // pred_region
        %p2627 = scmp.lt.s32.totalorder %s15, 1
        %s2628 = scalar_select %p2627, %s15, 1
        %s2629 = smul.addr %s2628, 6
        %s2630 = smul.addr %s2629, 4
        %s2631 = scalar_lea.vmem %s3, %s2630
      $region44: #{encoder_forward.6} parent=39 // pred_fallthru
        _
    $region40: #{encoder_forward.6} parent=5 // pred_fallthru
      _
  $region6: #{encoder_forward.6} parent=0 // loop_footer
    %s13 = sadd.s32 1, %s9
  $region7: #{encoder_forward.6} parent=0 // loop_footer_branch
    %8 = sbr.rel target = $region3
  $region8: #{encoder_forward.6} parent=0 // loop_exit
    _

// kernel: encoder_forward.7
$region0: #{encoder_forward.7}
  #allocation0 [shape = 'u32[]', space=smem, size = 0x4, offset = 0x4, fixed_abs, tag = 'smem constant byte address 0x4 - core index']
  #allocation1 [shape = 'u32[72,128]{1,0:T(1,128)}', space=vmem, size = 0x9000, scoped, tag = 'internal scratch']
  %s0 = inlined_call_operand.vmem [shape: bf16[2,4096], index: 0, kind: input, shape index: {}]
  %s1 = inlined_call_operand.vmem [shape: bf16[4096,128], index: 1, kind: input, shape index: {}]
  %s2 = inlined_call_operand.vmem [shape: f32[1,128], index: 2, kind: input, shape index: {}]
  %s3 = inlined_call_operand.hbm [shape: f32[2,128], index: 3, kind: output, shape index: {}]
  %s4 = sld [smem:[#allocation0]]
  $region22: #{encoder_forward.7} parent=0
    _
  %s6 = ssub.s32 1, %s4
  %s7 = scalar_select 0, %s6, %s4
  $region1: #{encoder_forward.7} parent=0
    #allocation2 [shape = 'u8[1024]{0}', space=vmem, size = 0x400, scoped, tag = 'output window, operand 0, single buffered']
    #allocation3 [shape = 's32[1]{0}', space=sflag, size = 0x4, scoped, tag = 'scoped memory for encoder_forward.7']
    %8 = vsyncpa [#allocation3], 0
    // Predicated region
    $region2: #{encoder_forward.7} parent=1 // pred_check
      _
    $region3: #{encoder_forward.7} parent=1 // pred_check_branch
      %10 = sbr.rel (0) target = $region5
    $region4: #{encoder_forward.7} parent=1 // pred_region
      _
    $region5: #{encoder_forward.7} parent=1 // pred_fallthru
      _
    // Predicated region
    $region6: #{encoder_forward.7} parent=1 // pred_check
      _
    $region7: #{encoder_forward.7} parent=1 // pred_check_branch
      %12 = sbr.rel (0) target = $region9
    $region8: #{encoder_forward.7} parent=1 // pred_region
      _
    $region9: #{encoder_forward.7} parent=1 // pred_fallthru
      _
    // Predicated region
    $region10: #{encoder_forward.7} parent=1 // pred_check
      _
    $region11: #{encoder_forward.7} parent=1 // pred_check_branch
      %14 = sbr.rel (0) target = $region13
    $region12: #{encoder_forward.7} parent=1 // pred_region
      _
    $region13: #{encoder_forward.7} parent=1 // pred_fallthru
      _
    %v15 = vld [vmem:[%s0] sm:$0xff]
    %v16 = vld [vmem:[%s0 + $0x8] sm:$0xff]
    %v17 = vld [vmem:[%s0 + $0x10] sm:$0xff]
    %v18 = vld [vmem:[%s0 + $0x18] sm:$0xff]
    %v19 = vld [vmem:[%s1] sm:$0xf]
    %v20 = vld [vmem:[%s1 + $0x4] sm:$0xf]
    %v21 = vld [vmem:[%s1 + $0x8] sm:$0xf]
    %v22 = vld [vmem:[%s1 + $0xc] sm:$0xf]
    %v23 = vld [vmem:[%s1 + $0x10] sm:$0xf]
    %v24 = vld [vmem:[%s1 + $0x14] sm:$0xf]
    %v25 = vld [vmem:[%s1 + $0x18] sm:$0xf]
    %v26 = vld [vmem:[%s1 + $0x1c] sm:$0xf]
    %v27 = vld [vmem:[%s1 + $0x20] sm:$0xf]
    %v28 = vld [vmem:[%s1 + $0x24] sm:$0xf]
    %v29 = vld [vmem:[%s1 + $0x28] sm:$0xf]
    %v30 = vld [vmem:[%s1 + $0x2c] sm:$0xf]
    %v31 = vld [vmem:[%s1 + $0x30] sm:$0xf]
    %v32 = vld [vmem:[%s1 + $0x34] sm:$0xf]
    %v33 = vld [vmem:[%s1 + $0x38] sm:$0xf]
    %v34 = vld [vmem:[%s1 + $0x3c] sm:$0xf]
    %v35 = vld [vmem:[%s1 + $0x40] sm:$0xf]
    %v36 = vld [vmem:[%s1 + $0x44] sm:$0xf]
    %v37 = vld [vmem:[%s1 + $0x48] sm:$0xf]
    %v38 = vld [vmem:[%s1 + $0x4c] sm:$0xf]
    %v39 = vld [vmem:[%s1 + $0x50] sm:$0xf]
    %v40 = vld [vmem:[%s1 + $0x54] sm:$0xf]
    %v41 = vld [vmem:[%s1 + $0x58] sm:$0xf]
    %v42 = vld [vmem:[%s1 + $0x5c] sm:$0xf]
    %v43 = vld [vmem:[%s1 + $0x60] sm:$0xf]
    %v44 = vld [vmem:[%s1 + $0x64] sm:$0xf]
    %v45 = vld [vmem:[%s1 + $0x68] sm:$0xf]
    %v46 = vld [vmem:[%s1 + $0x6c] sm:$0xf]
    %v47 = vld [vmem:[%s1 + $0x70] sm:$0xf]
    %v48 = vld [vmem:[%s1 + $0x74] sm:$0xf]
    %v49 = vld [vmem:[%s1 + $0x78] sm:$0xf]
    %v50 = vld [vmem:[%s1 + $0x7c] sm:$0xf]
    %v51 = vld [vmem:[%s1 + $0x80] sm:$0xf]
    %v52 = vld [vmem:[%s1 + $0x84] sm:$0xf]
    %v53 = vld [vmem:[%s1 + $0x88] sm:$0xf]
    %v54 = vld [vmem:[%s1 + $0x8c] sm:$0xf]
    %v55 = vld [vmem:[%s1 + $0x90] sm:$0xf]
    %v56 = vld [vmem:[%s1 + $0x94] sm:$0xf]
    %v57 = vld [vmem:[%s1 + $0x98] sm:$0xf]
    %v58 = vld [vmem:[%s1 + $0x9c] sm:$0xf]
    %v59 = vld [vmem:[%s1 + $0xa0] sm:$0xf]
    %v60 = vld [vmem:[%s1 + $0xa4] sm:$0xf]
    %v61 = vld [vmem:[%s1 + $0xa8] sm:$0xf]
    %v62 = vld [vmem:[%s1 + $0xac] sm:$0xf]
    %v63 = vld [vmem:[%s1 + $0xb0] sm:$0xf]
    %v64 = vld [vmem:[%s1 + $0xb4] sm:$0xf]
    %v65 = vld [vmem:[%s1 + $0xb8] sm:$0xf]
    %v66 = vld [vmem:[%s1 + $0xbc] sm:$0xf]
    %v67 = vld [vmem:[%s1 + $0xc0] sm:$0xf]
    %v68 = vld [vmem:[%s1 + $0xc4] sm:$0xf]
    %v69 = vld [vmem:[%s1 + $0xc8] sm:$0xf]
    %v70 = vld [vmem:[%s1 + $0xcc] sm:$0xf]
    %v71 = vld [vmem:[%s1 + $0xd0] sm:$0xf]
    %v72 = vld [vmem:[%s1 + $0xd4] sm:$0xf]
    %v73 = vld [vmem:[%s1 + $0xd8] sm:$0xf]
    %v74 = vld [vmem:[%s1 + $0xdc] sm:$0xf]
    %v75 = vld [vmem:[%s1 + $0xe0] sm:$0xf]
    %v76 = vld [vmem:[%s1 + $0xe4] sm:$0xf]
    %v77 = vld [vmem:[%s1 + $0xe8] sm:$0xf]
    %v78 = vld [vmem:[%s1 + $0xec] sm:$0xf]
    %v79 = vld [vmem:[%s1 + $0xf0] sm:$0xf]
    %v80 = vld [vmem:[%s1 + $0xf4] sm:$0xf]
    %v81 = vld [vmem:[%s1 + $0xf8] sm:$0xf]
    %v82 = vld [vmem:[%s1 + $0xfc] sm:$0xf]
    %v83 = vld [vmem:[%s1 + $0x100] sm:$0xf]
    %v84 = vld [vmem:[%s1 + $0x104] sm:$0xf]
    %v85 = vld [vmem:[%s1 + $0x108] sm:$0xf]
    %v86 = vld [vmem:[%s1 + $0x10c] sm:$0xf]
    %v87 = vld [vmem:[%s1 + $0x110] sm:$0xf]
    %v88 = vld [vmem:[%s1 + $0x114] sm:$0xf]
    %v89 = vld [vmem:[%s1 + $0x118] sm:$0xf]
    %v90 = vld [vmem:[%s1 + $0x11c] sm:$0xf]
    %v91 = vld [vmem:[%s1 + $0x120] sm:$0xf]
    %v92 = vld [vmem:[%s1 + $0x124] sm:$0xf]
    %v93 = vld [vmem:[%s1 + $0x128] sm:$0xf]
    %v94 = vld [vmem:[%s1 + $0x12c] sm:$0xf]
    %v95 = vld [vmem:[%s1 + $0x130] sm:$0xf]
    %v96 = vld [vmem:[%s1 + $0x134] sm:$0xf]
    %v97 = vld [vmem:[%s1 + $0x138] sm:$0xf]
    %v98 = vld [vmem:[%s1 + $0x13c] sm:$0xf]
    %v99 = vld [vmem:[%s1 + $0x140] sm:$0xf]
    %v100 = vld [vmem:[%s1 + $0x144] sm:$0xf]
    %v101 = vld [vmem:[%s1 + $0x148] sm:$0xf]
    %v102 = vld [vmem:[%s1 + $0x14c] sm:$0xf]
    %v103 = vld [vmem:[%s1 + $0x150] sm:$0xf]
    %v104 = vld [vmem:[%s1 + $0x154] sm:$0xf]
    %v105 = vld [vmem:[%s1 + $0x158] sm:$0xf]
    %v106 = vld [vmem:[%s1 + $0x15c] sm:$0xf]
    %v107 = vld [vmem:[%s1 + $0x160] sm:$0xf]
    %v108 = vld [vmem:[%s1 + $0x164] sm:$0xf]
    %v109 = vld [vmem:[%s1 + $0x168] sm:$0xf]
    %v110 = vld [vmem:[%s1 + $0x16c] sm:$0xf]
    %v111 = vld [vmem:[%s1 + $0x170] sm:$0xf]
    %v112 = vld [vmem:[%s1 + $0x174] sm:$0xf]
    %v113 = vld [vmem:[%s1 + $0x178] sm:$0xf]
    %v114 = vld [vmem:[%s1 + $0x17c] sm:$0xf]
    %v115 = vld [vmem:[%s1 + $0x180] sm:$0xf]
    %v116 = vld [vmem:[%s1 + $0x184] sm:$0xf]
    %v117 = vld [vmem:[%s1 + $0x188] sm:$0xf]
    %v118 = vld [vmem:[%s1 + $0x18c] sm:$0xf]
    %v119 = vld [vmem:[%s1 + $0x190] sm:$0xf]
    %v120 = vld [vmem:[%s1 + $0x194] sm:$0xf]
    %v121 = vld [vmem:[%s1 + $0x198] sm:$0xf]
    %v122 = vld [vmem:[%s1 + $0x19c] sm:$0xf]
    %v123 = vld [vmem:[%s1 + $0x1a0] sm:$0xf]
    %v124 = vld [vmem:[%s1 + $0x1a4] sm:$0xf]
    %v125 = vld [vmem:[%s1 + $0x1a8] sm:$0xf]
    %v126 = vld [vmem:[%s1 + $0x1ac] sm:$0xf]
    %v127 = vld [vmem:[%s1 + $0x1b0] sm:$0xf]
    %v128 = vld [vmem:[%s1 + $0x1b4] sm:$0xf]
    %v129 = vld [vmem:[%s1 + $0x1b8] sm:$0xf]
    %v130 = vld [vmem:[%s1 + $0x1bc] sm:$0xf]
    %v131 = vld [vmem:[%s1 + $0x1c0] sm:$0xf]
    %v132 = vld [vmem:[%s1 + $0x1c4] sm:$0xf]
    %v133 = vld [vmem:[%s1 + $0x1c8] sm:$0xf]
    %v134 = vld [vmem:[%s1 + $0x1cc] sm:$0xf]
    %v135 = vld [vmem:[%s1 + $0x1d0] sm:$0xf]
    %v136 = vld [vmem:[%s1 + $0x1d4] sm:$0xf]
    %v137 = vld [vmem:[%s1 + $0x1d8] sm:$0xf]
    %v138 = vld [vmem:[%s1 + $0x1dc] sm:$0xf]
    %v139 = vld [vmem:[%s1 + $0x1e0] sm:$0xf]
    %v140 = vld [vmem:[%s1 + $0x1e4] sm:$0xf]
    %v141 = vld [vmem:[%s1 + $0x1e8] sm:$0xf]
    %v142 = vld [vmem:[%s1 + $0x1ec] sm:$0xf]
    %v143 = vld [vmem:[%s1 + $0x1f0] sm:$0xf]
    %v144 = vld [vmem:[%s1 + $0x1f4] sm:$0xf]
    %v145 = vld [vmem:[%s1 + $0x1f8] sm:$0xf]
    %v146 = vld [vmem:[%s1 + $0x1fc] sm:$0xf]
    %v147 = vld [vmem:[%s1 + $0x200] sm:$0xf]
    %v148 = vld [vmem:[%s1 + $0x204] sm:$0xf]
    %v149 = vld [vmem:[%s1 + $0x208] sm:$0xf]
    %v150 = vld [vmem:[%s1 + $0x20c] sm:$0xf]
    %v151 = vld [vmem:[%s1 + $0x210] sm:$0xf]
    %v152 = vld [vmem:[%s1 + $0x214] sm:$0xf]
    %v153 = vld [vmem:[%s1 + $0x218] sm:$0xf]
    %v154 = vld [vmem:[%s1 + $0x21c] sm:$0xf]
    %v155 = vld [vmem:[%s1 + $0x220] sm:$0xf]
    %v156 = vld [vmem:[%s1 + $0x224] sm:$0xf]
    %v157 = vld [vmem:[%s1 + $0x228] sm:$0xf]
    %v158 = vld [vmem:[%s1 + $0x22c] sm:$0xf]
    %v159 = vld [vmem:[%s1 + $0x230] sm:$0xf]
    %v160 = vld [vmem:[%s1 + $0x234] sm:$0xf]
    %v161 = vld [vmem:[%s1 + $0x238] sm:$0xf]
    %v162 = vld [vmem:[%s1 + $0x23c] sm:$0xf]
    %v163 = vld [vmem:[%s1 + $0x240] sm:$0xf]
    %v164 = vld [vmem:[%s1 + $0x244] sm:$0xf]
    %v165 = vld [vmem:[%s1 + $0x248] sm:$0xf]
    %v166 = vld [vmem:[%s1 + $0x24c] sm:$0xf]
    %v167 = vld [vmem:[%s1 + $0x250] sm:$0xf]
    %v168 = vld [vmem:[%s1 + $0x254] sm:$0xf]
    %v169 = vld [vmem:[%s1 + $0x258] sm:$0xf]
    %v170 = vld [vmem:[%s1 + $0x25c] sm:$0xf]
    %v171 = vld [vmem:[%s1 + $0x260] sm:$0xf]
    %v172 = vld [vmem:[%s1 + $0x264] sm:$0xf]
    %v173 = vld [vmem:[%s1 + $0x268] sm:$0xf]
    %v174 = vld [vmem:[%s1 + $0x26c] sm:$0xf]
    %v175 = vld [vmem:[%s1 + $0x270] sm:$0xf]
    %v176 = vld [vmem:[%s1 + $0x274] sm:$0xf]
    %v177 = vld [vmem:[%s1 + $0x278] sm:$0xf]
    %v178 = vld [vmem:[%s1 + $0x27c] sm:$0xf]
    %v179 = vld [vmem:[%s1 + $0x280] sm:$0xf]
    %v180 = vld [vmem:[%s1 + $0x284] sm:$0xf]
    %v181 = vld [vmem:[%s1 + $0x288] sm:$0xf]
    %v182 = vld [vmem:[%s1 + $0x28c] sm:$0xf]
    %v183 = vld [vmem:[%s1 + $0x290] sm:$0xf]
    %v184 = vld [vmem:[%s1 + $0x294] sm:$0xf]
    %v185 = vld [vmem:[%s1 + $0x298] sm:$0xf]
    %v186 = vld [vmem:[%s1 + $0x29c] sm:$0xf]
    %v187 = vld [vmem:[%s1 + $0x2a0] sm:$0xf]
    %v188 = vld [vmem:[%s1 + $0x2a4] sm:$0xf]
    %v189 = vld [vmem:[%s1 + $0x2a8] sm:$0xf]
    %v190 = vld [vmem:[%s1 + $0x2ac] sm:$0xf]
    %v191 = vld [vmem:[%s1 + $0x2b0] sm:$0xf]
    %v192 = vld [vmem:[%s1 + $0x2b4] sm:$0xf]
    %v193 = vld [vmem:[%s1 + $0x2b8] sm:$0xf]
    %v194 = vld [vmem:[%s1 + $0x2bc] sm:$0xf]
    %v195 = vld [vmem:[%s1 + $0x2c0] sm:$0xf]
    %v196 = vld [vmem:[%s1 + $0x2c4] sm:$0xf]
    %v197 = vld [vmem:[%s1 + $0x2c8] sm:$0xf]
    %v198 = vld [vmem:[%s1 + $0x2cc] sm:$0xf]
    %v199 = vld [vmem:[%s1 + $0x2d0] sm:$0xf]
    %v200 = vld [vmem:[%s1 + $0x2d4] sm:$0xf]
    %v201 = vld [vmem:[%s1 + $0x2d8] sm:$0xf]
    %v202 = vld [vmem:[%s1 + $0x2dc] sm:$0xf]
    %v203 = vld [vmem:[%s1 + $0x2e0] sm:$0xf]
    %v204 = vld [vmem:[%s1 + $0x2e4] sm:$0xf]
    %v205 = vld [vmem:[%s1 + $0x2e8] sm:$0xf]
    %v206 = vld [vmem:[%s1 + $0x2ec] sm:$0xf]
    %v207 = vld [vmem:[%s1 + $0x2f0] sm:$0xf]
    %v208 = vld [vmem:[%s1 + $0x2f4] sm:$0xf]
    %v209 = vld [vmem:[%s1 + $0x2f8] sm:$0xf]
    %v210 = vld [vmem:[%s1 + $0x2fc] sm:$0xf]
    %v211 = vld [vmem:[%s1 + $0x300] sm:$0xf]
    %v212 = vld [vmem:[%s1 + $0x304] sm:$0xf]
    %v213 = vld [vmem:[%s1 + $0x308] sm:$0xf]
    %v214 = vld [vmem:[%s1 + $0x30c] sm:$0xf]
    %v215 = vld [vmem:[%s1 + $0x310] sm:$0xf]
    %v216 = vld [vmem:[%s1 + $0x314] sm:$0xf]
    %v217 = vld [vmem:[%s1 + $0x318] sm:$0xf]
    %v218 = vld [vmem:[%s1 + $0x31c] sm:$0xf]
    %v219 = vld [vmem:[%s1 + $0x320] sm:$0xf]
    %v220 = vld [vmem:[%s1 + $0x324] sm:$0xf]
    %v221 = vld [vmem:[%s1 + $0x328] sm:$0xf]
    %v222 = vld [vmem:[%s1 + $0x32c] sm:$0xf]
    %v223 = vld [vmem:[%s1 + $0x330] sm:$0xf]
    %v224 = vld [vmem:[%s1 + $0x334] sm:$0xf]
    %v225 = vld [vmem:[%s1 + $0x338] sm:$0xf]
    %v226 = vld [vmem:[%s1 + $0x33c] sm:$0xf]
    %v227 = vld [vmem:[%s1 + $0x340] sm:$0xf]
    %v228 = vld [vmem:[%s1 + $0x344] sm:$0xf]
    %v229 = vld [vmem:[%s1 + $0x348] sm:$0xf]
    %v230 = vld [vmem:[%s1 + $0x34c] sm:$0xf]
    %v231 = vld [vmem:[%s1 + $0x350] sm:$0xf]
    %v232 = vld [vmem:[%s1 + $0x354] sm:$0xf]
    %v233 = vld [vmem:[%s1 + $0x358] sm:$0xf]
    %v234 = vld [vmem:[%s1 + $0x35c] sm:$0xf]
    %v235 = vld [vmem:[%s1 + $0x360] sm:$0xf]
    %v236 = vld [vmem:[%s1 + $0x364] sm:$0xf]
    %v237 = vld [vmem:[%s1 + $0x368] sm:$0xf]
    %v238 = vld [vmem:[%s1 + $0x36c] sm:$0xf]
    %v239 = vld [vmem:[%s1 + $0x370] sm:$0xf]
    %v240 = vld [vmem:[%s1 + $0x374] sm:$0xf]
    %v241 = vld [vmem:[%s1 + $0x378] sm:$0xf]
    %v242 = vld [vmem:[%s1 + $0x37c] sm:$0xf]
    %v243 = vld [vmem:[%s1 + $0x380] sm:$0xf]
    %v244 = vld [vmem:[%s1 + $0x384] sm:$0xf]
    %v245 = vld [vmem:[%s1 + $0x388] sm:$0xf]
    %v246 = vld [vmem:[%s1 + $0x38c] sm:$0xf]
    %v247 = vld [vmem:[%s1 + $0x390] sm:$0xf]
    %v248 = vld [vmem:[%s1 + $0x394] sm:$0xf]
    %v249 = vld [vmem:[%s1 + $0x398] sm:$0xf]
    %v250 = vld [vmem:[%s1 + $0x39c] sm:$0xf]
    %v251 = vld [vmem:[%s1 + $0x3a0] sm:$0xf]
    %v252 = vld [vmem:[%s1 + $0x3a4] sm:$0xf]
    %v253 = vld [vmem:[%s1 + $0x3a8] sm:$0xf]
    %v254 = vld [vmem:[%s1 + $0x3ac] sm:$0xf]
    %v255 = vld [vmem:[%s1 + $0x3b0] sm:$0xf]
    %v256 = vld [vmem:[%s1 + $0x3b4] sm:$0xf]
    %v257 = vld [vmem:[%s1 + $0x3b8] sm:$0xf]
    %v258 = vld [vmem:[%s1 + $0x3bc] sm:$0xf]
    %v259 = vld [vmem:[%s1 + $0x3c0] sm:$0xf]
    %v260 = vld [vmem:[%s1 + $0x3c4] sm:$0xf]
    %v261 = vld [vmem:[%s1 + $0x3c8] sm:$0xf]
    %v262 = vld [vmem:[%s1 + $0x3cc] sm:$0xf]
    %v263 = vld [vmem:[%s1 + $0x3d0] sm:$0xf]
    %v264 = vld [vmem:[%s1 + $0x3d4] sm:$0xf]
    %v265 = vld [vmem:[%s1 + $0x3d8] sm:$0xf]
    %v266 = vld [vmem:[%s1 + $0x3dc] sm:$0xf]
    %v267 = vld [vmem:[%s1 + $0x3e0] sm:$0xf]
    %v268 = vld [vmem:[%s1 + $0x3e4] sm:$0xf]
    %v269 = vld [vmem:[%s1 + $0x3e8] sm:$0xf]
    %v270 = vld [vmem:[%s1 + $0x3ec] sm:$0xf]
    %v271 = vld [vmem:[%s1 + $0x3f0] sm:$0xf]
    %v272 = vld [vmem:[%s1 + $0x3f4] sm:$0xf]
    %v273 = vld [vmem:[%s1 + $0x3f8] sm:$0xf]
    %v274 = vld [vmem:[%s1 + $0x3fc] sm:$0xf]
    %v275 = vld [vmem:[%s1 + $0x400] sm:$0xf]
    %v276 = vld [vmem:[%s1 + $0x404] sm:$0xf]
    %v277 = vld [vmem:[%s1 + $0x408] sm:$0xf]
    %v278 = vld [vmem:[%s1 + $0x40c] sm:$0xf]
    %v279 = vld [vmem:[%s1 + $0x410] sm:$0xf]
    %v280 = vld [vmem:[%s1 + $0x414] sm:$0xf]
    %v281 = vld [vmem:[%s1 + $0x418] sm:$0xf]
    %v282 = vld [vmem:[%s1 + $0x41c] sm:$0xf]
    %v283 = vld [vmem:[%s1 + $0x420] sm:$0xf]
    %v284 = vld [vmem:[%s1 + $0x424] sm:$0xf]
    %v285 = vld [vmem:[%s1 + $0x428] sm:$0xf]
    %v286 = vld [vmem:[%s1 + $0x42c] sm:$0xf]
    %v287 = vld [vmem:[%s1 + $0x430] sm:$0xf]
    %v288 = vld [vmem:[%s1 + $0x434] sm:$0xf]
    %v289 = vld [vmem:[%s1 + $0x438] sm:$0xf]
    %v290 = vld [vmem:[%s1 + $0x43c] sm:$0xf]
    %v291 = vld [vmem:[%s1 + $0x440] sm:$0xf]
    %v292 = vld [vmem:[%s1 + $0x444] sm:$0xf]
    %v293 = vld [vmem:[%s1 + $0x448] sm:$0xf]
    %v294 = vld [vmem:[%s1 + $0x44c] sm:$0xf]
    %v295 = vld [vmem:[%s1 + $0x450] sm:$0xf]
    %v296 = vld [vmem:[%s1 + $0x454] sm:$0xf]
    %v297 = vld [vmem:[%s1 + $0x458] sm:$0xf]
    %v298 = vld [vmem:[%s1 + $0x45c] sm:$0xf]
    %v299 = vld [vmem:[%s1 + $0x460] sm:$0xf]
    %v300 = vld [vmem:[%s1 + $0x464] sm:$0xf]
    %v301 = vld [vmem:[%s1 + $0x468] sm:$0xf]
    %v302 = vld [vmem:[%s1 + $0x46c] sm:$0xf]
    %v303 = vld [vmem:[%s1 + $0x470] sm:$0xf]
    %v304 = vld [vmem:[%s1 + $0x474] sm:$0xf]
    %v305 = vld [vmem:[%s1 + $0x478] sm:$0xf]
    %v306 = vld [vmem:[%s1 + $0x47c] sm:$0xf]
    %v307 = vld [vmem:[%s1 + $0x480] sm:$0xf]
    %v308 = vld [vmem:[%s1 + $0x484] sm:$0xf]
    %v309 = vld [vmem:[%s1 + $0x488] sm:$0xf]
    %v310 = vld [vmem:[%s1 + $0x48c] sm:$0xf]
    %v311 = vld [vmem:[%s1 + $0x490] sm:$0xf]
    %v312 = vld [vmem:[%s1 + $0x494] sm:$0xf]
    %v313 = vld [vmem:[%s1 + $0x498] sm:$0xf]
    %v314 = vld [vmem:[%s1 + $0x49c] sm:$0xf]
    %v315 = vld [vmem:[%s1 + $0x4a0] sm:$0xf]
    %v316 = vld [vmem:[%s1 + $0x4a4] sm:$0xf]
    %v317 = vld [vmem:[%s1 + $0x4a8] sm:$0xf]
    %v318 = vld [vmem:[%s1 + $0x4ac] sm:$0xf]
    %v319 = vld [vmem:[%s1 + $0x4b0] sm:$0xf]
    %v320 = vld [vmem:[%s1 + $0x4b4] sm:$0xf]
    %v321 = vld [vmem:[%s1 + $0x4b8] sm:$0xf]
    %v322 = vld [vmem:[%s1 + $0x4bc] sm:$0xf]
    %v323 = vld [vmem:[%s1 + $0x4c0] sm:$0xf]
    %v324 = vld [vmem:[%s1 + $0x4c4] sm:$0xf]
    %v325 = vld [vmem:[%s1 + $0x4c8] sm:$0xf]
    %v326 = vld [vmem:[%s1 + $0x4cc] sm:$0xf]
    %v327 = vld [vmem:[%s1 + $0x4d0] sm:$0xf]
    %v328 = vld [vmem:[%s1 + $0x4d4] sm:$0xf]
    %v329 = vld [vmem:[%s1 + $0x4d8] sm:$0xf]
    %v330 = vld [vmem:[%s1 + $0x4dc] sm:$0xf]
    %v331 = vld [vmem:[%s1 + $0x4e0] sm:$0xf]
    %v332 = vld [vmem:[%s1 + $0x4e4] sm:$0xf]
    %v333 = vld [vmem:[%s1 + $0x4e8] sm:$0xf]
    %v334 = vld [vmem:[%s1 + $0x4ec] sm:$0xf]
    %v335 = vld [vmem:[%s1 + $0x4f0] sm:$0xf]
    %v336 = vld [vmem:[%s1 + $0x4f4] sm:$0xf]
    %v337 = vld [vmem:[%s1 + $0x4f8] sm:$0xf]
    %v338 = vld [vmem:[%s1 + $0x4fc] sm:$0xf]
    %v339 = vld [vmem:[%s1 + $0x500] sm:$0xf]
    %v340 = vld [vmem:[%s1 + $0x504] sm:$0xf]
    %v341 = vld [vmem:[%s1 + $0x508] sm:$0xf]
    %v342 = vld [vmem:[%s1 + $0x50c] sm:$0xf]
    %v343 = vld [vmem:[%s1 + $0x510] sm:$0xf]
    %v344 = vld [vmem:[%s1 + $0x514] sm:$0xf]
    %v345 = vld [vmem:[%s1 + $0x518] sm:$0xf]
    %v346 = vld [vmem:[%s1 + $0x51c] sm:$0xf]
    %v347 = vld [vmem:[%s1 + $0x520] sm:$0xf]
    %v348 = vld [vmem:[%s1 + $0x524] sm:$0xf]
    %v349 = vld [vmem:[%s1 + $0x528] sm:$0xf]
    %v350 = vld [vmem:[%s1 + $0x52c] sm:$0xf]
    %v351 = vld [vmem:[%s1 + $0x530] sm:$0xf]
    %v352 = vld [vmem:[%s1 + $0x534] sm:$0xf]
    %v353 = vld [vmem:[%s1 + $0x538] sm:$0xf]
    %v354 = vld [vmem:[%s1 + $0x53c] sm:$0xf]
    %v355 = vld [vmem:[%s1 + $0x540] sm:$0xf]
    %v356 = vld [vmem:[%s1 + $0x544] sm:$0xf]
    %v357 = vld [vmem:[%s1 + $0x548] sm:$0xf]
    %v358 = vld [vmem:[%s1 + $0x54c] sm:$0xf]
    %v359 = vld [vmem:[%s1 + $0x550] sm:$0xf]
    %v360 = vld [vmem:[%s1 + $0x554] sm:$0xf]
    %v361 = vld [vmem:[%s1 + $0x558] sm:$0xf]
    %v362 = vld [vmem:[%s1 + $0x55c] sm:$0xf]
    %v363 = vld [vmem:[%s1 + $0x560] sm:$0xf]
    %v364 = vld [vmem:[%s1 + $0x564] sm:$0xf]
    %v365 = vld [vmem:[%s1 + $0x568] sm:$0xf]
    %v366 = vld [vmem:[%s1 + $0x56c] sm:$0xf]
    %v367 = vld [vmem:[%s1 + $0x570] sm:$0xf]
    %v368 = vld [vmem:[%s1 + $0x574] sm:$0xf]
    %v369 = vld [vmem:[%s1 + $0x578] sm:$0xf]
    %v370 = vld [vmem:[%s1 + $0x57c] sm:$0xf]
    %v371 = vld [vmem:[%s1 + $0x580] sm:$0xf]
    %v372 = vld [vmem:[%s1 + $0x584] sm:$0xf]
    %v373 = vld [vmem:[%s1 + $0x588] sm:$0xf]
    %v374 = vld [vmem:[%s1 + $0x58c] sm:$0xf]
    %v375 = vld [vmem:[%s1 + $0x590] sm:$0xf]
    %v376 = vld [vmem:[%s1 + $0x594] sm:$0xf]
    %v377 = vld [vmem:[%s1 + $0x598] sm:$0xf]
    %v378 = vld [vmem:[%s1 + $0x59c] sm:$0xf]
    %v379 = vld [vmem:[%s1 + $0x5a0] sm:$0xf]
    %v380 = vld [vmem:[%s1 + $0x5a4] sm:$0xf]
    %v381 = vld [vmem:[%s1 + $0x5a8] sm:$0xf]
    %v382 = vld [vmem:[%s1 + $0x5ac] sm:$0xf]
    %v383 = vld [vmem:[%s1 + $0x5b0] sm:$0xf]
    %v384 = vld [vmem:[%s1 + $0x5b4] sm:$0xf]
    %v385 = vld [vmem:[%s1 + $0x5b8] sm:$0xf]
    %v386 = vld [vmem:[%s1 + $0x5bc] sm:$0xf]
    %v387 = vld [vmem:[%s1 + $0x5c0] sm:$0xf]
    %v388 = vld [vmem:[%s1 + $0x5c4] sm:$0xf]
    %v389 = vld [vmem:[%s1 + $0x5c8] sm:$0xf]
    %v390 = vld [vmem:[%s1 + $0x5cc] sm:$0xf]
    %v391 = vld [vmem:[%s1 + $0x5d0] sm:$0xf]
    %v392 = vld [vmem:[%s1 + $0x5d4] sm:$0xf]
    %v393 = vld [vmem:[%s1 + $0x5d8] sm:$0xf]
    %v394 = vld [vmem:[%s1 + $0x5dc] sm:$0xf]
    %v395 = vld [vmem:[%s1 + $0x5e0] sm:$0xf]
    %v396 = vld [vmem:[%s1 + $0x5e4] sm:$0xf]
    %v397 = vld [vmem:[%s1 + $0x5e8] sm:$0xf]
    %v398 = vld [vmem:[%s1 + $0x5ec] sm:$0xf]
    %v399 = vld [vmem:[%s1 + $0x5f0] sm:$0xf]
    %v400 = vld [vmem:[%s1 + $0x5f4] sm:$0xf]
    %v401 = vld [vmem:[%s1 + $0x5f8] sm:$0xf]
    %v402 = vld [vmem:[%s1 + $0x5fc] sm:$0xf]
    %v403 = vld [vmem:[%s1 + $0x600] sm:$0xf]
    %v404 = vld [vmem:[%s1 + $0x604] sm:$0xf]
    %v405 = vld [vmem:[%s1 + $0x608] sm:$0xf]
    %v406 = vld [vmem:[%s1 + $0x60c] sm:$0xf]
    %v407 = vld [vmem:[%s1 + $0x610] sm:$0xf]
    %v408 = vld [vmem:[%s1 + $0x614] sm:$0xf]
    %v409 = vld [vmem:[%s1 + $0x618] sm:$0xf]
    %v410 = vld [vmem:[%s1 + $0x61c] sm:$0xf]
    %v411 = vld [vmem:[%s1 + $0x620] sm:$0xf]
    %v412 = vld [vmem:[%s1 + $0x624] sm:$0xf]
    %v413 = vld [vmem:[%s1 + $0x628] sm:$0xf]
    %v414 = vld [vmem:[%s1 + $0x62c] sm:$0xf]
    %v415 = vld [vmem:[%s1 + $0x630] sm:$0xf]
    %v416 = vld [vmem:[%s1 + $0x634] sm:$0xf]
    %v417 = vld [vmem:[%s1 + $0x638] sm:$0xf]
    %v418 = vld [vmem:[%s1 + $0x63c] sm:$0xf]
    %v419 = vld [vmem:[%s1 + $0x640] sm:$0xf]
    %v420 = vld [vmem:[%s1 + $0x644] sm:$0xf]
    %v421 = vld [vmem:[%s1 + $0x648] sm:$0xf]
    %v422 = vld [vmem:[%s1 + $0x64c] sm:$0xf]
    %v423 = vld [vmem:[%s1 + $0x650] sm:$0xf]
    %v424 = vld [vmem:[%s1 + $0x654] sm:$0xf]
    %v425 = vld [vmem:[%s1 + $0x658] sm:$0xf]
    %v426 = vld [vmem:[%s1 + $0x65c] sm:$0xf]
    %v427 = vld [vmem:[%s1 + $0x660] sm:$0xf]
    %v428 = vld [vmem:[%s1 + $0x664] sm:$0xf]
    %v429 = vld [vmem:[%s1 + $0x668] sm:$0xf]
    %v430 = vld [vmem:[%s1 + $0x66c] sm:$0xf]
    %v431 = vld [vmem:[%s1 + $0x670] sm:$0xf]
    %v432 = vld [vmem:[%s1 + $0x674] sm:$0xf]
    %v433 = vld [vmem:[%s1 + $0x678] sm:$0xf]
    %v434 = vld [vmem:[%s1 + $0x67c] sm:$0xf]
    %v435 = vld [vmem:[%s1 + $0x680] sm:$0xf]
    %v436 = vld [vmem:[%s1 + $0x684] sm:$0xf]
    %v437 = vld [vmem:[%s1 + $0x688] sm:$0xf]
    %v438 = vld [vmem:[%s1 + $0x68c] sm:$0xf]
    %v439 = vld [vmem:[%s1 + $0x690] sm:$0xf]
    %v440 = vld [vmem:[%s1 + $0x694] sm:$0xf]
    %v441 = vld [vmem:[%s1 + $0x698] sm:$0xf]
    %v442 = vld [vmem:[%s1 + $0x69c] sm:$0xf]
    %v443 = vld [vmem:[%s1 + $0x6a0] sm:$0xf]
    %v444 = vld [vmem:[%s1 + $0x6a4] sm:$0xf]
    %v445 = vld [vmem:[%s1 + $0x6a8] sm:$0xf]
    %v446 = vld [vmem:[%s1 + $0x6ac] sm:$0xf]
    %v447 = vld [vmem:[%s1 + $0x6b0] sm:$0xf]
    %v448 = vld [vmem:[%s1 + $0x6b4] sm:$0xf]
    %v449 = vld [vmem:[%s1 + $0x6b8] sm:$0xf]
    %v450 = vld [vmem:[%s1 + $0x6bc] sm:$0xf]
    %v451 = vld [vmem:[%s1 + $0x6c0] sm:$0xf]
    %v452 = vld [vmem:[%s1 + $0x6c4] sm:$0xf]
    %v453 = vld [vmem:[%s1 + $0x6c8] sm:$0xf]
    %v454 = vld [vmem:[%s1 + $0x6cc] sm:$0xf]
    %v455 = vld [vmem:[%s1 + $0x6d0] sm:$0xf]
    %v456 = vld [vmem:[%s1 + $0x6d4] sm:$0xf]
    %v457 = vld [vmem:[%s1 + $0x6d8] sm:$0xf]
    %v458 = vld [vmem:[%s1 + $0x6dc] sm:$0xf]
    %v459 = vld [vmem:[%s1 + $0x6e0] sm:$0xf]
    %v460 = vld [vmem:[%s1 + $0x6e4] sm:$0xf]
    %v461 = vld [vmem:[%s1 + $0x6e8] sm:$0xf]
    %v462 = vld [vmem:[%s1 + $0x6ec] sm:$0xf]
    %v463 = vld [vmem:[%s1 + $0x6f0] sm:$0xf]
    %v464 = vld [vmem:[%s1 + $0x6f4] sm:$0xf]
    %v465 = vld [vmem:[%s1 + $0x6f8] sm:$0xf]
    %v466 = vld [vmem:[%s1 + $0x6fc] sm:$0xf]
    %v467 = vld [vmem:[%s1 + $0x700] sm:$0xf]
    %v468 = vld [vmem:[%s1 + $0x704] sm:$0xf]
    %v469 = vld [vmem:[%s1 + $0x708] sm:$0xf]
    %v470 = vld [vmem:[%s1 + $0x70c] sm:$0xf]
    %v471 = vld [vmem:[%s1 + $0x710] sm:$0xf]
    %v472 = vld [vmem:[%s1 + $0x714] sm:$0xf]
    %v473 = vld [vmem:[%s1 + $0x718] sm:$0xf]
    %v474 = vld [vmem:[%s1 + $0x71c] sm:$0xf]
    %v475 = vld [vmem:[%s1 + $0x720] sm:$0xf]
    %v476 = vld [vmem:[%s1 + $0x724] sm:$0xf]
    %v477 = vld [vmem:[%s1 + $0x728] sm:$0xf]
    %v478 = vld [vmem:[%s1 + $0x72c] sm:$0xf]
    %v479 = vld [vmem:[%s1 + $0x730] sm:$0xf]
    %v480 = vld [vmem:[%s1 + $0x734] sm:$0xf]
    %v481 = vld [vmem:[%s1 + $0x738] sm:$0xf]
    %v482 = vld [vmem:[%s1 + $0x73c] sm:$0xf]
    %v483 = vld [vmem:[%s1 + $0x740] sm:$0xf]
    %v484 = vld [vmem:[%s1 + $0x744] sm:$0xf]
    %v485 = vld [vmem:[%s1 + $0x748] sm:$0xf]
    %v486 = vld [vmem:[%s1 + $0x74c] sm:$0xf]
    %v487 = vld [vmem:[%s1 + $0x750] sm:$0xf]
    %v488 = vld [vmem:[%s1 + $0x754] sm:$0xf]
    %v489 = vld [vmem:[%s1 + $0x758] sm:$0xf]
    %v490 = vld [vmem:[%s1 + $0x75c] sm:$0xf]
    %v491 = vld [vmem:[%s1 + $0x760] sm:$0xf]
    %v492 = vld [vmem:[%s1 + $0x764] sm:$0xf]
    %v493 = vld [vmem:[%s1 + $0x768] sm:$0xf]
    %v494 = vld [vmem:[%s1 + $0x76c] sm:$0xf]
    %v495 = vld [vmem:[%s1 + $0x770] sm:$0xf]
    %v496 = vld [vmem:[%s1 + $0x774] sm:$0xf]
    %v497 = vld [vmem:[%s1 + $0x778] sm:$0xf]
    %v498 = vld [vmem:[%s1 + $0x77c] sm:$0xf]
    %v499 = vld [vmem:[%s1 + $0x780] sm:$0xf]
    %v500 = vld [vmem:[%s1 + $0x784] sm:$0xf]
    %v501 = vld [vmem:[%s1 + $0x788] sm:$0xf]
    %v502 = vld [vmem:[%s1 + $0x78c] sm:$0xf]
    %v503 = vld [vmem:[%s1 + $0x790] sm:$0xf]
    %v504 = vld [vmem:[%s1 + $0x794] sm:$0xf]
    %v505 = vld [vmem:[%s1 + $0x798] sm:$0xf]
    %v506 = vld [vmem:[%s1 + $0x79c] sm:$0xf]
    %v507 = vld [vmem:[%s1 + $0x7a0] sm:$0xf]
    %v508 = vld [vmem:[%s1 + $0x7a4] sm:$0xf]
    %v509 = vld [vmem:[%s1 + $0x7a8] sm:$0xf]
    %v510 = vld [vmem:[%s1 + $0x7ac] sm:$0xf]
    %v511 = vld [vmem:[%s1 + $0x7b0] sm:$0xf]
    %v512 = vld [vmem:[%s1 + $0x7b4] sm:$0xf]
    %v513 = vld [vmem:[%s1 + $0x7b8] sm:$0xf]
    %v514 = vld [vmem:[%s1 + $0x7bc] sm:$0xf]
    %v515 = vld [vmem:[%s1 + $0x7c0] sm:$0xf]
    %v516 = vld [vmem:[%s1 + $0x7c4] sm:$0xf]
    %v517 = vld [vmem:[%s1 + $0x7c8] sm:$0xf]
    %v518 = vld [vmem:[%s1 + $0x7cc] sm:$0xf]
    %v519 = vld [vmem:[%s1 + $0x7d0] sm:$0xf]
    %v520 = vld [vmem:[%s1 + $0x7d4] sm:$0xf]
    %v521 = vld [vmem:[%s1 + $0x7d8] sm:$0xf]
    %v522 = vld [vmem:[%s1 + $0x7dc] sm:$0xf]
    %v523 = vld [vmem:[%s1 + $0x7e0] sm:$0xf]
    %v524 = vld [vmem:[%s1 + $0x7e4] sm:$0xf]
    %v525 = vld [vmem:[%s1 + $0x7e8] sm:$0xf]
    %v526 = vld [vmem:[%s1 + $0x7ec] sm:$0xf]
    %v527 = vld [vmem:[%s1 + $0x7f0] sm:$0xf]
    %v528 = vld [vmem:[%s1 + $0x7f4] sm:$0xf]
    %v529 = vld [vmem:[%s1 + $0x7f8] sm:$0xf]
    %v530 = vld [vmem:[%s1 + $0x7fc] sm:$0xf]
    %v531 = vld [vmem:[%s2] sm:$0x1]
    %v533 = vperm.slane %v531, 0
    %536 = vst [vmem:[#allocation1] ss:$9 sm:$0xff] %v15
    %v537 = vld [vmem:[#allocation1] sm:$0xff]
    %v538 = vld [vmem:[#allocation1 + $0x9] sm:$0xff]
    %v539 = vld [vmem:[#allocation1 + $0x12] sm:$0xff]
    %v540 = vld [vmem:[#allocation1 + $0x1b] sm:$0xff]
    %v541 = vld [vmem:[#allocation1 + $0x24] sm:$0xff]
    %v542 = vld [vmem:[#allocation1 + $0x2d] sm:$0xff]
    %v543 = vld [vmem:[#allocation1 + $0x36] sm:$0xff]
    %v544 = vld [vmem:[#allocation1 + $0x3f] sm:$0xff]
    %546 = vst [vmem:[#allocation1] ss:$9 sm:$0xff] %v16
    %v547 = vld [vmem:[#allocation1] sm:$0xff]
    %v548 = vld [vmem:[#allocation1 + $0x9] sm:$0xff]
    %v549 = vld [vmem:[#allocation1 + $0x12] sm:$0xff]
    %v550 = vld [vmem:[#allocation1 + $0x1b] sm:$0xff]
    %v551 = vld [vmem:[#allocation1 + $0x24] sm:$0xff]
    %v552 = vld [vmem:[#allocation1 + $0x2d] sm:$0xff]
    %v553 = vld [vmem:[#allocation1 + $0x36] sm:$0xff]
    %v554 = vld [vmem:[#allocation1 + $0x3f] sm:$0xff]
    %556 = vst [vmem:[#allocation1] ss:$9 sm:$0xff] %v17
    %v557 = vld [vmem:[#allocation1] sm:$0xff]
    %v558 = vld [vmem:[#allocation1 + $0x9] sm:$0xff]
    %v559 = vld [vmem:[#allocation1 + $0x12] sm:$0xff]
    %v560 = vld [vmem:[#allocation1 + $0x1b] sm:$0xff]
    %v561 = vld [vmem:[#allocation1 + $0x24] sm:$0xff]
    %v562 = vld [vmem:[#allocation1 + $0x2d] sm:$0xff]
    %v563 = vld [vmem:[#allocation1 + $0x36] sm:$0xff]
    %v564 = vld [vmem:[#allocation1 + $0x3f] sm:$0xff]
    %566 = vst [vmem:[#allocation1] ss:$9 sm:$0xff] %v18
    %v567 = vld [vmem:[#allocation1] sm:$0xff]
    %v568 = vld [vmem:[#allocation1 + $0x9] sm:$0xff]
    %v569 = vld [vmem:[#allocation1 + $0x12] sm:$0xff]
    %v570 = vld [vmem:[#allocation1 + $0x1b] sm:$0xff]
    %v571 = vld [vmem:[#allocation1 + $0x24] sm:$0xff]
    %v572 = vld [vmem:[#allocation1 + $0x2d] sm:$0xff]
    %v573 = vld [vmem:[#allocation1 + $0x36] sm:$0xff]
    %v574 = vld [vmem:[#allocation1 + $0x3f] sm:$0xff]
    %v1119 = vunpack.c.l.b16 %v19
    %v1120 = vunpack.c.l.b16 %v20
    %v1121 = vunpack.c.l.b16 %v21
    %v1122 = vunpack.c.l.b16 %v22
    %v1123 = vunpack.c.l.b16 %v23
    %v1124 = vunpack.c.l.b16 %v24
    %v1125 = vunpack.c.l.b16 %v25
    %v1126 = vunpack.c.l.b16 %v26
    %v1127 = vunpack.c.l.b16 %v27
    %v1128 = vunpack.c.l.b16 %v28
    %v1129 = vunpack.c.l.b16 %v29
    %v1130 = vunpack.c.l.b16 %v30
    %v1131 = vunpack.c.l.b16 %v31
    %v1132 = vunpack.c.l.b16 %v32
    %v1133 = vunpack.c.l.b16 %v33
    %v1134 = vunpack.c.l.b16 %v34
    %v1135 = vunpack.c.l.b16 %v35
    %v1136 = vunpack.c.l.b16 %v36
    %v1137 = vunpack.c.l.b16 %v37
    %v1138 = vunpack.c.l.b16 %v38
    %v1139 = vunpack.c.l.b16 %v39
    %v1140 = vunpack.c.l.b16 %v40
    %v1141 = vunpack.c.l.b16 %v41
    %v1142 = vunpack.c.l.b16 %v42
    %v1143 = vunpack.c.l.b16 %v43
    %v1144 = vunpack.c.l.b16 %v44
    %v1145 = vunpack.c.l.b16 %v45
    %v1146 = vunpack.c.l.b16 %v46
    %v1147 = vunpack.c.l.b16 %v47
    %v1148 = vunpack.c.l.b16 %v48
    %v1149 = vunpack.c.l.b16 %v49
    %v1150 = vunpack.c.l.b16 %v50
    %v1151 = vunpack.c.l.b16 %v51
    %v1152 = vunpack.c.l.b16 %v52
    %v1153 = vunpack.c.l.b16 %v53
    %v1154 = vunpack.c.l.b16 %v54
    %v1155 = vunpack.c.l.b16 %v55
    %v1156 = vunpack.c.l.b16 %v56
    %v1157 = vunpack.c.l.b16 %v57
    %v1158 = vunpack.c.l.b16 %v58
    %v1159 = vunpack.c.l.b16 %v59
    %v1160 = vunpack.c.l.b16 %v60
    %v1161 = vunpack.c.l.b16 %v61
    %v1162 = vunpack.c.l.b16 %v62
    %v1163 = vunpack.c.l.b16 %v63
    %v1164 = vunpack.c.l.b16 %v64
    %v1165 = vunpack.c.l.b16 %v65
    %v1166 = vunpack.c.l.b16 %v66
    %v1167 = vunpack.c.l.b16 %v67
    %v1168 = vunpack.c.l.b16 %v68
    %v1169 = vunpack.c.l.b16 %v69
    %v1170 = vunpack.c.l.b16 %v70
    %v1171 = vunpack.c.l.b16 %v71
    %v1172 = vunpack.c.l.b16 %v72
    %v1173 = vunpack.c.l.b16 %v73
    %v1174 = vunpack.c.l.b16 %v74
    %v1175 = vunpack.c.l.b16 %v75
    %v1176 = vunpack.c.l.b16 %v76
    %v1177 = vunpack.c.l.b16 %v77
    %v1178 = vunpack.c.l.b16 %v78
    %v1179 = vunpack.c.l.b16 %v79
    %v1180 = vunpack.c.l.b16 %v80
    %v1181 = vunpack.c.l.b16 %v81
    %v1182 = vunpack.c.l.b16 %v82
    %v1183 = vunpack.c.l.b16 %v83
    %v1184 = vunpack.c.l.b16 %v84
    %v1185 = vunpack.c.l.b16 %v85
    %v1186 = vunpack.c.l.b16 %v86
    %v1187 = vunpack.c.l.b16 %v87
    %v1188 = vunpack.c.l.b16 %v88
    %v1189 = vunpack.c.l.b16 %v89
    %v1190 = vunpack.c.l.b16 %v90
    %v1191 = vunpack.c.l.b16 %v91
    %v1192 = vunpack.c.l.b16 %v92
    %v1193 = vunpack.c.l.b16 %v93
    %v1194 = vunpack.c.l.b16 %v94
    %v1195 = vunpack.c.l.b16 %v95
    %v1196 = vunpack.c.l.b16 %v96
    %v1197 = vunpack.c.l.b16 %v97
    %v1198 = vunpack.c.l.b16 %v98
    %v1199 = vunpack.c.l.b16 %v99
    %v1200 = vunpack.c.l.b16 %v100
    %v1201 = vunpack.c.l.b16 %v101
    %v1202 = vunpack.c.l.b16 %v102
    %v1203 = vunpack.c.l.b16 %v103
    %v1204 = vunpack.c.l.b16 %v104
    %v1205 = vunpack.c.l.b16 %v105
    %v1206 = vunpack.c.l.b16 %v106
    %v1207 = vunpack.c.l.b16 %v107
    %v1208 = vunpack.c.l.b16 %v108
    %v1209 = vunpack.c.l.b16 %v109
    %v1210 = vunpack.c.l.b16 %v110
    %v1211 = vunpack.c.l.b16 %v111
    %v1212 = vunpack.c.l.b16 %v112
    %v1213 = vunpack.c.l.b16 %v113
    %v1214 = vunpack.c.l.b16 %v114
    %v1215 = vunpack.c.l.b16 %v115
    %v1216 = vunpack.c.l.b16 %v116
    %v1217 = vunpack.c.l.b16 %v117
    %v1218 = vunpack.c.l.b16 %v118
    %v1219 = vunpack.c.l.b16 %v119
    %v1220 = vunpack.c.l.b16 %v120
    %v1221 = vunpack.c.l.b16 %v121
    %v1222 = vunpack.c.l.b16 %v122
    %v1223 = vunpack.c.l.b16 %v123
    %v1224 = vunpack.c.l.b16 %v124
    %v1225 = vunpack.c.l.b16 %v125
    %v1226 = vunpack.c.l.b16 %v126
    %v1227 = vunpack.c.l.b16 %v127
    %v1228 = vunpack.c.l.b16 %v128
    %v1229 = vunpack.c.l.b16 %v129
    %v1230 = vunpack.c.l.b16 %v130
    %v1231 = vunpack.c.l.b16 %v131
    %v1232 = vunpack.c.l.b16 %v132
    %v1233 = vunpack.c.l.b16 %v133
    %v1234 = vunpack.c.l.b16 %v134
    %v1235 = vunpack.c.l.b16 %v135
    %v1236 = vunpack.c.l.b16 %v136
    %v1237 = vunpack.c.l.b16 %v137
    %v1238 = vunpack.c.l.b16 %v138
    %v1239 = vunpack.c.l.b16 %v139
    %v1240 = vunpack.c.l.b16 %v140
    %v1241 = vunpack.c.l.b16 %v141
    %v1242 = vunpack.c.l.b16 %v142
    %v1243 = vunpack.c.l.b16 %v143
    %v1244 = vunpack.c.l.b16 %v144
    %v1245 = vunpack.c.l.b16 %v145
    %v1246 = vunpack.c.l.b16 %v146
    %v1247 = vunpack.c.l.b16 %v147
    %v1248 = vunpack.c.l.b16 %v148
    %v1249 = vunpack.c.l.b16 %v149
    %v1250 = vunpack.c.l.b16 %v150
    %v1251 = vunpack.c.l.b16 %v151
    %v1252 = vunpack.c.l.b16 %v152
    %v1253 = vunpack.c.l.b16 %v153
    %v1254 = vunpack.c.l.b16 %v154
    %v1255 = vunpack.c.l.b16 %v155
    %v1256 = vunpack.c.l.b16 %v156
    %v1257 = vunpack.c.l.b16 %v157
    %v1258 = vunpack.c.l.b16 %v158
    %v1259 = vunpack.c.l.b16 %v159
    %v1260 = vunpack.c.l.b16 %v160
    %v1261 = vunpack.c.l.b16 %v161
    %v1262 = vunpack.c.l.b16 %v162
    %v1263 = vunpack.c.l.b16 %v163
    %v1264 = vunpack.c.l.b16 %v164
    %v1265 = vunpack.c.l.b16 %v165
    %v1266 = vunpack.c.l.b16 %v166
    %v1267 = vunpack.c.l.b16 %v167
    %v1268 = vunpack.c.l.b16 %v168
    %v1269 = vunpack.c.l.b16 %v169
    %v1270 = vunpack.c.l.b16 %v170
    %v1271 = vunpack.c.l.b16 %v171
    %v1272 = vunpack.c.l.b16 %v172
    %v1273 = vunpack.c.l.b16 %v173
    %v1274 = vunpack.c.l.b16 %v174
    %v1275 = vunpack.c.l.b16 %v175
    %v1276 = vunpack.c.l.b16 %v176
    %v1277 = vunpack.c.l.b16 %v177
    %v1278 = vunpack.c.l.b16 %v178
    %v1279 = vunpack.c.l.b16 %v179
    %v1280 = vunpack.c.l.b16 %v180
    %v1281 = vunpack.c.l.b16 %v181
    %v1282 = vunpack.c.l.b16 %v182
    %v1283 = vunpack.c.l.b16 %v183
    %v1284 = vunpack.c.l.b16 %v184
    %v1285 = vunpack.c.l.b16 %v185
    %v1286 = vunpack.c.l.b16 %v186
    %v1287 = vunpack.c.l.b16 %v187
    %v1288 = vunpack.c.l.b16 %v188
    %v1289 = vunpack.c.l.b16 %v189
    %v1290 = vunpack.c.l.b16 %v190
    %v1291 = vunpack.c.l.b16 %v191
    %v1292 = vunpack.c.l.b16 %v192
    %v1293 = vunpack.c.l.b16 %v193
    %v1294 = vunpack.c.l.b16 %v194
    %v1295 = vunpack.c.l.b16 %v195
    %v1296 = vunpack.c.l.b16 %v196
    %v1297 = vunpack.c.l.b16 %v197
    %v1298 = vunpack.c.l.b16 %v198
    %v1299 = vunpack.c.l.b16 %v199
    %v1300 = vunpack.c.l.b16 %v200
    %v1301 = vunpack.c.l.b16 %v201
    %v1302 = vunpack.c.l.b16 %v202
    %v1303 = vunpack.c.l.b16 %v203
    %v1304 = vunpack.c.l.b16 %v204
    %v1305 = vunpack.c.l.b16 %v205
    %v1306 = vunpack.c.l.b16 %v206
    %v1307 = vunpack.c.l.b16 %v207
    %v1308 = vunpack.c.l.b16 %v208
    %v1309 = vunpack.c.l.b16 %v209
    %v1310 = vunpack.c.l.b16 %v210
    %v1311 = vunpack.c.l.b16 %v211
    %v1312 = vunpack.c.l.b16 %v212
    %v1313 = vunpack.c.l.b16 %v213
    %v1314 = vunpack.c.l.b16 %v214
    %v1315 = vunpack.c.l.b16 %v215
    %v1316 = vunpack.c.l.b16 %v216
    %v1317 = vunpack.c.l.b16 %v217
    %v1318 = vunpack.c.l.b16 %v218
    %v1319 = vunpack.c.l.b16 %v219
    %v1320 = vunpack.c.l.b16 %v220
    %v1321 = vunpack.c.l.b16 %v221
    %v1322 = vunpack.c.l.b16 %v222
    %v1323 = vunpack.c.l.b16 %v223
    %v1324 = vunpack.c.l.b16 %v224
    %v1325 = vunpack.c.l.b16 %v225
    %v1326 = vunpack.c.l.b16 %v226
    %v1327 = vunpack.c.l.b16 %v227
    %v1328 = vunpack.c.l.b16 %v228
    %v1329 = vunpack.c.l.b16 %v229
    %v1330 = vunpack.c.l.b16 %v230
    %v1331 = vunpack.c.l.b16 %v231
    %v1332 = vunpack.c.l.b16 %v232
    %v1333 = vunpack.c.l.b16 %v233
    %v1334 = vunpack.c.l.b16 %v234
    %v1335 = vunpack.c.l.b16 %v235
    %v1336 = vunpack.c.l.b16 %v236
    %v1337 = vunpack.c.l.b16 %v237
    %v1338 = vunpack.c.l.b16 %v238
    %v1339 = vunpack.c.l.b16 %v239
    %v1340 = vunpack.c.l.b16 %v240
    %v1341 = vunpack.c.l.b16 %v241
    %v1342 = vunpack.c.l.b16 %v242
    %v1343 = vunpack.c.l.b16 %v243
    %v1344 = vunpack.c.l.b16 %v244
    %v1345 = vunpack.c.l.b16 %v245
    %v1346 = vunpack.c.l.b16 %v246
    %v1347 = vunpack.c.l.b16 %v247
    %v1348 = vunpack.c.l.b16 %v248
    %v1349 = vunpack.c.l.b16 %v249
    %v1350 = vunpack.c.l.b16 %v250
    %v1351 = vunpack.c.l.b16 %v251
    %v1352 = vunpack.c.l.b16 %v252
    %v1353 = vunpack.c.l.b16 %v253
    %v1354 = vunpack.c.l.b16 %v254
    %v1355 = vunpack.c.l.b16 %v255
    %v1356 = vunpack.c.l.b16 %v256
    %v1357 = vunpack.c.l.b16 %v257
    %v1358 = vunpack.c.l.b16 %v258
    %v1359 = vunpack.c.l.b16 %v259
    %v1360 = vunpack.c.l.b16 %v260
    %v1361 = vunpack.c.l.b16 %v261
    %v1362 = vunpack.c.l.b16 %v262
    %v1363 = vunpack.c.l.b16 %v263
    %v1364 = vunpack.c.l.b16 %v264
    %v1365 = vunpack.c.l.b16 %v265
    %v1366 = vunpack.c.l.b16 %v266
    %v1367 = vunpack.c.l.b16 %v267
    %v1368 = vunpack.c.l.b16 %v268
    %v1369 = vunpack.c.l.b16 %v269
    %v1370 = vunpack.c.l.b16 %v270
    %v1371 = vunpack.c.l.b16 %v271
    %v1372 = vunpack.c.l.b16 %v272
    %v1373 = vunpack.c.l.b16 %v273
    %v1374 = vunpack.c.l.b16 %v274
    %v1375 = vunpack.c.l.b16 %v275
    %v1376 = vunpack.c.l.b16 %v276
    %v1377 = vunpack.c.l.b16 %v277
    %v1378 = vunpack.c.l.b16 %v278
    %v1379 = vunpack.c.l.b16 %v279
    %v1380 = vunpack.c.l.b16 %v280
    %v1381 = vunpack.c.l.b16 %v281
    %v1382 = vunpack.c.l.b16 %v282
    %v1383 = vunpack.c.l.b16 %v283
    %v1384 = vunpack.c.l.b16 %v284
    %v1385 = vunpack.c.l.b16 %v285
    %v1386 = vunpack.c.l.b16 %v286
    %v1387 = vunpack.c.l.b16 %v287
    %v1388 = vunpack.c.l.b16 %v288
    %v1389 = vunpack.c.l.b16 %v289
    %v1390 = vunpack.c.l.b16 %v290
    %v1391 = vunpack.c.l.b16 %v291
    %v1392 = vunpack.c.l.b16 %v292
    %v1393 = vunpack.c.l.b16 %v293
    %v1394 = vunpack.c.l.b16 %v294
    %v1395 = vunpack.c.l.b16 %v295
    %v1396 = vunpack.c.l.b16 %v296
    %v1397 = vunpack.c.l.b16 %v297
    %v1398 = vunpack.c.l.b16 %v298
    %v1399 = vunpack.c.l.b16 %v299
    %v1400 = vunpack.c.l.b16 %v300
    %v1401 = vunpack.c.l.b16 %v301
    %v1402 = vunpack.c.l.b16 %v302
    %v1403 = vunpack.c.l.b16 %v303
    %v1404 = vunpack.c.l.b16 %v304
    %v1405 = vunpack.c.l.b16 %v305
    %v1406 = vunpack.c.l.b16 %v306
    %v1407 = vunpack.c.l.b16 %v307
    %v1408 = vunpack.c.l.b16 %v308
    %v1409 = vunpack.c.l.b16 %v309
    %v1410 = vunpack.c.l.b16 %v310
    %v1411 = vunpack.c.l.b16 %v311
    %v1412 = vunpack.c.l.b16 %v312
    %v1413 = vunpack.c.l.b16 %v313
    %v1414 = vunpack.c.l.b16 %v314
    %v1415 = vunpack.c.l.b16 %v315
    %v1416 = vunpack.c.l.b16 %v316
    %v1417 = vunpack.c.l.b16 %v317
    %v1418 = vunpack.c.l.b16 %v318
    %v1419 = vunpack.c.l.b16 %v319
    %v1420 = vunpack.c.l.b16 %v320
    %v1421 = vunpack.c.l.b16 %v321
    %v1422 = vunpack.c.l.b16 %v322
    %v1423 = vunpack.c.l.b16 %v323
    %v1424 = vunpack.c.l.b16 %v324
    %v1425 = vunpack.c.l.b16 %v325
    %v1426 = vunpack.c.l.b16 %v326
    %v1427 = vunpack.c.l.b16 %v327
    %v1428 = vunpack.c.l.b16 %v328
    %v1429 = vunpack.c.l.b16 %v329
    %v1430 = vunpack.c.l.b16 %v330
    %v1431 = vunpack.c.l.b16 %v331
    %v1432 = vunpack.c.l.b16 %v332
    %v1433 = vunpack.c.l.b16 %v333
    %v1434 = vunpack.c.l.b16 %v334
    %v1435 = vunpack.c.l.b16 %v335
    %v1436 = vunpack.c.l.b16 %v336
    %v1437 = vunpack.c.l.b16 %v337
    %v1438 = vunpack.c.l.b16 %v338
    %v1439 = vunpack.c.l.b16 %v339
    %v1440 = vunpack.c.l.b16 %v340
    %v1441 = vunpack.c.l.b16 %v341
    %v1442 = vunpack.c.l.b16 %v342
    %v1443 = vunpack.c.l.b16 %v343
    %v1444 = vunpack.c.l.b16 %v344
    %v1445 = vunpack.c.l.b16 %v345
    %v1446 = vunpack.c.l.b16 %v346
    %v1447 = vunpack.c.l.b16 %v347
    %v1448 = vunpack.c.l.b16 %v348
    %v1449 = vunpack.c.l.b16 %v349
    %v1450 = vunpack.c.l.b16 %v350
    %v1451 = vunpack.c.l.b16 %v351
    %v1452 = vunpack.c.l.b16 %v352
    %v1453 = vunpack.c.l.b16 %v353
    %v1454 = vunpack.c.l.b16 %v354
    %v1455 = vunpack.c.l.b16 %v355
    %v1456 = vunpack.c.l.b16 %v356
    %v1457 = vunpack.c.l.b16 %v357
    %v1458 = vunpack.c.l.b16 %v358
    %v1459 = vunpack.c.l.b16 %v359
    %v1460 = vunpack.c.l.b16 %v360
    %v1461 = vunpack.c.l.b16 %v361
    %v1462 = vunpack.c.l.b16 %v362
    %v1463 = vunpack.c.l.b16 %v363
    %v1464 = vunpack.c.l.b16 %v364
    %v1465 = vunpack.c.l.b16 %v365
    %v1466 = vunpack.c.l.b16 %v366
    %v1467 = vunpack.c.l.b16 %v367
    %v1468 = vunpack.c.l.b16 %v368
    %v1469 = vunpack.c.l.b16 %v369
    %v1470 = vunpack.c.l.b16 %v370
    %v1471 = vunpack.c.l.b16 %v371
    %v1472 = vunpack.c.l.b16 %v372
    %v1473 = vunpack.c.l.b16 %v373
    %v1474 = vunpack.c.l.b16 %v374
    %v1475 = vunpack.c.l.b16 %v375
    %v1476 = vunpack.c.l.b16 %v376
    %v1477 = vunpack.c.l.b16 %v377
    %v1478 = vunpack.c.l.b16 %v378
    %v1479 = vunpack.c.l.b16 %v379
    %v1480 = vunpack.c.l.b16 %v380
    %v1481 = vunpack.c.l.b16 %v381
    %v1482 = vunpack.c.l.b16 %v382
    %v1483 = vunpack.c.l.b16 %v383
    %v1484 = vunpack.c.l.b16 %v384
    %v1485 = vunpack.c.l.b16 %v385
    %v1486 = vunpack.c.l.b16 %v386
    %v1487 = vunpack.c.l.b16 %v387
    %v1488 = vunpack.c.l.b16 %v388
    %v1489 = vunpack.c.l.b16 %v389
    %v1490 = vunpack.c.l.b16 %v390
    %v1491 = vunpack.c.l.b16 %v391
    %v1492 = vunpack.c.l.b16 %v392
    %v1493 = vunpack.c.l.b16 %v393
    %v1494 = vunpack.c.l.b16 %v394
    %v1495 = vunpack.c.l.b16 %v395
    %v1496 = vunpack.c.l.b16 %v396
    %v1497 = vunpack.c.l.b16 %v397
    %v1498 = vunpack.c.l.b16 %v398
    %v1499 = vunpack.c.l.b16 %v399
    %v1500 = vunpack.c.l.b16 %v400
    %v1501 = vunpack.c.l.b16 %v401
    %v1502 = vunpack.c.l.b16 %v402
    %v1503 = vunpack.c.l.b16 %v403
    %v1504 = vunpack.c.l.b16 %v404
    %v1505 = vunpack.c.l.b16 %v405
    %v1506 = vunpack.c.l.b16 %v406
    %v1507 = vunpack.c.l.b16 %v407
    %v1508 = vunpack.c.l.b16 %v408
    %v1509 = vunpack.c.l.b16 %v409
    %v1510 = vunpack.c.l.b16 %v410
    %v1511 = vunpack.c.l.b16 %v411
    %v1512 = vunpack.c.l.b16 %v412
    %v1513 = vunpack.c.l.b16 %v413
    %v1514 = vunpack.c.l.b16 %v414
    %v1515 = vunpack.c.l.b16 %v415
    %v1516 = vunpack.c.l.b16 %v416
    %v1517 = vunpack.c.l.b16 %v417
    %v1518 = vunpack.c.l.b16 %v418
    %v1519 = vunpack.c.l.b16 %v419
    %v1520 = vunpack.c.l.b16 %v420
    %v1521 = vunpack.c.l.b16 %v421
    %v1522 = vunpack.c.l.b16 %v422
    %v1523 = vunpack.c.l.b16 %v423
    %v1524 = vunpack.c.l.b16 %v424
    %v1525 = vunpack.c.l.b16 %v425
    %v1526 = vunpack.c.l.b16 %v426
    %v1527 = vunpack.c.l.b16 %v427
    %v1528 = vunpack.c.l.b16 %v428
    %v1529 = vunpack.c.l.b16 %v429
    %v1530 = vunpack.c.l.b16 %v430
    %v1531 = vunpack.c.l.b16 %v431
    %v1532 = vunpack.c.l.b16 %v432
    %v1533 = vunpack.c.l.b16 %v433
    %v1534 = vunpack.c.l.b16 %v434
    %v1535 = vunpack.c.l.b16 %v435
    %v1536 = vunpack.c.l.b16 %v436
    %v1537 = vunpack.c.l.b16 %v437
    %v1538 = vunpack.c.l.b16 %v438
    %v1539 = vunpack.c.l.b16 %v439
    %v1540 = vunpack.c.l.b16 %v440
    %v1541 = vunpack.c.l.b16 %v441
    %v1542 = vunpack.c.l.b16 %v442
    %v1543 = vunpack.c.l.b16 %v443
    %v1544 = vunpack.c.l.b16 %v444
    %v1545 = vunpack.c.l.b16 %v445
    %v1546 = vunpack.c.l.b16 %v446
    %v1547 = vunpack.c.l.b16 %v447
    %v1548 = vunpack.c.l.b16 %v448
    %v1549 = vunpack.c.l.b16 %v449
    %v1550 = vunpack.c.l.b16 %v450
    %v1551 = vunpack.c.l.b16 %v451
    %v1552 = vunpack.c.l.b16 %v452
    %v1553 = vunpack.c.l.b16 %v453
    %v1554 = vunpack.c.l.b16 %v454
    %v1555 = vunpack.c.l.b16 %v455
    %v1556 = vunpack.c.l.b16 %v456
    %v1557 = vunpack.c.l.b16 %v457
    %v1558 = vunpack.c.l.b16 %v458
    %v1559 = vunpack.c.l.b16 %v459
    %v1560 = vunpack.c.l.b16 %v460
    %v1561 = vunpack.c.l.b16 %v461
    %v1562 = vunpack.c.l.b16 %v462
    %v1563 = vunpack.c.l.b16 %v463
    %v1564 = vunpack.c.l.b16 %v464
    %v1565 = vunpack.c.l.b16 %v465
    %v1566 = vunpack.c.l.b16 %v466
    %v1567 = vunpack.c.l.b16 %v467
    %v1568 = vunpack.c.l.b16 %v468
    %v1569 = vunpack.c.l.b16 %v469
    %v1570 = vunpack.c.l.b16 %v470
    %v1571 = vunpack.c.l.b16 %v471
    %v1572 = vunpack.c.l.b16 %v472
    %v1573 = vunpack.c.l.b16 %v473
    %v1574 = vunpack.c.l.b16 %v474
    %v1575 = vunpack.c.l.b16 %v475
    %v1576 = vunpack.c.l.b16 %v476
    %v1577 = vunpack.c.l.b16 %v477
    %v1578 = vunpack.c.l.b16 %v478
    %v1579 = vunpack.c.l.b16 %v479
    %v1580 = vunpack.c.l.b16 %v480
    %v1581 = vunpack.c.l.b16 %v481
    %v1582 = vunpack.c.l.b16 %v482
    %v1583 = vunpack.c.l.b16 %v483
    %v1584 = vunpack.c.l.b16 %v484
    %v1585 = vunpack.c.l.b16 %v485
    %v1586 = vunpack.c.l.b16 %v486
    %v1587 = vunpack.c.l.b16 %v487
    %v1588 = vunpack.c.l.b16 %v488
    %v1589 = vunpack.c.l.b16 %v489
    %v1590 = vunpack.c.l.b16 %v490
    %v1591 = vunpack.c.l.b16 %v491
    %v1592 = vunpack.c.l.b16 %v492
    %v1593 = vunpack.c.l.b16 %v493
    %v1594 = vunpack.c.l.b16 %v494
    %v1595 = vunpack.c.l.b16 %v495
    %v1596 = vunpack.c.l.b16 %v496
    %v1597 = vunpack.c.l.b16 %v497
    %v1598 = vunpack.c.l.b16 %v498
    %v1599 = vunpack.c.l.b16 %v499
    %v1600 = vunpack.c.l.b16 %v500
    %v1601 = vunpack.c.l.b16 %v501
    %v1602 = vunpack.c.l.b16 %v502
    %v1603 = vunpack.c.l.b16 %v503
    %v1604 = vunpack.c.l.b16 %v504
    %v1605 = vunpack.c.l.b16 %v505
    %v1606 = vunpack.c.l.b16 %v506
    %v1607 = vunpack.c.l.b16 %v507
    %v1608 = vunpack.c.l.b16 %v508
    %v1609 = vunpack.c.l.b16 %v509
    %v1610 = vunpack.c.l.b16 %v510
    %v1611 = vunpack.c.l.b16 %v511
    %v1612 = vunpack.c.l.b16 %v512
    %v1613 = vunpack.c.l.b16 %v513
    %v1614 = vunpack.c.l.b16 %v514
    %v1615 = vunpack.c.l.b16 %v515
    %v1616 = vunpack.c.l.b16 %v516
    %v1617 = vunpack.c.l.b16 %v517
    %v1618 = vunpack.c.l.b16 %v518
    %v1619 = vunpack.c.l.b16 %v519
    %v1620 = vunpack.c.l.b16 %v520
    %v1621 = vunpack.c.l.b16 %v521
    %v1622 = vunpack.c.l.b16 %v522
    %v1623 = vunpack.c.l.b16 %v523
    %v1624 = vunpack.c.l.b16 %v524
    %v1625 = vunpack.c.l.b16 %v525
    %v1626 = vunpack.c.l.b16 %v526
    %v1627 = vunpack.c.l.b16 %v527
    %v1628 = vunpack.c.l.b16 %v528
    %v1629 = vunpack.c.l.b16 %v529
    %v1630 = vunpack.c.l.b16 %v530
    %v1631 = vpack.c.b16 %v1120, %v1119
    %v1632 = vpack.c.b16 %v1122, %v1121
    %v1633 = vpack.c.b16 %v1124, %v1123
    %v1634 = vpack.c.b16 %v1126, %v1125
    %v1635 = vpack.c.b16 %v1128, %v1127
    %v1636 = vpack.c.b16 %v1130, %v1129
    %v1637 = vpack.c.b16 %v1132, %v1131
    %v1638 = vpack.c.b16 %v1134, %v1133
    %v1639 = vpack.c.b16 %v1136, %v1135
    %v1640 = vpack.c.b16 %v1138, %v1137
    %v1641 = vpack.c.b16 %v1140, %v1139
    %v1642 = vpack.c.b16 %v1142, %v1141
    %v1643 = vpack.c.b16 %v1144, %v1143
    %v1644 = vpack.c.b16 %v1146, %v1145
    %v1645 = vpack.c.b16 %v1148, %v1147
    %v1646 = vpack.c.b16 %v1150, %v1149
    %v1647 = vpack.c.b16 %v1152, %v1151
    %v1648 = vpack.c.b16 %v1154, %v1153
    %v1649 = vpack.c.b16 %v1156, %v1155
    %v1650 = vpack.c.b16 %v1158, %v1157
    %v1651 = vpack.c.b16 %v1160, %v1159
    %v1652 = vpack.c.b16 %v1162, %v1161
    %v1653 = vpack.c.b16 %v1164, %v1163
    %v1654 = vpack.c.b16 %v1166, %v1165
    %v1655 = vpack.c.b16 %v1168, %v1167
    %v1656 = vpack.c.b16 %v1170, %v1169
    %v1657 = vpack.c.b16 %v1172, %v1171
    %v1658 = vpack.c.b16 %v1174, %v1173
    %v1659 = vpack.c.b16 %v1176, %v1175
    %v1660 = vpack.c.b16 %v1178, %v1177
    %v1661 = vpack.c.b16 %v1180, %v1179
    %v1662 = vpack.c.b16 %v1182, %v1181
    %v1663 = vpack.c.b16 %v1184, %v1183
    %v1664 = vpack.c.b16 %v1186, %v1185
    %v1665 = vpack.c.b16 %v1188, %v1187
    %v1666 = vpack.c.b16 %v1190, %v1189
    %v1667 = vpack.c.b16 %v1192, %v1191
    %v1668 = vpack.c.b16 %v1194, %v1193
    %v1669 = vpack.c.b16 %v1196, %v1195
    %v1670 = vpack.c.b16 %v1198, %v1197
    %v1671 = vpack.c.b16 %v1200, %v1199
    %v1672 = vpack.c.b16 %v1202, %v1201
    %v1673 = vpack.c.b16 %v1204, %v1203
    %v1674 = vpack.c.b16 %v1206, %v1205
    %v1675 = vpack.c.b16 %v1208, %v1207
    %v1676 = vpack.c.b16 %v1210, %v1209
    %v1677 = vpack.c.b16 %v1212, %v1211
    %v1678 = vpack.c.b16 %v1214, %v1213
    %v1679 = vpack.c.b16 %v1216, %v1215
    %v1680 = vpack.c.b16 %v1218, %v1217
    %v1681 = vpack.c.b16 %v1220, %v1219
    %v1682 = vpack.c.b16 %v1222, %v1221
    %v1683 = vpack.c.b16 %v1224, %v1223
    %v1684 = vpack.c.b16 %v1226, %v1225
    %v1685 = vpack.c.b16 %v1228, %v1227
    %v1686 = vpack.c.b16 %v1230, %v1229
    %v1687 = vpack.c.b16 %v1232, %v1231
    %v1688 = vpack.c.b16 %v1234, %v1233
    %v1689 = vpack.c.b16 %v1236, %v1235
    %v1690 = vpack.c.b16 %v1238, %v1237
    %v1691 = vpack.c.b16 %v1240, %v1239
    %v1692 = vpack.c.b16 %v1242, %v1241
    %v1693 = vpack.c.b16 %v1244, %v1243
    %v1694 = vpack.c.b16 %v1246, %v1245
    %v1695 = vpack.c.b16 %v1248, %v1247
    %v1696 = vpack.c.b16 %v1250, %v1249
    %v1697 = vpack.c.b16 %v1252, %v1251
    %v1698 = vpack.c.b16 %v1254, %v1253
    %v1699 = vpack.c.b16 %v1256, %v1255
    %v1700 = vpack.c.b16 %v1258, %v1257
    %v1701 = vpack.c.b16 %v1260, %v1259
    %v1702 = vpack.c.b16 %v1262, %v1261
    %v1703 = vpack.c.b16 %v1264, %v1263
    %v1704 = vpack.c.b16 %v1266, %v1265
    %v1705 = vpack.c.b16 %v1268, %v1267
    %v1706 = vpack.c.b16 %v1270, %v1269
    %v1707 = vpack.c.b16 %v1272, %v1271
    %v1708 = vpack.c.b16 %v1274, %v1273
    %v1709 = vpack.c.b16 %v1276, %v1275
    %v1710 = vpack.c.b16 %v1278, %v1277
    %v1711 = vpack.c.b16 %v1280, %v1279
    %v1712 = vpack.c.b16 %v1282, %v1281
    %v1713 = vpack.c.b16 %v1284, %v1283
    %v1714 = vpack.c.b16 %v1286, %v1285
    %v1715 = vpack.c.b16 %v1288, %v1287
    %v1716 = vpack.c.b16 %v1290, %v1289
    %v1717 = vpack.c.b16 %v1292, %v1291
    %v1718 = vpack.c.b16 %v1294, %v1293
    %v1719 = vpack.c.b16 %v1296, %v1295
    %v1720 = vpack.c.b16 %v1298, %v1297
    %v1721 = vpack.c.b16 %v1300, %v1299
    %v1722 = vpack.c.b16 %v1302, %v1301
    %v1723 = vpack.c.b16 %v1304, %v1303
    %v1724 = vpack.c.b16 %v1306, %v1305
    %v1725 = vpack.c.b16 %v1308, %v1307
    %v1726 = vpack.c.b16 %v1310, %v1309
    %v1727 = vpack.c.b16 %v1312, %v1311
    %v1728 = vpack.c.b16 %v1314, %v1313
    %v1729 = vpack.c.b16 %v1316, %v1315
    %v1730 = vpack.c.b16 %v1318, %v1317
    %v1731 = vpack.c.b16 %v1320, %v1319
    %v1732 = vpack.c.b16 %v1322, %v1321
    %v1733 = vpack.c.b16 %v1324, %v1323
    %v1734 = vpack.c.b16 %v1326, %v1325
    %v1735 = vpack.c.b16 %v1328, %v1327
    %v1736 = vpack.c.b16 %v1330, %v1329
    %v1737 = vpack.c.b16 %v1332, %v1331
    %v1738 = vpack.c.b16 %v1334, %v1333
    %v1739 = vpack.c.b16 %v1336, %v1335
    %v1740 = vpack.c.b16 %v1338, %v1337
    %v1741 = vpack.c.b16 %v1340, %v1339
    %v1742 = vpack.c.b16 %v1342, %v1341
    %v1743 = vpack.c.b16 %v1344, %v1343
    %v1744 = vpack.c.b16 %v1346, %v1345
    %v1745 = vpack.c.b16 %v1348, %v1347
    %v1746 = vpack.c.b16 %v1350, %v1349
    %v1747 = vpack.c.b16 %v1352, %v1351
    %v1748 = vpack.c.b16 %v1354, %v1353
    %v1749 = vpack.c.b16 %v1356, %v1355
    %v1750 = vpack.c.b16 %v1358, %v1357
    %v1751 = vpack.c.b16 %v1360, %v1359
    %v1752 = vpack.c.b16 %v1362, %v1361
    %v1753 = vpack.c.b16 %v1364, %v1363
    %v1754 = vpack.c.b16 %v1366, %v1365
    %v1755 = vpack.c.b16 %v1368, %v1367
    %v1756 = vpack.c.b16 %v1370, %v1369
    %v1757 = vpack.c.b16 %v1372, %v1371
    %v1758 = vpack.c.b16 %v1374, %v1373
    %v1759 = vpack.c.b16 %v1376, %v1375
    %v1760 = vpack.c.b16 %v1378, %v1377
    %v1761 = vpack.c.b16 %v1380, %v1379
    %v1762 = vpack.c.b16 %v1382, %v1381
    %v1763 = vpack.c.b16 %v1384, %v1383
    %v1764 = vpack.c.b16 %v1386, %v1385
    %v1765 = vpack.c.b16 %v1388, %v1387
    %v1766 = vpack.c.b16 %v1390, %v1389
    %v1767 = vpack.c.b16 %v1392, %v1391
    %v1768 = vpack.c.b16 %v1394, %v1393
    %v1769 = vpack.c.b16 %v1396, %v1395
    %v1770 = vpack.c.b16 %v1398, %v1397
    %v1771 = vpack.c.b16 %v1400, %v1399
    %v1772 = vpack.c.b16 %v1402, %v1401
    %v1773 = vpack.c.b16 %v1404, %v1403
    %v1774 = vpack.c.b16 %v1406, %v1405
    %v1775 = vpack.c.b16 %v1408, %v1407
    %v1776 = vpack.c.b16 %v1410, %v1409
    %v1777 = vpack.c.b16 %v1412, %v1411
    %v1778 = vpack.c.b16 %v1414, %v1413
    %v1779 = vpack.c.b16 %v1416, %v1415
    %v1780 = vpack.c.b16 %v1418, %v1417
    %v1781 = vpack.c.b16 %v1420, %v1419
    %v1782 = vpack.c.b16 %v1422, %v1421
    %v1783 = vpack.c.b16 %v1424, %v1423
    %v1784 = vpack.c.b16 %v1426, %v1425
    %v1785 = vpack.c.b16 %v1428, %v1427
    %v1786 = vpack.c.b16 %v1430, %v1429
    %v1787 = vpack.c.b16 %v1432, %v1431
    %v1788 = vpack.c.b16 %v1434, %v1433
    %v1789 = vpack.c.b16 %v1436, %v1435
    %v1790 = vpack.c.b16 %v1438, %v1437
    %v1791 = vpack.c.b16 %v1440, %v1439
    %v1792 = vpack.c.b16 %v1442, %v1441
    %v1793 = vpack.c.b16 %v1444, %v1443
    %v1794 = vpack.c.b16 %v1446, %v1445
    %v1795 = vpack.c.b16 %v1448, %v1447
    %v1796 = vpack.c.b16 %v1450, %v1449
    %v1797 = vpack.c.b16 %v1452, %v1451
    %v1798 = vpack.c.b16 %v1454, %v1453
    %v1799 = vpack.c.b16 %v1456, %v1455
    %v1800 = vpack.c.b16 %v1458, %v1457
    %v1801 = vpack.c.b16 %v1460, %v1459
    %v1802 = vpack.c.b16 %v1462, %v1461
    %v1803 = vpack.c.b16 %v1464, %v1463
    %v1804 = vpack.c.b16 %v1466, %v1465
    %v1805 = vpack.c.b16 %v1468, %v1467
    %v1806 = vpack.c.b16 %v1470, %v1469
    %v1807 = vpack.c.b16 %v1472, %v1471
    %v1808 = vpack.c.b16 %v1474, %v1473
    %v1809 = vpack.c.b16 %v1476, %v1475
    %v1810 = vpack.c.b16 %v1478, %v1477
    %v1811 = vpack.c.b16 %v1480, %v1479
    %v1812 = vpack.c.b16 %v1482, %v1481
    %v1813 = vpack.c.b16 %v1484, %v1483
    %v1814 = vpack.c.b16 %v1486, %v1485
    %v1815 = vpack.c.b16 %v1488, %v1487
    %v1816 = vpack.c.b16 %v1490, %v1489
    %v1817 = vpack.c.b16 %v1492, %v1491
    %v1818 = vpack.c.b16 %v1494, %v1493
    %v1819 = vpack.c.b16 %v1496, %v1495
    %v1820 = vpack.c.b16 %v1498, %v1497
    %v1821 = vpack.c.b16 %v1500, %v1499
    %v1822 = vpack.c.b16 %v1502, %v1501
    %v1823 = vpack.c.b16 %v1504, %v1503
    %v1824 = vpack.c.b16 %v1506, %v1505
    %v1825 = vpack.c.b16 %v1508, %v1507
    %v1826 = vpack.c.b16 %v1510, %v1509
    %v1827 = vpack.c.b16 %v1512, %v1511
    %v1828 = vpack.c.b16 %v1514, %v1513
    %v1829 = vpack.c.b16 %v1516, %v1515
    %v1830 = vpack.c.b16 %v1518, %v1517
    %v1831 = vpack.c.b16 %v1520, %v1519
    %v1832 = vpack.c.b16 %v1522, %v1521
    %v1833 = vpack.c.b16 %v1524, %v1523
    %v1834 = vpack.c.b16 %v1526, %v1525
    %v1835 = vpack.c.b16 %v1528, %v1527
    %v1836 = vpack.c.b16 %v1530, %v1529
    %v1837 = vpack.c.b16 %v1532, %v1531
    %v1838 = vpack.c.b16 %v1534, %v1533
    %v1839 = vpack.c.b16 %v1536, %v1535
    %v1840 = vpack.c.b16 %v1538, %v1537
    %v1841 = vpack.c.b16 %v1540, %v1539
    %v1842 = vpack.c.b16 %v1542, %v1541
    %v1843 = vpack.c.b16 %v1544, %v1543
    %v1844 = vpack.c.b16 %v1546, %v1545
    %v1845 = vpack.c.b16 %v1548, %v1547
    %v1846 = vpack.c.b16 %v1550, %v1549
    %v1847 = vpack.c.b16 %v1552, %v1551
    %v1848 = vpack.c.b16 %v1554, %v1553
    %v1849 = vpack.c.b16 %v1556, %v1555
    %v1850 = vpack.c.b16 %v1558, %v1557
    %v1851 = vpack.c.b16 %v1560, %v1559
    %v1852 = vpack.c.b16 %v1562, %v1561
    %v1853 = vpack.c.b16 %v1564, %v1563
    %v1854 = vpack.c.b16 %v1566, %v1565
    %v1855 = vpack.c.b16 %v1568, %v1567
    %v1856 = vpack.c.b16 %v1570, %v1569
    %v1857 = vpack.c.b16 %v1572, %v1571
    %v1858 = vpack.c.b16 %v1574, %v1573
    %v1859 = vpack.c.b16 %v1576, %v1575
    %v1860 = vpack.c.b16 %v1578, %v1577
    %v1861 = vpack.c.b16 %v1580, %v1579
    %v1862 = vpack.c.b16 %v1582, %v1581
    %v1863 = vpack.c.b16 %v1584, %v1583
    %v1864 = vpack.c.b16 %v1586, %v1585
    %v1865 = vpack.c.b16 %v1588, %v1587
    %v1866 = vpack.c.b16 %v1590, %v1589
    %v1867 = vpack.c.b16 %v1592, %v1591
    %v1868 = vpack.c.b16 %v1594, %v1593
    %v1869 = vpack.c.b16 %v1596, %v1595
    %v1870 = vpack.c.b16 %v1598, %v1597
    %v1871 = vpack.c.b16 %v1600, %v1599
    %v1872 = vpack.c.b16 %v1602, %v1601
    %v1873 = vpack.c.b16 %v1604, %v1603
    %v1874 = vpack.c.b16 %v1606, %v1605
    %v1875 = vpack.c.b16 %v1608, %v1607
    %v1876 = vpack.c.b16 %v1610, %v1609
    %v1877 = vpack.c.b16 %v1612, %v1611
    %v1878 = vpack.c.b16 %v1614, %v1613
    %v1879 = vpack.c.b16 %v1616, %v1615
    %v1880 = vpack.c.b16 %v1618, %v1617
    %v1881 = vpack.c.b16 %v1620, %v1619
    %v1882 = vpack.c.b16 %v1622, %v1621
    %v1883 = vpack.c.b16 %v1624, %v1623
    %v1884 = vpack.c.b16 %v1626, %v1625
    %v1885 = vpack.c.b16 %v1628, %v1627
    %v1886 = vpack.c.b16 %v1630, %v1629
    %2143 = vmatpush.bf16.msra.mxu0 %v1638
    %2144 = vmatpush.bf16.msra.mxu0 %v1637
    %2145 = vmatpush.bf16.msra.mxu0 %v1636
    %2146 = vmatpush.bf16.msra.mxu0 %v1635
    %2147 = vmatpush.bf16.msra.mxu0 %v1634
    %2148 = vmatpush.bf16.msra.mxu0 %v1633
    %2149 = vmatpush.bf16.msra.mxu0 %v1632
    %2150 = vmatpush.bf16.msra.mxu0 %v1631
    %2151 = vmatmul.bf16.gmra.mxu0 %v537
    %v2152 = vpop.f32.mrf.mxu0
    %v2153 = vadd.f32 %v533, %v2152
    %v2154 = vpop.f32.mrf.mxu0
    %2155 = vdwg.mxu0
    %2156 = vmatpush.bf16.msra.mxu0 %v1646
    %2157 = vmatpush.bf16.msra.mxu0 %v1645
    %2158 = vmatpush.bf16.msra.mxu0 %v1644
    %2159 = vmatpush.bf16.msra.mxu0 %v1643
    %2160 = vmatpush.bf16.msra.mxu0 %v1642
    %2161 = vmatpush.bf16.msra.mxu0 %v1641
    %2162 = vmatpush.bf16.msra.mxu0 %v1640
    %2163 = vmatpush.bf16.msra.mxu0 %v1639
    %2164 = vmatmul.bf16.gmra.mxu0 %v538
    %v2165 = vpop.f32.mrf.mxu0
    %v2166 = vadd.f32 %v2153, %v2165
    %v2167 = vpop.f32.mrf.mxu0
    %2168 = vdwg.mxu0
    %2169 = vmatpush.bf16.msra.mxu0 %v1654
    %2170 = vmatpush.bf16.msra.mxu0 %v1653
    %2171 = vmatpush.bf16.msra.mxu0 %v1652
    %2172 = vmatpush.bf16.msra.mxu0 %v1651
    %2173 = vmatpush.bf16.msra.mxu0 %v1650
    %2174 = vmatpush.bf16.msra.mxu0 %v1649
    %2175 = vmatpush.bf16.msra.mxu0 %v1648
    %2176 = vmatpush.bf16.msra.mxu0 %v1647
    %2177 = vmatmul.bf16.gmra.mxu0 %v539
    %v2178 = vpop.f32.mrf.mxu0
    %v2179 = vadd.f32 %v2166, %v2178
    %v2180 = vpop.f32.mrf.mxu0
    %2181 = vdwg.mxu0
    %2182 = vmatpush.bf16.msra.mxu0 %v1662
    %2183 = vmatpush.bf16.msra.mxu0 %v1661
    %2184 = vmatpush.bf16.msra.mxu0 %v1660
    %2185 = vmatpush.bf16.msra.mxu0 %v1659
    %2186 = vmatpush.bf16.msra.mxu0 %v1658
    %2187 = vmatpush.bf16.msra.mxu0 %v1657
    %2188 = vmatpush.bf16.msra.mxu0 %v1656
    %2189 = vmatpush.bf16.msra.mxu0 %v1655
    %2190 = vmatmul.bf16.gmra.mxu0 %v540
    %v2191 = vpop.f32.mrf.mxu0
    %v2192 = vadd.f32 %v2179, %v2191
    %v2193 = vpop.f32.mrf.mxu0
    %2194 = vdwg.mxu0
    %2195 = vmatpush.bf16.msra.mxu0 %v1670
    %2196 = vmatpush.bf16.msra.mxu0 %v1669
    %2197 = vmatpush.bf16.msra.mxu0 %v1668
    %2198 = vmatpush.bf16.msra.mxu0 %v1667
    %2199 = vmatpush.bf16.msra.mxu0 %v1666
    %2200 = vmatpush.bf16.msra.mxu0 %v1665
    %2201 = vmatpush.bf16.msra.mxu0 %v1664
    %2202 = vmatpush.bf16.msra.mxu0 %v1663
    %2203 = vmatmul.bf16.gmra.mxu0 %v541
    %v2204 = vpop.f32.mrf.mxu0
    %v2205 = vadd.f32 %v2192, %v2204
    %v2206 = vpop.f32.mrf.mxu0
    %2207 = vdwg.mxu0
    %2208 = vmatpush.bf16.msra.mxu0 %v1678
    %2209 = vmatpush.bf16.msra.mxu0 %v1677
    %2210 = vmatpush.bf16.msra.mxu0 %v1676
    %2211 = vmatpush.bf16.msra.mxu0 %v1675
    %2212 = vmatpush.bf16.msra.mxu0 %v1674
    %2213 = vmatpush.bf16.msra.mxu0 %v1673
    %2214 = vmatpush.bf16.msra.mxu0 %v1672
    %2215 = vmatpush.bf16.msra.mxu0 %v1671
    %2216 = vmatmul.bf16.gmra.mxu0 %v542
    %v2217 = vpop.f32.mrf.mxu0
    %v2218 = vadd.f32 %v2205, %v2217
    %v2219 = vpop.f32.mrf.mxu0
    %2220 = vdwg.mxu0
    %2221 = vmatpush.bf16.msra.mxu0 %v1686
    %2222 = vmatpush.bf16.msra.mxu0 %v1685
    %2223 = vmatpush.bf16.msra.mxu0 %v1684
    %2224 = vmatpush.bf16.msra.mxu0 %v1683
    %2225 = vmatpush.bf16.msra.mxu0 %v1682
    %2226 = vmatpush.bf16.msra.mxu0 %v1681
    %2227 = vmatpush.bf16.msra.mxu0 %v1680
    %2228 = vmatpush.bf16.msra.mxu0 %v1679
    %2229 = vmatmul.bf16.gmra.mxu0 %v543
    %v2230 = vpop.f32.mrf.mxu0
    %v2231 = vadd.f32 %v2218, %v2230
    %v2232 = vpop.f32.mrf.mxu0
    %2233 = vdwg.mxu0
    %2234 = vmatpush.bf16.msra.mxu0 %v1694
    %2235 = vmatpush.bf16.msra.mxu0 %v1693
    %2236 = vmatpush.bf16.msra.mxu0 %v1692
    %2237 = vmatpush.bf16.msra.mxu0 %v1691
    %2238 = vmatpush.bf16.msra.mxu0 %v1690
    %2239 = vmatpush.bf16.msra.mxu0 %v1689
    %2240 = vmatpush.bf16.msra.mxu0 %v1688
    %2241 = vmatpush.bf16.msra.mxu0 %v1687
    %2242 = vmatmul.bf16.gmra.mxu0 %v544
    %v2243 = vpop.f32.mrf.mxu0
    %v2244 = vadd.f32 %v2231, %v2243
    %v2245 = vpop.f32.mrf.mxu0
    %2246 = vdwg.mxu0
    %2247 = vmatpush.bf16.msra.mxu0 %v1702
    %2248 = vmatpush.bf16.msra.mxu0 %v1701
    %2249 = vmatpush.bf16.msra.mxu0 %v1700
    %2250 = vmatpush.bf16.msra.mxu0 %v1699
    %2251 = vmatpush.bf16.msra.mxu0 %v1698
    %2252 = vmatpush.bf16.msra.mxu0 %v1697
    %2253 = vmatpush.bf16.msra.mxu0 %v1696
    %2254 = vmatpush.bf16.msra.mxu0 %v1695
    %2255 = vmatmul.bf16.gmra.mxu0 %v547
    %v2256 = vpop.f32.mrf.mxu0
    %v2257 = vadd.f32 %v2244, %v2256
    %v2258 = vpop.f32.mrf.mxu0
    %2259 = vdwg.mxu0
    %2260 = vmatpush.bf16.msra.mxu0 %v1710
    %2261 = vmatpush.bf16.msra.mxu0 %v1709
    %2262 = vmatpush.bf16.msra.mxu0 %v1708
    %2263 = vmatpush.bf16.msra.mxu0 %v1707
    %2264 = vmatpush.bf16.msra.mxu0 %v1706
    %2265 = vmatpush.bf16.msra.mxu0 %v1705
    %2266 = vmatpush.bf16.msra.mxu0 %v1704
    %2267 = vmatpush.bf16.msra.mxu0 %v1703
    %2268 = vmatmul.bf16.gmra.mxu0 %v548
    %v2269 = vpop.f32.mrf.mxu0
    %v2270 = vadd.f32 %v2257, %v2269
    %v2271 = vpop.f32.mrf.mxu0
    %2272 = vdwg.mxu0
    %2273 = vmatpush.bf16.msra.mxu0 %v1718
    %2274 = vmatpush.bf16.msra.mxu0 %v1717
    %2275 = vmatpush.bf16.msra.mxu0 %v1716
    %2276 = vmatpush.bf16.msra.mxu0 %v1715
    %2277 = vmatpush.bf16.msra.mxu0 %v1714
    %2278 = vmatpush.bf16.msra.mxu0 %v1713
    %2279 = vmatpush.bf16.msra.mxu0 %v1712
    %2280 = vmatpush.bf16.msra.mxu0 %v1711
    %2281 = vmatmul.bf16.gmra.mxu0 %v549
    %v2282 = vpop.f32.mrf.mxu0
    %v2283 = vadd.f32 %v2270, %v2282
    %v2284 = vpop.f32.mrf.mxu0
    %2285 = vdwg.mxu0
    %2286 = vmatpush.bf16.msra.mxu0 %v1726
    %2287 = vmatpush.bf16.msra.mxu0 %v1725
    %2288 = vmatpush.bf16.msra.mxu0 %v1724
    %2289 = vmatpush.bf16.msra.mxu0 %v1723
    %2290 = vmatpush.bf16.msra.mxu0 %v1722
    %2291 = vmatpush.bf16.msra.mxu0 %v1721
    %2292 = vmatpush.bf16.msra.mxu0 %v1720
    %2293 = vmatpush.bf16.msra.mxu0 %v1719
    %2294 = vmatmul.bf16.gmra.mxu0 %v550
    %v2295 = vpop.f32.mrf.mxu0
    %v2296 = vadd.f32 %v2283, %v2295
    %v2297 = vpop.f32.mrf.mxu0
    %2298 = vdwg.mxu0
    %2299 = vmatpush.bf16.msra.mxu0 %v1734
    %2300 = vmatpush.bf16.msra.mxu0 %v1733
    %2301 = vmatpush.bf16.msra.mxu0 %v1732
    %2302 = vmatpush.bf16.msra.mxu0 %v1731
    %2303 = vmatpush.bf16.msra.mxu0 %v1730
    %2304 = vmatpush.bf16.msra.mxu0 %v1729
    %2305 = vmatpush.bf16.msra.mxu0 %v1728
    %2306 = vmatpush.bf16.msra.mxu0 %v1727
    %2307 = vmatmul.bf16.gmra.mxu0 %v551
    %v2308 = vpop.f32.mrf.mxu0
    %v2309 = vadd.f32 %v2296, %v2308
    %v2310 = vpop.f32.mrf.mxu0
    %2311 = vdwg.mxu0
    %2312 = vmatpush.bf16.msra.mxu0 %v1742
    %2313 = vmatpush.bf16.msra.mxu0 %v1741
    %2314 = vmatpush.bf16.msra.mxu0 %v1740
    %2315 = vmatpush.bf16.msra.mxu0 %v1739
    %2316 = vmatpush.bf16.msra.mxu0 %v1738
    %2317 = vmatpush.bf16.msra.mxu0 %v1737
    %2318 = vmatpush.bf16.msra.mxu0 %v1736
    %2319 = vmatpush.bf16.msra.mxu0 %v1735
    %2320 = vmatmul.bf16.gmra.mxu0 %v552
    %v2321 = vpop.f32.mrf.mxu0
    %v2322 = vadd.f32 %v2309, %v2321
    %v2323 = vpop.f32.mrf.mxu0
    %2324 = vdwg.mxu0
    %2325 = vmatpush.bf16.msra.mxu0 %v1750
    %2326 = vmatpush.bf16.msra.mxu0 %v1749
    %2327 = vmatpush.bf16.msra.mxu0 %v1748
    %2328 = vmatpush.bf16.msra.mxu0 %v1747
    %2329 = vmatpush.bf16.msra.mxu0 %v1746
    %2330 = vmatpush.bf16.msra.mxu0 %v1745
    %2331 = vmatpush.bf16.msra.mxu0 %v1744
    %2332 = vmatpush.bf16.msra.mxu0 %v1743
    %2333 = vmatmul.bf16.gmra.mxu0 %v553
    %v2334 = vpop.f32.mrf.mxu0
    %v2335 = vadd.f32 %v2322, %v2334
    %v2336 = vpop.f32.mrf.mxu0
    %2337 = vdwg.mxu0
    %2338 = vmatpush.bf16.msra.mxu0 %v1758
    %2339 = vmatpush.bf16.msra.mxu0 %v1757
    %2340 = vmatpush.bf16.msra.mxu0 %v1756
    %2341 = vmatpush.bf16.msra.mxu0 %v1755
    %2342 = vmatpush.bf16.msra.mxu0 %v1754
    %2343 = vmatpush.bf16.msra.mxu0 %v1753
    %2344 = vmatpush.bf16.msra.mxu0 %v1752
    %2345 = vmatpush.bf16.msra.mxu0 %v1751
    %2346 = vmatmul.bf16.gmra.mxu0 %v554
    %v2347 = vpop.f32.mrf.mxu0
    %v2348 = vadd.f32 %v2335, %v2347
    %v2349 = vpop.f32.mrf.mxu0
    %2350 = vdwg.mxu0
    %2351 = vmatpush.bf16.msra.mxu0 %v1766
    %2352 = vmatpush.bf16.msra.mxu0 %v1765
    %2353 = vmatpush.bf16.msra.mxu0 %v1764
    %2354 = vmatpush.bf16.msra.mxu0 %v1763
    %2355 = vmatpush.bf16.msra.mxu0 %v1762
    %2356 = vmatpush.bf16.msra.mxu0 %v1761
    %2357 = vmatpush.bf16.msra.mxu0 %v1760
    %2358 = vmatpush.bf16.msra.mxu0 %v1759
    %2359 = vmatmul.bf16.gmra.mxu0 %v557
    %v2360 = vpop.f32.mrf.mxu0
    %v2361 = vadd.f32 %v2348, %v2360
    %v2362 = vpop.f32.mrf.mxu0
    %2363 = vdwg.mxu0
    %2364 = vmatpush.bf16.msra.mxu0 %v1774
    %2365 = vmatpush.bf16.msra.mxu0 %v1773
    %2366 = vmatpush.bf16.msra.mxu0 %v1772
    %2367 = vmatpush.bf16.msra.mxu0 %v1771
    %2368 = vmatpush.bf16.msra.mxu0 %v1770
    %2369 = vmatpush.bf16.msra.mxu0 %v1769
    %2370 = vmatpush.bf16.msra.mxu0 %v1768
    %2371 = vmatpush.bf16.msra.mxu0 %v1767
    %2372 = vmatmul.bf16.gmra.mxu0 %v558
    %v2373 = vpop.f32.mrf.mxu0
    %v2374 = vadd.f32 %v2361, %v2373
    %v2375 = vpop.f32.mrf.mxu0
    %2376 = vdwg.mxu0
    %2377 = vmatpush.bf16.msra.mxu0 %v1782
    %2378 = vmatpush.bf16.msra.mxu0 %v1781
    %2379 = vmatpush.bf16.msra.mxu0 %v1780
    %2380 = vmatpush.bf16.msra.mxu0 %v1779
    %2381 = vmatpush.bf16.msra.mxu0 %v1778
    %2382 = vmatpush.bf16.msra.mxu0 %v1777
    %2383 = vmatpush.bf16.msra.mxu0 %v1776
    %2384 = vmatpush.bf16.msra.mxu0 %v1775
    %2385 = vmatmul.bf16.gmra.mxu0 %v559
    %v2386 = vpop.f32.mrf.mxu0
    %v2387 = vadd.f32 %v2374, %v2386
    %v2388 = vpop.f32.mrf.mxu0
    %2389 = vdwg.mxu0
    %2390 = vmatpush.bf16.msra.mxu0 %v1790
    %2391 = vmatpush.bf16.msra.mxu0 %v1789
    %2392 = vmatpush.bf16.msra.mxu0 %v1788
    %2393 = vmatpush.bf16.msra.mxu0 %v1787
    %2394 = vmatpush.bf16.msra.mxu0 %v1786
    %2395 = vmatpush.bf16.msra.mxu0 %v1785
    %2396 = vmatpush.bf16.msra.mxu0 %v1784
    %2397 = vmatpush.bf16.msra.mxu0 %v1783
    %2398 = vmatmul.bf16.gmra.mxu0 %v560
    %v2399 = vpop.f32.mrf.mxu0
    %v2400 = vadd.f32 %v2387, %v2399
    %v2401 = vpop.f32.mrf.mxu0
    %2402 = vdwg.mxu0
    %2403 = vmatpush.bf16.msra.mxu0 %v1798
    %2404 = vmatpush.bf16.msra.mxu0 %v1797
    %2405 = vmatpush.bf16.msra.mxu0 %v1796
    %2406 = vmatpush.bf16.msra.mxu0 %v1795
    %2407 = vmatpush.bf16.msra.mxu0 %v1794
    %2408 = vmatpush.bf16.msra.mxu0 %v1793
    %2409 = vmatpush.bf16.msra.mxu0 %v1792
    %2410 = vmatpush.bf16.msra.mxu0 %v1791
    %2411 = vmatmul.bf16.gmra.mxu0 %v561
    %v2412 = vpop.f32.mrf.mxu0
    %v2413 = vadd.f32 %v2400, %v2412
    %v2414 = vpop.f32.mrf.mxu0
    %2415 = vdwg.mxu0
    %2416 = vmatpush.bf16.msra.mxu0 %v1806
    %2417 = vmatpush.bf16.msra.mxu0 %v1805
    %2418 = vmatpush.bf16.msra.mxu0 %v1804
    %2419 = vmatpush.bf16.msra.mxu0 %v1803
    %2420 = vmatpush.bf16.msra.mxu0 %v1802
    %2421 = vmatpush.bf16.msra.mxu0 %v1801
    %2422 = vmatpush.bf16.msra.mxu0 %v1800
    %2423 = vmatpush.bf16.msra.mxu0 %v1799
    %2424 = vmatmul.bf16.gmra.mxu0 %v562
    %v2425 = vpop.f32.mrf.mxu0
    %v2426 = vadd.f32 %v2413, %v2425
    %v2427 = vpop.f32.mrf.mxu0
    %2428 = vdwg.mxu0
    %2429 = vmatpush.bf16.msra.mxu0 %v1814
    %2430 = vmatpush.bf16.msra.mxu0 %v1813
    %2431 = vmatpush.bf16.msra.mxu0 %v1812
    %2432 = vmatpush.bf16.msra.mxu0 %v1811
    %2433 = vmatpush.bf16.msra.mxu0 %v1810
    %2434 = vmatpush.bf16.msra.mxu0 %v1809
    %2435 = vmatpush.bf16.msra.mxu0 %v1808
    %2436 = vmatpush.bf16.msra.mxu0 %v1807
    %2437 = vmatmul.bf16.gmra.mxu0 %v563
    %v2438 = vpop.f32.mrf.mxu0
    %v2439 = vadd.f32 %v2426, %v2438
    %v2440 = vpop.f32.mrf.mxu0
    %2441 = vdwg.mxu0
    %2442 = vmatpush.bf16.msra.mxu0 %v1822
    %2443 = vmatpush.bf16.msra.mxu0 %v1821
    %2444 = vmatpush.bf16.msra.mxu0 %v1820
    %2445 = vmatpush.bf16.msra.mxu0 %v1819
    %2446 = vmatpush.bf16.msra.mxu0 %v1818
    %2447 = vmatpush.bf16.msra.mxu0 %v1817
    %2448 = vmatpush.bf16.msra.mxu0 %v1816
    %2449 = vmatpush.bf16.msra.mxu0 %v1815
    %2450 = vmatmul.bf16.gmra.mxu0 %v564
    %v2451 = vpop.f32.mrf.mxu0
    %v2452 = vadd.f32 %v2439, %v2451
    %v2453 = vpop.f32.mrf.mxu0
    %2454 = vdwg.mxu0
    %2455 = vmatpush.bf16.msra.mxu0 %v1830
    %2456 = vmatpush.bf16.msra.mxu0 %v1829
    %2457 = vmatpush.bf16.msra.mxu0 %v1828
    %2458 = vmatpush.bf16.msra.mxu0 %v1827
    %2459 = vmatpush.bf16.msra.mxu0 %v1826
    %2460 = vmatpush.bf16.msra.mxu0 %v1825
    %2461 = vmatpush.bf16.msra.mxu0 %v1824
    %2462 = vmatpush.bf16.msra.mxu0 %v1823
    %2463 = vmatmul.bf16.gmra.mxu0 %v567
    %v2464 = vpop.f32.mrf.mxu0
    %v2465 = vadd.f32 %v2452, %v2464
    %v2466 = vpop.f32.mrf.mxu0
    %2467 = vdwg.mxu0
    %2468 = vmatpush.bf16.msra.mxu0 %v1838
    %2469 = vmatpush.bf16.msra.mxu0 %v1837
    %2470 = vmatpush.bf16.msra.mxu0 %v1836
    %2471 = vmatpush.bf16.msra.mxu0 %v1835
    %2472 = vmatpush.bf16.msra.mxu0 %v1834
    %2473 = vmatpush.bf16.msra.mxu0 %v1833
    %2474 = vmatpush.bf16.msra.mxu0 %v1832
    %2475 = vmatpush.bf16.msra.mxu0 %v1831
    %2476 = vmatmul.bf16.gmra.mxu0 %v568
    %v2477 = vpop.f32.mrf.mxu0
    %v2478 = vadd.f32 %v2465, %v2477
    %v2479 = vpop.f32.mrf.mxu0
    %2480 = vdwg.mxu0
    %2481 = vmatpush.bf16.msra.mxu0 %v1846
    %2482 = vmatpush.bf16.msra.mxu0 %v1845
    %2483 = vmatpush.bf16.msra.mxu0 %v1844
    %2484 = vmatpush.bf16.msra.mxu0 %v1843
    %2485 = vmatpush.bf16.msra.mxu0 %v1842
    %2486 = vmatpush.bf16.msra.mxu0 %v1841
    %2487 = vmatpush.bf16.msra.mxu0 %v1840
    %2488 = vmatpush.bf16.msra.mxu0 %v1839
    %2489 = vmatmul.bf16.gmra.mxu0 %v569
    %v2490 = vpop.f32.mrf.mxu0
    %v2491 = vadd.f32 %v2478, %v2490
    %v2492 = vpop.f32.mrf.mxu0
    %2493 = vdwg.mxu0
    %2494 = vmatpush.bf16.msra.mxu0 %v1854
    %2495 = vmatpush.bf16.msra.mxu0 %v1853
    %2496 = vmatpush.bf16.msra.mxu0 %v1852
    %2497 = vmatpush.bf16.msra.mxu0 %v1851
    %2498 = vmatpush.bf16.msra.mxu0 %v1850
    %2499 = vmatpush.bf16.msra.mxu0 %v1849
    %2500 = vmatpush.bf16.msra.mxu0 %v1848
    %2501 = vmatpush.bf16.msra.mxu0 %v1847
    %2502 = vmatmul.bf16.gmra.mxu0 %v570
    %v2503 = vpop.f32.mrf.mxu0
    %v2504 = vadd.f32 %v2491, %v2503
    %v2505 = vpop.f32.mrf.mxu0
    %2506 = vdwg.mxu0
    %2507 = vmatpush.bf16.msra.mxu0 %v1862
    %2508 = vmatpush.bf16.msra.mxu0 %v1861
    %2509 = vmatpush.bf16.msra.mxu0 %v1860
    %2510 = vmatpush.bf16.msra.mxu0 %v1859
    %2511 = vmatpush.bf16.msra.mxu0 %v1858
    %2512 = vmatpush.bf16.msra.mxu0 %v1857
    %2513 = vmatpush.bf16.msra.mxu0 %v1856
    %2514 = vmatpush.bf16.msra.mxu0 %v1855
    %2515 = vmatmul.bf16.gmra.mxu0 %v571
    %v2516 = vpop.f32.mrf.mxu0
    %v2517 = vadd.f32 %v2504, %v2516
    %v2518 = vpop.f32.mrf.mxu0
    %2519 = vdwg.mxu0
    %2520 = vmatpush.bf16.msra.mxu0 %v1870
    %2521 = vmatpush.bf16.msra.mxu0 %v1869
    %2522 = vmatpush.bf16.msra.mxu0 %v1868
    %2523 = vmatpush.bf16.msra.mxu0 %v1867
    %2524 = vmatpush.bf16.msra.mxu0 %v1866
    %2525 = vmatpush.bf16.msra.mxu0 %v1865
    %2526 = vmatpush.bf16.msra.mxu0 %v1864
    %2527 = vmatpush.bf16.msra.mxu0 %v1863
    %2528 = vmatmul.bf16.gmra.mxu0 %v572
    %v2529 = vpop.f32.mrf.mxu0
    %v2530 = vadd.f32 %v2517, %v2529
    %v2531 = vpop.f32.mrf.mxu0
    %2532 = vdwg.mxu0
    %2533 = vmatpush.bf16.msra.mxu0 %v1878
    %2534 = vmatpush.bf16.msra.mxu0 %v1877
    %2535 = vmatpush.bf16.msra.mxu0 %v1876
    %2536 = vmatpush.bf16.msra.mxu0 %v1875
    %2537 = vmatpush.bf16.msra.mxu0 %v1874
    %2538 = vmatpush.bf16.msra.mxu0 %v1873
    %2539 = vmatpush.bf16.msra.mxu0 %v1872
    %2540 = vmatpush.bf16.msra.mxu0 %v1871
    %2541 = vmatmul.bf16.gmra.mxu0 %v573
    %v2542 = vpop.f32.mrf.mxu0
    %v2543 = vadd.f32 %v2530, %v2542
    %v2544 = vpop.f32.mrf.mxu0
    %2545 = vdwg.mxu0
    %2546 = vmatpush.bf16.msra.mxu0 %v1886
    %2547 = vmatpush.bf16.msra.mxu0 %v1885
    %2548 = vmatpush.bf16.msra.mxu0 %v1884
    %2549 = vmatpush.bf16.msra.mxu0 %v1883
    %2550 = vmatpush.bf16.msra.mxu0 %v1882
    %2551 = vmatpush.bf16.msra.mxu0 %v1881
    %2552 = vmatpush.bf16.msra.mxu0 %v1880
    %2553 = vmatpush.bf16.msra.mxu0 %v1879
    %2554 = vmatmul.bf16.gmra.mxu0 %v574
    %v2555 = vpop.f32.mrf.mxu0
    %v2556 = vadd.f32 %v2543, %v2555
    %v2557 = vpop.f32.mrf.mxu0
    %2558 = vdwg.mxu0
    %v2559 = vtanh.pop %v2556
    %2560 = vst [vmem:[#allocation2] sm:$0x3] %v2559
    // Predicated region
    $region14: #{encoder_forward.7} parent=1 // pred_check
      _
    $region15: #{encoder_forward.7} parent=1 // pred_check_branch
      %2562 = sbr.rel (0) target = $region17
    $region16: #{encoder_forward.7} parent=1 // pred_region
      %2564 = vsyncadd [#allocation3], 0
      %s2566 = sshll.u32 [#allocation2], 4
      %s2567 = int_to_ptr.vmem [resolvable:$true] %s2566
      %s2568 = sshll.u32 %s3, 4
      %s2569 = int_to_ptr.hbm [resolvable:$true] %s2568
      %2571 = dma.vmem_to_hbm [thread:$0]  %s2567, 32, %s2569, [#allocation3]
    $region17: #{encoder_forward.7} parent=1 // pred_fallthru
      _
    // Predicated region
    $region18: #{encoder_forward.7} parent=1 // pred_check
      _
    $region19: #{encoder_forward.7} parent=1 // pred_check_branch
      %2573 = sbr.rel (0) target = $region21
    $region20: #{encoder_forward.7} parent=1 // pred_region
      %2575 = dma.done [#allocation3], 32
    $region21: #{encoder_forward.7} parent=1 // pred_fallthru
      _
    %2576 = vsyncpa [#allocation3], 1

</llo_original>
